<compile_context>
chip_gen: v7x
topology: tpu7x:2x2x1
jax: 0.10.0
libtpu: 0.0.40
codegen_flags: <defaults>
</compile_context>

<pallas_src>
import jax
import jax.numpy as jnp
from jax.experimental import pallas as pl
from jax.experimental.pallas import tpu as pltpu


IN_FEATURES = 224 * 224 * 3          # 150528, fixed by the module (fc1)
H1, H2, H3, H4, OUT = 256, 256, 128, 32, 1


def _stable_sigmoid(y):
    # Only ever exponentiates a non-positive number -> no overflow, no NaN.
    z = jnp.exp(-jnp.abs(y))
    return jnp.where(y >= 0.0, 1.0 / (1.0 + z), z / (1.0 + z))


# ---------------------------------------------------------------------------
# Single fused kernel: fc1 K-streamed reduction + (scale, bias, ReLU) epilogue
# + VMEM-resident fc2..fc5 head + sigmoid.
# ---------------------------------------------------------------------------
def mlp_kernel(x_ref, w1_ref, s1_ref, b1_ref,
               w2_ref, b2_ref, w3_ref, b3_ref,
               w4_ref, b4_ref, w5_ref, b5_ref,
               o_ref, acc_ref):
    k = pl.program_id(0)

    @pl.when(k == 0)
    def _():
        acc_ref[...] = jnp.zeros_like(acc_ref)

    # Dequant int8 -> bf16 on the VPU (hidden under the weight DMA), MXU matmul
    # with f32 accumulation into the resident scratch accumulator.
    w_blk = w1_ref[...].astype(jnp.bfloat16)
    acc_ref[...] += jnp.dot(x_ref[...], w_blk, preferred_element_type=jnp.float32)

    @pl.when(k == pl.num_programs(0) - 1)
    def _():
        # fc1 epilogue: per-output-channel dequant scale + bias + ReLU.
        h = jnp.maximum(acc_ref[...] * s1_ref[...] + b1_ref[...], 0.0)
        # fc2..fc5 head (weights VMEM-resident) + fused sigmoid.
        h = jnp.maximum(
            jnp.dot(h, w2_ref[...], preferred_element_type=jnp.float32) + b2_ref[...], 0.0)
        h = jnp.maximum(
            jnp.dot(h, w3_ref[...], preferred_element_type=jnp.float32) + b3_ref[...], 0.0)
        h = jnp.dot(h, w4_ref[...], preferred_element_type=jnp.float32) + b4_ref[...]
        y = jnp.dot(h, w5_ref[...], preferred_element_type=jnp.float32) + b5_ref[...]
        o_ref[...] = _stable_sigmoid(y)


def mlp_pallas(x2d, params, *, tk=18816):
    """x2d: (M, K) bf16; params from init_params.  Returns (M, 1) f32 in (0,1)."""
    (w1q, s1, b1), (w2, b2), (w3, b3), (w4, b4), (w5, b5) = params
    M, K = x2d.shape
    N1 = w1q.shape[1]
    assert K % tk == 0, (K, tk)
    nk = K // tk

    flops = 2 * M * (K * N1 + H1 * H2 + H2 * H3 + H3 * H4 + H4 * OUT)
    bytes_accessed = (w1q.size                               # int8 weight stream (dominant)
                      + x2d.size * 2                         # bf16 activations (re-fetched, tiny)
                      + 4 * (s1.size + b1.size + w2.size + b2.size + w3.size + b3.size
                             + w4.size + b4.size + w5.size + b5.size)
                      + 4 * M * OUT)

    return pl.pallas_call(
        mlp_kernel,
        out_shape=jax.ShapeDtypeStruct((M, OUT), jnp.float32),
        grid_spec=pltpu.PrefetchScalarGridSpec(
            num_scalar_prefetch=0,
            grid=(nk,),                                       # K reduction only
            in_specs=[
                pl.BlockSpec((M, tk), lambda k: (0, k)),      # activations
                pl.BlockSpec((tk, N1), lambda k: (k, 0)),     # contiguous int8 W1 stream
                pl.BlockSpec((1, N1), lambda k: (0, 0)),      # per-channel scale (resident)
                pl.BlockSpec((1, N1), lambda k: (0, 0)),      # b1 (resident)
                pl.BlockSpec(w2.shape, lambda k: (0, 0)),     # fc2..fc5: VMEM-resident
                pl.BlockSpec(b2.shape, lambda k: (0, 0)),
                pl.BlockSpec(w3.shape, lambda k: (0, 0)),
                pl.BlockSpec(b3.shape, lambda k: (0, 0)),
                pl.BlockSpec(w4.shape, lambda k: (0, 0)),
                pl.BlockSpec(b4.shape, lambda k: (0, 0)),
                pl.BlockSpec(w5.shape, lambda k: (0, 0)),
                pl.BlockSpec(b5.shape, lambda k: (0, 0)),
            ],
            out_specs=pl.BlockSpec((M, OUT), lambda k: (0, 0)),
            scratch_shapes=[pltpu.VMEM((M, N1), jnp.float32)],  # fc1 accumulator
        ),
        compiler_params=pltpu.CompilerParams(
            dimension_semantics=("arbitrary",),
        ),
        cost_estimate=pl.CostEstimate(
            flops=flops, transcendentals=M, bytes_accessed=bytes_accessed),
    )(x2d, w1q, s1, b1, w2, b2, w3, b3, w4, b4, w5, b5)


# ---------------------------------------------------------------------------
# Params / forward
# ---------------------------------------------------------------------------
def init_params(key):
    """nn.Linear-style init (uniform +-1/sqrt(fan_in)); weights kept (in, out).

    fc1's weight is quantized to per-output-channel int8 (+ f32 scale): the
    kernel is bound by streaming W1 from HBM, so halving the bytes vs bf16 is
    ~2x on fc1.
    """
    dims = [(IN_FEATURES, H1), (H1, H2), (H2, H3), (H3, H4), (H4, OUT)]
    params = []
    for li, (fan_in, fan_out) in enumerate(dims):
        key, kw, kb = jax.random.split(key, 3)
        bound = 1.0 / float(fan_in) ** 0.5
        w = jax.random.uniform(kw, (fan_in, fan_out), jnp.float32, -bound, bound)
        b = jax.random.uniform(kb, (1, fan_out), jnp.float32, -bound, bound)
        if li == 0:
            amax = jnp.maximum(jnp.max(jnp.abs(w), axis=0, keepdims=True), 1e-12)
            scale = amax / 127.0                              # (1, 256) f32
            wq = jnp.clip(jnp.round(w / scale), -127.0, 127.0).astype(jnp.int8)
            params.append((wq, scale, b))
        else:
            params.append((w, b))
    return params


@jax.jit
def mlp_forward(x, params):
    B = x.shape[0]
    h = x.reshape(B, -1).astype(jnp.bfloat16)                 # == x.view(x.size(0), -1)
    return mlp_pallas(h, params)


if __name__ == "__main__":
    key = jax.random.PRNGKey(0)
    kx, kp = jax.random.split(key)
    # Spatial/channel dims are fixed by the module (fc1 expects 224*224*3 inputs).
    x = jax.random.normal(kx, (2, 3, 224, 224), dtype=jnp.float32)
    params = init_params(kp)

    out = jax.block_until_ready(mlp_forward(x, params))
    assert out.shape == (2, 1), out.shape
    assert bool(jnp.all(jnp.isfinite(out)))
    assert bool(jnp.all((out > 0.0) & (out < 1.0)))

    # Plain-JAX reference using the SAME quantized fc1 weights / bf16 inputs.
    def ref_forward(x, params):
        (w1q, s1, b1), (w2, b2), (w3, b3), (w4, b4), (w5, b5) = params
        h = x.reshape(x.shape[0], -1).astype(jnp.bfloat16).astype(jnp.float32)
        h = jnp.maximum(h @ (w1q.astype(jnp.float32) * s1) + b1, 0.0)
        h = jnp.maximum(h @ w2 + b2, 0.0)
        h = jnp.maximum(h @ w3 + b3, 0.0)
        h = h @ w4 + b4
        y = h @ w5 + b5
        return 1.0 / (1.0 + jnp.exp(-y))

    ref = jax.block_until_ready(ref_forward(x, params))
    assert bool(jnp.all(jnp.abs(out - ref) < 1e-2)), (out, ref)
    print("KERNEL_OK")
</pallas_src>

<mosaic_0001>
module attributes {stable_mosaic.version = 11 : i64} {
  func.func @mlp_kernel(%arg0: i32, %arg1: memref<2x18816xbf16, #tpu.memory_space<vmem>>, %arg2: memref<18816x256xi8, #tpu.memory_space<vmem>>, %arg3: memref<1x256xf32, #tpu.memory_space<vmem>>, %arg4: memref<1x256xf32, #tpu.memory_space<vmem>>, %arg5: memref<256x256xf32, #tpu.memory_space<vmem>>, %arg6: memref<1x256xf32, #tpu.memory_space<vmem>>, %arg7: memref<256x128xf32, #tpu.memory_space<vmem>>, %arg8: memref<1x128xf32, #tpu.memory_space<vmem>>, %arg9: memref<128x32xf32, #tpu.memory_space<vmem>>, %arg10: memref<1x32xf32, #tpu.memory_space<vmem>>, %arg11: memref<32x1xf32, #tpu.memory_space<vmem>>, %arg12: memref<1x1xf32, #tpu.memory_space<vmem>>, %arg13: memref<2x1xf32, #tpu.memory_space<vmem>>, %arg14: memref<2x256xf32, #tpu.memory_space<vmem>>) attributes {dimension_semantics = [#tpu.dimension_semantics<arbitrary>], iteration_bounds = array<i64: 8>, scalar_prefetch = 0 : i64, scratch_operands = 1 : i64, tpu.core_type = #tpu.core_type<tc>, window_params = [{transform_indices = @transform_0, window_bounds = array<i64: 2, 18816>}, {transform_indices = @transform_1, window_bounds = array<i64: 18816, 256>}, {pipeline_mode = #tpu.pipeline_mode<synchronous>, transform_indices = @transform_2, window_bounds = array<i64: 1, 256>}, {pipeline_mode = #tpu.pipeline_mode<synchronous>, transform_indices = @transform_3, window_bounds = array<i64: 1, 256>}, {pipeline_mode = #tpu.pipeline_mode<synchronous>, transform_indices = @transform_4, window_bounds = array<i64: 256, 256>}, {pipeline_mode = #tpu.pipeline_mode<synchronous>, transform_indices = @transform_5, window_bounds = array<i64: 1, 256>}, {pipeline_mode = #tpu.pipeline_mode<synchronous>, transform_indices = @transform_6, window_bounds = array<i64: 256, 128>}, {pipeline_mode = #tpu.pipeline_mode<synchronous>, transform_indices = @transform_7, window_bounds = array<i64: 1, 128>}, {pipeline_mode = #tpu.pipeline_mode<synchronous>, transform_indices = @transform_8, window_bounds = array<i64: 128, 32>}, {pipeline_mode = #tpu.pipeline_mode<synchronous>, transform_indices = @transform_9, window_bounds = array<i64: 1, 32>}, {pipeline_mode = #tpu.pipeline_mode<synchronous>, transform_indices = @transform_10, window_bounds = array<i64: 32, 1>}, {pipeline_mode = #tpu.pipeline_mode<synchronous>, transform_indices = @transform_11, window_bounds = array<i64: 1, 1>}, {pipeline_mode = #tpu.pipeline_mode<synchronous>, transform_indices = @transform_12, window_bounds = array<i64: 2, 1>}]} {
    %c0_i32 = arith.constant 0 : i32
    %0 = arith.cmpi eq, %arg0, %c0_i32 : i32
    %1 = arith.extui %0 : i1 to i32
    %c0_i32_0 = arith.constant 0 : i32
    %2 = arith.cmpi ne, %1, %c0_i32_0 : i32
    scf.if %2 {
      %cst_9 = arith.constant 0.000000e+00 : f32
      %13 = vector.broadcast %cst_9 : f32 to vector<2x256xf32>
      %c0_10 = arith.constant 0 : index
      %c0_11 = arith.constant 0 : index
      %14 = vector.load %arg14[%c0_10, %c0_11] : memref<2x256xf32, #tpu.memory_space<vmem>>, vector<2x256xf32>
      tpu.vector_store %arg14[%c0_10, %c0_11], %13 {strides = array<i32>} : memref<2x256xf32, #tpu.memory_space<vmem>>, vector<2x256xf32>,
    } else {
    }
    %c0 = arith.constant 0 : index
    %c0_1 = arith.constant 0 : index
    %3 = vector.load %arg2[%c0, %c0_1] : memref<18816x256xi8, #tpu.memory_space<vmem>>, vector<18816x256xi8>
    %4 = arith.sitofp %3 : vector<18816x256xi8> to vector<18816x256xbf16>
    %c0_2 = arith.constant 0 : index
    %c0_3 = arith.constant 0 : index
    %5 = vector.load %arg14[%c0_2, %c0_3] : memref<2x256xf32, #tpu.memory_space<vmem>>, vector<2x256xf32>
    %c0_4 = arith.constant 0 : index
    %c0_5 = arith.constant 0 : index
    %6 = vector.load %arg1[%c0_4, %c0_5] : memref<2x18816xbf16, #tpu.memory_space<vmem>>, vector<2x18816xbf16>
    %cst = arith.constant dense<0.000000e+00> : vector<2x256xf32>
    %7 = tpu.matmul %6, %4, %cst {dimension_numbers = #tpu.dot_dimension_numbers<[1], [0], [0], [1], [0, 0, 1, 1], [], []>} : vector<2x18816xbf16>, vector<18816x256xbf16>, vector<2x256xf32> -> vector<2x256xf32>
    %8 = arith.addf %5, %7 : vector<2x256xf32>
    %c0_6 = arith.constant 0 : index
    %c0_7 = arith.constant 0 : index
    %9 = vector.load %arg14[%c0_6, %c0_7] : memref<2x256xf32, #tpu.memory_space<vmem>>, vector<2x256xf32>
    tpu.vector_store %arg14[%c0_6, %c0_7], %8 {strides = array<i32>} : memref<2x256xf32, #tpu.memory_space<vmem>>, vector<2x256xf32>,
    %c7_i32 = arith.constant 7 : i32
    %10 = arith.cmpi eq, %arg0, %c7_i32 : i32
    %11 = arith.extui %10 : i1 to i32
    %c0_i32_8 = arith.constant 0 : i32
    %12 = arith.cmpi ne, %11, %c0_i32_8 : i32
    scf.if %12 {
      %c0_9 = arith.constant 0 : index
      %c0_10 = arith.constant 0 : index
      %13 = vector.load %arg14[%c0_9, %c0_10] : memref<2x256xf32, #tpu.memory_space<vmem>>, vector<2x256xf32>
      %c0_11 = arith.constant 0 : index
      %c0_12 = arith.constant 0 : index
      %14 = vector.load %arg3[%c0_11, %c0_12] : memref<1x256xf32, #tpu.memory_space<vmem>>, vector<1x256xf32>
      %15 = vector.broadcast %14 : vector<1x256xf32> to vector<2x256xf32>
      %16 = arith.mulf %13, %15 : vector<2x256xf32>
      %c0_13 = arith.constant 0 : index
      %c0_14 = arith.constant 0 : index
      %17 = vector.load %arg4[%c0_13, %c0_14] : memref<1x256xf32, #tpu.memory_space<vmem>>, vector<1x256xf32>
      %18 = vector.broadcast %17 : vector<1x256xf32> to vector<2x256xf32>
      %19 = arith.addf %16, %18 : vector<2x256xf32>
      %cst_15 = arith.constant 0.000000e+00 : f32
      %20 = vector.broadcast %cst_15 : f32 to vector<2x256xf32>
      %21 = arith.maximumf %19, %20 : vector<2x256xf32>
      %c0_16 = arith.constant 0 : index
      %c0_17 = arith.constant 0 : index
      %22 = vector.load %arg5[%c0_16, %c0_17] : memref<256x256xf32, #tpu.memory_space<vmem>>, vector<256x256xf32>
      %cst_18 = arith.constant dense<0.000000e+00> : vector<2x256xf32>
      %23 = tpu.matmul %21, %22, %cst_18 {dimension_numbers = #tpu.dot_dimension_numbers<[1], [0], [0], [1], [0, 0, 1, 1], [], []>} : vector<2x256xf32>, vector<256x256xf32>, vector<2x256xf32> -> vector<2x256xf32>
      %c0_19 = arith.constant 0 : index
      %c0_20 = arith.constant 0 : index
      %24 = vector.load %arg6[%c0_19, %c0_20] : memref<1x256xf32, #tpu.memory_space<vmem>>, vector<1x256xf32>
      %25 = vector.broadcast %24 : vector<1x256xf32> to vector<2x256xf32>
      %26 = arith.addf %23, %25 : vector<2x256xf32>
      %cst_21 = arith.constant 0.000000e+00 : f32
      %27 = vector.broadcast %cst_21 : f32 to vector<2x256xf32>
      %28 = arith.maximumf %26, %27 : vector<2x256xf32>
      %c0_22 = arith.constant 0 : index
      %c0_23 = arith.constant 0 : index
      %29 = vector.load %arg7[%c0_22, %c0_23] : memref<256x128xf32, #tpu.memory_space<vmem>>, vector<256x128xf32>
      %cst_24 = arith.constant dense<0.000000e+00> : vector<2x128xf32>
      %30 = tpu.matmul %28, %29, %cst_24 {dimension_numbers = #tpu.dot_dimension_numbers<[1], [0], [0], [1], [0, 0, 1, 1], [], []>} : vector<2x256xf32>, vector<256x128xf32>, vector<2x128xf32> -> vector<2x128xf32>
      %c0_25 = arith.constant 0 : index
      %c0_26 = arith.constant 0 : index
      %31 = vector.load %arg8[%c0_25, %c0_26] : memref<1x128xf32, #tpu.memory_space<vmem>>, vector<1x128xf32>
      %32 = vector.broadcast %31 : vector<1x128xf32> to vector<2x128xf32>
      %33 = arith.addf %30, %32 : vector<2x128xf32>
      %cst_27 = arith.constant 0.000000e+00 : f32
      %34 = vector.broadcast %cst_27 : f32 to vector<2x128xf32>
      %35 = arith.maximumf %33, %34 : vector<2x128xf32>
      %c0_28 = arith.constant 0 : index
      %c0_29 = arith.constant 0 : index
      %36 = vector.load %arg9[%c0_28, %c0_29] : memref<128x32xf32, #tpu.memory_space<vmem>>, vector<128x32xf32>
      %cst_30 = arith.constant dense<0.000000e+00> : vector<2x32xf32>
      %37 = tpu.matmul %35, %36, %cst_30 {dimension_numbers = #tpu.dot_dimension_numbers<[1], [0], [0], [1], [0, 0, 1, 1], [], []>} : vector<2x128xf32>, vector<128x32xf32>, vector<2x32xf32> -> vector<2x32xf32>
      %c0_31 = arith.constant 0 : index
      %c0_32 = arith.constant 0 : index
      %38 = vector.load %arg10[%c0_31, %c0_32] : memref<1x32xf32, #tpu.memory_space<vmem>>, vector<1x32xf32>
      %39 = vector.broadcast %38 : vector<1x32xf32> to vector<2x32xf32>
      %40 = arith.addf %37, %39 : vector<2x32xf32>
      %c0_33 = arith.constant 0 : index
      %c0_34 = arith.constant 0 : index
      %41 = vector.load %arg11[%c0_33, %c0_34] : memref<32x1xf32, #tpu.memory_space<vmem>>, vector<32x1xf32>
      %cst_35 = arith.constant dense<0.000000e+00> : vector<2x1xf32>
      %42 = tpu.matmul %40, %41, %cst_35 {dimension_numbers = #tpu.dot_dimension_numbers<[1], [0], [0], [1], [0, 0, 1, 1], [], []>} : vector<2x32xf32>, vector<32x1xf32>, vector<2x1xf32> -> vector<2x1xf32>
      %c0_36 = arith.constant 0 : index
      %c0_37 = arith.constant 0 : index
      %43 = vector.load %arg12[%c0_36, %c0_37] : memref<1x1xf32, #tpu.memory_space<vmem>>, vector<1x1xf32>
      %44 = vector.broadcast %43 : vector<1x1xf32> to vector<2x1xf32>
      %45 = arith.addf %42, %44 : vector<2x1xf32>
      %46 = math.absf %45 : vector<2x1xf32>
      %cst_38 = arith.constant 0.000000e+00 : f32
      %47 = vector.broadcast %cst_38 : f32 to vector<2x1xf32>
      %48 = arith.subf %47, %46 : vector<2x1xf32>
      %49 = math.exp %48 : vector<2x1xf32>
      %cst_39 = arith.constant 0.000000e+00 : f32
      %50 = vector.broadcast %cst_39 : f32 to vector<2x1xf32>
      %51 = arith.cmpf oge, %45, %50 : vector<2x1xf32>
      %cst_40 = arith.constant 1.000000e+00 : f32
      %52 = vector.broadcast %cst_40 : f32 to vector<2x1xf32>
      %53 = arith.addf %52, %49 : vector<2x1xf32>
      %cst_41 = arith.constant 1.000000e+00 : f32
      %54 = vector.broadcast %cst_41 : f32 to vector<2x1xf32>
      %55 = arith.divf %54, %53 : vector<2x1xf32>
      %cst_42 = arith.constant 1.000000e+00 : f32
      %56 = vector.broadcast %cst_42 : f32 to vector<2x1xf32>
      %57 = arith.addf %56, %49 : vector<2x1xf32>
      %58 = arith.divf %49, %57 : vector<2x1xf32>
      %59 = arith.select %51, %55, %58 : vector<2x1xi1>, vector<2x1xf32>
      %c0_43 = arith.constant 0 : index
      %c0_44 = arith.constant 0 : index
      %60 = vector.load %arg13[%c0_43, %c0_44] : memref<2x1xf32, #tpu.memory_space<vmem>>, vector<2x1xf32>
      tpu.vector_store %arg13[%c0_43, %c0_44], %59 {strides = array<i32>} : memref<2x1xf32, #tpu.memory_space<vmem>>, vector<2x1xf32>,
    } else {
    }
    return
  }
  func.func @transform_0(%arg0: i32) -> (i32, i32) {
    %c0_i32 = arith.constant 0 : i32
    %c0_i32_0 = arith.constant 0 : i32
    return %c0_i32, %arg0 : i32, i32
  }
  func.func @transform_1(%arg0: i32) -> (i32, i32) {
    %c0_i32 = arith.constant 0 : i32
    %c0_i32_0 = arith.constant 0 : i32
    return %arg0, %c0_i32 : i32, i32
  }
  func.func @transform_2(%arg0: i32) -> (i32, i32) {
    %c0_i32 = arith.constant 0 : i32
    %c0_i32_0 = arith.constant 0 : i32
    %c0_i32_1 = arith.constant 0 : i32
    return %c0_i32, %c0_i32_0 : i32, i32
  }
  func.func @transform_3(%arg0: i32) -> (i32, i32) {
    %c0_i32 = arith.constant 0 : i32
    %c0_i32_0 = arith.constant 0 : i32
    %c0_i32_1 = arith.constant 0 : i32
    return %c0_i32, %c0_i32_0 : i32, i32
  }
  func.func @transform_4(%arg0: i32) -> (i32, i32) {
    %c0_i32 = arith.constant 0 : i32
    %c0_i32_0 = arith.constant 0 : i32
    %c0_i32_1 = arith.constant 0 : i32
    return %c0_i32, %c0_i32_0 : i32, i32
  }
  func.func @transform_5(%arg0: i32) -> (i32, i32) {
    %c0_i32 = arith.constant 0 : i32
    %c0_i32_0 = arith.constant 0 : i32
    %c0_i32_1 = arith.constant 0 : i32
    return %c0_i32, %c0_i32_0 : i32, i32
  }
  func.func @transform_6(%arg0: i32) -> (i32, i32) {
    %c0_i32 = arith.constant 0 : i32
    %c0_i32_0 = arith.constant 0 : i32
    %c0_i32_1 = arith.constant 0 : i32
    return %c0_i32, %c0_i32_0 : i32, i32
  }
  func.func @transform_7(%arg0: i32) -> (i32, i32) {
    %c0_i32 = arith.constant 0 : i32
    %c0_i32_0 = arith.constant 0 : i32
    %c0_i32_1 = arith.constant 0 : i32
    return %c0_i32, %c0_i32_0 : i32, i32
  }
  func.func @transform_8(%arg0: i32) -> (i32, i32) {
    %c0_i32 = arith.constant 0 : i32
    %c0_i32_0 = arith.constant 0 : i32
    %c0_i32_1 = arith.constant 0 : i32
    return %c0_i32, %c0_i32_0 : i32, i32
  }
  func.func @transform_9(%arg0: i32) -> (i32, i32) {
    %c0_i32 = arith.constant 0 : i32
    %c0_i32_0 = arith.constant 0 : i32
    %c0_i32_1 = arith.constant 0 : i32
    return %c0_i32, %c0_i32_0 : i32, i32
  }
  func.func @transform_10(%arg0: i32) -> (i32, i32) {
    %c0_i32 = arith.constant 0 : i32
    %c0_i32_0 = arith.constant 0 : i32
    %c0_i32_1 = arith.constant 0 : i32
    return %c0_i32, %c0_i32_0 : i32, i32
  }
  func.func @transform_11(%arg0: i32) -> (i32, i32) {
    %c0_i32 = arith.constant 0 : i32
    %c0_i32_0 = arith.constant 0 : i32
    %c0_i32_1 = arith.constant 0 : i32
    return %c0_i32, %c0_i32_0 : i32, i32
  }
  func.func @transform_12(%arg0: i32) -> (i32, i32) {
    %c0_i32 = arith.constant 0 : i32
    %c0_i32_0 = arith.constant 0 : i32
    %c0_i32_1 = arith.constant 0 : i32
    return %c0_i32, %c0_i32_0 : i32, i32
  }
}

</mosaic_0001>

<llo_original>
// kernel: mlp_forward.1
$region0: #{mlp_forward.1}
  #allocation0 [shape = 'u32[]', space=smem, size = 0x4, offset = 0x4, fixed_abs, tag = 'smem constant byte address 0x4 - core index']
  #allocation1 [shape = 'u32[144,128]{1,0:T(1,128)}', space=vmem, size = 0x12000, scoped, tag = 'internal scratch']
  #allocation2 [shape = 'f32[2,256]{1,0:T(2,128)}', space=vmem, size = 0x800, scoped, tag = 'scratch operand']
  #allocation3 [shape = 'f32[1,1]{1,0:T(1,128)S(1)}', space=vmem, size = 0x200, scoped, tag = 'scoped memory for mlp_forward.1']
  %s0 = inlined_call_operand.vmem [shape: bf16[2,150528], index: 0, kind: input, shape index: {}]
  %s1 = inlined_call_operand.hbm [shape: s8[150528,256], index: 1, kind: input, shape index: {}]
  %s2 = inlined_call_operand.hbm [shape: f32[1,256], index: 2, kind: input, shape index: {}]
  %s3 = inlined_call_operand.hbm [shape: f32[1,256], index: 3, kind: input, shape index: {}]
  %s4 = inlined_call_operand.hbm [shape: f32[256,256], index: 4, kind: input, shape index: {}]
  %s5 = inlined_call_operand.hbm [shape: f32[1,256], index: 5, kind: input, shape index: {}]
  %s6 = inlined_call_operand.hbm [shape: f32[256,128], index: 6, kind: input, shape index: {}]
  %s7 = inlined_call_operand.hbm [shape: f32[1,128], index: 7, kind: input, shape index: {}]
  %s8 = inlined_call_operand.vmem [shape: f32[128,32], index: 8, kind: input, shape index: {}]
  %s9 = inlined_call_operand.hbm [shape: f32[1,32], index: 9, kind: input, shape index: {}]
  %s10 = inlined_call_operand.vmem [shape: f32[32,1], index: 10, kind: input, shape index: {}]
  %s11 = inlined_call_operand.<no memory space> [shape: f32[1,1], index: 11, kind: input, shape index: {}]
  %s12 = inlined_call_operand.vmem [shape: f32[2,1], index: 12, kind: output, shape index: {}]
  %s13 = sld [smem:[#allocation0]]
  $region121: #{mlp_forward.1} parent=0
    _
  %s15 = ssub.s32 1, %s13
  %s16 = scalar_select 0, %s15, %s13
  %v17 = vstv %s11
  %18 = vst [vmem:[#allocation3] sm:$0x1] %v17
  $region1: #{mlp_forward.1} parent=0
    #allocation4 [shape = 'u8[9633792]{0}', space=vmem, size = 0x930000, scoped, tag = 'input window, operand 1']
    #allocation5 [shape = 's32[2]{0}', space=sflag, size = 0x8, scoped, tag = 'scoped memory for mlp_forward.1']
    #allocation6 [shape = 'u8[1024]{0}', space=vmem, size = 0x400, scoped, tag = 'input window, operand 2, single buffered']
    #allocation7 [shape = 's32[1]{0}', space=sflag, size = 0x4, scoped, tag = 'scoped memory for mlp_forward.1']
    #allocation8 [shape = 'u8[1024]{0}', space=vmem, size = 0x400, scoped, tag = 'input window, operand 3, single buffered']
    #allocation9 [shape = 'u8[262144]{0}', space=vmem, size = 0x40000, scoped, tag = 'input window, operand 4, single buffered']
    #allocation10 [shape = 's32[1]{0}', space=sflag, size = 0x4, scoped, tag = 'scoped memory for mlp_forward.1']
    #allocation11 [shape = 'u8[1024]{0}', space=vmem, size = 0x400, scoped, tag = 'input window, operand 5, single buffered']
    #allocation12 [shape = 'u8[131072]{0}', space=vmem, size = 0x20000, scoped, tag = 'input window, operand 6, single buffered']
    #allocation13 [shape = 's32[1]{0}', space=sflag, size = 0x4, scoped, tag = 'scoped memory for mlp_forward.1']
    #allocation14 [shape = 'u8[512]{0}', space=vmem, size = 0x400, scoped, tag = 'input window, operand 7, single buffered']
    #allocation15 [shape = 'u8[512]{0}', space=vmem, size = 0x400, scoped, tag = 'input window, operand 9, single buffered']
    #allocation16 [shape = 's32[1]{0}', space=sflag, size = 0x4, scoped, tag = 'scoped memory for mlp_forward.1']
    %19 = vsyncpa [#allocation5], 0
    %s20 = scalar_lea.sflag [#allocation5], 1
    %21 = vsyncpa %s20, 0
    %22 = vsyncpa [#allocation7], 0
    %23 = vsyncpa [#allocation10], 0
    %24 = vsyncpa [#allocation13], 0
    %25 = vsyncpa [#allocation16], 0
    loop: start=0, step=1, limit=10
    $region2: #{mlp_forward.1} parent=1 // loop_pre_header
      _
    $region3: #{mlp_forward.1} parent=1 // loop_header
      %s27 = sphi 0, %s31
      %p28 = scmp.ge.s32.totalorder %s27, 10
      %s37 = sphi 0, %s39
      %s40 = sphi 0, %s37
      %s41 = sphi 0, %s40
      %s57 = sphi 0, %s41
      %s63 = sphi 0, %s65
      %s66 = sphi 0, %s63
      %s67 = sphi 0, %s66
      %s83 = sphi 0, %s67
      %s87 = sphi 0, %s87
      %s89 = sphi 0, %s87
      %s90 = sphi 0, %s89
      %s104 = sphi 0, %s90
      %s108 = sphi 0, %s108
      %s110 = sphi 0, %s108
      %s111 = sphi 0, %s110
      %s125 = sphi 0, %s111
      %s129 = sphi 0, %s129
      %s131 = sphi 0, %s129
      %s132 = sphi 0, %s131
      %s146 = sphi 0, %s132
      %s150 = sphi 0, %s150
      %s152 = sphi 0, %s150
      %s153 = sphi 0, %s152
      %s167 = sphi 0, %s153
      %s171 = sphi 0, %s171
      %s173 = sphi 0, %s171
      %s174 = sphi 0, %s173
      %s188 = sphi 0, %s174
      %s192 = sphi 0, %s192
      %s194 = sphi 0, %s192
      %s195 = sphi 0, %s194
      %s209 = sphi 0, %s195
      %s213 = sphi 0, %s213
      %s215 = sphi 0, %s213
      %s216 = sphi 0, %s215
      %s230 = sphi 0, %s216
      %s234 = sphi 0, %s234
      %s236 = sphi 0, %s234
      %s237 = sphi 0, %s236
      %s251 = sphi 0, %s237
      %s255 = sphi 0, %s255
      %s257 = sphi 0, %s255
      %s258 = sphi 0, %s257
      %s272 = sphi 0, %s258
      %s276 = sphi 0, %s276
      %s278 = sphi 0, %s276
      %s279 = sphi 0, %s278
      %s293 = sphi 0, %s279
      %s297 = sphi 0, %s297
      %s299 = sphi 0, %s297
      %s300 = sphi 0, %s299
      %s314 = sphi 0, %s300
    $region4: #{mlp_forward.1} parent=1 // loop_header_branch
      %30 = sbr.rel (%p28) target = $region8
    $region5: #{mlp_forward.1} parent=1 // loop_body
      %s32 = ssub.s32 %s27, 1
      %s33 = ssub.s32 %s27, 2
      %s34 = sadd.s32 %s27, 1
      %s35 = ssub.s32 %s27, %s34
      %p36 = scmp.eq.s32.totalorder %s35, 0
      %s38 = sadd.s32 %s37, 1
      %s39 = scalar_select %p36, %s37, %s38
      %p42 = pneg %p36
      %p43 = scmp.eq.s32.totalorder %s27, 7
      %p44 = por %p42, %p43
      %p45 = scmp.ne.s32.totalorder %s37, %s40
      %p46 = scmp.eq.s32.totalorder %s27, 0
      %p47 = por %p45, %p46
      %p48 = scmp.ne.s32.totalorder %s37, %s40
      %p49 = scmp.eq.s32.totalorder %s32, 7
      %p50 = por %p48, %p49
      %p51 = scmp.ne.s32.totalorder %s40, %s41
      %p52 = scmp.eq.s32.totalorder %s32, 0
      %p53 = por %p51, %p52
      %p54 = scmp.ne.s32.totalorder %s40, %s41
      %p55 = scmp.eq.s32.totalorder %s33, 7
      %p56 = por %p54, %p55
      %p58 = scmp.ne.s32.totalorder %s41, %s57
      %p59 = scmp.eq.s32.totalorder %s33, 0
      %p60 = por %p58, %p59
      %s61 = ssub.s32 %s27, %s34
      %p62 = scmp.eq.s32.totalorder %s61, 0
      %s64 = sadd.s32 %s63, 1
      %s65 = scalar_select %p62, %s63, %s64
      %p68 = pneg %p62
      %p69 = scmp.eq.s32.totalorder %s27, 7
      %p70 = por %p68, %p69
      %p71 = scmp.ne.s32.totalorder %s63, %s66
      %p72 = scmp.eq.s32.totalorder %s27, 0
      %p73 = por %p71, %p72
      %p74 = scmp.ne.s32.totalorder %s63, %s66
      %p75 = scmp.eq.s32.totalorder %s32, 7
      %p76 = por %p74, %p75
      %p77 = scmp.ne.s32.totalorder %s66, %s67
      %p78 = scmp.eq.s32.totalorder %s32, 0
      %p79 = por %p77, %p78
      %p80 = scmp.ne.s32.totalorder %s66, %s67
      %p81 = scmp.eq.s32.totalorder %s33, 7
      %p82 = por %p80, %p81
      %p84 = scmp.ne.s32.totalorder %s67, %s83
      %p85 = scmp.eq.s32.totalorder %s33, 0
      %p86 = por %p84, %p85
      %s88 = sadd.s32 %s87, 1
      %p91 = scmp.eq.s32.totalorder %s27, 7
      %p92 = scmp.ne.s32.totalorder %s87, %s89
      %p93 = scmp.eq.s32.totalorder %s27, 0
      %p94 = por %p92, %p93
      %p95 = scmp.ne.s32.totalorder %s87, %s89
      %p96 = scmp.eq.s32.totalorder %s32, 7
      %p97 = por %p95, %p96
      %p98 = scmp.ne.s32.totalorder %s89, %s90
      %p99 = scmp.eq.s32.totalorder %s32, 0
      %p100 = por %p98, %p99
      %p101 = scmp.ne.s32.totalorder %s89, %s90
      %p102 = scmp.eq.s32.totalorder %s33, 7
      %p103 = por %p101, %p102
      %p105 = scmp.ne.s32.totalorder %s90, %s104
      %p106 = scmp.eq.s32.totalorder %s33, 0
      %p107 = por %p105, %p106
      %s109 = sadd.s32 %s108, 1
      %p112 = scmp.eq.s32.totalorder %s27, 7
      %p113 = scmp.ne.s32.totalorder %s108, %s110
      %p114 = scmp.eq.s32.totalorder %s27, 0
      %p115 = por %p113, %p114
      %p116 = scmp.ne.s32.totalorder %s108, %s110
      %p117 = scmp.eq.s32.totalorder %s32, 7
      %p118 = por %p116, %p117
      %p119 = scmp.ne.s32.totalorder %s110, %s111
      %p120 = scmp.eq.s32.totalorder %s32, 0
      %p121 = por %p119, %p120
      %p122 = scmp.ne.s32.totalorder %s110, %s111
      %p123 = scmp.eq.s32.totalorder %s33, 7
      %p124 = por %p122, %p123
      %p126 = scmp.ne.s32.totalorder %s111, %s125
      %p127 = scmp.eq.s32.totalorder %s33, 0
      %p128 = por %p126, %p127
      %s130 = sadd.s32 %s129, 1
      %p133 = scmp.eq.s32.totalorder %s27, 7
      %p134 = scmp.ne.s32.totalorder %s129, %s131
      %p135 = scmp.eq.s32.totalorder %s27, 0
      %p136 = por %p134, %p135
      %p137 = scmp.ne.s32.totalorder %s129, %s131
      %p138 = scmp.eq.s32.totalorder %s32, 7
      %p139 = por %p137, %p138
      %p140 = scmp.ne.s32.totalorder %s131, %s132
      %p141 = scmp.eq.s32.totalorder %s32, 0
      %p142 = por %p140, %p141
      %p143 = scmp.ne.s32.totalorder %s131, %s132
      %p144 = scmp.eq.s32.totalorder %s33, 7
      %p145 = por %p143, %p144
      %p147 = scmp.ne.s32.totalorder %s132, %s146
      %p148 = scmp.eq.s32.totalorder %s33, 0
      %p149 = por %p147, %p148
      %s151 = sadd.s32 %s150, 1
      %p154 = scmp.eq.s32.totalorder %s27, 7
      %p155 = scmp.ne.s32.totalorder %s150, %s152
      %p156 = scmp.eq.s32.totalorder %s27, 0
      %p157 = por %p155, %p156
      %p158 = scmp.ne.s32.totalorder %s150, %s152
      %p159 = scmp.eq.s32.totalorder %s32, 7
      %p160 = por %p158, %p159
      %p161 = scmp.ne.s32.totalorder %s152, %s153
      %p162 = scmp.eq.s32.totalorder %s32, 0
      %p163 = por %p161, %p162
      %p164 = scmp.ne.s32.totalorder %s152, %s153
      %p165 = scmp.eq.s32.totalorder %s33, 7
      %p166 = por %p164, %p165
      %p168 = scmp.ne.s32.totalorder %s153, %s167
      %p169 = scmp.eq.s32.totalorder %s33, 0
      %p170 = por %p168, %p169
      %s172 = sadd.s32 %s171, 1
      %p175 = scmp.eq.s32.totalorder %s27, 7
      %p176 = scmp.ne.s32.totalorder %s171, %s173
      %p177 = scmp.eq.s32.totalorder %s27, 0
      %p178 = por %p176, %p177
      %p179 = scmp.ne.s32.totalorder %s171, %s173
      %p180 = scmp.eq.s32.totalorder %s32, 7
      %p181 = por %p179, %p180
      %p182 = scmp.ne.s32.totalorder %s173, %s174
      %p183 = scmp.eq.s32.totalorder %s32, 0
      %p184 = por %p182, %p183
      %p185 = scmp.ne.s32.totalorder %s173, %s174
      %p186 = scmp.eq.s32.totalorder %s33, 7
      %p187 = por %p185, %p186
      %p189 = scmp.ne.s32.totalorder %s174, %s188
      %p190 = scmp.eq.s32.totalorder %s33, 0
      %p191 = por %p189, %p190
      %s193 = sadd.s32 %s192, 1
      %p196 = scmp.eq.s32.totalorder %s27, 7
      %p197 = scmp.ne.s32.totalorder %s192, %s194
      %p198 = scmp.eq.s32.totalorder %s27, 0
      %p199 = por %p197, %p198
      %p200 = scmp.ne.s32.totalorder %s192, %s194
      %p201 = scmp.eq.s32.totalorder %s32, 7
      %p202 = por %p200, %p201
      %p203 = scmp.ne.s32.totalorder %s194, %s195
      %p204 = scmp.eq.s32.totalorder %s32, 0
      %p205 = por %p203, %p204
      %p206 = scmp.ne.s32.totalorder %s194, %s195
      %p207 = scmp.eq.s32.totalorder %s33, 7
      %p208 = por %p206, %p207
      %p210 = scmp.ne.s32.totalorder %s195, %s209
      %p211 = scmp.eq.s32.totalorder %s33, 0
      %p212 = por %p210, %p211
      %s214 = sadd.s32 %s213, 1
      %p217 = scmp.eq.s32.totalorder %s27, 7
      %p218 = scmp.ne.s32.totalorder %s213, %s215
      %p219 = scmp.eq.s32.totalorder %s27, 0
      %p220 = por %p218, %p219
      %p221 = scmp.ne.s32.totalorder %s213, %s215
      %p222 = scmp.eq.s32.totalorder %s32, 7
      %p223 = por %p221, %p222
      %p224 = scmp.ne.s32.totalorder %s215, %s216
      %p225 = scmp.eq.s32.totalorder %s32, 0
      %p226 = por %p224, %p225
      %p227 = scmp.ne.s32.totalorder %s215, %s216
      %p228 = scmp.eq.s32.totalorder %s33, 7
      %p229 = por %p227, %p228
      %p231 = scmp.ne.s32.totalorder %s216, %s230
      %p232 = scmp.eq.s32.totalorder %s33, 0
      %p233 = por %p231, %p232
      %s235 = sadd.s32 %s234, 1
      %p238 = scmp.eq.s32.totalorder %s27, 7
      %p239 = scmp.ne.s32.totalorder %s234, %s236
      %p240 = scmp.eq.s32.totalorder %s27, 0
      %p241 = por %p239, %p240
      %p242 = scmp.ne.s32.totalorder %s234, %s236
      %p243 = scmp.eq.s32.totalorder %s32, 7
      %p244 = por %p242, %p243
      %p245 = scmp.ne.s32.totalorder %s236, %s237
      %p246 = scmp.eq.s32.totalorder %s32, 0
      %p247 = por %p245, %p246
      %p248 = scmp.ne.s32.totalorder %s236, %s237
      %p249 = scmp.eq.s32.totalorder %s33, 7
      %p250 = por %p248, %p249
      %p252 = scmp.ne.s32.totalorder %s237, %s251
      %p253 = scmp.eq.s32.totalorder %s33, 0
      %p254 = por %p252, %p253
      %s256 = sadd.s32 %s255, 1
      %p259 = scmp.eq.s32.totalorder %s27, 7
      %p260 = scmp.ne.s32.totalorder %s255, %s257
      %p261 = scmp.eq.s32.totalorder %s27, 0
      %p262 = por %p260, %p261
      %p263 = scmp.ne.s32.totalorder %s255, %s257
      %p264 = scmp.eq.s32.totalorder %s32, 7
      %p265 = por %p263, %p264
      %p266 = scmp.ne.s32.totalorder %s257, %s258
      %p267 = scmp.eq.s32.totalorder %s32, 0
      %p268 = por %p266, %p267
      %p269 = scmp.ne.s32.totalorder %s257, %s258
      %p270 = scmp.eq.s32.totalorder %s33, 7
      %p271 = por %p269, %p270
      %p273 = scmp.ne.s32.totalorder %s258, %s272
      %p274 = scmp.eq.s32.totalorder %s33, 0
      %p275 = por %p273, %p274
      %s277 = sadd.s32 %s276, 1
      %p280 = scmp.eq.s32.totalorder %s27, 7
      %p281 = scmp.ne.s32.totalorder %s276, %s278
      %p282 = scmp.eq.s32.totalorder %s27, 0
      %p283 = por %p281, %p282
      %p284 = scmp.ne.s32.totalorder %s276, %s278
      %p285 = scmp.eq.s32.totalorder %s32, 7
      %p286 = por %p284, %p285
      %p287 = scmp.ne.s32.totalorder %s278, %s279
      %p288 = scmp.eq.s32.totalorder %s32, 0
      %p289 = por %p287, %p288
      %p290 = scmp.ne.s32.totalorder %s278, %s279
      %p291 = scmp.eq.s32.totalorder %s33, 7
      %p292 = por %p290, %p291
      %p294 = scmp.ne.s32.totalorder %s279, %s293
      %p295 = scmp.eq.s32.totalorder %s33, 0
      %p296 = por %p294, %p295
      %s298 = sadd.s32 %s297, 1
      %p301 = scmp.eq.s32.totalorder %s27, 7
      %p302 = scmp.ne.s32.totalorder %s297, %s299
      %p303 = scmp.eq.s32.totalorder %s27, 0
      %p304 = por %p302, %p303
      %p305 = scmp.ne.s32.totalorder %s297, %s299
      %p306 = scmp.eq.s32.totalorder %s32, 7
      %p307 = por %p305, %p306
      %p308 = scmp.ne.s32.totalorder %s299, %s300
      %p309 = scmp.eq.s32.totalorder %s32, 0
      %p310 = por %p308, %p309
      %p311 = scmp.ne.s32.totalorder %s299, %s300
      %p312 = scmp.eq.s32.totalorder %s33, 7
      %p313 = por %p311, %p312
      %p315 = scmp.ne.s32.totalorder %s300, %s314
      %p316 = scmp.eq.s32.totalorder %s33, 0
      %p317 = por %p315, %p316
      %p318 = scmp.le.s32.totalorder 1, %s27
      %p319 = scmp.lt.s32.totalorder %s27, 9
      %p320 = pnand %p318, %p319
      %p321 = pneg %p320
      // Predicated region
      $region9: #{mlp_forward.1} parent=5 // pred_check
        _
      $region10: #{mlp_forward.1} parent=5 // pred_check_branch
        %323 = sbr.rel (%p320) target = $region12
      $region11: #{mlp_forward.1} parent=5 // pred_region
        %s324 = ssub.s32 %s27, 1
        // Predicated region
        $region13: #{mlp_forward.1} parent=11 // pred_check
          %p325 = pneg %p100
        $region14: #{mlp_forward.1} parent=11 // pred_check_branch
          %327 = sbr.rel (%p325) target = $region16
        $region15: #{mlp_forward.1} parent=11 // pred_region
          %s329 = ssub.s32 32, 32
          %330 = vsyncadd [#allocation7], %s329
          %s332 = sshll.u32 [#allocation6], 4
          %s333 = int_to_ptr.vmem [resolvable:$true] %s332
          %335 = dma.hbm_to_vmem [thread:$0]  %s2, 32, %s333, [#allocation7]
        $region16: #{mlp_forward.1} parent=11 // pred_fallthru
          _
        // Predicated region
        $region17: #{mlp_forward.1} parent=11 // pred_check
          %p336 = pneg %p121
        $region18: #{mlp_forward.1} parent=11 // pred_check_branch
          %338 = sbr.rel (%p336) target = $region20
        $region19: #{mlp_forward.1} parent=11 // pred_region
          %s340 = ssub.s32 32, 32
          %341 = vsyncadd [#allocation7], %s340
          %s343 = sshll.u32 [#allocation8], 4
          %s344 = int_to_ptr.vmem [resolvable:$true] %s343
          %346 = dma.hbm_to_vmem [thread:$0]  %s3, 32, %s344, [#allocation7]
        $region20: #{mlp_forward.1} parent=11 // pred_fallthru
          _
        // Predicated region
        $region21: #{mlp_forward.1} parent=11 // pred_check
          %p347 = pneg %p142
        $region22: #{mlp_forward.1} parent=11 // pred_check_branch
          %349 = sbr.rel (%p347) target = $region24
        $region23: #{mlp_forward.1} parent=11 // pred_region
          %s351 = ssub.s32 8192, 8192
          %352 = vsyncadd [#allocation10], %s351
          %s353 = sshll.u32 [#allocation9], 4
          %s354 = int_to_ptr.vmem [resolvable:$true] %s353
          %359 = dma.hbm_to_vmem [thread:$0]  %s4, 8192, %s354, [#allocation10], 256, 256, 16
        $region24: #{mlp_forward.1} parent=11 // pred_fallthru
          _
        // Predicated region
        $region25: #{mlp_forward.1} parent=11 // pred_check
          %p360 = pneg %p163
        $region26: #{mlp_forward.1} parent=11 // pred_check_branch
          %362 = sbr.rel (%p360) target = $region28
        $region27: #{mlp_forward.1} parent=11 // pred_region
          %s364 = ssub.s32 32, 32
          %365 = vsyncadd [#allocation10], %s364
          %s367 = sshll.u32 [#allocation11], 4
          %s368 = int_to_ptr.vmem [resolvable:$true] %s367
          %370 = dma.hbm_to_vmem [thread:$0]  %s5, 32, %s368, [#allocation10]
        $region28: #{mlp_forward.1} parent=11 // pred_fallthru
          _
        // Predicated region
        $region29: #{mlp_forward.1} parent=11 // pred_check
          %p371 = pneg %p184
        $region30: #{mlp_forward.1} parent=11 // pred_check_branch
          %373 = sbr.rel (%p371) target = $region32
        $region31: #{mlp_forward.1} parent=11 // pred_region
          %s375 = ssub.s32 4096, 4096
          %376 = vsyncadd [#allocation13], %s375
          %s377 = sshll.u32 [#allocation12], 4
          %s378 = int_to_ptr.vmem [resolvable:$true] %s377
          %383 = dma.hbm_to_vmem [thread:$0]  %s6, 4096, %s378, [#allocation13], 128, 128, 8
        $region32: #{mlp_forward.1} parent=11 // pred_fallthru
          _
        // Predicated region
        $region33: #{mlp_forward.1} parent=11 // pred_check
          %p384 = pneg %p205
        $region34: #{mlp_forward.1} parent=11 // pred_check_branch
          %386 = sbr.rel (%p384) target = $region36
        $region35: #{mlp_forward.1} parent=11 // pred_region
          %s388 = ssub.s32 16, 16
          %389 = vsyncadd [#allocation13], %s388
          %s391 = sshll.u32 [#allocation14], 4
          %s392 = int_to_ptr.vmem [resolvable:$true] %s391
          %394 = dma.hbm_to_vmem [thread:$0]  %s7, 16, %s392, [#allocation13]
        $region36: #{mlp_forward.1} parent=11 // pred_fallthru
          _
        // Predicated region
        $region37: #{mlp_forward.1} parent=11 // pred_check
          %p395 = pneg %p226
        $region38: #{mlp_forward.1} parent=11 // pred_check_branch
          %397 = sbr.rel (%p395) target = $region40
        $region39: #{mlp_forward.1} parent=11 // pred_region
          _
        $region40: #{mlp_forward.1} parent=11 // pred_fallthru
          _
        // Predicated region
        $region41: #{mlp_forward.1} parent=11 // pred_check
          %p398 = pneg %p247
        $region42: #{mlp_forward.1} parent=11 // pred_check_branch
          %400 = sbr.rel (%p398) target = $region44
        $region43: #{mlp_forward.1} parent=11 // pred_region
          %s402 = ssub.s32 16, 16
          %403 = vsyncadd [#allocation16], %s402
          %s405 = sshll.u32 [#allocation15], 4
          %s406 = int_to_ptr.vmem [resolvable:$true] %s405
          %408 = dma.hbm_to_vmem [thread:$0]  %s9, 16, %s406, [#allocation16]
        $region44: #{mlp_forward.1} parent=11 // pred_fallthru
          _
        // Predicated region
        $region45: #{mlp_forward.1} parent=11 // pred_check
          %p409 = pneg %p268
        $region46: #{mlp_forward.1} parent=11 // pred_check_branch
          %411 = sbr.rel (%p409) target = $region48
        $region47: #{mlp_forward.1} parent=11 // pred_region
          _
        $region48: #{mlp_forward.1} parent=11 // pred_fallthru
          _
        // Predicated region
        $region49: #{mlp_forward.1} parent=11 // pred_check
          %p412 = pneg %p289
        $region50: #{mlp_forward.1} parent=11 // pred_check_branch
          %414 = sbr.rel (%p412) target = $region52
        $region51: #{mlp_forward.1} parent=11 // pred_region
          _
        $region52: #{mlp_forward.1} parent=11 // pred_fallthru
          _
      $region12: #{mlp_forward.1} parent=5 // pred_fallthru
        _
      %p415 = scmp.lt.s32.totalorder %s27, 8
      // Predicated region
      $region53: #{mlp_forward.1} parent=5 // pred_check
        %p416 = pneg %p415
      $region54: #{mlp_forward.1} parent=5 // pred_check_branch
        %418 = sbr.rel (%p416) target = $region56
      $region55: #{mlp_forward.1} parent=5 // pred_region
        // Predicated region
        $region57: #{mlp_forward.1} parent=55 // pred_check
          %p419 = pneg %p47
        $region58: #{mlp_forward.1} parent=55 // pred_check_branch
          %421 = sbr.rel (%p419) target = $region60
        $region59: #{mlp_forward.1} parent=55 // pred_region
          %s422 = smul.u32 147, %s27
          %p423 = scmp.lt.s32.totalorder %s422, 1175
          %s424 = scalar_select %p423, %s422, 1175
          %s425 = scalar_lea.vmem %s0, %s424
          %s426 = smul.u32 147, %s27
        $region60: #{mlp_forward.1} parent=55 // pred_fallthru
          _
        // Predicated region
        $region61: #{mlp_forward.1} parent=55 // pred_check
          %p427 = pneg %p73
        $region62: #{mlp_forward.1} parent=55 // pred_check_branch
          %429 = sbr.rel (%p427) target = $region64
        $region63: #{mlp_forward.1} parent=55 // pred_region
          %s430 = sand.u32 %s63, 1
          %s431 = scalar_lea.sflag [#allocation5], %s430
          %s432 = sand.u32 %s63, 1
          %s433 = smul.addr %s432, 9408
          %s434 = scalar_lea.vmem [#allocation4], %s433
          %s435 = smul.u32 588, %s27
          %s437 = ssub.s32 150528, 150528
          %438 = vsyncadd %s431, %s437
          %s439 = smul.addr %s435, 2
          %s440 = smul.addr %s439, 128
          %s441 = scalar_lea.hbm %s1, %s440
          %s442 = sshll.u32 %s434, 4
          %s443 = int_to_ptr.vmem [resolvable:$true] %s442
          %448 = dma.hbm_to_vmem [thread:$0]  %s441, 150528, %s443, %s431, 256, 256, 16
        $region64: #{mlp_forward.1} parent=55 // pred_fallthru
          _
      $region56: #{mlp_forward.1} parent=5 // pred_fallthru
        _
      %p449 = scmp.le.s32.totalorder 1, %s27
      %p450 = scmp.lt.s32.totalorder %s27, 9
      %p451 = pnand %p449, %p450
      %p452 = pneg %p451
      // Predicated region
      $region65: #{mlp_forward.1} parent=5 // pred_check
        _
      $region66: #{mlp_forward.1} parent=5 // pred_check_branch
        %454 = sbr.rel (%p451) target = $region68
      $region67: #{mlp_forward.1} parent=5 // pred_region
        %s455 = ssub.s32 %s27, 1
        %s456 = sand.u32 %s66, 1
        %s457 = scalar_lea.sflag [#allocation5], %s456
        %s458 = sand.u32 %s66, 1
        %s459 = smul.addr %s458, 9408
        %s460 = scalar_lea.vmem [#allocation4], %s459
        // Predicated region
        $region69: #{mlp_forward.1} parent=67 // pred_check
          %p461 = pneg %p79
        $region70: #{mlp_forward.1} parent=67 // pred_check_branch
          %463 = sbr.rel (%p461) target = $region72
        $region71: #{mlp_forward.1} parent=67 // pred_region
          %464 = dma.done %s457, 150528
        $region72: #{mlp_forward.1} parent=67 // pred_fallthru
          _
        // Predicated region
        $region73: #{mlp_forward.1} parent=67 // pred_check
          %p465 = pneg %p100
        $region74: #{mlp_forward.1} parent=67 // pred_check_branch
          %467 = sbr.rel (%p465) target = $region76
        $region75: #{mlp_forward.1} parent=67 // pred_region
          %468 = dma.done [#allocation7], 32
        $region76: #{mlp_forward.1} parent=67 // pred_fallthru
          _
        // Predicated region
        $region77: #{mlp_forward.1} parent=67 // pred_check
          %p469 = pneg %p121
        $region78: #{mlp_forward.1} parent=67 // pred_check_branch
          %471 = sbr.rel (%p469) target = $region80
        $region79: #{mlp_forward.1} parent=67 // pred_region
          %472 = dma.done [#allocation7], 32
        $region80: #{mlp_forward.1} parent=67 // pred_fallthru
          _
        // Predicated region
        $region81: #{mlp_forward.1} parent=67 // pred_check
          %p473 = pneg %p142
        $region82: #{mlp_forward.1} parent=67 // pred_check_branch
          %475 = sbr.rel (%p473) target = $region84
        $region83: #{mlp_forward.1} parent=67 // pred_region
          %476 = dma.done [#allocation10], 8192
        $region84: #{mlp_forward.1} parent=67 // pred_fallthru
          _
        // Predicated region
        $region85: #{mlp_forward.1} parent=67 // pred_check
          %p477 = pneg %p163
        $region86: #{mlp_forward.1} parent=67 // pred_check_branch
          %479 = sbr.rel (%p477) target = $region88
        $region87: #{mlp_forward.1} parent=67 // pred_region
          %480 = dma.done [#allocation10], 32
        $region88: #{mlp_forward.1} parent=67 // pred_fallthru
          _
        // Predicated region
        $region89: #{mlp_forward.1} parent=67 // pred_check
          %p481 = pneg %p184
        $region90: #{mlp_forward.1} parent=67 // pred_check_branch
          %483 = sbr.rel (%p481) target = $region92
        $region91: #{mlp_forward.1} parent=67 // pred_region
          %484 = dma.done [#allocation13], 4096
        $region92: #{mlp_forward.1} parent=67 // pred_fallthru
          _
        // Predicated region
        $region93: #{mlp_forward.1} parent=67 // pred_check
          %p485 = pneg %p205
        $region94: #{mlp_forward.1} parent=67 // pred_check_branch
          %487 = sbr.rel (%p485) target = $region96
        $region95: #{mlp_forward.1} parent=67 // pred_region
          %488 = dma.done [#allocation13], 16
        $region96: #{mlp_forward.1} parent=67 // pred_fallthru
          _
        // Predicated region
        $region97: #{mlp_forward.1} parent=67 // pred_check
          %p489 = pneg %p247
        $region98: #{mlp_forward.1} parent=67 // pred_check_branch
          %491 = sbr.rel (%p489) target = $region100
        $region99: #{mlp_forward.1} parent=67 // pred_region
          %492 = dma.done [#allocation16], 16
        $region100: #{mlp_forward.1} parent=67 // pred_fallthru
          _
        %s493 = smul.u32 147, %s32
        %p494 = scmp.lt.s32.totalorder %s493, 1175
        %s495 = scalar_select %p494, %s493, 1175
        %s496 = scalar_lea.vmem %s0, %s495
        %p497 = pneg %p53
        %p498 = pneg %p50
        %s499 = sand.u32 %s66, 1
        %s500 = scalar_lea.sflag [#allocation5], %s499
        %s501 = sand.u32 %s66, 1
        %s502 = smul.addr %s501, 9408
        %s503 = scalar_lea.vmem [#allocation4], %s502
        %p504 = pneg %p79
        %p505 = pneg %p76
        %p506 = pneg %p100
        %p507 = pneg %p97
        %p508 = pneg %p121
        %p509 = pneg %p118
        %p510 = pneg %p142
        %p511 = pneg %p139
        %p512 = pneg %p163
        %p513 = pneg %p160
        %p514 = pneg %p184
        %p515 = pneg %p181
        %p516 = pneg %p205
        %p517 = pneg %p202
        %p518 = pneg %p226
        %p519 = pneg %p223
        %p520 = pneg %p247
        %p521 = pneg %p244
        %p522 = pneg %p268
        %p523 = pneg %p265
        %p524 = pneg %p289
        %p525 = pneg %p286
        %p526 = pneg %p310
        %p527 = pneg %p307
        %s528 = smul.u32 147, %s32
        %p529 = scmp.lt.s32.totalorder %s528, 1175
        %s530 = scalar_select %p529, %s528, 1175
        %s531 = scalar_lea.vmem %s0, %s530
        %s532 = smul.u32 147, %s32
        %s533 = smul.u32 588, %s32
        %p535 = scmp.eq.s32.totalorder %s32, 0
        // Predicated region
        $region101: #{mlp_forward.1} parent=67 // pred_check
          %p536 = pneg %p535
        $region102: #{mlp_forward.1} parent=67 // pred_check_branch
          %538 = sbr.rel (%p536) target = $region104
        $region103: #{mlp_forward.1} parent=67 // pred_region
          %539 = vst [vmem:[#allocation2] sm:$0xf] 0.0
        $region104: #{mlp_forward.1} parent=67 // pred_fallthru
          _
        %v540 = vld [vmem:[%s460] sm:$0xff]
        %v541 = vld [vmem:[%s460 + $0x8] sm:$0xff]
        %v542 = vld [vmem:[%s460 + $0x10] sm:$0xff]
        %v543 = vld [vmem:[%s460 + $0x18] sm:$0xff]
        %v544 = vld [vmem:[%s460 + $0x20] sm:$0xff]
        %v545 = vld [vmem:[%s460 + $0x28] sm:$0xff]
        %v546 = vld [vmem:[%s460 + $0x30] sm:$0xff]
        %v547 = vld [vmem:[%s460 + $0x38] sm:$0xff]
        %v548 = vld [vmem:[%s460 + $0x40] sm:$0xff]
        %v549 = vld [vmem:[%s460 + $0x48] sm:$0xff]
        %v550 = vld [vmem:[%s460 + $0x50] sm:$0xff]
        %v551 = vld [vmem:[%s460 + $0x58] sm:$0xff]
        %v552 = vld [vmem:[%s460 + $0x60] sm:$0xff]
        %v553 = vld [vmem:[%s460 + $0x68] sm:$0xff]
        %v554 = vld [vmem:[%s460 + $0x70] sm:$0xff]
        %v555 = vld [vmem:[%s460 + $0x78] sm:$0xff]
        %v556 = vld [vmem:[%s460 + $0x80] sm:$0xff]
        %v557 = vld [vmem:[%s460 + $0x88] sm:$0xff]
        %v558 = vld [vmem:[%s460 + $0x90] sm:$0xff]
        %v559 = vld [vmem:[%s460 + $0x98] sm:$0xff]
        %v560 = vld [vmem:[%s460 + $0xa0] sm:$0xff]
        %v561 = vld [vmem:[%s460 + $0xa8] sm:$0xff]
        %v562 = vld [vmem:[%s460 + $0xb0] sm:$0xff]
        %v563 = vld [vmem:[%s460 + $0xb8] sm:$0xff]
        %v564 = vld [vmem:[%s460 + $0xc0] sm:$0xff]
        %v565 = vld [vmem:[%s460 + $0xc8] sm:$0xff]
        %v566 = vld [vmem:[%s460 + $0xd0] sm:$0xff]
        %v567 = vld [vmem:[%s460 + $0xd8] sm:$0xff]
        %v568 = vld [vmem:[%s460 + $0xe0] sm:$0xff]
        %v569 = vld [vmem:[%s460 + $0xe8] sm:$0xff]
        %v570 = vld [vmem:[%s460 + $0xf0] sm:$0xff]
        %v571 = vld [vmem:[%s460 + $0xf8] sm:$0xff]
        %v572 = vld [vmem:[%s460 + $0x100] sm:$0xff]
        %v573 = vld [vmem:[%s460 + $0x108] sm:$0xff]
        %v574 = vld [vmem:[%s460 + $0x110] sm:$0xff]
        %v575 = vld [vmem:[%s460 + $0x118] sm:$0xff]
        %v576 = vld [vmem:[%s460 + $0x120] sm:$0xff]
        %v577 = vld [vmem:[%s460 + $0x128] sm:$0xff]
        %v578 = vld [vmem:[%s460 + $0x130] sm:$0xff]
        %v579 = vld [vmem:[%s460 + $0x138] sm:$0xff]
        %v580 = vld [vmem:[%s460 + $0x140] sm:$0xff]
        %v581 = vld [vmem:[%s460 + $0x148] sm:$0xff]
        %v582 = vld [vmem:[%s460 + $0x150] sm:$0xff]
        %v583 = vld [vmem:[%s460 + $0x158] sm:$0xff]
        %v584 = vld [vmem:[%s460 + $0x160] sm:$0xff]
        %v585 = vld [vmem:[%s460 + $0x168] sm:$0xff]
        %v586 = vld [vmem:[%s460 + $0x170] sm:$0xff]
        %v587 = vld [vmem:[%s460 + $0x178] sm:$0xff]
        %v588 = vld [vmem:[%s460 + $0x180] sm:$0xff]
        %v589 = vld [vmem:[%s460 + $0x188] sm:$0xff]
        %v590 = vld [vmem:[%s460 + $0x190] sm:$0xff]
        %v591 = vld [vmem:[%s460 + $0x198] sm:$0xff]
        %v592 = vld [vmem:[%s460 + $0x1a0] sm:$0xff]
        %v593 = vld [vmem:[%s460 + $0x1a8] sm:$0xff]
        %v594 = vld [vmem:[%s460 + $0x1b0] sm:$0xff]
        %v595 = vld [vmem:[%s460 + $0x1b8] sm:$0xff]
        %v596 = vld [vmem:[%s460 + $0x1c0] sm:$0xff]
        %v597 = vld [vmem:[%s460 + $0x1c8] sm:$0xff]
        %v598 = vld [vmem:[%s460 + $0x1d0] sm:$0xff]
        %v599 = vld [vmem:[%s460 + $0x1d8] sm:$0xff]
        %v600 = vld [vmem:[%s460 + $0x1e0] sm:$0xff]
        %v601 = vld [vmem:[%s460 + $0x1e8] sm:$0xff]
        %v602 = vld [vmem:[%s460 + $0x1f0] sm:$0xff]
        %v603 = vld [vmem:[%s460 + $0x1f8] sm:$0xff]
        %v604 = vld [vmem:[%s460 + $0x200] sm:$0xff]
        %v605 = vld [vmem:[%s460 + $0x208] sm:$0xff]
        %v606 = vld [vmem:[%s460 + $0x210] sm:$0xff]
        %v607 = vld [vmem:[%s460 + $0x218] sm:$0xff]
        %v608 = vld [vmem:[%s460 + $0x220] sm:$0xff]
        %v609 = vld [vmem:[%s460 + $0x228] sm:$0xff]
        %v610 = vld [vmem:[%s460 + $0x230] sm:$0xff]
        %v611 = vld [vmem:[%s460 + $0x238] sm:$0xff]
        %v612 = vld [vmem:[%s460 + $0x240] sm:$0xff]
        %v613 = vld [vmem:[%s460 + $0x248] sm:$0xff]
        %v614 = vld [vmem:[%s460 + $0x250] sm:$0xff]
        %v615 = vld [vmem:[%s460 + $0x258] sm:$0xff]
        %v616 = vld [vmem:[%s460 + $0x260] sm:$0xff]
        %v617 = vld [vmem:[%s460 + $0x268] sm:$0xff]
        %v618 = vld [vmem:[%s460 + $0x270] sm:$0xff]
        %v619 = vld [vmem:[%s460 + $0x278] sm:$0xff]
        %v620 = vld [vmem:[%s460 + $0x280] sm:$0xff]
        %v621 = vld [vmem:[%s460 + $0x288] sm:$0xff]
        %v622 = vld [vmem:[%s460 + $0x290] sm:$0xff]
        %v623 = vld [vmem:[%s460 + $0x298] sm:$0xff]
        %v624 = vld [vmem:[%s460 + $0x2a0] sm:$0xff]
        %v625 = vld [vmem:[%s460 + $0x2a8] sm:$0xff]
        %v626 = vld [vmem:[%s460 + $0x2b0] sm:$0xff]
        %v627 = vld [vmem:[%s460 + $0x2b8] sm:$0xff]
        %v628 = vld [vmem:[%s460 + $0x2c0] sm:$0xff]
        %v629 = vld [vmem:[%s460 + $0x2c8] sm:$0xff]
        %v630 = vld [vmem:[%s460 + $0x2d0] sm:$0xff]
        %v631 = vld [vmem:[%s460 + $0x2d8] sm:$0xff]
        %v632 = vld [vmem:[%s460 + $0x2e0] sm:$0xff]
        %v633 = vld [vmem:[%s460 + $0x2e8] sm:$0xff]
        %v634 = vld [vmem:[%s460 + $0x2f0] sm:$0xff]
        %v635 = vld [vmem:[%s460 + $0x2f8] sm:$0xff]
        %v636 = vld [vmem:[%s460 + $0x300] sm:$0xff]
        %v637 = vld [vmem:[%s460 + $0x308] sm:$0xff]
        %v638 = vld [vmem:[%s460 + $0x310] sm:$0xff]
        %v639 = vld [vmem:[%s460 + $0x318] sm:$0xff]
        %v640 = vld [vmem:[%s460 + $0x320] sm:$0xff]
        %v641 = vld [vmem:[%s460 + $0x328] sm:$0xff]
        %v642 = vld [vmem:[%s460 + $0x330] sm:$0xff]
        %v643 = vld [vmem:[%s460 + $0x338] sm:$0xff]
        %v644 = vld [vmem:[%s460 + $0x340] sm:$0xff]
        %v645 = vld [vmem:[%s460 + $0x348] sm:$0xff]
        %v646 = vld [vmem:[%s460 + $0x350] sm:$0xff]
        %v647 = vld [vmem:[%s460 + $0x358] sm:$0xff]
        %v648 = vld [vmem:[%s460 + $0x360] sm:$0xff]
        %v649 = vld [vmem:[%s460 + $0x368] sm:$0xff]
        %v650 = vld [vmem:[%s460 + $0x370] sm:$0xff]
        %v651 = vld [vmem:[%s460 + $0x378] sm:$0xff]
        %v652 = vld [vmem:[%s460 + $0x380] sm:$0xff]
        %v653 = vld [vmem:[%s460 + $0x388] sm:$0xff]
        %v654 = vld [vmem:[%s460 + $0x390] sm:$0xff]
        %v655 = vld [vmem:[%s460 + $0x398] sm:$0xff]
        %v656 = vld [vmem:[%s460 + $0x3a0] sm:$0xff]
        %v657 = vld [vmem:[%s460 + $0x3a8] sm:$0xff]
        %v658 = vld [vmem:[%s460 + $0x3b0] sm:$0xff]
        %v659 = vld [vmem:[%s460 + $0x3b8] sm:$0xff]
        %v660 = vld [vmem:[%s460 + $0x3c0] sm:$0xff]
        %v661 = vld [vmem:[%s460 + $0x3c8] sm:$0xff]
        %v662 = vld [vmem:[%s460 + $0x3d0] sm:$0xff]
        %v663 = vld [vmem:[%s460 + $0x3d8] sm:$0xff]
        %v664 = vld [vmem:[%s460 + $0x3e0] sm:$0xff]
        %v665 = vld [vmem:[%s460 + $0x3e8] sm:$0xff]
        %v666 = vld [vmem:[%s460 + $0x3f0] sm:$0xff]
        %v667 = vld [vmem:[%s460 + $0x3f8] sm:$0xff]
        %v668 = vld [vmem:[%s460 + $0x400] sm:$0xff]
        %v669 = vld [vmem:[%s460 + $0x408] sm:$0xff]
        %v670 = vld [vmem:[%s460 + $0x410] sm:$0xff]
        %v671 = vld [vmem:[%s460 + $0x418] sm:$0xff]
        %v672 = vld [vmem:[%s460 + $0x420] sm:$0xff]
        %v673 = vld [vmem:[%s460 + $0x428] sm:$0xff]
        %v674 = vld [vmem:[%s460 + $0x430] sm:$0xff]
        %v675 = vld [vmem:[%s460 + $0x438] sm:$0xff]
        %v676 = vld [vmem:[%s460 + $0x440] sm:$0xff]
        %v677 = vld [vmem:[%s460 + $0x448] sm:$0xff]
        %v678 = vld [vmem:[%s460 + $0x450] sm:$0xff]
        %v679 = vld [vmem:[%s460 + $0x458] sm:$0xff]
        %v680 = vld [vmem:[%s460 + $0x460] sm:$0xff]
        %v681 = vld [vmem:[%s460 + $0x468] sm:$0xff]
        %v682 = vld [vmem:[%s460 + $0x470] sm:$0xff]
        %v683 = vld [vmem:[%s460 + $0x478] sm:$0xff]
        %v684 = vld [vmem:[%s460 + $0x480] sm:$0xff]
        %v685 = vld [vmem:[%s460 + $0x488] sm:$0xff]
        %v686 = vld [vmem:[%s460 + $0x490] sm:$0xff]
        %v687 = vld [vmem:[%s460 + $0x498] sm:$0xff]
        %v688 = vld [vmem:[%s460 + $0x4a0] sm:$0xff]
        %v689 = vld [vmem:[%s460 + $0x4a8] sm:$0xff]
        %v690 = vld [vmem:[%s460 + $0x4b0] sm:$0xff]
        %v691 = vld [vmem:[%s460 + $0x4b8] sm:$0xff]
        %v692 = vld [vmem:[%s460 + $0x4c0] sm:$0xff]
        %v693 = vld [vmem:[%s460 + $0x4c8] sm:$0xff]
        %v694 = vld [vmem:[%s460 + $0x4d0] sm:$0xff]
        %v695 = vld [vmem:[%s460 + $0x4d8] sm:$0xff]
        %v696 = vld [vmem:[%s460 + $0x4e0] sm:$0xff]
        %v697 = vld [vmem:[%s460 + $0x4e8] sm:$0xff]
        %v698 = vld [vmem:[%s460 + $0x4f0] sm:$0xff]
        %v699 = vld [vmem:[%s460 + $0x4f8] sm:$0xff]
        %v700 = vld [vmem:[%s460 + $0x500] sm:$0xff]
        %v701 = vld [vmem:[%s460 + $0x508] sm:$0xff]
        %v702 = vld [vmem:[%s460 + $0x510] sm:$0xff]
        %v703 = vld [vmem:[%s460 + $0x518] sm:$0xff]
        %v704 = vld [vmem:[%s460 + $0x520] sm:$0xff]
        %v705 = vld [vmem:[%s460 + $0x528] sm:$0xff]
        %v706 = vld [vmem:[%s460 + $0x530] sm:$0xff]
        %v707 = vld [vmem:[%s460 + $0x538] sm:$0xff]
        %v708 = vld [vmem:[%s460 + $0x540] sm:$0xff]
        %v709 = vld [vmem:[%s460 + $0x548] sm:$0xff]
        %v710 = vld [vmem:[%s460 + $0x550] sm:$0xff]
        %v711 = vld [vmem:[%s460 + $0x558] sm:$0xff]
        %v712 = vld [vmem:[%s460 + $0x560] sm:$0xff]
        %v713 = vld [vmem:[%s460 + $0x568] sm:$0xff]
        %v714 = vld [vmem:[%s460 + $0x570] sm:$0xff]
        %v715 = vld [vmem:[%s460 + $0x578] sm:$0xff]
        %v716 = vld [vmem:[%s460 + $0x580] sm:$0xff]
        %v717 = vld [vmem:[%s460 + $0x588] sm:$0xff]
        %v718 = vld [vmem:[%s460 + $0x590] sm:$0xff]
        %v719 = vld [vmem:[%s460 + $0x598] sm:$0xff]
        %v720 = vld [vmem:[%s460 + $0x5a0] sm:$0xff]
        %v721 = vld [vmem:[%s460 + $0x5a8] sm:$0xff]
        %v722 = vld [vmem:[%s460 + $0x5b0] sm:$0xff]
        %v723 = vld [vmem:[%s460 + $0x5b8] sm:$0xff]
        %v724 = vld [vmem:[%s460 + $0x5c0] sm:$0xff]
        %v725 = vld [vmem:[%s460 + $0x5c8] sm:$0xff]
        %v726 = vld [vmem:[%s460 + $0x5d0] sm:$0xff]
        %v727 = vld [vmem:[%s460 + $0x5d8] sm:$0xff]
        %v728 = vld [vmem:[%s460 + $0x5e0] sm:$0xff]
        %v729 = vld [vmem:[%s460 + $0x5e8] sm:$0xff]
        %v730 = vld [vmem:[%s460 + $0x5f0] sm:$0xff]
        %v731 = vld [vmem:[%s460 + $0x5f8] sm:$0xff]
        %v732 = vld [vmem:[%s460 + $0x600] sm:$0xff]
        %v733 = vld [vmem:[%s460 + $0x608] sm:$0xff]
        %v734 = vld [vmem:[%s460 + $0x610] sm:$0xff]
        %v735 = vld [vmem:[%s460 + $0x618] sm:$0xff]
        %v736 = vld [vmem:[%s460 + $0x620] sm:$0xff]
        %v737 = vld [vmem:[%s460 + $0x628] sm:$0xff]
        %v738 = vld [vmem:[%s460 + $0x630] sm:$0xff]
        %v739 = vld [vmem:[%s460 + $0x638] sm:$0xff]
        %v740 = vld [vmem:[%s460 + $0x640] sm:$0xff]
        %v741 = vld [vmem:[%s460 + $0x648] sm:$0xff]
        %v742 = vld [vmem:[%s460 + $0x650] sm:$0xff]
        %v743 = vld [vmem:[%s460 + $0x658] sm:$0xff]
        %v744 = vld [vmem:[%s460 + $0x660] sm:$0xff]
        %v745 = vld [vmem:[%s460 + $0x668] sm:$0xff]
        %v746 = vld [vmem:[%s460 + $0x670] sm:$0xff]
        %v747 = vld [vmem:[%s460 + $0x678] sm:$0xff]
        %v748 = vld [vmem:[%s460 + $0x680] sm:$0xff]
        %v749 = vld [vmem:[%s460 + $0x688] sm:$0xff]
        %v750 = vld [vmem:[%s460 + $0x690] sm:$0xff]
        %v751 = vld [vmem:[%s460 + $0x698] sm:$0xff]
        %v752 = vld [vmem:[%s460 + $0x6a0] sm:$0xff]
        %v753 = vld [vmem:[%s460 + $0x6a8] sm:$0xff]
        %v754 = vld [vmem:[%s460 + $0x6b0] sm:$0xff]
        %v755 = vld [vmem:[%s460 + $0x6b8] sm:$0xff]
        %v756 = vld [vmem:[%s460 + $0x6c0] sm:$0xff]
        %v757 = vld [vmem:[%s460 + $0x6c8] sm:$0xff]
        %v758 = vld [vmem:[%s460 + $0x6d0] sm:$0xff]
        %v759 = vld [vmem:[%s460 + $0x6d8] sm:$0xff]
        %v760 = vld [vmem:[%s460 + $0x6e0] sm:$0xff]
        %v761 = vld [vmem:[%s460 + $0x6e8] sm:$0xff]
        %v762 = vld [vmem:[%s460 + $0x6f0] sm:$0xff]
        %v763 = vld [vmem:[%s460 + $0x6f8] sm:$0xff]
        %v764 = vld [vmem:[%s460 + $0x700] sm:$0xff]
        %v765 = vld [vmem:[%s460 + $0x708] sm:$0xff]
        %v766 = vld [vmem:[%s460 + $0x710] sm:$0xff]
        %v767 = vld [vmem:[%s460 + $0x718] sm:$0xff]
        %v768 = vld [vmem:[%s460 + $0x720] sm:$0xff]
        %v769 = vld [vmem:[%s460 + $0x728] sm:$0xff]
        %v770 = vld [vmem:[%s460 + $0x730] sm:$0xff]
        %v771 = vld [vmem:[%s460 + $0x738] sm:$0xff]
        %v772 = vld [vmem:[%s460 + $0x740] sm:$0xff]
        %v773 = vld [vmem:[%s460 + $0x748] sm:$0xff]
        %v774 = vld [vmem:[%s460 + $0x750] sm:$0xff]
        %v775 = vld [vmem:[%s460 + $0x758] sm:$0xff]
        %v776 = vld [vmem:[%s460 + $0x760] sm:$0xff]
        %v777 = vld [vmem:[%s460 + $0x768] sm:$0xff]
        %v778 = vld [vmem:[%s460 + $0x770] sm:$0xff]
        %v779 = vld [vmem:[%s460 + $0x778] sm:$0xff]
        %v780 = vld [vmem:[%s460 + $0x780] sm:$0xff]
        %v781 = vld [vmem:[%s460 + $0x788] sm:$0xff]
        %v782 = vld [vmem:[%s460 + $0x790] sm:$0xff]
        %v783 = vld [vmem:[%s460 + $0x798] sm:$0xff]
        %v784 = vld [vmem:[%s460 + $0x7a0] sm:$0xff]
        %v785 = vld [vmem:[%s460 + $0x7a8] sm:$0xff]
        %v786 = vld [vmem:[%s460 + $0x7b0] sm:$0xff]
        %v787 = vld [vmem:[%s460 + $0x7b8] sm:$0xff]
        %v788 = vld [vmem:[%s460 + $0x7c0] sm:$0xff]
        %v789 = vld [vmem:[%s460 + $0x7c8] sm:$0xff]
        %v790 = vld [vmem:[%s460 + $0x7d0] sm:$0xff]
        %v791 = vld [vmem:[%s460 + $0x7d8] sm:$0xff]
        %v792 = vld [vmem:[%s460 + $0x7e0] sm:$0xff]
        %v793 = vld [vmem:[%s460 + $0x7e8] sm:$0xff]
        %v794 = vld [vmem:[%s460 + $0x7f0] sm:$0xff]
        %v795 = vld [vmem:[%s460 + $0x7f8] sm:$0xff]
        %v796 = vld [vmem:[%s460 + $0x800] sm:$0xff]
        %v797 = vld [vmem:[%s460 + $0x808] sm:$0xff]
        %v798 = vld [vmem:[%s460 + $0x810] sm:$0xff]
        %v799 = vld [vmem:[%s460 + $0x818] sm:$0xff]
        %v800 = vld [vmem:[%s460 + $0x820] sm:$0xff]
        %v801 = vld [vmem:[%s460 + $0x828] sm:$0xff]
        %v802 = vld [vmem:[%s460 + $0x830] sm:$0xff]
        %v803 = vld [vmem:[%s460 + $0x838] sm:$0xff]
        %v804 = vld [vmem:[%s460 + $0x840] sm:$0xff]
        %v805 = vld [vmem:[%s460 + $0x848] sm:$0xff]
        %v806 = vld [vmem:[%s460 + $0x850] sm:$0xff]
        %v807 = vld [vmem:[%s460 + $0x858] sm:$0xff]
        %v808 = vld [vmem:[%s460 + $0x860] sm:$0xff]
        %v809 = vld [vmem:[%s460 + $0x868] sm:$0xff]
        %v810 = vld [vmem:[%s460 + $0x870] sm:$0xff]
        %v811 = vld [vmem:[%s460 + $0x878] sm:$0xff]
        %v812 = vld [vmem:[%s460 + $0x880] sm:$0xff]
        %v813 = vld [vmem:[%s460 + $0x888] sm:$0xff]
        %v814 = vld [vmem:[%s460 + $0x890] sm:$0xff]
        %v815 = vld [vmem:[%s460 + $0x898] sm:$0xff]
        %v816 = vld [vmem:[%s460 + $0x8a0] sm:$0xff]
        %v817 = vld [vmem:[%s460 + $0x8a8] sm:$0xff]
        %v818 = vld [vmem:[%s460 + $0x8b0] sm:$0xff]
        %v819 = vld [vmem:[%s460 + $0x8b8] sm:$0xff]
        %v820 = vld [vmem:[%s460 + $0x8c0] sm:$0xff]
        %v821 = vld [vmem:[%s460 + $0x8c8] sm:$0xff]
        %v822 = vld [vmem:[%s460 + $0x8d0] sm:$0xff]
        %v823 = vld [vmem:[%s460 + $0x8d8] sm:$0xff]
        %v824 = vld [vmem:[%s460 + $0x8e0] sm:$0xff]
        %v825 = vld [vmem:[%s460 + $0x8e8] sm:$0xff]
        %v826 = vld [vmem:[%s460 + $0x8f0] sm:$0xff]
        %v827 = vld [vmem:[%s460 + $0x8f8] sm:$0xff]
        %v828 = vld [vmem:[%s460 + $0x900] sm:$0xff]
        %v829 = vld [vmem:[%s460 + $0x908] sm:$0xff]
        %v830 = vld [vmem:[%s460 + $0x910] sm:$0xff]
        %v831 = vld [vmem:[%s460 + $0x918] sm:$0xff]
        %v832 = vld [vmem:[%s460 + $0x920] sm:$0xff]
        %v833 = vld [vmem:[%s460 + $0x928] sm:$0xff]
        %v834 = vld [vmem:[%s460 + $0x930] sm:$0xff]
        %v835 = vld [vmem:[%s460 + $0x938] sm:$0xff]
        %v836 = vld [vmem:[%s460 + $0x940] sm:$0xff]
        %v837 = vld [vmem:[%s460 + $0x948] sm:$0xff]
        %v838 = vld [vmem:[%s460 + $0x950] sm:$0xff]
        %v839 = vld [vmem:[%s460 + $0x958] sm:$0xff]
        %v840 = vld [vmem:[%s460 + $0x960] sm:$0xff]
        %v841 = vld [vmem:[%s460 + $0x968] sm:$0xff]
        %v842 = vld [vmem:[%s460 + $0x970] sm:$0xff]
        %v843 = vld [vmem:[%s460 + $0x978] sm:$0xff]
        %v844 = vld [vmem:[%s460 + $0x980] sm:$0xff]
        %v845 = vld [vmem:[%s460 + $0x988] sm:$0xff]
        %v846 = vld [vmem:[%s460 + $0x990] sm:$0xff]
        %v847 = vld [vmem:[%s460 + $0x998] sm:$0xff]
        %v848 = vld [vmem:[%s460 + $0x9a0] sm:$0xff]
        %v849 = vld [vmem:[%s460 + $0x9a8] sm:$0xff]
        %v850 = vld [vmem:[%s460 + $0x9b0] sm:$0xff]
        %v851 = vld [vmem:[%s460 + $0x9b8] sm:$0xff]
        %v852 = vld [vmem:[%s460 + $0x9c0] sm:$0xff]
        %v853 = vld [vmem:[%s460 + $0x9c8] sm:$0xff]
        %v854 = vld [vmem:[%s460 + $0x9d0] sm:$0xff]
        %v855 = vld [vmem:[%s460 + $0x9d8] sm:$0xff]
        %v856 = vld [vmem:[%s460 + $0x9e0] sm:$0xff]
        %v857 = vld [vmem:[%s460 + $0x9e8] sm:$0xff]
        %v858 = vld [vmem:[%s460 + $0x9f0] sm:$0xff]
        %v859 = vld [vmem:[%s460 + $0x9f8] sm:$0xff]
        %v860 = vld [vmem:[%s460 + $0xa00] sm:$0xff]
        %v861 = vld [vmem:[%s460 + $0xa08] sm:$0xff]
        %v862 = vld [vmem:[%s460 + $0xa10] sm:$0xff]
        %v863 = vld [vmem:[%s460 + $0xa18] sm:$0xff]
        %v864 = vld [vmem:[%s460 + $0xa20] sm:$0xff]
        %v865 = vld [vmem:[%s460 + $0xa28] sm:$0xff]
        %v866 = vld [vmem:[%s460 + $0xa30] sm:$0xff]
        %v867 = vld [vmem:[%s460 + $0xa38] sm:$0xff]
        %v868 = vld [vmem:[%s460 + $0xa40] sm:$0xff]
        %v869 = vld [vmem:[%s460 + $0xa48] sm:$0xff]
        %v870 = vld [vmem:[%s460 + $0xa50] sm:$0xff]
        %v871 = vld [vmem:[%s460 + $0xa58] sm:$0xff]
        %v872 = vld [vmem:[%s460 + $0xa60] sm:$0xff]
        %v873 = vld [vmem:[%s460 + $0xa68] sm:$0xff]
        %v874 = vld [vmem:[%s460 + $0xa70] sm:$0xff]
        %v875 = vld [vmem:[%s460 + $0xa78] sm:$0xff]
        %v876 = vld [vmem:[%s460 + $0xa80] sm:$0xff]
        %v877 = vld [vmem:[%s460 + $0xa88] sm:$0xff]
        %v878 = vld [vmem:[%s460 + $0xa90] sm:$0xff]
        %v879 = vld [vmem:[%s460 + $0xa98] sm:$0xff]
        %v880 = vld [vmem:[%s460 + $0xaa0] sm:$0xff]
        %v881 = vld [vmem:[%s460 + $0xaa8] sm:$0xff]
        %v882 = vld [vmem:[%s460 + $0xab0] sm:$0xff]
        %v883 = vld [vmem:[%s460 + $0xab8] sm:$0xff]
        %v884 = vld [vmem:[%s460 + $0xac0] sm:$0xff]
        %v885 = vld [vmem:[%s460 + $0xac8] sm:$0xff]
        %v886 = vld [vmem:[%s460 + $0xad0] sm:$0xff]
        %v887 = vld [vmem:[%s460 + $0xad8] sm:$0xff]
        %v888 = vld [vmem:[%s460 + $0xae0] sm:$0xff]
        %v889 = vld [vmem:[%s460 + $0xae8] sm:$0xff]
        %v890 = vld [vmem:[%s460 + $0xaf0] sm:$0xff]
        %v891 = vld [vmem:[%s460 + $0xaf8] sm:$0xff]
        %v892 = vld [vmem:[%s460 + $0xb00] sm:$0xff]
        %v893 = vld [vmem:[%s460 + $0xb08] sm:$0xff]
        %v894 = vld [vmem:[%s460 + $0xb10] sm:$0xff]
        %v895 = vld [vmem:[%s460 + $0xb18] sm:$0xff]
        %v896 = vld [vmem:[%s460 + $0xb20] sm:$0xff]
        %v897 = vld [vmem:[%s460 + $0xb28] sm:$0xff]
        %v898 = vld [vmem:[%s460 + $0xb30] sm:$0xff]
        %v899 = vld [vmem:[%s460 + $0xb38] sm:$0xff]
        %v900 = vld [vmem:[%s460 + $0xb40] sm:$0xff]
        %v901 = vld [vmem:[%s460 + $0xb48] sm:$0xff]
        %v902 = vld [vmem:[%s460 + $0xb50] sm:$0xff]
        %v903 = vld [vmem:[%s460 + $0xb58] sm:$0xff]
        %v904 = vld [vmem:[%s460 + $0xb60] sm:$0xff]
        %v905 = vld [vmem:[%s460 + $0xb68] sm:$0xff]
        %v906 = vld [vmem:[%s460 + $0xb70] sm:$0xff]
        %v907 = vld [vmem:[%s460 + $0xb78] sm:$0xff]
        %v908 = vld [vmem:[%s460 + $0xb80] sm:$0xff]
        %v909 = vld [vmem:[%s460 + $0xb88] sm:$0xff]
        %v910 = vld [vmem:[%s460 + $0xb90] sm:$0xff]
        %v911 = vld [vmem:[%s460 + $0xb98] sm:$0xff]
        %v912 = vld [vmem:[%s460 + $0xba0] sm:$0xff]
        %v913 = vld [vmem:[%s460 + $0xba8] sm:$0xff]
        %v914 = vld [vmem:[%s460 + $0xbb0] sm:$0xff]
        %v915 = vld [vmem:[%s460 + $0xbb8] sm:$0xff]
        %v916 = vld [vmem:[%s460 + $0xbc0] sm:$0xff]
        %v917 = vld [vmem:[%s460 + $0xbc8] sm:$0xff]
        %v918 = vld [vmem:[%s460 + $0xbd0] sm:$0xff]
        %v919 = vld [vmem:[%s460 + $0xbd8] sm:$0xff]
        %v920 = vld [vmem:[%s460 + $0xbe0] sm:$0xff]
        %v921 = vld [vmem:[%s460 + $0xbe8] sm:$0xff]
        %v922 = vld [vmem:[%s460 + $0xbf0] sm:$0xff]
        %v923 = vld [vmem:[%s460 + $0xbf8] sm:$0xff]
        %v924 = vld [vmem:[%s460 + $0xc00] sm:$0xff]
        %v925 = vld [vmem:[%s460 + $0xc08] sm:$0xff]
        %v926 = vld [vmem:[%s460 + $0xc10] sm:$0xff]
        %v927 = vld [vmem:[%s460 + $0xc18] sm:$0xff]
        %v928 = vld [vmem:[%s460 + $0xc20] sm:$0xff]
        %v929 = vld [vmem:[%s460 + $0xc28] sm:$0xff]
        %v930 = vld [vmem:[%s460 + $0xc30] sm:$0xff]
        %v931 = vld [vmem:[%s460 + $0xc38] sm:$0xff]
        %v932 = vld [vmem:[%s460 + $0xc40] sm:$0xff]
        %v933 = vld [vmem:[%s460 + $0xc48] sm:$0xff]
        %v934 = vld [vmem:[%s460 + $0xc50] sm:$0xff]
        %v935 = vld [vmem:[%s460 + $0xc58] sm:$0xff]
        %v936 = vld [vmem:[%s460 + $0xc60] sm:$0xff]
        %v937 = vld [vmem:[%s460 + $0xc68] sm:$0xff]
        %v938 = vld [vmem:[%s460 + $0xc70] sm:$0xff]
        %v939 = vld [vmem:[%s460 + $0xc78] sm:$0xff]
        %v940 = vld [vmem:[%s460 + $0xc80] sm:$0xff]
        %v941 = vld [vmem:[%s460 + $0xc88] sm:$0xff]
        %v942 = vld [vmem:[%s460 + $0xc90] sm:$0xff]
        %v943 = vld [vmem:[%s460 + $0xc98] sm:$0xff]
        %v944 = vld [vmem:[%s460 + $0xca0] sm:$0xff]
        %v945 = vld [vmem:[%s460 + $0xca8] sm:$0xff]
        %v946 = vld [vmem:[%s460 + $0xcb0] sm:$0xff]
        %v947 = vld [vmem:[%s460 + $0xcb8] sm:$0xff]
        %v948 = vld [vmem:[%s460 + $0xcc0] sm:$0xff]
        %v949 = vld [vmem:[%s460 + $0xcc8] sm:$0xff]
        %v950 = vld [vmem:[%s460 + $0xcd0] sm:$0xff]
        %v951 = vld [vmem:[%s460 + $0xcd8] sm:$0xff]
        %v952 = vld [vmem:[%s460 + $0xce0] sm:$0xff]
        %v953 = vld [vmem:[%s460 + $0xce8] sm:$0xff]
        %v954 = vld [vmem:[%s460 + $0xcf0] sm:$0xff]
        %v955 = vld [vmem:[%s460 + $0xcf8] sm:$0xff]
        %v956 = vld [vmem:[%s460 + $0xd00] sm:$0xff]
        %v957 = vld [vmem:[%s460 + $0xd08] sm:$0xff]
        %v958 = vld [vmem:[%s460 + $0xd10] sm:$0xff]
        %v959 = vld [vmem:[%s460 + $0xd18] sm:$0xff]
        %v960 = vld [vmem:[%s460 + $0xd20] sm:$0xff]
        %v961 = vld [vmem:[%s460 + $0xd28] sm:$0xff]
        %v962 = vld [vmem:[%s460 + $0xd30] sm:$0xff]
        %v963 = vld [vmem:[%s460 + $0xd38] sm:$0xff]
        %v964 = vld [vmem:[%s460 + $0xd40] sm:$0xff]
        %v965 = vld [vmem:[%s460 + $0xd48] sm:$0xff]
        %v966 = vld [vmem:[%s460 + $0xd50] sm:$0xff]
        %v967 = vld [vmem:[%s460 + $0xd58] sm:$0xff]
        %v968 = vld [vmem:[%s460 + $0xd60] sm:$0xff]
        %v969 = vld [vmem:[%s460 + $0xd68] sm:$0xff]
        %v970 = vld [vmem:[%s460 + $0xd70] sm:$0xff]
        %v971 = vld [vmem:[%s460 + $0xd78] sm:$0xff]
        %v972 = vld [vmem:[%s460 + $0xd80] sm:$0xff]
        %v973 = vld [vmem:[%s460 + $0xd88] sm:$0xff]
        %v974 = vld [vmem:[%s460 + $0xd90] sm:$0xff]
        %v975 = vld [vmem:[%s460 + $0xd98] sm:$0xff]
        %v976 = vld [vmem:[%s460 + $0xda0] sm:$0xff]
        %v977 = vld [vmem:[%s460 + $0xda8] sm:$0xff]
        %v978 = vld [vmem:[%s460 + $0xdb0] sm:$0xff]
        %v979 = vld [vmem:[%s460 + $0xdb8] sm:$0xff]
        %v980 = vld [vmem:[%s460 + $0xdc0] sm:$0xff]
        %v981 = vld [vmem:[%s460 + $0xdc8] sm:$0xff]
        %v982 = vld [vmem:[%s460 + $0xdd0] sm:$0xff]
        %v983 = vld [vmem:[%s460 + $0xdd8] sm:$0xff]
        %v984 = vld [vmem:[%s460 + $0xde0] sm:$0xff]
        %v985 = vld [vmem:[%s460 + $0xde8] sm:$0xff]
        %v986 = vld [vmem:[%s460 + $0xdf0] sm:$0xff]
        %v987 = vld [vmem:[%s460 + $0xdf8] sm:$0xff]
        %v988 = vld [vmem:[%s460 + $0xe00] sm:$0xff]
        %v989 = vld [vmem:[%s460 + $0xe08] sm:$0xff]
        %v990 = vld [vmem:[%s460 + $0xe10] sm:$0xff]
        %v991 = vld [vmem:[%s460 + $0xe18] sm:$0xff]
        %v992 = vld [vmem:[%s460 + $0xe20] sm:$0xff]
        %v993 = vld [vmem:[%s460 + $0xe28] sm:$0xff]
        %v994 = vld [vmem:[%s460 + $0xe30] sm:$0xff]
        %v995 = vld [vmem:[%s460 + $0xe38] sm:$0xff]
        %v996 = vld [vmem:[%s460 + $0xe40] sm:$0xff]
        %v997 = vld [vmem:[%s460 + $0xe48] sm:$0xff]
        %v998 = vld [vmem:[%s460 + $0xe50] sm:$0xff]
        %v999 = vld [vmem:[%s460 + $0xe58] sm:$0xff]
        %v1000 = vld [vmem:[%s460 + $0xe60] sm:$0xff]
        %v1001 = vld [vmem:[%s460 + $0xe68] sm:$0xff]
        %v1002 = vld [vmem:[%s460 + $0xe70] sm:$0xff]
        %v1003 = vld [vmem:[%s460 + $0xe78] sm:$0xff]
        %v1004 = vld [vmem:[%s460 + $0xe80] sm:$0xff]
        %v1005 = vld [vmem:[%s460 + $0xe88] sm:$0xff]
        %v1006 = vld [vmem:[%s460 + $0xe90] sm:$0xff]
        %v1007 = vld [vmem:[%s460 + $0xe98] sm:$0xff]
        %v1008 = vld [vmem:[%s460 + $0xea0] sm:$0xff]
        %v1009 = vld [vmem:[%s460 + $0xea8] sm:$0xff]
        %v1010 = vld [vmem:[%s460 + $0xeb0] sm:$0xff]
        %v1011 = vld [vmem:[%s460 + $0xeb8] sm:$0xff]
        %v1012 = vld [vmem:[%s460 + $0xec0] sm:$0xff]
        %v1013 = vld [vmem:[%s460 + $0xec8] sm:$0xff]
        %v1014 = vld [vmem:[%s460 + $0xed0] sm:$0xff]
        %v1015 = vld [vmem:[%s460 + $0xed8] sm:$0xff]
        %v1016 = vld [vmem:[%s460 + $0xee0] sm:$0xff]
        %v1017 = vld [vmem:[%s460 + $0xee8] sm:$0xff]
        %v1018 = vld [vmem:[%s460 + $0xef0] sm:$0xff]
        %v1019 = vld [vmem:[%s460 + $0xef8] sm:$0xff]
        %v1020 = vld [vmem:[%s460 + $0xf00] sm:$0xff]
        %v1021 = vld [vmem:[%s460 + $0xf08] sm:$0xff]
        %v1022 = vld [vmem:[%s460 + $0xf10] sm:$0xff]
        %v1023 = vld [vmem:[%s460 + $0xf18] sm:$0xff]
        %v1024 = vld [vmem:[%s460 + $0xf20] sm:$0xff]
        %v1025 = vld [vmem:[%s460 + $0xf28] sm:$0xff]
        %v1026 = vld [vmem:[%s460 + $0xf30] sm:$0xff]
        %v1027 = vld [vmem:[%s460 + $0xf38] sm:$0xff]
        %v1028 = vld [vmem:[%s460 + $0xf40] sm:$0xff]
        %v1029 = vld [vmem:[%s460 + $0xf48] sm:$0xff]
        %v1030 = vld [vmem:[%s460 + $0xf50] sm:$0xff]
        %v1031 = vld [vmem:[%s460 + $0xf58] sm:$0xff]
        %v1032 = vld [vmem:[%s460 + $0xf60] sm:$0xff]
        %v1033 = vld [vmem:[%s460 + $0xf68] sm:$0xff]
        %v1034 = vld [vmem:[%s460 + $0xf70] sm:$0xff]
        %v1035 = vld [vmem:[%s460 + $0xf78] sm:$0xff]
        %v1036 = vld [vmem:[%s460 + $0xf80] sm:$0xff]
        %v1037 = vld [vmem:[%s460 + $0xf88] sm:$0xff]
        %v1038 = vld [vmem:[%s460 + $0xf90] sm:$0xff]
        %v1039 = vld [vmem:[%s460 + $0xf98] sm:$0xff]
        %v1040 = vld [vmem:[%s460 + $0xfa0] sm:$0xff]
        %v1041 = vld [vmem:[%s460 + $0xfa8] sm:$0xff]
        %v1042 = vld [vmem:[%s460 + $0xfb0] sm:$0xff]
        %v1043 = vld [vmem:[%s460 + $0xfb8] sm:$0xff]
        %v1044 = vld [vmem:[%s460 + $0xfc0] sm:$0xff]
        %v1045 = vld [vmem:[%s460 + $0xfc8] sm:$0xff]
        %v1046 = vld [vmem:[%s460 + $0xfd0] sm:$0xff]
        %v1047 = vld [vmem:[%s460 + $0xfd8] sm:$0xff]
        %v1048 = vld [vmem:[%s460 + $0xfe0] sm:$0xff]
        %v1049 = vld [vmem:[%s460 + $0xfe8] sm:$0xff]
        %v1050 = vld [vmem:[%s460 + $0xff0] sm:$0xff]
        %v1051 = vld [vmem:[%s460 + $0xff8] sm:$0xff]
        %v1052 = vld [vmem:[%s460 + $0x1000] sm:$0xff]
        %v1053 = vld [vmem:[%s460 + $0x1008] sm:$0xff]
        %v1054 = vld [vmem:[%s460 + $0x1010] sm:$0xff]
        %v1055 = vld [vmem:[%s460 + $0x1018] sm:$0xff]
        %v1056 = vld [vmem:[%s460 + $0x1020] sm:$0xff]
        %v1057 = vld [vmem:[%s460 + $0x1028] sm:$0xff]
        %v1058 = vld [vmem:[%s460 + $0x1030] sm:$0xff]
        %v1059 = vld [vmem:[%s460 + $0x1038] sm:$0xff]
        %v1060 = vld [vmem:[%s460 + $0x1040] sm:$0xff]
        %v1061 = vld [vmem:[%s460 + $0x1048] sm:$0xff]
        %v1062 = vld [vmem:[%s460 + $0x1050] sm:$0xff]
        %v1063 = vld [vmem:[%s460 + $0x1058] sm:$0xff]
        %v1064 = vld [vmem:[%s460 + $0x1060] sm:$0xff]
        %v1065 = vld [vmem:[%s460 + $0x1068] sm:$0xff]
        %v1066 = vld [vmem:[%s460 + $0x1070] sm:$0xff]
        %v1067 = vld [vmem:[%s460 + $0x1078] sm:$0xff]
        %v1068 = vld [vmem:[%s460 + $0x1080] sm:$0xff]
        %v1069 = vld [vmem:[%s460 + $0x1088] sm:$0xff]
        %v1070 = vld [vmem:[%s460 + $0x1090] sm:$0xff]
        %v1071 = vld [vmem:[%s460 + $0x1098] sm:$0xff]
        %v1072 = vld [vmem:[%s460 + $0x10a0] sm:$0xff]
        %v1073 = vld [vmem:[%s460 + $0x10a8] sm:$0xff]
        %v1074 = vld [vmem:[%s460 + $0x10b0] sm:$0xff]
        %v1075 = vld [vmem:[%s460 + $0x10b8] sm:$0xff]
        %v1076 = vld [vmem:[%s460 + $0x10c0] sm:$0xff]
        %v1077 = vld [vmem:[%s460 + $0x10c8] sm:$0xff]
        %v1078 = vld [vmem:[%s460 + $0x10d0] sm:$0xff]
        %v1079 = vld [vmem:[%s460 + $0x10d8] sm:$0xff]
        %v1080 = vld [vmem:[%s460 + $0x10e0] sm:$0xff]
        %v1081 = vld [vmem:[%s460 + $0x10e8] sm:$0xff]
        %v1082 = vld [vmem:[%s460 + $0x10f0] sm:$0xff]
        %v1083 = vld [vmem:[%s460 + $0x10f8] sm:$0xff]
        %v1084 = vld [vmem:[%s460 + $0x1100] sm:$0xff]
        %v1085 = vld [vmem:[%s460 + $0x1108] sm:$0xff]
        %v1086 = vld [vmem:[%s460 + $0x1110] sm:$0xff]
        %v1087 = vld [vmem:[%s460 + $0x1118] sm:$0xff]
        %v1088 = vld [vmem:[%s460 + $0x1120] sm:$0xff]
        %v1089 = vld [vmem:[%s460 + $0x1128] sm:$0xff]
        %v1090 = vld [vmem:[%s460 + $0x1130] sm:$0xff]
        %v1091 = vld [vmem:[%s460 + $0x1138] sm:$0xff]
        %v1092 = vld [vmem:[%s460 + $0x1140] sm:$0xff]
        %v1093 = vld [vmem:[%s460 + $0x1148] sm:$0xff]
        %v1094 = vld [vmem:[%s460 + $0x1150] sm:$0xff]
        %v1095 = vld [vmem:[%s460 + $0x1158] sm:$0xff]
        %v1096 = vld [vmem:[%s460 + $0x1160] sm:$0xff]
        %v1097 = vld [vmem:[%s460 + $0x1168] sm:$0xff]
        %v1098 = vld [vmem:[%s460 + $0x1170] sm:$0xff]
        %v1099 = vld [vmem:[%s460 + $0x1178] sm:$0xff]
        %v1100 = vld [vmem:[%s460 + $0x1180] sm:$0xff]
        %v1101 = vld [vmem:[%s460 + $0x1188] sm:$0xff]
        %v1102 = vld [vmem:[%s460 + $0x1190] sm:$0xff]
        %v1103 = vld [vmem:[%s460 + $0x1198] sm:$0xff]
        %v1104 = vld [vmem:[%s460 + $0x11a0] sm:$0xff]
        %v1105 = vld [vmem:[%s460 + $0x11a8] sm:$0xff]
        %v1106 = vld [vmem:[%s460 + $0x11b0] sm:$0xff]
        %v1107 = vld [vmem:[%s460 + $0x11b8] sm:$0xff]
        %v1108 = vld [vmem:[%s460 + $0x11c0] sm:$0xff]
        %v1109 = vld [vmem:[%s460 + $0x11c8] sm:$0xff]
        %v1110 = vld [vmem:[%s460 + $0x11d0] sm:$0xff]
        %v1111 = vld [vmem:[%s460 + $0x11d8] sm:$0xff]
        %v1112 = vld [vmem:[%s460 + $0x11e0] sm:$0xff]
        %v1113 = vld [vmem:[%s460 + $0x11e8] sm:$0xff]
        %v1114 = vld [vmem:[%s460 + $0x11f0] sm:$0xff]
        %v1115 = vld [vmem:[%s460 + $0x11f8] sm:$0xff]
        %v1116 = vld [vmem:[%s460 + $0x1200] sm:$0xff]
        %v1117 = vld [vmem:[%s460 + $0x1208] sm:$0xff]
        %v1118 = vld [vmem:[%s460 + $0x1210] sm:$0xff]
        %v1119 = vld [vmem:[%s460 + $0x1218] sm:$0xff]
        %v1120 = vld [vmem:[%s460 + $0x1220] sm:$0xff]
        %v1121 = vld [vmem:[%s460 + $0x1228] sm:$0xff]
        %v1122 = vld [vmem:[%s460 + $0x1230] sm:$0xff]
        %v1123 = vld [vmem:[%s460 + $0x1238] sm:$0xff]
        %v1124 = vld [vmem:[%s460 + $0x1240] sm:$0xff]
        %v1125 = vld [vmem:[%s460 + $0x1248] sm:$0xff]
        %v1126 = vld [vmem:[%s460 + $0x1250] sm:$0xff]
        %v1127 = vld [vmem:[%s460 + $0x1258] sm:$0xff]
        %v1128 = vld [vmem:[%s460 + $0x1260] sm:$0xff]
        %v1129 = vld [vmem:[%s460 + $0x1268] sm:$0xff]
        %v1130 = vld [vmem:[%s460 + $0x1270] sm:$0xff]
        %v1131 = vld [vmem:[%s460 + $0x1278] sm:$0xff]
        %v1132 = vld [vmem:[%s460 + $0x1280] sm:$0xff]
        %v1133 = vld [vmem:[%s460 + $0x1288] sm:$0xff]
        %v1134 = vld [vmem:[%s460 + $0x1290] sm:$0xff]
        %v1135 = vld [vmem:[%s460 + $0x1298] sm:$0xff]
        %v1136 = vld [vmem:[%s460 + $0x12a0] sm:$0xff]
        %v1137 = vld [vmem:[%s460 + $0x12a8] sm:$0xff]
        %v1138 = vld [vmem:[%s460 + $0x12b0] sm:$0xff]
        %v1139 = vld [vmem:[%s460 + $0x12b8] sm:$0xff]
        %v1140 = vld [vmem:[%s460 + $0x12c0] sm:$0xff]
        %v1141 = vld [vmem:[%s460 + $0x12c8] sm:$0xff]
        %v1142 = vld [vmem:[%s460 + $0x12d0] sm:$0xff]
        %v1143 = vld [vmem:[%s460 + $0x12d8] sm:$0xff]
        %v1144 = vld [vmem:[%s460 + $0x12e0] sm:$0xff]
        %v1145 = vld [vmem:[%s460 + $0x12e8] sm:$0xff]
        %v1146 = vld [vmem:[%s460 + $0x12f0] sm:$0xff]
        %v1147 = vld [vmem:[%s460 + $0x12f8] sm:$0xff]
        %v1148 = vld [vmem:[%s460 + $0x1300] sm:$0xff]
        %v1149 = vld [vmem:[%s460 + $0x1308] sm:$0xff]
        %v1150 = vld [vmem:[%s460 + $0x1310] sm:$0xff]
        %v1151 = vld [vmem:[%s460 + $0x1318] sm:$0xff]
        %v1152 = vld [vmem:[%s460 + $0x1320] sm:$0xff]
        %v1153 = vld [vmem:[%s460 + $0x1328] sm:$0xff]
        %v1154 = vld [vmem:[%s460 + $0x1330] sm:$0xff]
        %v1155 = vld [vmem:[%s460 + $0x1338] sm:$0xff]
        %v1156 = vld [vmem:[%s460 + $0x1340] sm:$0xff]
        %v1157 = vld [vmem:[%s460 + $0x1348] sm:$0xff]
        %v1158 = vld [vmem:[%s460 + $0x1350] sm:$0xff]
        %v1159 = vld [vmem:[%s460 + $0x1358] sm:$0xff]
        %v1160 = vld [vmem:[%s460 + $0x1360] sm:$0xff]
        %v1161 = vld [vmem:[%s460 + $0x1368] sm:$0xff]
        %v1162 = vld [vmem:[%s460 + $0x1370] sm:$0xff]
        %v1163 = vld [vmem:[%s460 + $0x1378] sm:$0xff]
        %v1164 = vld [vmem:[%s460 + $0x1380] sm:$0xff]
        %v1165 = vld [vmem:[%s460 + $0x1388] sm:$0xff]
        %v1166 = vld [vmem:[%s460 + $0x1390] sm:$0xff]
        %v1167 = vld [vmem:[%s460 + $0x1398] sm:$0xff]
        %v1168 = vld [vmem:[%s460 + $0x13a0] sm:$0xff]
        %v1169 = vld [vmem:[%s460 + $0x13a8] sm:$0xff]
        %v1170 = vld [vmem:[%s460 + $0x13b0] sm:$0xff]
        %v1171 = vld [vmem:[%s460 + $0x13b8] sm:$0xff]
        %v1172 = vld [vmem:[%s460 + $0x13c0] sm:$0xff]
        %v1173 = vld [vmem:[%s460 + $0x13c8] sm:$0xff]
        %v1174 = vld [vmem:[%s460 + $0x13d0] sm:$0xff]
        %v1175 = vld [vmem:[%s460 + $0x13d8] sm:$0xff]
        %v1176 = vld [vmem:[%s460 + $0x13e0] sm:$0xff]
        %v1177 = vld [vmem:[%s460 + $0x13e8] sm:$0xff]
        %v1178 = vld [vmem:[%s460 + $0x13f0] sm:$0xff]
        %v1179 = vld [vmem:[%s460 + $0x13f8] sm:$0xff]
        %v1180 = vld [vmem:[%s460 + $0x1400] sm:$0xff]
        %v1181 = vld [vmem:[%s460 + $0x1408] sm:$0xff]
        %v1182 = vld [vmem:[%s460 + $0x1410] sm:$0xff]
        %v1183 = vld [vmem:[%s460 + $0x1418] sm:$0xff]
        %v1184 = vld [vmem:[%s460 + $0x1420] sm:$0xff]
        %v1185 = vld [vmem:[%s460 + $0x1428] sm:$0xff]
        %v1186 = vld [vmem:[%s460 + $0x1430] sm:$0xff]
        %v1187 = vld [vmem:[%s460 + $0x1438] sm:$0xff]
        %v1188 = vld [vmem:[%s460 + $0x1440] sm:$0xff]
        %v1189 = vld [vmem:[%s460 + $0x1448] sm:$0xff]
        %v1190 = vld [vmem:[%s460 + $0x1450] sm:$0xff]
        %v1191 = vld [vmem:[%s460 + $0x1458] sm:$0xff]
        %v1192 = vld [vmem:[%s460 + $0x1460] sm:$0xff]
        %v1193 = vld [vmem:[%s460 + $0x1468] sm:$0xff]
        %v1194 = vld [vmem:[%s460 + $0x1470] sm:$0xff]
        %v1195 = vld [vmem:[%s460 + $0x1478] sm:$0xff]
        %v1196 = vld [vmem:[%s460 + $0x1480] sm:$0xff]
        %v1197 = vld [vmem:[%s460 + $0x1488] sm:$0xff]
        %v1198 = vld [vmem:[%s460 + $0x1490] sm:$0xff]
        %v1199 = vld [vmem:[%s460 + $0x1498] sm:$0xff]
        %v1200 = vld [vmem:[%s460 + $0x14a0] sm:$0xff]
        %v1201 = vld [vmem:[%s460 + $0x14a8] sm:$0xff]
        %v1202 = vld [vmem:[%s460 + $0x14b0] sm:$0xff]
        %v1203 = vld [vmem:[%s460 + $0x14b8] sm:$0xff]
        %v1204 = vld [vmem:[%s460 + $0x14c0] sm:$0xff]
        %v1205 = vld [vmem:[%s460 + $0x14c8] sm:$0xff]
        %v1206 = vld [vmem:[%s460 + $0x14d0] sm:$0xff]
        %v1207 = vld [vmem:[%s460 + $0x14d8] sm:$0xff]
        %v1208 = vld [vmem:[%s460 + $0x14e0] sm:$0xff]
        %v1209 = vld [vmem:[%s460 + $0x14e8] sm:$0xff]
        %v1210 = vld [vmem:[%s460 + $0x14f0] sm:$0xff]
        %v1211 = vld [vmem:[%s460 + $0x14f8] sm:$0xff]
        %v1212 = vld [vmem:[%s460 + $0x1500] sm:$0xff]
        %v1213 = vld [vmem:[%s460 + $0x1508] sm:$0xff]
        %v1214 = vld [vmem:[%s460 + $0x1510] sm:$0xff]
        %v1215 = vld [vmem:[%s460 + $0x1518] sm:$0xff]
        %v1216 = vld [vmem:[%s460 + $0x1520] sm:$0xff]
        %v1217 = vld [vmem:[%s460 + $0x1528] sm:$0xff]
        %v1218 = vld [vmem:[%s460 + $0x1530] sm:$0xff]
        %v1219 = vld [vmem:[%s460 + $0x1538] sm:$0xff]
        %v1220 = vld [vmem:[%s460 + $0x1540] sm:$0xff]
        %v1221 = vld [vmem:[%s460 + $0x1548] sm:$0xff]
        %v1222 = vld [vmem:[%s460 + $0x1550] sm:$0xff]
        %v1223 = vld [vmem:[%s460 + $0x1558] sm:$0xff]
        %v1224 = vld [vmem:[%s460 + $0x1560] sm:$0xff]
        %v1225 = vld [vmem:[%s460 + $0x1568] sm:$0xff]
        %v1226 = vld [vmem:[%s460 + $0x1570] sm:$0xff]
        %v1227 = vld [vmem:[%s460 + $0x1578] sm:$0xff]
        %v1228 = vld [vmem:[%s460 + $0x1580] sm:$0xff]
        %v1229 = vld [vmem:[%s460 + $0x1588] sm:$0xff]
        %v1230 = vld [vmem:[%s460 + $0x1590] sm:$0xff]
        %v1231 = vld [vmem:[%s460 + $0x1598] sm:$0xff]
        %v1232 = vld [vmem:[%s460 + $0x15a0] sm:$0xff]
        %v1233 = vld [vmem:[%s460 + $0x15a8] sm:$0xff]
        %v1234 = vld [vmem:[%s460 + $0x15b0] sm:$0xff]
        %v1235 = vld [vmem:[%s460 + $0x15b8] sm:$0xff]
        %v1236 = vld [vmem:[%s460 + $0x15c0] sm:$0xff]
        %v1237 = vld [vmem:[%s460 + $0x15c8] sm:$0xff]
        %v1238 = vld [vmem:[%s460 + $0x15d0] sm:$0xff]
        %v1239 = vld [vmem:[%s460 + $0x15d8] sm:$0xff]
        %v1240 = vld [vmem:[%s460 + $0x15e0] sm:$0xff]
        %v1241 = vld [vmem:[%s460 + $0x15e8] sm:$0xff]
        %v1242 = vld [vmem:[%s460 + $0x15f0] sm:$0xff]
        %v1243 = vld [vmem:[%s460 + $0x15f8] sm:$0xff]
        %v1244 = vld [vmem:[%s460 + $0x1600] sm:$0xff]
        %v1245 = vld [vmem:[%s460 + $0x1608] sm:$0xff]
        %v1246 = vld [vmem:[%s460 + $0x1610] sm:$0xff]
        %v1247 = vld [vmem:[%s460 + $0x1618] sm:$0xff]
        %v1248 = vld [vmem:[%s460 + $0x1620] sm:$0xff]
        %v1249 = vld [vmem:[%s460 + $0x1628] sm:$0xff]
        %v1250 = vld [vmem:[%s460 + $0x1630] sm:$0xff]
        %v1251 = vld [vmem:[%s460 + $0x1638] sm:$0xff]
        %v1252 = vld [vmem:[%s460 + $0x1640] sm:$0xff]
        %v1253 = vld [vmem:[%s460 + $0x1648] sm:$0xff]
        %v1254 = vld [vmem:[%s460 + $0x1650] sm:$0xff]
        %v1255 = vld [vmem:[%s460 + $0x1658] sm:$0xff]
        %v1256 = vld [vmem:[%s460 + $0x1660] sm:$0xff]
        %v1257 = vld [vmem:[%s460 + $0x1668] sm:$0xff]
        %v1258 = vld [vmem:[%s460 + $0x1670] sm:$0xff]
        %v1259 = vld [vmem:[%s460 + $0x1678] sm:$0xff]
        %v1260 = vld [vmem:[%s460 + $0x1680] sm:$0xff]
        %v1261 = vld [vmem:[%s460 + $0x1688] sm:$0xff]
        %v1262 = vld [vmem:[%s460 + $0x1690] sm:$0xff]
        %v1263 = vld [vmem:[%s460 + $0x1698] sm:$0xff]
        %v1264 = vld [vmem:[%s460 + $0x16a0] sm:$0xff]
        %v1265 = vld [vmem:[%s460 + $0x16a8] sm:$0xff]
        %v1266 = vld [vmem:[%s460 + $0x16b0] sm:$0xff]
        %v1267 = vld [vmem:[%s460 + $0x16b8] sm:$0xff]
        %v1268 = vld [vmem:[%s460 + $0x16c0] sm:$0xff]
        %v1269 = vld [vmem:[%s460 + $0x16c8] sm:$0xff]
        %v1270 = vld [vmem:[%s460 + $0x16d0] sm:$0xff]
        %v1271 = vld [vmem:[%s460 + $0x16d8] sm:$0xff]
        %v1272 = vld [vmem:[%s460 + $0x16e0] sm:$0xff]
        %v1273 = vld [vmem:[%s460 + $0x16e8] sm:$0xff]
        %v1274 = vld [vmem:[%s460 + $0x16f0] sm:$0xff]
        %v1275 = vld [vmem:[%s460 + $0x16f8] sm:$0xff]
        %v1276 = vld [vmem:[%s460 + $0x1700] sm:$0xff]
        %v1277 = vld [vmem:[%s460 + $0x1708] sm:$0xff]
        %v1278 = vld [vmem:[%s460 + $0x1710] sm:$0xff]
        %v1279 = vld [vmem:[%s460 + $0x1718] sm:$0xff]
        %v1280 = vld [vmem:[%s460 + $0x1720] sm:$0xff]
        %v1281 = vld [vmem:[%s460 + $0x1728] sm:$0xff]
        %v1282 = vld [vmem:[%s460 + $0x1730] sm:$0xff]
        %v1283 = vld [vmem:[%s460 + $0x1738] sm:$0xff]
        %v1284 = vld [vmem:[%s460 + $0x1740] sm:$0xff]
        %v1285 = vld [vmem:[%s460 + $0x1748] sm:$0xff]
        %v1286 = vld [vmem:[%s460 + $0x1750] sm:$0xff]
        %v1287 = vld [vmem:[%s460 + $0x1758] sm:$0xff]
        %v1288 = vld [vmem:[%s460 + $0x1760] sm:$0xff]
        %v1289 = vld [vmem:[%s460 + $0x1768] sm:$0xff]
        %v1290 = vld [vmem:[%s460 + $0x1770] sm:$0xff]
        %v1291 = vld [vmem:[%s460 + $0x1778] sm:$0xff]
        %v1292 = vld [vmem:[%s460 + $0x1780] sm:$0xff]
        %v1293 = vld [vmem:[%s460 + $0x1788] sm:$0xff]
        %v1294 = vld [vmem:[%s460 + $0x1790] sm:$0xff]
        %v1295 = vld [vmem:[%s460 + $0x1798] sm:$0xff]
        %v1296 = vld [vmem:[%s460 + $0x17a0] sm:$0xff]
        %v1297 = vld [vmem:[%s460 + $0x17a8] sm:$0xff]
        %v1298 = vld [vmem:[%s460 + $0x17b0] sm:$0xff]
        %v1299 = vld [vmem:[%s460 + $0x17b8] sm:$0xff]
        %v1300 = vld [vmem:[%s460 + $0x17c0] sm:$0xff]
        %v1301 = vld [vmem:[%s460 + $0x17c8] sm:$0xff]
        %v1302 = vld [vmem:[%s460 + $0x17d0] sm:$0xff]
        %v1303 = vld [vmem:[%s460 + $0x17d8] sm:$0xff]
        %v1304 = vld [vmem:[%s460 + $0x17e0] sm:$0xff]
        %v1305 = vld [vmem:[%s460 + $0x17e8] sm:$0xff]
        %v1306 = vld [vmem:[%s460 + $0x17f0] sm:$0xff]
        %v1307 = vld [vmem:[%s460 + $0x17f8] sm:$0xff]
        %v1308 = vld [vmem:[%s460 + $0x1800] sm:$0xff]
        %v1309 = vld [vmem:[%s460 + $0x1808] sm:$0xff]
        %v1310 = vld [vmem:[%s460 + $0x1810] sm:$0xff]
        %v1311 = vld [vmem:[%s460 + $0x1818] sm:$0xff]
        %v1312 = vld [vmem:[%s460 + $0x1820] sm:$0xff]
        %v1313 = vld [vmem:[%s460 + $0x1828] sm:$0xff]
        %v1314 = vld [vmem:[%s460 + $0x1830] sm:$0xff]
        %v1315 = vld [vmem:[%s460 + $0x1838] sm:$0xff]
        %v1316 = vld [vmem:[%s460 + $0x1840] sm:$0xff]
        %v1317 = vld [vmem:[%s460 + $0x1848] sm:$0xff]
        %v1318 = vld [vmem:[%s460 + $0x1850] sm:$0xff]
        %v1319 = vld [vmem:[%s460 + $0x1858] sm:$0xff]
        %v1320 = vld [vmem:[%s460 + $0x1860] sm:$0xff]
        %v1321 = vld [vmem:[%s460 + $0x1868] sm:$0xff]
        %v1322 = vld [vmem:[%s460 + $0x1870] sm:$0xff]
        %v1323 = vld [vmem:[%s460 + $0x1878] sm:$0xff]
        %v1324 = vld [vmem:[%s460 + $0x1880] sm:$0xff]
        %v1325 = vld [vmem:[%s460 + $0x1888] sm:$0xff]
        %v1326 = vld [vmem:[%s460 + $0x1890] sm:$0xff]
        %v1327 = vld [vmem:[%s460 + $0x1898] sm:$0xff]
        %v1328 = vld [vmem:[%s460 + $0x18a0] sm:$0xff]
        %v1329 = vld [vmem:[%s460 + $0x18a8] sm:$0xff]
        %v1330 = vld [vmem:[%s460 + $0x18b0] sm:$0xff]
        %v1331 = vld [vmem:[%s460 + $0x18b8] sm:$0xff]
        %v1332 = vld [vmem:[%s460 + $0x18c0] sm:$0xff]
        %v1333 = vld [vmem:[%s460 + $0x18c8] sm:$0xff]
        %v1334 = vld [vmem:[%s460 + $0x18d0] sm:$0xff]
        %v1335 = vld [vmem:[%s460 + $0x18d8] sm:$0xff]
        %v1336 = vld [vmem:[%s460 + $0x18e0] sm:$0xff]
        %v1337 = vld [vmem:[%s460 + $0x18e8] sm:$0xff]
        %v1338 = vld [vmem:[%s460 + $0x18f0] sm:$0xff]
        %v1339 = vld [vmem:[%s460 + $0x18f8] sm:$0xff]
        %v1340 = vld [vmem:[%s460 + $0x1900] sm:$0xff]
        %v1341 = vld [vmem:[%s460 + $0x1908] sm:$0xff]
        %v1342 = vld [vmem:[%s460 + $0x1910] sm:$0xff]
        %v1343 = vld [vmem:[%s460 + $0x1918] sm:$0xff]
        %v1344 = vld [vmem:[%s460 + $0x1920] sm:$0xff]
        %v1345 = vld [vmem:[%s460 + $0x1928] sm:$0xff]
        %v1346 = vld [vmem:[%s460 + $0x1930] sm:$0xff]
        %v1347 = vld [vmem:[%s460 + $0x1938] sm:$0xff]
        %v1348 = vld [vmem:[%s460 + $0x1940] sm:$0xff]
        %v1349 = vld [vmem:[%s460 + $0x1948] sm:$0xff]
        %v1350 = vld [vmem:[%s460 + $0x1950] sm:$0xff]
        %v1351 = vld [vmem:[%s460 + $0x1958] sm:$0xff]
        %v1352 = vld [vmem:[%s460 + $0x1960] sm:$0xff]
        %v1353 = vld [vmem:[%s460 + $0x1968] sm:$0xff]
        %v1354 = vld [vmem:[%s460 + $0x1970] sm:$0xff]
        %v1355 = vld [vmem:[%s460 + $0x1978] sm:$0xff]
        %v1356 = vld [vmem:[%s460 + $0x1980] sm:$0xff]
        %v1357 = vld [vmem:[%s460 + $0x1988] sm:$0xff]
        %v1358 = vld [vmem:[%s460 + $0x1990] sm:$0xff]
        %v1359 = vld [vmem:[%s460 + $0x1998] sm:$0xff]
        %v1360 = vld [vmem:[%s460 + $0x19a0] sm:$0xff]
        %v1361 = vld [vmem:[%s460 + $0x19a8] sm:$0xff]
        %v1362 = vld [vmem:[%s460 + $0x19b0] sm:$0xff]
        %v1363 = vld [vmem:[%s460 + $0x19b8] sm:$0xff]
        %v1364 = vld [vmem:[%s460 + $0x19c0] sm:$0xff]
        %v1365 = vld [vmem:[%s460 + $0x19c8] sm:$0xff]
        %v1366 = vld [vmem:[%s460 + $0x19d0] sm:$0xff]
        %v1367 = vld [vmem:[%s460 + $0x19d8] sm:$0xff]
        %v1368 = vld [vmem:[%s460 + $0x19e0] sm:$0xff]
        %v1369 = vld [vmem:[%s460 + $0x19e8] sm:$0xff]
        %v1370 = vld [vmem:[%s460 + $0x19f0] sm:$0xff]
        %v1371 = vld [vmem:[%s460 + $0x19f8] sm:$0xff]
        %v1372 = vld [vmem:[%s460 + $0x1a00] sm:$0xff]
        %v1373 = vld [vmem:[%s460 + $0x1a08] sm:$0xff]
        %v1374 = vld [vmem:[%s460 + $0x1a10] sm:$0xff]
        %v1375 = vld [vmem:[%s460 + $0x1a18] sm:$0xff]
        %v1376 = vld [vmem:[%s460 + $0x1a20] sm:$0xff]
        %v1377 = vld [vmem:[%s460 + $0x1a28] sm:$0xff]
        %v1378 = vld [vmem:[%s460 + $0x1a30] sm:$0xff]
        %v1379 = vld [vmem:[%s460 + $0x1a38] sm:$0xff]
        %v1380 = vld [vmem:[%s460 + $0x1a40] sm:$0xff]
        %v1381 = vld [vmem:[%s460 + $0x1a48] sm:$0xff]
        %v1382 = vld [vmem:[%s460 + $0x1a50] sm:$0xff]
        %v1383 = vld [vmem:[%s460 + $0x1a58] sm:$0xff]
        %v1384 = vld [vmem:[%s460 + $0x1a60] sm:$0xff]
        %v1385 = vld [vmem:[%s460 + $0x1a68] sm:$0xff]
        %v1386 = vld [vmem:[%s460 + $0x1a70] sm:$0xff]
        %v1387 = vld [vmem:[%s460 + $0x1a78] sm:$0xff]
        %v1388 = vld [vmem:[%s460 + $0x1a80] sm:$0xff]
        %v1389 = vld [vmem:[%s460 + $0x1a88] sm:$0xff]
        %v1390 = vld [vmem:[%s460 + $0x1a90] sm:$0xff]
        %v1391 = vld [vmem:[%s460 + $0x1a98] sm:$0xff]
        %v1392 = vld [vmem:[%s460 + $0x1aa0] sm:$0xff]
        %v1393 = vld [vmem:[%s460 + $0x1aa8] sm:$0xff]
        %v1394 = vld [vmem:[%s460 + $0x1ab0] sm:$0xff]
        %v1395 = vld [vmem:[%s460 + $0x1ab8] sm:$0xff]
        %v1396 = vld [vmem:[%s460 + $0x1ac0] sm:$0xff]
        %v1397 = vld [vmem:[%s460 + $0x1ac8] sm:$0xff]
        %v1398 = vld [vmem:[%s460 + $0x1ad0] sm:$0xff]
        %v1399 = vld [vmem:[%s460 + $0x1ad8] sm:$0xff]
        %v1400 = vld [vmem:[%s460 + $0x1ae0] sm:$0xff]
        %v1401 = vld [vmem:[%s460 + $0x1ae8] sm:$0xff]
        %v1402 = vld [vmem:[%s460 + $0x1af0] sm:$0xff]
        %v1403 = vld [vmem:[%s460 + $0x1af8] sm:$0xff]
        %v1404 = vld [vmem:[%s460 + $0x1b00] sm:$0xff]
        %v1405 = vld [vmem:[%s460 + $0x1b08] sm:$0xff]
        %v1406 = vld [vmem:[%s460 + $0x1b10] sm:$0xff]
        %v1407 = vld [vmem:[%s460 + $0x1b18] sm:$0xff]
        %v1408 = vld [vmem:[%s460 + $0x1b20] sm:$0xff]
        %v1409 = vld [vmem:[%s460 + $0x1b28] sm:$0xff]
        %v1410 = vld [vmem:[%s460 + $0x1b30] sm:$0xff]
        %v1411 = vld [vmem:[%s460 + $0x1b38] sm:$0xff]
        %v1412 = vld [vmem:[%s460 + $0x1b40] sm:$0xff]
        %v1413 = vld [vmem:[%s460 + $0x1b48] sm:$0xff]
        %v1414 = vld [vmem:[%s460 + $0x1b50] sm:$0xff]
        %v1415 = vld [vmem:[%s460 + $0x1b58] sm:$0xff]
        %v1416 = vld [vmem:[%s460 + $0x1b60] sm:$0xff]
        %v1417 = vld [vmem:[%s460 + $0x1b68] sm:$0xff]
        %v1418 = vld [vmem:[%s460 + $0x1b70] sm:$0xff]
        %v1419 = vld [vmem:[%s460 + $0x1b78] sm:$0xff]
        %v1420 = vld [vmem:[%s460 + $0x1b80] sm:$0xff]
        %v1421 = vld [vmem:[%s460 + $0x1b88] sm:$0xff]
        %v1422 = vld [vmem:[%s460 + $0x1b90] sm:$0xff]
        %v1423 = vld [vmem:[%s460 + $0x1b98] sm:$0xff]
        %v1424 = vld [vmem:[%s460 + $0x1ba0] sm:$0xff]
        %v1425 = vld [vmem:[%s460 + $0x1ba8] sm:$0xff]
        %v1426 = vld [vmem:[%s460 + $0x1bb0] sm:$0xff]
        %v1427 = vld [vmem:[%s460 + $0x1bb8] sm:$0xff]
        %v1428 = vld [vmem:[%s460 + $0x1bc0] sm:$0xff]
        %v1429 = vld [vmem:[%s460 + $0x1bc8] sm:$0xff]
        %v1430 = vld [vmem:[%s460 + $0x1bd0] sm:$0xff]
        %v1431 = vld [vmem:[%s460 + $0x1bd8] sm:$0xff]
        %v1432 = vld [vmem:[%s460 + $0x1be0] sm:$0xff]
        %v1433 = vld [vmem:[%s460 + $0x1be8] sm:$0xff]
        %v1434 = vld [vmem:[%s460 + $0x1bf0] sm:$0xff]
        %v1435 = vld [vmem:[%s460 + $0x1bf8] sm:$0xff]
        %v1436 = vld [vmem:[%s460 + $0x1c00] sm:$0xff]
        %v1437 = vld [vmem:[%s460 + $0x1c08] sm:$0xff]
        %v1438 = vld [vmem:[%s460 + $0x1c10] sm:$0xff]
        %v1439 = vld [vmem:[%s460 + $0x1c18] sm:$0xff]
        %v1440 = vld [vmem:[%s460 + $0x1c20] sm:$0xff]
        %v1441 = vld [vmem:[%s460 + $0x1c28] sm:$0xff]
        %v1442 = vld [vmem:[%s460 + $0x1c30] sm:$0xff]
        %v1443 = vld [vmem:[%s460 + $0x1c38] sm:$0xff]
        %v1444 = vld [vmem:[%s460 + $0x1c40] sm:$0xff]
        %v1445 = vld [vmem:[%s460 + $0x1c48] sm:$0xff]
        %v1446 = vld [vmem:[%s460 + $0x1c50] sm:$0xff]
        %v1447 = vld [vmem:[%s460 + $0x1c58] sm:$0xff]
        %v1448 = vld [vmem:[%s460 + $0x1c60] sm:$0xff]
        %v1449 = vld [vmem:[%s460 + $0x1c68] sm:$0xff]
        %v1450 = vld [vmem:[%s460 + $0x1c70] sm:$0xff]
        %v1451 = vld [vmem:[%s460 + $0x1c78] sm:$0xff]
        %v1452 = vld [vmem:[%s460 + $0x1c80] sm:$0xff]
        %v1453 = vld [vmem:[%s460 + $0x1c88] sm:$0xff]
        %v1454 = vld [vmem:[%s460 + $0x1c90] sm:$0xff]
        %v1455 = vld [vmem:[%s460 + $0x1c98] sm:$0xff]
        %v1456 = vld [vmem:[%s460 + $0x1ca0] sm:$0xff]
        %v1457 = vld [vmem:[%s460 + $0x1ca8] sm:$0xff]
        %v1458 = vld [vmem:[%s460 + $0x1cb0] sm:$0xff]
        %v1459 = vld [vmem:[%s460 + $0x1cb8] sm:$0xff]
        %v1460 = vld [vmem:[%s460 + $0x1cc0] sm:$0xff]
        %v1461 = vld [vmem:[%s460 + $0x1cc8] sm:$0xff]
        %v1462 = vld [vmem:[%s460 + $0x1cd0] sm:$0xff]
        %v1463 = vld [vmem:[%s460 + $0x1cd8] sm:$0xff]
        %v1464 = vld [vmem:[%s460 + $0x1ce0] sm:$0xff]
        %v1465 = vld [vmem:[%s460 + $0x1ce8] sm:$0xff]
        %v1466 = vld [vmem:[%s460 + $0x1cf0] sm:$0xff]
        %v1467 = vld [vmem:[%s460 + $0x1cf8] sm:$0xff]
        %v1468 = vld [vmem:[%s460 + $0x1d00] sm:$0xff]
        %v1469 = vld [vmem:[%s460 + $0x1d08] sm:$0xff]
        %v1470 = vld [vmem:[%s460 + $0x1d10] sm:$0xff]
        %v1471 = vld [vmem:[%s460 + $0x1d18] sm:$0xff]
        %v1472 = vld [vmem:[%s460 + $0x1d20] sm:$0xff]
        %v1473 = vld [vmem:[%s460 + $0x1d28] sm:$0xff]
        %v1474 = vld [vmem:[%s460 + $0x1d30] sm:$0xff]
        %v1475 = vld [vmem:[%s460 + $0x1d38] sm:$0xff]
        %v1476 = vld [vmem:[%s460 + $0x1d40] sm:$0xff]
        %v1477 = vld [vmem:[%s460 + $0x1d48] sm:$0xff]
        %v1478 = vld [vmem:[%s460 + $0x1d50] sm:$0xff]
        %v1479 = vld [vmem:[%s460 + $0x1d58] sm:$0xff]
        %v1480 = vld [vmem:[%s460 + $0x1d60] sm:$0xff]
        %v1481 = vld [vmem:[%s460 + $0x1d68] sm:$0xff]
        %v1482 = vld [vmem:[%s460 + $0x1d70] sm:$0xff]
        %v1483 = vld [vmem:[%s460 + $0x1d78] sm:$0xff]
        %v1484 = vld [vmem:[%s460 + $0x1d80] sm:$0xff]
        %v1485 = vld [vmem:[%s460 + $0x1d88] sm:$0xff]
        %v1486 = vld [vmem:[%s460 + $0x1d90] sm:$0xff]
        %v1487 = vld [vmem:[%s460 + $0x1d98] sm:$0xff]
        %v1488 = vld [vmem:[%s460 + $0x1da0] sm:$0xff]
        %v1489 = vld [vmem:[%s460 + $0x1da8] sm:$0xff]
        %v1490 = vld [vmem:[%s460 + $0x1db0] sm:$0xff]
        %v1491 = vld [vmem:[%s460 + $0x1db8] sm:$0xff]
        %v1492 = vld [vmem:[%s460 + $0x1dc0] sm:$0xff]
        %v1493 = vld [vmem:[%s460 + $0x1dc8] sm:$0xff]
        %v1494 = vld [vmem:[%s460 + $0x1dd0] sm:$0xff]
        %v1495 = vld [vmem:[%s460 + $0x1dd8] sm:$0xff]
        %v1496 = vld [vmem:[%s460 + $0x1de0] sm:$0xff]
        %v1497 = vld [vmem:[%s460 + $0x1de8] sm:$0xff]
        %v1498 = vld [vmem:[%s460 + $0x1df0] sm:$0xff]
        %v1499 = vld [vmem:[%s460 + $0x1df8] sm:$0xff]
        %v1500 = vld [vmem:[%s460 + $0x1e00] sm:$0xff]
        %v1501 = vld [vmem:[%s460 + $0x1e08] sm:$0xff]
        %v1502 = vld [vmem:[%s460 + $0x1e10] sm:$0xff]
        %v1503 = vld [vmem:[%s460 + $0x1e18] sm:$0xff]
        %v1504 = vld [vmem:[%s460 + $0x1e20] sm:$0xff]
        %v1505 = vld [vmem:[%s460 + $0x1e28] sm:$0xff]
        %v1506 = vld [vmem:[%s460 + $0x1e30] sm:$0xff]
        %v1507 = vld [vmem:[%s460 + $0x1e38] sm:$0xff]
        %v1508 = vld [vmem:[%s460 + $0x1e40] sm:$0xff]
        %v1509 = vld [vmem:[%s460 + $0x1e48] sm:$0xff]
        %v1510 = vld [vmem:[%s460 + $0x1e50] sm:$0xff]
        %v1511 = vld [vmem:[%s460 + $0x1e58] sm:$0xff]
        %v1512 = vld [vmem:[%s460 + $0x1e60] sm:$0xff]
        %v1513 = vld [vmem:[%s460 + $0x1e68] sm:$0xff]
        %v1514 = vld [vmem:[%s460 + $0x1e70] sm:$0xff]
        %v1515 = vld [vmem:[%s460 + $0x1e78] sm:$0xff]
        %v1516 = vld [vmem:[%s460 + $0x1e80] sm:$0xff]
        %v1517 = vld [vmem:[%s460 + $0x1e88] sm:$0xff]
        %v1518 = vld [vmem:[%s460 + $0x1e90] sm:$0xff]
        %v1519 = vld [vmem:[%s460 + $0x1e98] sm:$0xff]
        %v1520 = vld [vmem:[%s460 + $0x1ea0] sm:$0xff]
        %v1521 = vld [vmem:[%s460 + $0x1ea8] sm:$0xff]
        %v1522 = vld [vmem:[%s460 + $0x1eb0] sm:$0xff]
        %v1523 = vld [vmem:[%s460 + $0x1eb8] sm:$0xff]
        %v1524 = vld [vmem:[%s460 + $0x1ec0] sm:$0xff]
        %v1525 = vld [vmem:[%s460 + $0x1ec8] sm:$0xff]
        %v1526 = vld [vmem:[%s460 + $0x1ed0] sm:$0xff]
        %v1527 = vld [vmem:[%s460 + $0x1ed8] sm:$0xff]
        %v1528 = vld [vmem:[%s460 + $0x1ee0] sm:$0xff]
        %v1529 = vld [vmem:[%s460 + $0x1ee8] sm:$0xff]
        %v1530 = vld [vmem:[%s460 + $0x1ef0] sm:$0xff]
        %v1531 = vld [vmem:[%s460 + $0x1ef8] sm:$0xff]
        %v1532 = vld [vmem:[%s460 + $0x1f00] sm:$0xff]
        %v1533 = vld [vmem:[%s460 + $0x1f08] sm:$0xff]
        %v1534 = vld [vmem:[%s460 + $0x1f10] sm:$0xff]
        %v1535 = vld [vmem:[%s460 + $0x1f18] sm:$0xff]
        %v1536 = vld [vmem:[%s460 + $0x1f20] sm:$0xff]
        %v1537 = vld [vmem:[%s460 + $0x1f28] sm:$0xff]
        %v1538 = vld [vmem:[%s460 + $0x1f30] sm:$0xff]
        %v1539 = vld [vmem:[%s460 + $0x1f38] sm:$0xff]
        %v1540 = vld [vmem:[%s460 + $0x1f40] sm:$0xff]
        %v1541 = vld [vmem:[%s460 + $0x1f48] sm:$0xff]
        %v1542 = vld [vmem:[%s460 + $0x1f50] sm:$0xff]
        %v1543 = vld [vmem:[%s460 + $0x1f58] sm:$0xff]
        %v1544 = vld [vmem:[%s460 + $0x1f60] sm:$0xff]
        %v1545 = vld [vmem:[%s460 + $0x1f68] sm:$0xff]
        %v1546 = vld [vmem:[%s460 + $0x1f70] sm:$0xff]
        %v1547 = vld [vmem:[%s460 + $0x1f78] sm:$0xff]
        %v1548 = vld [vmem:[%s460 + $0x1f80] sm:$0xff]
        %v1549 = vld [vmem:[%s460 + $0x1f88] sm:$0xff]
        %v1550 = vld [vmem:[%s460 + $0x1f90] sm:$0xff]
        %v1551 = vld [vmem:[%s460 + $0x1f98] sm:$0xff]
        %v1552 = vld [vmem:[%s460 + $0x1fa0] sm:$0xff]
        %v1553 = vld [vmem:[%s460 + $0x1fa8] sm:$0xff]
        %v1554 = vld [vmem:[%s460 + $0x1fb0] sm:$0xff]
        %v1555 = vld [vmem:[%s460 + $0x1fb8] sm:$0xff]
        %v1556 = vld [vmem:[%s460 + $0x1fc0] sm:$0xff]
        %v1557 = vld [vmem:[%s460 + $0x1fc8] sm:$0xff]
        %v1558 = vld [vmem:[%s460 + $0x1fd0] sm:$0xff]
        %v1559 = vld [vmem:[%s460 + $0x1fd8] sm:$0xff]
        %v1560 = vld [vmem:[%s460 + $0x1fe0] sm:$0xff]
        %v1561 = vld [vmem:[%s460 + $0x1fe8] sm:$0xff]
        %v1562 = vld [vmem:[%s460 + $0x1ff0] sm:$0xff]
        %v1563 = vld [vmem:[%s460 + $0x1ff8] sm:$0xff]
        %v1564 = vld [vmem:[%s460 + $0x2000] sm:$0xff]
        %v1565 = vld [vmem:[%s460 + $0x2008] sm:$0xff]
        %v1566 = vld [vmem:[%s460 + $0x2010] sm:$0xff]
        %v1567 = vld [vmem:[%s460 + $0x2018] sm:$0xff]
        %v1568 = vld [vmem:[%s460 + $0x2020] sm:$0xff]
        %v1569 = vld [vmem:[%s460 + $0x2028] sm:$0xff]
        %v1570 = vld [vmem:[%s460 + $0x2030] sm:$0xff]
        %v1571 = vld [vmem:[%s460 + $0x2038] sm:$0xff]
        %v1572 = vld [vmem:[%s460 + $0x2040] sm:$0xff]
        %v1573 = vld [vmem:[%s460 + $0x2048] sm:$0xff]
        %v1574 = vld [vmem:[%s460 + $0x2050] sm:$0xff]
        %v1575 = vld [vmem:[%s460 + $0x2058] sm:$0xff]
        %v1576 = vld [vmem:[%s460 + $0x2060] sm:$0xff]
        %v1577 = vld [vmem:[%s460 + $0x2068] sm:$0xff]
        %v1578 = vld [vmem:[%s460 + $0x2070] sm:$0xff]
        %v1579 = vld [vmem:[%s460 + $0x2078] sm:$0xff]
        %v1580 = vld [vmem:[%s460 + $0x2080] sm:$0xff]
        %v1581 = vld [vmem:[%s460 + $0x2088] sm:$0xff]
        %v1582 = vld [vmem:[%s460 + $0x2090] sm:$0xff]
        %v1583 = vld [vmem:[%s460 + $0x2098] sm:$0xff]
        %v1584 = vld [vmem:[%s460 + $0x20a0] sm:$0xff]
        %v1585 = vld [vmem:[%s460 + $0x20a8] sm:$0xff]
        %v1586 = vld [vmem:[%s460 + $0x20b0] sm:$0xff]
        %v1587 = vld [vmem:[%s460 + $0x20b8] sm:$0xff]
        %v1588 = vld [vmem:[%s460 + $0x20c0] sm:$0xff]
        %v1589 = vld [vmem:[%s460 + $0x20c8] sm:$0xff]
        %v1590 = vld [vmem:[%s460 + $0x20d0] sm:$0xff]
        %v1591 = vld [vmem:[%s460 + $0x20d8] sm:$0xff]
        %v1592 = vld [vmem:[%s460 + $0x20e0] sm:$0xff]
        %v1593 = vld [vmem:[%s460 + $0x20e8] sm:$0xff]
        %v1594 = vld [vmem:[%s460 + $0x20f0] sm:$0xff]
        %v1595 = vld [vmem:[%s460 + $0x20f8] sm:$0xff]
        %v1596 = vld [vmem:[%s460 + $0x2100] sm:$0xff]
        %v1597 = vld [vmem:[%s460 + $0x2108] sm:$0xff]
        %v1598 = vld [vmem:[%s460 + $0x2110] sm:$0xff]
        %v1599 = vld [vmem:[%s460 + $0x2118] sm:$0xff]
        %v1600 = vld [vmem:[%s460 + $0x2120] sm:$0xff]
        %v1601 = vld [vmem:[%s460 + $0x2128] sm:$0xff]
        %v1602 = vld [vmem:[%s460 + $0x2130] sm:$0xff]
        %v1603 = vld [vmem:[%s460 + $0x2138] sm:$0xff]
        %v1604 = vld [vmem:[%s460 + $0x2140] sm:$0xff]
        %v1605 = vld [vmem:[%s460 + $0x2148] sm:$0xff]
        %v1606 = vld [vmem:[%s460 + $0x2150] sm:$0xff]
        %v1607 = vld [vmem:[%s460 + $0x2158] sm:$0xff]
        %v1608 = vld [vmem:[%s460 + $0x2160] sm:$0xff]
        %v1609 = vld [vmem:[%s460 + $0x2168] sm:$0xff]
        %v1610 = vld [vmem:[%s460 + $0x2170] sm:$0xff]
        %v1611 = vld [vmem:[%s460 + $0x2178] sm:$0xff]
        %v1612 = vld [vmem:[%s460 + $0x2180] sm:$0xff]
        %v1613 = vld [vmem:[%s460 + $0x2188] sm:$0xff]
        %v1614 = vld [vmem:[%s460 + $0x2190] sm:$0xff]
        %v1615 = vld [vmem:[%s460 + $0x2198] sm:$0xff]
        %v1616 = vld [vmem:[%s460 + $0x21a0] sm:$0xff]
        %v1617 = vld [vmem:[%s460 + $0x21a8] sm:$0xff]
        %v1618 = vld [vmem:[%s460 + $0x21b0] sm:$0xff]
        %v1619 = vld [vmem:[%s460 + $0x21b8] sm:$0xff]
        %v1620 = vld [vmem:[%s460 + $0x21c0] sm:$0xff]
        %v1621 = vld [vmem:[%s460 + $0x21c8] sm:$0xff]
        %v1622 = vld [vmem:[%s460 + $0x21d0] sm:$0xff]
        %v1623 = vld [vmem:[%s460 + $0x21d8] sm:$0xff]
        %v1624 = vld [vmem:[%s460 + $0x21e0] sm:$0xff]
        %v1625 = vld [vmem:[%s460 + $0x21e8] sm:$0xff]
        %v1626 = vld [vmem:[%s460 + $0x21f0] sm:$0xff]
        %v1627 = vld [vmem:[%s460 + $0x21f8] sm:$0xff]
        %v1628 = vld [vmem:[%s460 + $0x2200] sm:$0xff]
        %v1629 = vld [vmem:[%s460 + $0x2208] sm:$0xff]
        %v1630 = vld [vmem:[%s460 + $0x2210] sm:$0xff]
        %v1631 = vld [vmem:[%s460 + $0x2218] sm:$0xff]
        %v1632 = vld [vmem:[%s460 + $0x2220] sm:$0xff]
        %v1633 = vld [vmem:[%s460 + $0x2228] sm:$0xff]
        %v1634 = vld [vmem:[%s460 + $0x2230] sm:$0xff]
        %v1635 = vld [vmem:[%s460 + $0x2238] sm:$0xff]
        %v1636 = vld [vmem:[%s460 + $0x2240] sm:$0xff]
        %v1637 = vld [vmem:[%s460 + $0x2248] sm:$0xff]
        %v1638 = vld [vmem:[%s460 + $0x2250] sm:$0xff]
        %v1639 = vld [vmem:[%s460 + $0x2258] sm:$0xff]
        %v1640 = vld [vmem:[%s460 + $0x2260] sm:$0xff]
        %v1641 = vld [vmem:[%s460 + $0x2268] sm:$0xff]
        %v1642 = vld [vmem:[%s460 + $0x2270] sm:$0xff]
        %v1643 = vld [vmem:[%s460 + $0x2278] sm:$0xff]
        %v1644 = vld [vmem:[%s460 + $0x2280] sm:$0xff]
        %v1645 = vld [vmem:[%s460 + $0x2288] sm:$0xff]
        %v1646 = vld [vmem:[%s460 + $0x2290] sm:$0xff]
        %v1647 = vld [vmem:[%s460 + $0x2298] sm:$0xff]
        %v1648 = vld [vmem:[%s460 + $0x22a0] sm:$0xff]
        %v1649 = vld [vmem:[%s460 + $0x22a8] sm:$0xff]
        %v1650 = vld [vmem:[%s460 + $0x22b0] sm:$0xff]
        %v1651 = vld [vmem:[%s460 + $0x22b8] sm:$0xff]
        %v1652 = vld [vmem:[%s460 + $0x22c0] sm:$0xff]
        %v1653 = vld [vmem:[%s460 + $0x22c8] sm:$0xff]
        %v1654 = vld [vmem:[%s460 + $0x22d0] sm:$0xff]
        %v1655 = vld [vmem:[%s460 + $0x22d8] sm:$0xff]
        %v1656 = vld [vmem:[%s460 + $0x22e0] sm:$0xff]
        %v1657 = vld [vmem:[%s460 + $0x22e8] sm:$0xff]
        %v1658 = vld [vmem:[%s460 + $0x22f0] sm:$0xff]
        %v1659 = vld [vmem:[%s460 + $0x22f8] sm:$0xff]
        %v1660 = vld [vmem:[%s460 + $0x2300] sm:$0xff]
        %v1661 = vld [vmem:[%s460 + $0x2308] sm:$0xff]
        %v1662 = vld [vmem:[%s460 + $0x2310] sm:$0xff]
        %v1663 = vld [vmem:[%s460 + $0x2318] sm:$0xff]
        %v1664 = vld [vmem:[%s460 + $0x2320] sm:$0xff]
        %v1665 = vld [vmem:[%s460 + $0x2328] sm:$0xff]
        %v1666 = vld [vmem:[%s460 + $0x2330] sm:$0xff]
        %v1667 = vld [vmem:[%s460 + $0x2338] sm:$0xff]
        %v1668 = vld [vmem:[%s460 + $0x2340] sm:$0xff]
        %v1669 = vld [vmem:[%s460 + $0x2348] sm:$0xff]
        %v1670 = vld [vmem:[%s460 + $0x2350] sm:$0xff]
        %v1671 = vld [vmem:[%s460 + $0x2358] sm:$0xff]
        %v1672 = vld [vmem:[%s460 + $0x2360] sm:$0xff]
        %v1673 = vld [vmem:[%s460 + $0x2368] sm:$0xff]
        %v1674 = vld [vmem:[%s460 + $0x2370] sm:$0xff]
        %v1675 = vld [vmem:[%s460 + $0x2378] sm:$0xff]
        %v1676 = vld [vmem:[%s460 + $0x2380] sm:$0xff]
        %v1677 = vld [vmem:[%s460 + $0x2388] sm:$0xff]
        %v1678 = vld [vmem:[%s460 + $0x2390] sm:$0xff]
        %v1679 = vld [vmem:[%s460 + $0x2398] sm:$0xff]
        %v1680 = vld [vmem:[%s460 + $0x23a0] sm:$0xff]
        %v1681 = vld [vmem:[%s460 + $0x23a8] sm:$0xff]
        %v1682 = vld [vmem:[%s460 + $0x23b0] sm:$0xff]
        %v1683 = vld [vmem:[%s460 + $0x23b8] sm:$0xff]
        %v1684 = vld [vmem:[%s460 + $0x23c0] sm:$0xff]
        %v1685 = vld [vmem:[%s460 + $0x23c8] sm:$0xff]
        %v1686 = vld [vmem:[%s460 + $0x23d0] sm:$0xff]
        %v1687 = vld [vmem:[%s460 + $0x23d8] sm:$0xff]
        %v1688 = vld [vmem:[%s460 + $0x23e0] sm:$0xff]
        %v1689 = vld [vmem:[%s460 + $0x23e8] sm:$0xff]
        %v1690 = vld [vmem:[%s460 + $0x23f0] sm:$0xff]
        %v1691 = vld [vmem:[%s460 + $0x23f8] sm:$0xff]
        %v1692 = vld [vmem:[%s460 + $0x2400] sm:$0xff]
        %v1693 = vld [vmem:[%s460 + $0x2408] sm:$0xff]
        %v1694 = vld [vmem:[%s460 + $0x2410] sm:$0xff]
        %v1695 = vld [vmem:[%s460 + $0x2418] sm:$0xff]
        %v1696 = vld [vmem:[%s460 + $0x2420] sm:$0xff]
        %v1697 = vld [vmem:[%s460 + $0x2428] sm:$0xff]
        %v1698 = vld [vmem:[%s460 + $0x2430] sm:$0xff]
        %v1699 = vld [vmem:[%s460 + $0x2438] sm:$0xff]
        %v1700 = vld [vmem:[%s460 + $0x2440] sm:$0xff]
        %v1701 = vld [vmem:[%s460 + $0x2448] sm:$0xff]
        %v1702 = vld [vmem:[%s460 + $0x2450] sm:$0xff]
        %v1703 = vld [vmem:[%s460 + $0x2458] sm:$0xff]
        %v1704 = vld [vmem:[%s460 + $0x2460] sm:$0xff]
        %v1705 = vld [vmem:[%s460 + $0x2468] sm:$0xff]
        %v1706 = vld [vmem:[%s460 + $0x2470] sm:$0xff]
        %v1707 = vld [vmem:[%s460 + $0x2478] sm:$0xff]
        %v1708 = vld [vmem:[%s460 + $0x2480] sm:$0xff]
        %v1709 = vld [vmem:[%s460 + $0x2488] sm:$0xff]
        %v1710 = vld [vmem:[%s460 + $0x2490] sm:$0xff]
        %v1711 = vld [vmem:[%s460 + $0x2498] sm:$0xff]
        %v1712 = vld [vmem:[%s460 + $0x24a0] sm:$0xff]
        %v1713 = vld [vmem:[%s460 + $0x24a8] sm:$0xff]
        %v1714 = vld [vmem:[%s460 + $0x24b0] sm:$0xff]
        %v1715 = vld [vmem:[%s460 + $0x24b8] sm:$0xff]
        %v1716 = vunpack.c.l.s8.bf16 %v540
        %v1717 = vunpack.c.l.s8.bf16 %v541
        %v1718 = vunpack.c.h.s8.bf16 %v540
        %v1719 = vunpack.c.h.s8.bf16 %v541
        %v1720 = vunpack.c.l.s8.bf16 %v542
        %v1721 = vunpack.c.l.s8.bf16 %v543
        %v1722 = vunpack.c.h.s8.bf16 %v542
        %v1723 = vunpack.c.h.s8.bf16 %v543
        %v1724 = vunpack.c.l.s8.bf16 %v544
        %v1725 = vunpack.c.l.s8.bf16 %v545
        %v1726 = vunpack.c.h.s8.bf16 %v544
        %v1727 = vunpack.c.h.s8.bf16 %v545
        %v1728 = vunpack.c.l.s8.bf16 %v546
        %v1729 = vunpack.c.l.s8.bf16 %v547
        %v1730 = vunpack.c.h.s8.bf16 %v546
        %v1731 = vunpack.c.h.s8.bf16 %v547
        %v1732 = vunpack.c.l.s8.bf16 %v548
        %v1733 = vunpack.c.l.s8.bf16 %v549
        %v1734 = vunpack.c.h.s8.bf16 %v548
        %v1735 = vunpack.c.h.s8.bf16 %v549
        %v1736 = vunpack.c.l.s8.bf16 %v550
        %v1737 = vunpack.c.l.s8.bf16 %v551
        %v1738 = vunpack.c.h.s8.bf16 %v550
        %v1739 = vunpack.c.h.s8.bf16 %v551
        %v1740 = vunpack.c.l.s8.bf16 %v552
        %v1741 = vunpack.c.l.s8.bf16 %v553
        %v1742 = vunpack.c.h.s8.bf16 %v552
        %v1743 = vunpack.c.h.s8.bf16 %v553
        %v1744 = vunpack.c.l.s8.bf16 %v554
        %v1745 = vunpack.c.l.s8.bf16 %v555
        %v1746 = vunpack.c.h.s8.bf16 %v554
        %v1747 = vunpack.c.h.s8.bf16 %v555
        %v1748 = vunpack.c.l.s8.bf16 %v556
        %v1749 = vunpack.c.l.s8.bf16 %v557
        %v1750 = vunpack.c.h.s8.bf16 %v556
        %v1751 = vunpack.c.h.s8.bf16 %v557
        %v1752 = vunpack.c.l.s8.bf16 %v558
        %v1753 = vunpack.c.l.s8.bf16 %v559
        %v1754 = vunpack.c.h.s8.bf16 %v558
        %v1755 = vunpack.c.h.s8.bf16 %v559
        %v1756 = vunpack.c.l.s8.bf16 %v560
        %v1757 = vunpack.c.l.s8.bf16 %v561
        %v1758 = vunpack.c.h.s8.bf16 %v560
        %v1759 = vunpack.c.h.s8.bf16 %v561
        %v1760 = vunpack.c.l.s8.bf16 %v562
        %v1761 = vunpack.c.l.s8.bf16 %v563
        %v1762 = vunpack.c.h.s8.bf16 %v562
        %v1763 = vunpack.c.h.s8.bf16 %v563
        %v1764 = vunpack.c.l.s8.bf16 %v564
        %v1765 = vunpack.c.l.s8.bf16 %v565
        %v1766 = vunpack.c.h.s8.bf16 %v564
        %v1767 = vunpack.c.h.s8.bf16 %v565
        %v1768 = vunpack.c.l.s8.bf16 %v566
        %v1769 = vunpack.c.l.s8.bf16 %v567
        %v1770 = vunpack.c.h.s8.bf16 %v566
        %v1771 = vunpack.c.h.s8.bf16 %v567
        %v1772 = vunpack.c.l.s8.bf16 %v568
        %v1773 = vunpack.c.l.s8.bf16 %v569
        %v1774 = vunpack.c.h.s8.bf16 %v568
        %v1775 = vunpack.c.h.s8.bf16 %v569
        %v1776 = vunpack.c.l.s8.bf16 %v570
        %v1777 = vunpack.c.l.s8.bf16 %v571
        %v1778 = vunpack.c.h.s8.bf16 %v570
        %v1779 = vunpack.c.h.s8.bf16 %v571
        %v1780 = vunpack.c.l.s8.bf16 %v572
        %v1781 = vunpack.c.l.s8.bf16 %v573
        %v1782 = vunpack.c.h.s8.bf16 %v572
        %v1783 = vunpack.c.h.s8.bf16 %v573
        %v1784 = vunpack.c.l.s8.bf16 %v574
        %v1785 = vunpack.c.l.s8.bf16 %v575
        %v1786 = vunpack.c.h.s8.bf16 %v574
        %v1787 = vunpack.c.h.s8.bf16 %v575
        %v1788 = vunpack.c.l.s8.bf16 %v576
        %v1789 = vunpack.c.l.s8.bf16 %v577
        %v1790 = vunpack.c.h.s8.bf16 %v576
        %v1791 = vunpack.c.h.s8.bf16 %v577
        %v1792 = vunpack.c.l.s8.bf16 %v578
        %v1793 = vunpack.c.l.s8.bf16 %v579
        %v1794 = vunpack.c.h.s8.bf16 %v578
        %v1795 = vunpack.c.h.s8.bf16 %v579
        %v1796 = vunpack.c.l.s8.bf16 %v580
        %v1797 = vunpack.c.l.s8.bf16 %v581
        %v1798 = vunpack.c.h.s8.bf16 %v580
        %v1799 = vunpack.c.h.s8.bf16 %v581
        %v1800 = vunpack.c.l.s8.bf16 %v582
        %v1801 = vunpack.c.l.s8.bf16 %v583
        %v1802 = vunpack.c.h.s8.bf16 %v582
        %v1803 = vunpack.c.h.s8.bf16 %v583
        %v1804 = vunpack.c.l.s8.bf16 %v584
        %v1805 = vunpack.c.l.s8.bf16 %v585
        %v1806 = vunpack.c.h.s8.bf16 %v584
        %v1807 = vunpack.c.h.s8.bf16 %v585
        %v1808 = vunpack.c.l.s8.bf16 %v586
        %v1809 = vunpack.c.l.s8.bf16 %v587
        %v1810 = vunpack.c.h.s8.bf16 %v586
        %v1811 = vunpack.c.h.s8.bf16 %v587
        %v1812 = vunpack.c.l.s8.bf16 %v588
        %v1813 = vunpack.c.l.s8.bf16 %v589
        %v1814 = vunpack.c.h.s8.bf16 %v588
        %v1815 = vunpack.c.h.s8.bf16 %v589
        %v1816 = vunpack.c.l.s8.bf16 %v590
        %v1817 = vunpack.c.l.s8.bf16 %v591
        %v1818 = vunpack.c.h.s8.bf16 %v590
        %v1819 = vunpack.c.h.s8.bf16 %v591
        %v1820 = vunpack.c.l.s8.bf16 %v592
        %v1821 = vunpack.c.l.s8.bf16 %v593
        %v1822 = vunpack.c.h.s8.bf16 %v592
        %v1823 = vunpack.c.h.s8.bf16 %v593
        %v1824 = vunpack.c.l.s8.bf16 %v594
        %v1825 = vunpack.c.l.s8.bf16 %v595
        %v1826 = vunpack.c.h.s8.bf16 %v594
        %v1827 = vunpack.c.h.s8.bf16 %v595
        %v1828 = vunpack.c.l.s8.bf16 %v596
        %v1829 = vunpack.c.l.s8.bf16 %v597
        %v1830 = vunpack.c.h.s8.bf16 %v596
        %v1831 = vunpack.c.h.s8.bf16 %v597
        %v1832 = vunpack.c.l.s8.bf16 %v598
        %v1833 = vunpack.c.l.s8.bf16 %v599
        %v1834 = vunpack.c.h.s8.bf16 %v598
        %v1835 = vunpack.c.h.s8.bf16 %v599
        %v1836 = vunpack.c.l.s8.bf16 %v600
        %v1837 = vunpack.c.l.s8.bf16 %v601
        %v1838 = vunpack.c.h.s8.bf16 %v600
        %v1839 = vunpack.c.h.s8.bf16 %v601
        %v1840 = vunpack.c.l.s8.bf16 %v602
        %v1841 = vunpack.c.l.s8.bf16 %v603
        %v1842 = vunpack.c.h.s8.bf16 %v602
        %v1843 = vunpack.c.h.s8.bf16 %v603
        %v1844 = vunpack.c.l.s8.bf16 %v604
        %v1845 = vunpack.c.l.s8.bf16 %v605
        %v1846 = vunpack.c.h.s8.bf16 %v604
        %v1847 = vunpack.c.h.s8.bf16 %v605
        %v1848 = vunpack.c.l.s8.bf16 %v606
        %v1849 = vunpack.c.l.s8.bf16 %v607
        %v1850 = vunpack.c.h.s8.bf16 %v606
        %v1851 = vunpack.c.h.s8.bf16 %v607
        %v1852 = vunpack.c.l.s8.bf16 %v608
        %v1853 = vunpack.c.l.s8.bf16 %v609
        %v1854 = vunpack.c.h.s8.bf16 %v608
        %v1855 = vunpack.c.h.s8.bf16 %v609
        %v1856 = vunpack.c.l.s8.bf16 %v610
        %v1857 = vunpack.c.l.s8.bf16 %v611
        %v1858 = vunpack.c.h.s8.bf16 %v610
        %v1859 = vunpack.c.h.s8.bf16 %v611
        %v1860 = vunpack.c.l.s8.bf16 %v612
        %v1861 = vunpack.c.l.s8.bf16 %v613
        %v1862 = vunpack.c.h.s8.bf16 %v612
        %v1863 = vunpack.c.h.s8.bf16 %v613
        %v1864 = vunpack.c.l.s8.bf16 %v614
        %v1865 = vunpack.c.l.s8.bf16 %v615
        %v1866 = vunpack.c.h.s8.bf16 %v614
        %v1867 = vunpack.c.h.s8.bf16 %v615
        %v1868 = vunpack.c.l.s8.bf16 %v616
        %v1869 = vunpack.c.l.s8.bf16 %v617
        %v1870 = vunpack.c.h.s8.bf16 %v616
        %v1871 = vunpack.c.h.s8.bf16 %v617
        %v1872 = vunpack.c.l.s8.bf16 %v618
        %v1873 = vunpack.c.l.s8.bf16 %v619
        %v1874 = vunpack.c.h.s8.bf16 %v618
        %v1875 = vunpack.c.h.s8.bf16 %v619
        %v1876 = vunpack.c.l.s8.bf16 %v620
        %v1877 = vunpack.c.l.s8.bf16 %v621
        %v1878 = vunpack.c.h.s8.bf16 %v620
        %v1879 = vunpack.c.h.s8.bf16 %v621
        %v1880 = vunpack.c.l.s8.bf16 %v622
        %v1881 = vunpack.c.l.s8.bf16 %v623
        %v1882 = vunpack.c.h.s8.bf16 %v622
        %v1883 = vunpack.c.h.s8.bf16 %v623
        %v1884 = vunpack.c.l.s8.bf16 %v624
        %v1885 = vunpack.c.l.s8.bf16 %v625
        %v1886 = vunpack.c.h.s8.bf16 %v624
        %v1887 = vunpack.c.h.s8.bf16 %v625
        %v1888 = vunpack.c.l.s8.bf16 %v626
        %v1889 = vunpack.c.l.s8.bf16 %v627
        %v1890 = vunpack.c.h.s8.bf16 %v626
        %v1891 = vunpack.c.h.s8.bf16 %v627
        %v1892 = vunpack.c.l.s8.bf16 %v628
        %v1893 = vunpack.c.l.s8.bf16 %v629
        %v1894 = vunpack.c.h.s8.bf16 %v628
        %v1895 = vunpack.c.h.s8.bf16 %v629
        %v1896 = vunpack.c.l.s8.bf16 %v630
        %v1897 = vunpack.c.l.s8.bf16 %v631
        %v1898 = vunpack.c.h.s8.bf16 %v630
        %v1899 = vunpack.c.h.s8.bf16 %v631
        %v1900 = vunpack.c.l.s8.bf16 %v632
        %v1901 = vunpack.c.l.s8.bf16 %v633
        %v1902 = vunpack.c.h.s8.bf16 %v632
        %v1903 = vunpack.c.h.s8.bf16 %v633
        %v1904 = vunpack.c.l.s8.bf16 %v634
        %v1905 = vunpack.c.l.s8.bf16 %v635
        %v1906 = vunpack.c.h.s8.bf16 %v634
        %v1907 = vunpack.c.h.s8.bf16 %v635
        %v1908 = vunpack.c.l.s8.bf16 %v636
        %v1909 = vunpack.c.l.s8.bf16 %v637
        %v1910 = vunpack.c.h.s8.bf16 %v636
        %v1911 = vunpack.c.h.s8.bf16 %v637
        %v1912 = vunpack.c.l.s8.bf16 %v638
        %v1913 = vunpack.c.l.s8.bf16 %v639
        %v1914 = vunpack.c.h.s8.bf16 %v638
        %v1915 = vunpack.c.h.s8.bf16 %v639
        %v1916 = vunpack.c.l.s8.bf16 %v640
        %v1917 = vunpack.c.l.s8.bf16 %v641
        %v1918 = vunpack.c.h.s8.bf16 %v640
        %v1919 = vunpack.c.h.s8.bf16 %v641
        %v1920 = vunpack.c.l.s8.bf16 %v642
        %v1921 = vunpack.c.l.s8.bf16 %v643
        %v1922 = vunpack.c.h.s8.bf16 %v642
        %v1923 = vunpack.c.h.s8.bf16 %v643
        %v1924 = vunpack.c.l.s8.bf16 %v644
        %v1925 = vunpack.c.l.s8.bf16 %v645
        %v1926 = vunpack.c.h.s8.bf16 %v644
        %v1927 = vunpack.c.h.s8.bf16 %v645
        %v1928 = vunpack.c.l.s8.bf16 %v646
        %v1929 = vunpack.c.l.s8.bf16 %v647
        %v1930 = vunpack.c.h.s8.bf16 %v646
        %v1931 = vunpack.c.h.s8.bf16 %v647
        %v1932 = vunpack.c.l.s8.bf16 %v648
        %v1933 = vunpack.c.l.s8.bf16 %v649
        %v1934 = vunpack.c.h.s8.bf16 %v648
        %v1935 = vunpack.c.h.s8.bf16 %v649
        %v1936 = vunpack.c.l.s8.bf16 %v650
        %v1937 = vunpack.c.l.s8.bf16 %v651
        %v1938 = vunpack.c.h.s8.bf16 %v650
        %v1939 = vunpack.c.h.s8.bf16 %v651
        %v1940 = vunpack.c.l.s8.bf16 %v652
        %v1941 = vunpack.c.l.s8.bf16 %v653
        %v1942 = vunpack.c.h.s8.bf16 %v652
        %v1943 = vunpack.c.h.s8.bf16 %v653
        %v1944 = vunpack.c.l.s8.bf16 %v654
        %v1945 = vunpack.c.l.s8.bf16 %v655
        %v1946 = vunpack.c.h.s8.bf16 %v654
        %v1947 = vunpack.c.h.s8.bf16 %v655
        %v1948 = vunpack.c.l.s8.bf16 %v656
        %v1949 = vunpack.c.l.s8.bf16 %v657
        %v1950 = vunpack.c.h.s8.bf16 %v656
        %v1951 = vunpack.c.h.s8.bf16 %v657
        %v1952 = vunpack.c.l.s8.bf16 %v658
        %v1953 = vunpack.c.l.s8.bf16 %v659
        %v1954 = vunpack.c.h.s8.bf16 %v658
        %v1955 = vunpack.c.h.s8.bf16 %v659
        %v1956 = vunpack.c.l.s8.bf16 %v660
        %v1957 = vunpack.c.l.s8.bf16 %v661
        %v1958 = vunpack.c.h.s8.bf16 %v660
        %v1959 = vunpack.c.h.s8.bf16 %v661
        %v1960 = vunpack.c.l.s8.bf16 %v662
        %v1961 = vunpack.c.l.s8.bf16 %v663
        %v1962 = vunpack.c.h.s8.bf16 %v662
        %v1963 = vunpack.c.h.s8.bf16 %v663
        %v1964 = vunpack.c.l.s8.bf16 %v664
        %v1965 = vunpack.c.l.s8.bf16 %v665
        %v1966 = vunpack.c.h.s8.bf16 %v664
        %v1967 = vunpack.c.h.s8.bf16 %v665
        %v1968 = vunpack.c.l.s8.bf16 %v666
        %v1969 = vunpack.c.l.s8.bf16 %v667
        %v1970 = vunpack.c.h.s8.bf16 %v666
        %v1971 = vunpack.c.h.s8.bf16 %v667
        %v1972 = vunpack.c.l.s8.bf16 %v668
        %v1973 = vunpack.c.l.s8.bf16 %v669
        %v1974 = vunpack.c.h.s8.bf16 %v668
        %v1975 = vunpack.c.h.s8.bf16 %v669
        %v1976 = vunpack.c.l.s8.bf16 %v670
        %v1977 = vunpack.c.l.s8.bf16 %v671
        %v1978 = vunpack.c.h.s8.bf16 %v670
        %v1979 = vunpack.c.h.s8.bf16 %v671
        %v1980 = vunpack.c.l.s8.bf16 %v672
        %v1981 = vunpack.c.l.s8.bf16 %v673
        %v1982 = vunpack.c.h.s8.bf16 %v672
        %v1983 = vunpack.c.h.s8.bf16 %v673
        %v1984 = vunpack.c.l.s8.bf16 %v674
        %v1985 = vunpack.c.l.s8.bf16 %v675
        %v1986 = vunpack.c.h.s8.bf16 %v674
        %v1987 = vunpack.c.h.s8.bf16 %v675
        %v1988 = vunpack.c.l.s8.bf16 %v676
        %v1989 = vunpack.c.l.s8.bf16 %v677
        %v1990 = vunpack.c.h.s8.bf16 %v676
        %v1991 = vunpack.c.h.s8.bf16 %v677
        %v1992 = vunpack.c.l.s8.bf16 %v678
        %v1993 = vunpack.c.l.s8.bf16 %v679
        %v1994 = vunpack.c.h.s8.bf16 %v678
        %v1995 = vunpack.c.h.s8.bf16 %v679
        %v1996 = vunpack.c.l.s8.bf16 %v680
        %v1997 = vunpack.c.l.s8.bf16 %v681
        %v1998 = vunpack.c.h.s8.bf16 %v680
        %v1999 = vunpack.c.h.s8.bf16 %v681
        %v2000 = vunpack.c.l.s8.bf16 %v682
        %v2001 = vunpack.c.l.s8.bf16 %v683
        %v2002 = vunpack.c.h.s8.bf16 %v682
        %v2003 = vunpack.c.h.s8.bf16 %v683
        %v2004 = vunpack.c.l.s8.bf16 %v684
        %v2005 = vunpack.c.l.s8.bf16 %v685
        %v2006 = vunpack.c.h.s8.bf16 %v684
        %v2007 = vunpack.c.h.s8.bf16 %v685
        %v2008 = vunpack.c.l.s8.bf16 %v686
        %v2009 = vunpack.c.l.s8.bf16 %v687
        %v2010 = vunpack.c.h.s8.bf16 %v686
        %v2011 = vunpack.c.h.s8.bf16 %v687
        %v2012 = vunpack.c.l.s8.bf16 %v688
        %v2013 = vunpack.c.l.s8.bf16 %v689
        %v2014 = vunpack.c.h.s8.bf16 %v688
        %v2015 = vunpack.c.h.s8.bf16 %v689
        %v2016 = vunpack.c.l.s8.bf16 %v690
        %v2017 = vunpack.c.l.s8.bf16 %v691
        %v2018 = vunpack.c.h.s8.bf16 %v690
        %v2019 = vunpack.c.h.s8.bf16 %v691
        %v2020 = vunpack.c.l.s8.bf16 %v692
        %v2021 = vunpack.c.l.s8.bf16 %v693
        %v2022 = vunpack.c.h.s8.bf16 %v692
        %v2023 = vunpack.c.h.s8.bf16 %v693
        %v2024 = vunpack.c.l.s8.bf16 %v694
        %v2025 = vunpack.c.l.s8.bf16 %v695
        %v2026 = vunpack.c.h.s8.bf16 %v694
        %v2027 = vunpack.c.h.s8.bf16 %v695
        %v2028 = vunpack.c.l.s8.bf16 %v696
        %v2029 = vunpack.c.l.s8.bf16 %v697
        %v2030 = vunpack.c.h.s8.bf16 %v696
        %v2031 = vunpack.c.h.s8.bf16 %v697
        %v2032 = vunpack.c.l.s8.bf16 %v698
        %v2033 = vunpack.c.l.s8.bf16 %v699
        %v2034 = vunpack.c.h.s8.bf16 %v698
        %v2035 = vunpack.c.h.s8.bf16 %v699
        %v2036 = vunpack.c.l.s8.bf16 %v700
        %v2037 = vunpack.c.l.s8.bf16 %v701
        %v2038 = vunpack.c.h.s8.bf16 %v700
        %v2039 = vunpack.c.h.s8.bf16 %v701
        %v2040 = vunpack.c.l.s8.bf16 %v702
        %v2041 = vunpack.c.l.s8.bf16 %v703
        %v2042 = vunpack.c.h.s8.bf16 %v702
        %v2043 = vunpack.c.h.s8.bf16 %v703
        %v2044 = vunpack.c.l.s8.bf16 %v704
        %v2045 = vunpack.c.l.s8.bf16 %v705
        %v2046 = vunpack.c.h.s8.bf16 %v704
        %v2047 = vunpack.c.h.s8.bf16 %v705
        %v2048 = vunpack.c.l.s8.bf16 %v706
        %v2049 = vunpack.c.l.s8.bf16 %v707
        %v2050 = vunpack.c.h.s8.bf16 %v706
        %v2051 = vunpack.c.h.s8.bf16 %v707
        %v2052 = vunpack.c.l.s8.bf16 %v708
        %v2053 = vunpack.c.l.s8.bf16 %v709
        %v2054 = vunpack.c.h.s8.bf16 %v708
        %v2055 = vunpack.c.h.s8.bf16 %v709
        %v2056 = vunpack.c.l.s8.bf16 %v710
        %v2057 = vunpack.c.l.s8.bf16 %v711
        %v2058 = vunpack.c.h.s8.bf16 %v710
        %v2059 = vunpack.c.h.s8.bf16 %v711
        %v2060 = vunpack.c.l.s8.bf16 %v712
        %v2061 = vunpack.c.l.s8.bf16 %v713
        %v2062 = vunpack.c.h.s8.bf16 %v712
        %v2063 = vunpack.c.h.s8.bf16 %v713
        %v2064 = vunpack.c.l.s8.bf16 %v714
        %v2065 = vunpack.c.l.s8.bf16 %v715
        %v2066 = vunpack.c.h.s8.bf16 %v714
        %v2067 = vunpack.c.h.s8.bf16 %v715
        %v2068 = vunpack.c.l.s8.bf16 %v716
        %v2069 = vunpack.c.l.s8.bf16 %v717
        %v2070 = vunpack.c.h.s8.bf16 %v716
        %v2071 = vunpack.c.h.s8.bf16 %v717
        %v2072 = vunpack.c.l.s8.bf16 %v718
        %v2073 = vunpack.c.l.s8.bf16 %v719
        %v2074 = vunpack.c.h.s8.bf16 %v718
        %v2075 = vunpack.c.h.s8.bf16 %v719
        %v2076 = vunpack.c.l.s8.bf16 %v720
        %v2077 = vunpack.c.l.s8.bf16 %v721
        %v2078 = vunpack.c.h.s8.bf16 %v720
        %v2079 = vunpack.c.h.s8.bf16 %v721
        %v2080 = vunpack.c.l.s8.bf16 %v722
        %v2081 = vunpack.c.l.s8.bf16 %v723
        %v2082 = vunpack.c.h.s8.bf16 %v722
        %v2083 = vunpack.c.h.s8.bf16 %v723
        %v2084 = vunpack.c.l.s8.bf16 %v724
        %v2085 = vunpack.c.l.s8.bf16 %v725
        %v2086 = vunpack.c.h.s8.bf16 %v724
        %v2087 = vunpack.c.h.s8.bf16 %v725
        %v2088 = vunpack.c.l.s8.bf16 %v726
        %v2089 = vunpack.c.l.s8.bf16 %v727
        %v2090 = vunpack.c.h.s8.bf16 %v726
        %v2091 = vunpack.c.h.s8.bf16 %v727
        %v2092 = vunpack.c.l.s8.bf16 %v728
        %v2093 = vunpack.c.l.s8.bf16 %v729
        %v2094 = vunpack.c.h.s8.bf16 %v728
        %v2095 = vunpack.c.h.s8.bf16 %v729
        %v2096 = vunpack.c.l.s8.bf16 %v730
        %v2097 = vunpack.c.l.s8.bf16 %v731
        %v2098 = vunpack.c.h.s8.bf16 %v730
        %v2099 = vunpack.c.h.s8.bf16 %v731
        %v2100 = vunpack.c.l.s8.bf16 %v732
        %v2101 = vunpack.c.l.s8.bf16 %v733
        %v2102 = vunpack.c.h.s8.bf16 %v732
        %v2103 = vunpack.c.h.s8.bf16 %v733
        %v2104 = vunpack.c.l.s8.bf16 %v734
        %v2105 = vunpack.c.l.s8.bf16 %v735
        %v2106 = vunpack.c.h.s8.bf16 %v734
        %v2107 = vunpack.c.h.s8.bf16 %v735
        %v2108 = vunpack.c.l.s8.bf16 %v736
        %v2109 = vunpack.c.l.s8.bf16 %v737
        %v2110 = vunpack.c.h.s8.bf16 %v736
        %v2111 = vunpack.c.h.s8.bf16 %v737
        %v2112 = vunpack.c.l.s8.bf16 %v738
        %v2113 = vunpack.c.l.s8.bf16 %v739
        %v2114 = vunpack.c.h.s8.bf16 %v738
        %v2115 = vunpack.c.h.s8.bf16 %v739
        %v2116 = vunpack.c.l.s8.bf16 %v740
        %v2117 = vunpack.c.l.s8.bf16 %v741
        %v2118 = vunpack.c.h.s8.bf16 %v740
        %v2119 = vunpack.c.h.s8.bf16 %v741
        %v2120 = vunpack.c.l.s8.bf16 %v742
        %v2121 = vunpack.c.l.s8.bf16 %v743
        %v2122 = vunpack.c.h.s8.bf16 %v742
        %v2123 = vunpack.c.h.s8.bf16 %v743
        %v2124 = vunpack.c.l.s8.bf16 %v744
        %v2125 = vunpack.c.l.s8.bf16 %v745
        %v2126 = vunpack.c.h.s8.bf16 %v744
        %v2127 = vunpack.c.h.s8.bf16 %v745
        %v2128 = vunpack.c.l.s8.bf16 %v746
        %v2129 = vunpack.c.l.s8.bf16 %v747
        %v2130 = vunpack.c.h.s8.bf16 %v746
        %v2131 = vunpack.c.h.s8.bf16 %v747
        %v2132 = vunpack.c.l.s8.bf16 %v748
        %v2133 = vunpack.c.l.s8.bf16 %v749
        %v2134 = vunpack.c.h.s8.bf16 %v748
        %v2135 = vunpack.c.h.s8.bf16 %v749
        %v2136 = vunpack.c.l.s8.bf16 %v750
        %v2137 = vunpack.c.l.s8.bf16 %v751
        %v2138 = vunpack.c.h.s8.bf16 %v750
        %v2139 = vunpack.c.h.s8.bf16 %v751
        %v2140 = vunpack.c.l.s8.bf16 %v752
        %v2141 = vunpack.c.l.s8.bf16 %v753
        %v2142 = vunpack.c.h.s8.bf16 %v752
        %v2143 = vunpack.c.h.s8.bf16 %v753
        %v2144 = vunpack.c.l.s8.bf16 %v754
        %v2145 = vunpack.c.l.s8.bf16 %v755
        %v2146 = vunpack.c.h.s8.bf16 %v754
        %v2147 = vunpack.c.h.s8.bf16 %v755
        %v2148 = vunpack.c.l.s8.bf16 %v756
        %v2149 = vunpack.c.l.s8.bf16 %v757
        %v2150 = vunpack.c.h.s8.bf16 %v756
        %v2151 = vunpack.c.h.s8.bf16 %v757
        %v2152 = vunpack.c.l.s8.bf16 %v758
        %v2153 = vunpack.c.l.s8.bf16 %v759
        %v2154 = vunpack.c.h.s8.bf16 %v758
        %v2155 = vunpack.c.h.s8.bf16 %v759
        %v2156 = vunpack.c.l.s8.bf16 %v760
        %v2157 = vunpack.c.l.s8.bf16 %v761
        %v2158 = vunpack.c.h.s8.bf16 %v760
        %v2159 = vunpack.c.h.s8.bf16 %v761
        %v2160 = vunpack.c.l.s8.bf16 %v762
        %v2161 = vunpack.c.l.s8.bf16 %v763
        %v2162 = vunpack.c.h.s8.bf16 %v762
        %v2163 = vunpack.c.h.s8.bf16 %v763
        %v2164 = vunpack.c.l.s8.bf16 %v764
        %v2165 = vunpack.c.l.s8.bf16 %v765
        %v2166 = vunpack.c.h.s8.bf16 %v764
        %v2167 = vunpack.c.h.s8.bf16 %v765
        %v2168 = vunpack.c.l.s8.bf16 %v766
        %v2169 = vunpack.c.l.s8.bf16 %v767
        %v2170 = vunpack.c.h.s8.bf16 %v766
        %v2171 = vunpack.c.h.s8.bf16 %v767
        %v2172 = vunpack.c.l.s8.bf16 %v768
        %v2173 = vunpack.c.l.s8.bf16 %v769
        %v2174 = vunpack.c.h.s8.bf16 %v768
        %v2175 = vunpack.c.h.s8.bf16 %v769
        %v2176 = vunpack.c.l.s8.bf16 %v770
        %v2177 = vunpack.c.l.s8.bf16 %v771
        %v2178 = vunpack.c.h.s8.bf16 %v770
        %v2179 = vunpack.c.h.s8.bf16 %v771
        %v2180 = vunpack.c.l.s8.bf16 %v772
        %v2181 = vunpack.c.l.s8.bf16 %v773
        %v2182 = vunpack.c.h.s8.bf16 %v772
        %v2183 = vunpack.c.h.s8.bf16 %v773
        %v2184 = vunpack.c.l.s8.bf16 %v774
        %v2185 = vunpack.c.l.s8.bf16 %v775
        %v2186 = vunpack.c.h.s8.bf16 %v774
        %v2187 = vunpack.c.h.s8.bf16 %v775
        %v2188 = vunpack.c.l.s8.bf16 %v776
        %v2189 = vunpack.c.l.s8.bf16 %v777
        %v2190 = vunpack.c.h.s8.bf16 %v776
        %v2191 = vunpack.c.h.s8.bf16 %v777
        %v2192 = vunpack.c.l.s8.bf16 %v778
        %v2193 = vunpack.c.l.s8.bf16 %v779
        %v2194 = vunpack.c.h.s8.bf16 %v778
        %v2195 = vunpack.c.h.s8.bf16 %v779
        %v2196 = vunpack.c.l.s8.bf16 %v780
        %v2197 = vunpack.c.l.s8.bf16 %v781
        %v2198 = vunpack.c.h.s8.bf16 %v780
        %v2199 = vunpack.c.h.s8.bf16 %v781
        %v2200 = vunpack.c.l.s8.bf16 %v782
        %v2201 = vunpack.c.l.s8.bf16 %v783
        %v2202 = vunpack.c.h.s8.bf16 %v782
        %v2203 = vunpack.c.h.s8.bf16 %v783
        %v2204 = vunpack.c.l.s8.bf16 %v784
        %v2205 = vunpack.c.l.s8.bf16 %v785
        %v2206 = vunpack.c.h.s8.bf16 %v784
        %v2207 = vunpack.c.h.s8.bf16 %v785
        %v2208 = vunpack.c.l.s8.bf16 %v786
        %v2209 = vunpack.c.l.s8.bf16 %v787
        %v2210 = vunpack.c.h.s8.bf16 %v786
        %v2211 = vunpack.c.h.s8.bf16 %v787
        %v2212 = vunpack.c.l.s8.bf16 %v788
        %v2213 = vunpack.c.l.s8.bf16 %v789
        %v2214 = vunpack.c.h.s8.bf16 %v788
        %v2215 = vunpack.c.h.s8.bf16 %v789
        %v2216 = vunpack.c.l.s8.bf16 %v790
        %v2217 = vunpack.c.l.s8.bf16 %v791
        %v2218 = vunpack.c.h.s8.bf16 %v790
        %v2219 = vunpack.c.h.s8.bf16 %v791
        %v2220 = vunpack.c.l.s8.bf16 %v792
        %v2221 = vunpack.c.l.s8.bf16 %v793
        %v2222 = vunpack.c.h.s8.bf16 %v792
        %v2223 = vunpack.c.h.s8.bf16 %v793
        %v2224 = vunpack.c.l.s8.bf16 %v794
        %v2225 = vunpack.c.l.s8.bf16 %v795
        %v2226 = vunpack.c.h.s8.bf16 %v794
        %v2227 = vunpack.c.h.s8.bf16 %v795
        %v2228 = vunpack.c.l.s8.bf16 %v796
        %v2229 = vunpack.c.l.s8.bf16 %v797
        %v2230 = vunpack.c.h.s8.bf16 %v796
        %v2231 = vunpack.c.h.s8.bf16 %v797
        %v2232 = vunpack.c.l.s8.bf16 %v798
        %v2233 = vunpack.c.l.s8.bf16 %v799
        %v2234 = vunpack.c.h.s8.bf16 %v798
        %v2235 = vunpack.c.h.s8.bf16 %v799
        %v2236 = vunpack.c.l.s8.bf16 %v800
        %v2237 = vunpack.c.l.s8.bf16 %v801
        %v2238 = vunpack.c.h.s8.bf16 %v800
        %v2239 = vunpack.c.h.s8.bf16 %v801
        %v2240 = vunpack.c.l.s8.bf16 %v802
        %v2241 = vunpack.c.l.s8.bf16 %v803
        %v2242 = vunpack.c.h.s8.bf16 %v802
        %v2243 = vunpack.c.h.s8.bf16 %v803
        %v2244 = vunpack.c.l.s8.bf16 %v804
        %v2245 = vunpack.c.l.s8.bf16 %v805
        %v2246 = vunpack.c.h.s8.bf16 %v804
        %v2247 = vunpack.c.h.s8.bf16 %v805
        %v2248 = vunpack.c.l.s8.bf16 %v806
        %v2249 = vunpack.c.l.s8.bf16 %v807
        %v2250 = vunpack.c.h.s8.bf16 %v806
        %v2251 = vunpack.c.h.s8.bf16 %v807
        %v2252 = vunpack.c.l.s8.bf16 %v808
        %v2253 = vunpack.c.l.s8.bf16 %v809
        %v2254 = vunpack.c.h.s8.bf16 %v808
        %v2255 = vunpack.c.h.s8.bf16 %v809
        %v2256 = vunpack.c.l.s8.bf16 %v810
        %v2257 = vunpack.c.l.s8.bf16 %v811
        %v2258 = vunpack.c.h.s8.bf16 %v810
        %v2259 = vunpack.c.h.s8.bf16 %v811
        %v2260 = vunpack.c.l.s8.bf16 %v812
        %v2261 = vunpack.c.l.s8.bf16 %v813
        %v2262 = vunpack.c.h.s8.bf16 %v812
        %v2263 = vunpack.c.h.s8.bf16 %v813
        %v2264 = vunpack.c.l.s8.bf16 %v814
        %v2265 = vunpack.c.l.s8.bf16 %v815
        %v2266 = vunpack.c.h.s8.bf16 %v814
        %v2267 = vunpack.c.h.s8.bf16 %v815
        %v2268 = vunpack.c.l.s8.bf16 %v816
        %v2269 = vunpack.c.l.s8.bf16 %v817
        %v2270 = vunpack.c.h.s8.bf16 %v816
        %v2271 = vunpack.c.h.s8.bf16 %v817
        %v2272 = vunpack.c.l.s8.bf16 %v818
        %v2273 = vunpack.c.l.s8.bf16 %v819
        %v2274 = vunpack.c.h.s8.bf16 %v818
        %v2275 = vunpack.c.h.s8.bf16 %v819
        %v2276 = vunpack.c.l.s8.bf16 %v820
        %v2277 = vunpack.c.l.s8.bf16 %v821
        %v2278 = vunpack.c.h.s8.bf16 %v820
        %v2279 = vunpack.c.h.s8.bf16 %v821
        %v2280 = vunpack.c.l.s8.bf16 %v822
        %v2281 = vunpack.c.l.s8.bf16 %v823
        %v2282 = vunpack.c.h.s8.bf16 %v822
        %v2283 = vunpack.c.h.s8.bf16 %v823
        %v2284 = vunpack.c.l.s8.bf16 %v824
        %v2285 = vunpack.c.l.s8.bf16 %v825
        %v2286 = vunpack.c.h.s8.bf16 %v824
        %v2287 = vunpack.c.h.s8.bf16 %v825
        %v2288 = vunpack.c.l.s8.bf16 %v826
        %v2289 = vunpack.c.l.s8.bf16 %v827
        %v2290 = vunpack.c.h.s8.bf16 %v826
        %v2291 = vunpack.c.h.s8.bf16 %v827
        %v2292 = vunpack.c.l.s8.bf16 %v828
        %v2293 = vunpack.c.l.s8.bf16 %v829
        %v2294 = vunpack.c.h.s8.bf16 %v828
        %v2295 = vunpack.c.h.s8.bf16 %v829
        %v2296 = vunpack.c.l.s8.bf16 %v830
        %v2297 = vunpack.c.l.s8.bf16 %v831
        %v2298 = vunpack.c.h.s8.bf16 %v830
        %v2299 = vunpack.c.h.s8.bf16 %v831
        %v2300 = vunpack.c.l.s8.bf16 %v832
        %v2301 = vunpack.c.l.s8.bf16 %v833
        %v2302 = vunpack.c.h.s8.bf16 %v832
        %v2303 = vunpack.c.h.s8.bf16 %v833
        %v2304 = vunpack.c.l.s8.bf16 %v834
        %v2305 = vunpack.c.l.s8.bf16 %v835
        %v2306 = vunpack.c.h.s8.bf16 %v834
        %v2307 = vunpack.c.h.s8.bf16 %v835
        %v2308 = vunpack.c.l.s8.bf16 %v836
        %v2309 = vunpack.c.l.s8.bf16 %v837
        %v2310 = vunpack.c.h.s8.bf16 %v836
        %v2311 = vunpack.c.h.s8.bf16 %v837
        %v2312 = vunpack.c.l.s8.bf16 %v838
        %v2313 = vunpack.c.l.s8.bf16 %v839
        %v2314 = vunpack.c.h.s8.bf16 %v838
        %v2315 = vunpack.c.h.s8.bf16 %v839
        %v2316 = vunpack.c.l.s8.bf16 %v840
        %v2317 = vunpack.c.l.s8.bf16 %v841
        %v2318 = vunpack.c.h.s8.bf16 %v840
        %v2319 = vunpack.c.h.s8.bf16 %v841
        %v2320 = vunpack.c.l.s8.bf16 %v842
        %v2321 = vunpack.c.l.s8.bf16 %v843
        %v2322 = vunpack.c.h.s8.bf16 %v842
        %v2323 = vunpack.c.h.s8.bf16 %v843
        %v2324 = vunpack.c.l.s8.bf16 %v844
        %v2325 = vunpack.c.l.s8.bf16 %v845
        %v2326 = vunpack.c.h.s8.bf16 %v844
        %v2327 = vunpack.c.h.s8.bf16 %v845
        %v2328 = vunpack.c.l.s8.bf16 %v846
        %v2329 = vunpack.c.l.s8.bf16 %v847
        %v2330 = vunpack.c.h.s8.bf16 %v846
        %v2331 = vunpack.c.h.s8.bf16 %v847
        %v2332 = vunpack.c.l.s8.bf16 %v848
        %v2333 = vunpack.c.l.s8.bf16 %v849
        %v2334 = vunpack.c.h.s8.bf16 %v848
        %v2335 = vunpack.c.h.s8.bf16 %v849
        %v2336 = vunpack.c.l.s8.bf16 %v850
        %v2337 = vunpack.c.l.s8.bf16 %v851
        %v2338 = vunpack.c.h.s8.bf16 %v850
        %v2339 = vunpack.c.h.s8.bf16 %v851
        %v2340 = vunpack.c.l.s8.bf16 %v852
        %v2341 = vunpack.c.l.s8.bf16 %v853
        %v2342 = vunpack.c.h.s8.bf16 %v852
        %v2343 = vunpack.c.h.s8.bf16 %v853
        %v2344 = vunpack.c.l.s8.bf16 %v854
        %v2345 = vunpack.c.l.s8.bf16 %v855
        %v2346 = vunpack.c.h.s8.bf16 %v854
        %v2347 = vunpack.c.h.s8.bf16 %v855
        %v2348 = vunpack.c.l.s8.bf16 %v856
        %v2349 = vunpack.c.l.s8.bf16 %v857
        %v2350 = vunpack.c.h.s8.bf16 %v856
        %v2351 = vunpack.c.h.s8.bf16 %v857
        %v2352 = vunpack.c.l.s8.bf16 %v858
        %v2353 = vunpack.c.l.s8.bf16 %v859
        %v2354 = vunpack.c.h.s8.bf16 %v858
        %v2355 = vunpack.c.h.s8.bf16 %v859
        %v2356 = vunpack.c.l.s8.bf16 %v860
        %v2357 = vunpack.c.l.s8.bf16 %v861
        %v2358 = vunpack.c.h.s8.bf16 %v860
        %v2359 = vunpack.c.h.s8.bf16 %v861
        %v2360 = vunpack.c.l.s8.bf16 %v862
        %v2361 = vunpack.c.l.s8.bf16 %v863
        %v2362 = vunpack.c.h.s8.bf16 %v862
        %v2363 = vunpack.c.h.s8.bf16 %v863
        %v2364 = vunpack.c.l.s8.bf16 %v864
        %v2365 = vunpack.c.l.s8.bf16 %v865
        %v2366 = vunpack.c.h.s8.bf16 %v864
        %v2367 = vunpack.c.h.s8.bf16 %v865
        %v2368 = vunpack.c.l.s8.bf16 %v866
        %v2369 = vunpack.c.l.s8.bf16 %v867
        %v2370 = vunpack.c.h.s8.bf16 %v866
        %v2371 = vunpack.c.h.s8.bf16 %v867
        %v2372 = vunpack.c.l.s8.bf16 %v868
        %v2373 = vunpack.c.l.s8.bf16 %v869
        %v2374 = vunpack.c.h.s8.bf16 %v868
        %v2375 = vunpack.c.h.s8.bf16 %v869
        %v2376 = vunpack.c.l.s8.bf16 %v870
        %v2377 = vunpack.c.l.s8.bf16 %v871
        %v2378 = vunpack.c.h.s8.bf16 %v870
        %v2379 = vunpack.c.h.s8.bf16 %v871
        %v2380 = vunpack.c.l.s8.bf16 %v872
        %v2381 = vunpack.c.l.s8.bf16 %v873
        %v2382 = vunpack.c.h.s8.bf16 %v872
        %v2383 = vunpack.c.h.s8.bf16 %v873
        %v2384 = vunpack.c.l.s8.bf16 %v874
        %v2385 = vunpack.c.l.s8.bf16 %v875
        %v2386 = vunpack.c.h.s8.bf16 %v874
        %v2387 = vunpack.c.h.s8.bf16 %v875
        %v2388 = vunpack.c.l.s8.bf16 %v876
        %v2389 = vunpack.c.l.s8.bf16 %v877
        %v2390 = vunpack.c.h.s8.bf16 %v876
        %v2391 = vunpack.c.h.s8.bf16 %v877
        %v2392 = vunpack.c.l.s8.bf16 %v878
        %v2393 = vunpack.c.l.s8.bf16 %v879
        %v2394 = vunpack.c.h.s8.bf16 %v878
        %v2395 = vunpack.c.h.s8.bf16 %v879
        %v2396 = vunpack.c.l.s8.bf16 %v880
        %v2397 = vunpack.c.l.s8.bf16 %v881
        %v2398 = vunpack.c.h.s8.bf16 %v880
        %v2399 = vunpack.c.h.s8.bf16 %v881
        %v2400 = vunpack.c.l.s8.bf16 %v882
        %v2401 = vunpack.c.l.s8.bf16 %v883
        %v2402 = vunpack.c.h.s8.bf16 %v882
        %v2403 = vunpack.c.h.s8.bf16 %v883
        %v2404 = vunpack.c.l.s8.bf16 %v884
        %v2405 = vunpack.c.l.s8.bf16 %v885
        %v2406 = vunpack.c.h.s8.bf16 %v884
        %v2407 = vunpack.c.h.s8.bf16 %v885
        %v2408 = vunpack.c.l.s8.bf16 %v886
        %v2409 = vunpack.c.l.s8.bf16 %v887
        %v2410 = vunpack.c.h.s8.bf16 %v886
        %v2411 = vunpack.c.h.s8.bf16 %v887
        %v2412 = vunpack.c.l.s8.bf16 %v888
        %v2413 = vunpack.c.l.s8.bf16 %v889
        %v2414 = vunpack.c.h.s8.bf16 %v888
        %v2415 = vunpack.c.h.s8.bf16 %v889
        %v2416 = vunpack.c.l.s8.bf16 %v890
        %v2417 = vunpack.c.l.s8.bf16 %v891
        %v2418 = vunpack.c.h.s8.bf16 %v890
        %v2419 = vunpack.c.h.s8.bf16 %v891
        %v2420 = vunpack.c.l.s8.bf16 %v892
        %v2421 = vunpack.c.l.s8.bf16 %v893
        %v2422 = vunpack.c.h.s8.bf16 %v892
        %v2423 = vunpack.c.h.s8.bf16 %v893
        %v2424 = vunpack.c.l.s8.bf16 %v894
        %v2425 = vunpack.c.l.s8.bf16 %v895
        %v2426 = vunpack.c.h.s8.bf16 %v894
        %v2427 = vunpack.c.h.s8.bf16 %v895
        %v2428 = vunpack.c.l.s8.bf16 %v896
        %v2429 = vunpack.c.l.s8.bf16 %v897
        %v2430 = vunpack.c.h.s8.bf16 %v896
        %v2431 = vunpack.c.h.s8.bf16 %v897
        %v2432 = vunpack.c.l.s8.bf16 %v898
        %v2433 = vunpack.c.l.s8.bf16 %v899
        %v2434 = vunpack.c.h.s8.bf16 %v898
        %v2435 = vunpack.c.h.s8.bf16 %v899
        %v2436 = vunpack.c.l.s8.bf16 %v900
        %v2437 = vunpack.c.l.s8.bf16 %v901
        %v2438 = vunpack.c.h.s8.bf16 %v900
        %v2439 = vunpack.c.h.s8.bf16 %v901
        %v2440 = vunpack.c.l.s8.bf16 %v902
        %v2441 = vunpack.c.l.s8.bf16 %v903
        %v2442 = vunpack.c.h.s8.bf16 %v902
        %v2443 = vunpack.c.h.s8.bf16 %v903
        %v2444 = vunpack.c.l.s8.bf16 %v904
        %v2445 = vunpack.c.l.s8.bf16 %v905
        %v2446 = vunpack.c.h.s8.bf16 %v904
        %v2447 = vunpack.c.h.s8.bf16 %v905
        %v2448 = vunpack.c.l.s8.bf16 %v906
        %v2449 = vunpack.c.l.s8.bf16 %v907
        %v2450 = vunpack.c.h.s8.bf16 %v906
        %v2451 = vunpack.c.h.s8.bf16 %v907
        %v2452 = vunpack.c.l.s8.bf16 %v908
        %v2453 = vunpack.c.l.s8.bf16 %v909
        %v2454 = vunpack.c.h.s8.bf16 %v908
        %v2455 = vunpack.c.h.s8.bf16 %v909
        %v2456 = vunpack.c.l.s8.bf16 %v910
        %v2457 = vunpack.c.l.s8.bf16 %v911
        %v2458 = vunpack.c.h.s8.bf16 %v910
        %v2459 = vunpack.c.h.s8.bf16 %v911
        %v2460 = vunpack.c.l.s8.bf16 %v912
        %v2461 = vunpack.c.l.s8.bf16 %v913
        %v2462 = vunpack.c.h.s8.bf16 %v912
        %v2463 = vunpack.c.h.s8.bf16 %v913
        %v2464 = vunpack.c.l.s8.bf16 %v914
        %v2465 = vunpack.c.l.s8.bf16 %v915
        %v2466 = vunpack.c.h.s8.bf16 %v914
        %v2467 = vunpack.c.h.s8.bf16 %v915
        %v2468 = vunpack.c.l.s8.bf16 %v916
        %v2469 = vunpack.c.l.s8.bf16 %v917
        %v2470 = vunpack.c.h.s8.bf16 %v916
        %v2471 = vunpack.c.h.s8.bf16 %v917
        %v2472 = vunpack.c.l.s8.bf16 %v918
        %v2473 = vunpack.c.l.s8.bf16 %v919
        %v2474 = vunpack.c.h.s8.bf16 %v918
        %v2475 = vunpack.c.h.s8.bf16 %v919
        %v2476 = vunpack.c.l.s8.bf16 %v920
        %v2477 = vunpack.c.l.s8.bf16 %v921
        %v2478 = vunpack.c.h.s8.bf16 %v920
        %v2479 = vunpack.c.h.s8.bf16 %v921
        %v2480 = vunpack.c.l.s8.bf16 %v922
        %v2481 = vunpack.c.l.s8.bf16 %v923
        %v2482 = vunpack.c.h.s8.bf16 %v922
        %v2483 = vunpack.c.h.s8.bf16 %v923
        %v2484 = vunpack.c.l.s8.bf16 %v924
        %v2485 = vunpack.c.l.s8.bf16 %v925
        %v2486 = vunpack.c.h.s8.bf16 %v924
        %v2487 = vunpack.c.h.s8.bf16 %v925
        %v2488 = vunpack.c.l.s8.bf16 %v926
        %v2489 = vunpack.c.l.s8.bf16 %v927
        %v2490 = vunpack.c.h.s8.bf16 %v926
        %v2491 = vunpack.c.h.s8.bf16 %v927
        %v2492 = vunpack.c.l.s8.bf16 %v928
        %v2493 = vunpack.c.l.s8.bf16 %v929
        %v2494 = vunpack.c.h.s8.bf16 %v928
        %v2495 = vunpack.c.h.s8.bf16 %v929
        %v2496 = vunpack.c.l.s8.bf16 %v930
        %v2497 = vunpack.c.l.s8.bf16 %v931
        %v2498 = vunpack.c.h.s8.bf16 %v930
        %v2499 = vunpack.c.h.s8.bf16 %v931
        %v2500 = vunpack.c.l.s8.bf16 %v932
        %v2501 = vunpack.c.l.s8.bf16 %v933
        %v2502 = vunpack.c.h.s8.bf16 %v932
        %v2503 = vunpack.c.h.s8.bf16 %v933
        %v2504 = vunpack.c.l.s8.bf16 %v934
        %v2505 = vunpack.c.l.s8.bf16 %v935
        %v2506 = vunpack.c.h.s8.bf16 %v934
        %v2507 = vunpack.c.h.s8.bf16 %v935
        %v2508 = vunpack.c.l.s8.bf16 %v936
        %v2509 = vunpack.c.l.s8.bf16 %v937
        %v2510 = vunpack.c.h.s8.bf16 %v936
        %v2511 = vunpack.c.h.s8.bf16 %v937
        %v2512 = vunpack.c.l.s8.bf16 %v938
        %v2513 = vunpack.c.l.s8.bf16 %v939
        %v2514 = vunpack.c.h.s8.bf16 %v938
        %v2515 = vunpack.c.h.s8.bf16 %v939
        %v2516 = vunpack.c.l.s8.bf16 %v940
        %v2517 = vunpack.c.l.s8.bf16 %v941
        %v2518 = vunpack.c.h.s8.bf16 %v940
        %v2519 = vunpack.c.h.s8.bf16 %v941
        %v2520 = vunpack.c.l.s8.bf16 %v942
        %v2521 = vunpack.c.l.s8.bf16 %v943
        %v2522 = vunpack.c.h.s8.bf16 %v942
        %v2523 = vunpack.c.h.s8.bf16 %v943
        %v2524 = vunpack.c.l.s8.bf16 %v944
        %v2525 = vunpack.c.l.s8.bf16 %v945
        %v2526 = vunpack.c.h.s8.bf16 %v944
        %v2527 = vunpack.c.h.s8.bf16 %v945
        %v2528 = vunpack.c.l.s8.bf16 %v946
        %v2529 = vunpack.c.l.s8.bf16 %v947
        %v2530 = vunpack.c.h.s8.bf16 %v946
        %v2531 = vunpack.c.h.s8.bf16 %v947
        %v2532 = vunpack.c.l.s8.bf16 %v948
        %v2533 = vunpack.c.l.s8.bf16 %v949
        %v2534 = vunpack.c.h.s8.bf16 %v948
        %v2535 = vunpack.c.h.s8.bf16 %v949
        %v2536 = vunpack.c.l.s8.bf16 %v950
        %v2537 = vunpack.c.l.s8.bf16 %v951
        %v2538 = vunpack.c.h.s8.bf16 %v950
        %v2539 = vunpack.c.h.s8.bf16 %v951
        %v2540 = vunpack.c.l.s8.bf16 %v952
        %v2541 = vunpack.c.l.s8.bf16 %v953
        %v2542 = vunpack.c.h.s8.bf16 %v952
        %v2543 = vunpack.c.h.s8.bf16 %v953
        %v2544 = vunpack.c.l.s8.bf16 %v954
        %v2545 = vunpack.c.l.s8.bf16 %v955
        %v2546 = vunpack.c.h.s8.bf16 %v954
        %v2547 = vunpack.c.h.s8.bf16 %v955
        %v2548 = vunpack.c.l.s8.bf16 %v956
        %v2549 = vunpack.c.l.s8.bf16 %v957
        %v2550 = vunpack.c.h.s8.bf16 %v956
        %v2551 = vunpack.c.h.s8.bf16 %v957
        %v2552 = vunpack.c.l.s8.bf16 %v958
        %v2553 = vunpack.c.l.s8.bf16 %v959
        %v2554 = vunpack.c.h.s8.bf16 %v958
        %v2555 = vunpack.c.h.s8.bf16 %v959
        %v2556 = vunpack.c.l.s8.bf16 %v960
        %v2557 = vunpack.c.l.s8.bf16 %v961
        %v2558 = vunpack.c.h.s8.bf16 %v960
        %v2559 = vunpack.c.h.s8.bf16 %v961
        %v2560 = vunpack.c.l.s8.bf16 %v962
        %v2561 = vunpack.c.l.s8.bf16 %v963
        %v2562 = vunpack.c.h.s8.bf16 %v962
        %v2563 = vunpack.c.h.s8.bf16 %v963
        %v2564 = vunpack.c.l.s8.bf16 %v964
        %v2565 = vunpack.c.l.s8.bf16 %v965
        %v2566 = vunpack.c.h.s8.bf16 %v964
        %v2567 = vunpack.c.h.s8.bf16 %v965
        %v2568 = vunpack.c.l.s8.bf16 %v966
        %v2569 = vunpack.c.l.s8.bf16 %v967
        %v2570 = vunpack.c.h.s8.bf16 %v966
        %v2571 = vunpack.c.h.s8.bf16 %v967
        %v2572 = vunpack.c.l.s8.bf16 %v968
        %v2573 = vunpack.c.l.s8.bf16 %v969
        %v2574 = vunpack.c.h.s8.bf16 %v968
        %v2575 = vunpack.c.h.s8.bf16 %v969
        %v2576 = vunpack.c.l.s8.bf16 %v970
        %v2577 = vunpack.c.l.s8.bf16 %v971
        %v2578 = vunpack.c.h.s8.bf16 %v970
        %v2579 = vunpack.c.h.s8.bf16 %v971
        %v2580 = vunpack.c.l.s8.bf16 %v972
        %v2581 = vunpack.c.l.s8.bf16 %v973
        %v2582 = vunpack.c.h.s8.bf16 %v972
        %v2583 = vunpack.c.h.s8.bf16 %v973
        %v2584 = vunpack.c.l.s8.bf16 %v974
        %v2585 = vunpack.c.l.s8.bf16 %v975
        %v2586 = vunpack.c.h.s8.bf16 %v974
        %v2587 = vunpack.c.h.s8.bf16 %v975
        %v2588 = vunpack.c.l.s8.bf16 %v976
        %v2589 = vunpack.c.l.s8.bf16 %v977
        %v2590 = vunpack.c.h.s8.bf16 %v976
        %v2591 = vunpack.c.h.s8.bf16 %v977
        %v2592 = vunpack.c.l.s8.bf16 %v978
        %v2593 = vunpack.c.l.s8.bf16 %v979
        %v2594 = vunpack.c.h.s8.bf16 %v978
        %v2595 = vunpack.c.h.s8.bf16 %v979
        %v2596 = vunpack.c.l.s8.bf16 %v980
        %v2597 = vunpack.c.l.s8.bf16 %v981
        %v2598 = vunpack.c.h.s8.bf16 %v980
        %v2599 = vunpack.c.h.s8.bf16 %v981
        %v2600 = vunpack.c.l.s8.bf16 %v982
        %v2601 = vunpack.c.l.s8.bf16 %v983
        %v2602 = vunpack.c.h.s8.bf16 %v982
        %v2603 = vunpack.c.h.s8.bf16 %v983
        %v2604 = vunpack.c.l.s8.bf16 %v984
        %v2605 = vunpack.c.l.s8.bf16 %v985
        %v2606 = vunpack.c.h.s8.bf16 %v984
        %v2607 = vunpack.c.h.s8.bf16 %v985
        %v2608 = vunpack.c.l.s8.bf16 %v986
        %v2609 = vunpack.c.l.s8.bf16 %v987
        %v2610 = vunpack.c.h.s8.bf16 %v986
        %v2611 = vunpack.c.h.s8.bf16 %v987
        %v2612 = vunpack.c.l.s8.bf16 %v988
        %v2613 = vunpack.c.l.s8.bf16 %v989
        %v2614 = vunpack.c.h.s8.bf16 %v988
        %v2615 = vunpack.c.h.s8.bf16 %v989
        %v2616 = vunpack.c.l.s8.bf16 %v990
        %v2617 = vunpack.c.l.s8.bf16 %v991
        %v2618 = vunpack.c.h.s8.bf16 %v990
        %v2619 = vunpack.c.h.s8.bf16 %v991
        %v2620 = vunpack.c.l.s8.bf16 %v992
        %v2621 = vunpack.c.l.s8.bf16 %v993
        %v2622 = vunpack.c.h.s8.bf16 %v992
        %v2623 = vunpack.c.h.s8.bf16 %v993
        %v2624 = vunpack.c.l.s8.bf16 %v994
        %v2625 = vunpack.c.l.s8.bf16 %v995
        %v2626 = vunpack.c.h.s8.bf16 %v994
        %v2627 = vunpack.c.h.s8.bf16 %v995
        %v2628 = vunpack.c.l.s8.bf16 %v996
        %v2629 = vunpack.c.l.s8.bf16 %v997
        %v2630 = vunpack.c.h.s8.bf16 %v996
        %v2631 = vunpack.c.h.s8.bf16 %v997
        %v2632 = vunpack.c.l.s8.bf16 %v998
        %v2633 = vunpack.c.l.s8.bf16 %v999
        %v2634 = vunpack.c.h.s8.bf16 %v998
        %v2635 = vunpack.c.h.s8.bf16 %v999
        %v2636 = vunpack.c.l.s8.bf16 %v1000
        %v2637 = vunpack.c.l.s8.bf16 %v1001
        %v2638 = vunpack.c.h.s8.bf16 %v1000
        %v2639 = vunpack.c.h.s8.bf16 %v1001
        %v2640 = vunpack.c.l.s8.bf16 %v1002
        %v2641 = vunpack.c.l.s8.bf16 %v1003
        %v2642 = vunpack.c.h.s8.bf16 %v1002
        %v2643 = vunpack.c.h.s8.bf16 %v1003
        %v2644 = vunpack.c.l.s8.bf16 %v1004
        %v2645 = vunpack.c.l.s8.bf16 %v1005
        %v2646 = vunpack.c.h.s8.bf16 %v1004
        %v2647 = vunpack.c.h.s8.bf16 %v1005
        %v2648 = vunpack.c.l.s8.bf16 %v1006
        %v2649 = vunpack.c.l.s8.bf16 %v1007
        %v2650 = vunpack.c.h.s8.bf16 %v1006
        %v2651 = vunpack.c.h.s8.bf16 %v1007
        %v2652 = vunpack.c.l.s8.bf16 %v1008
        %v2653 = vunpack.c.l.s8.bf16 %v1009
        %v2654 = vunpack.c.h.s8.bf16 %v1008
        %v2655 = vunpack.c.h.s8.bf16 %v1009
        %v2656 = vunpack.c.l.s8.bf16 %v1010
        %v2657 = vunpack.c.l.s8.bf16 %v1011
        %v2658 = vunpack.c.h.s8.bf16 %v1010
        %v2659 = vunpack.c.h.s8.bf16 %v1011
        %v2660 = vunpack.c.l.s8.bf16 %v1012
        %v2661 = vunpack.c.l.s8.bf16 %v1013
        %v2662 = vunpack.c.h.s8.bf16 %v1012
        %v2663 = vunpack.c.h.s8.bf16 %v1013
        %v2664 = vunpack.c.l.s8.bf16 %v1014
        %v2665 = vunpack.c.l.s8.bf16 %v1015
        %v2666 = vunpack.c.h.s8.bf16 %v1014
        %v2667 = vunpack.c.h.s8.bf16 %v1015
        %v2668 = vunpack.c.l.s8.bf16 %v1016
        %v2669 = vunpack.c.l.s8.bf16 %v1017
        %v2670 = vunpack.c.h.s8.bf16 %v1016
        %v2671 = vunpack.c.h.s8.bf16 %v1017
        %v2672 = vunpack.c.l.s8.bf16 %v1018
        %v2673 = vunpack.c.l.s8.bf16 %v1019
        %v2674 = vunpack.c.h.s8.bf16 %v1018
        %v2675 = vunpack.c.h.s8.bf16 %v1019
        %v2676 = vunpack.c.l.s8.bf16 %v1020
        %v2677 = vunpack.c.l.s8.bf16 %v1021
        %v2678 = vunpack.c.h.s8.bf16 %v1020
        %v2679 = vunpack.c.h.s8.bf16 %v1021
        %v2680 = vunpack.c.l.s8.bf16 %v1022
        %v2681 = vunpack.c.l.s8.bf16 %v1023
        %v2682 = vunpack.c.h.s8.bf16 %v1022
        %v2683 = vunpack.c.h.s8.bf16 %v1023
        %v2684 = vunpack.c.l.s8.bf16 %v1024
        %v2685 = vunpack.c.l.s8.bf16 %v1025
        %v2686 = vunpack.c.h.s8.bf16 %v1024
        %v2687 = vunpack.c.h.s8.bf16 %v1025
        %v2688 = vunpack.c.l.s8.bf16 %v1026
        %v2689 = vunpack.c.l.s8.bf16 %v1027
        %v2690 = vunpack.c.h.s8.bf16 %v1026
        %v2691 = vunpack.c.h.s8.bf16 %v1027
        %v2692 = vunpack.c.l.s8.bf16 %v1028
        %v2693 = vunpack.c.l.s8.bf16 %v1029
        %v2694 = vunpack.c.h.s8.bf16 %v1028
        %v2695 = vunpack.c.h.s8.bf16 %v1029
        %v2696 = vunpack.c.l.s8.bf16 %v1030
        %v2697 = vunpack.c.l.s8.bf16 %v1031
        %v2698 = vunpack.c.h.s8.bf16 %v1030
        %v2699 = vunpack.c.h.s8.bf16 %v1031
        %v2700 = vunpack.c.l.s8.bf16 %v1032
        %v2701 = vunpack.c.l.s8.bf16 %v1033
        %v2702 = vunpack.c.h.s8.bf16 %v1032
        %v2703 = vunpack.c.h.s8.bf16 %v1033
        %v2704 = vunpack.c.l.s8.bf16 %v1034
        %v2705 = vunpack.c.l.s8.bf16 %v1035
        %v2706 = vunpack.c.h.s8.bf16 %v1034
        %v2707 = vunpack.c.h.s8.bf16 %v1035
        %v2708 = vunpack.c.l.s8.bf16 %v1036
        %v2709 = vunpack.c.l.s8.bf16 %v1037
        %v2710 = vunpack.c.h.s8.bf16 %v1036
        %v2711 = vunpack.c.h.s8.bf16 %v1037
        %v2712 = vunpack.c.l.s8.bf16 %v1038
        %v2713 = vunpack.c.l.s8.bf16 %v1039
        %v2714 = vunpack.c.h.s8.bf16 %v1038
        %v2715 = vunpack.c.h.s8.bf16 %v1039
        %v2716 = vunpack.c.l.s8.bf16 %v1040
        %v2717 = vunpack.c.l.s8.bf16 %v1041
        %v2718 = vunpack.c.h.s8.bf16 %v1040
        %v2719 = vunpack.c.h.s8.bf16 %v1041
        %v2720 = vunpack.c.l.s8.bf16 %v1042
        %v2721 = vunpack.c.l.s8.bf16 %v1043
        %v2722 = vunpack.c.h.s8.bf16 %v1042
        %v2723 = vunpack.c.h.s8.bf16 %v1043
        %v2724 = vunpack.c.l.s8.bf16 %v1044
        %v2725 = vunpack.c.l.s8.bf16 %v1045
        %v2726 = vunpack.c.h.s8.bf16 %v1044
        %v2727 = vunpack.c.h.s8.bf16 %v1045
        %v2728 = vunpack.c.l.s8.bf16 %v1046
        %v2729 = vunpack.c.l.s8.bf16 %v1047
        %v2730 = vunpack.c.h.s8.bf16 %v1046
        %v2731 = vunpack.c.h.s8.bf16 %v1047
        %v2732 = vunpack.c.l.s8.bf16 %v1048
        %v2733 = vunpack.c.l.s8.bf16 %v1049
        %v2734 = vunpack.c.h.s8.bf16 %v1048
        %v2735 = vunpack.c.h.s8.bf16 %v1049
        %v2736 = vunpack.c.l.s8.bf16 %v1050
        %v2737 = vunpack.c.l.s8.bf16 %v1051
        %v2738 = vunpack.c.h.s8.bf16 %v1050
        %v2739 = vunpack.c.h.s8.bf16 %v1051
        %v2740 = vunpack.c.l.s8.bf16 %v1052
        %v2741 = vunpack.c.l.s8.bf16 %v1053
        %v2742 = vunpack.c.h.s8.bf16 %v1052
        %v2743 = vunpack.c.h.s8.bf16 %v1053
        %v2744 = vunpack.c.l.s8.bf16 %v1054
        %v2745 = vunpack.c.l.s8.bf16 %v1055
        %v2746 = vunpack.c.h.s8.bf16 %v1054
        %v2747 = vunpack.c.h.s8.bf16 %v1055
        %v2748 = vunpack.c.l.s8.bf16 %v1056
        %v2749 = vunpack.c.l.s8.bf16 %v1057
        %v2750 = vunpack.c.h.s8.bf16 %v1056
        %v2751 = vunpack.c.h.s8.bf16 %v1057
        %v2752 = vunpack.c.l.s8.bf16 %v1058
        %v2753 = vunpack.c.l.s8.bf16 %v1059
        %v2754 = vunpack.c.h.s8.bf16 %v1058
        %v2755 = vunpack.c.h.s8.bf16 %v1059
        %v2756 = vunpack.c.l.s8.bf16 %v1060
        %v2757 = vunpack.c.l.s8.bf16 %v1061
        %v2758 = vunpack.c.h.s8.bf16 %v1060
        %v2759 = vunpack.c.h.s8.bf16 %v1061
        %v2760 = vunpack.c.l.s8.bf16 %v1062
        %v2761 = vunpack.c.l.s8.bf16 %v1063
        %v2762 = vunpack.c.h.s8.bf16 %v1062
        %v2763 = vunpack.c.h.s8.bf16 %v1063
        %v2764 = vunpack.c.l.s8.bf16 %v1064
        %v2765 = vunpack.c.l.s8.bf16 %v1065
        %v2766 = vunpack.c.h.s8.bf16 %v1064
        %v2767 = vunpack.c.h.s8.bf16 %v1065
        %v2768 = vunpack.c.l.s8.bf16 %v1066
        %v2769 = vunpack.c.l.s8.bf16 %v1067
        %v2770 = vunpack.c.h.s8.bf16 %v1066
        %v2771 = vunpack.c.h.s8.bf16 %v1067
        %v2772 = vunpack.c.l.s8.bf16 %v1068
        %v2773 = vunpack.c.l.s8.bf16 %v1069
        %v2774 = vunpack.c.h.s8.bf16 %v1068
        %v2775 = vunpack.c.h.s8.bf16 %v1069
        %v2776 = vunpack.c.l.s8.bf16 %v1070
        %v2777 = vunpack.c.l.s8.bf16 %v1071
        %v2778 = vunpack.c.h.s8.bf16 %v1070
        %v2779 = vunpack.c.h.s8.bf16 %v1071
        %v2780 = vunpack.c.l.s8.bf16 %v1072
        %v2781 = vunpack.c.l.s8.bf16 %v1073
        %v2782 = vunpack.c.h.s8.bf16 %v1072
        %v2783 = vunpack.c.h.s8.bf16 %v1073
        %v2784 = vunpack.c.l.s8.bf16 %v1074
        %v2785 = vunpack.c.l.s8.bf16 %v1075
        %v2786 = vunpack.c.h.s8.bf16 %v1074
        %v2787 = vunpack.c.h.s8.bf16 %v1075
        %v2788 = vunpack.c.l.s8.bf16 %v1076
        %v2789 = vunpack.c.l.s8.bf16 %v1077
        %v2790 = vunpack.c.h.s8.bf16 %v1076
        %v2791 = vunpack.c.h.s8.bf16 %v1077
        %v2792 = vunpack.c.l.s8.bf16 %v1078
        %v2793 = vunpack.c.l.s8.bf16 %v1079
        %v2794 = vunpack.c.h.s8.bf16 %v1078
        %v2795 = vunpack.c.h.s8.bf16 %v1079
        %v2796 = vunpack.c.l.s8.bf16 %v1080
        %v2797 = vunpack.c.l.s8.bf16 %v1081
        %v2798 = vunpack.c.h.s8.bf16 %v1080
        %v2799 = vunpack.c.h.s8.bf16 %v1081
        %v2800 = vunpack.c.l.s8.bf16 %v1082
        %v2801 = vunpack.c.l.s8.bf16 %v1083
        %v2802 = vunpack.c.h.s8.bf16 %v1082
        %v2803 = vunpack.c.h.s8.bf16 %v1083
        %v2804 = vunpack.c.l.s8.bf16 %v1084
        %v2805 = vunpack.c.l.s8.bf16 %v1085
        %v2806 = vunpack.c.h.s8.bf16 %v1084
        %v2807 = vunpack.c.h.s8.bf16 %v1085
        %v2808 = vunpack.c.l.s8.bf16 %v1086
        %v2809 = vunpack.c.l.s8.bf16 %v1087
        %v2810 = vunpack.c.h.s8.bf16 %v1086
        %v2811 = vunpack.c.h.s8.bf16 %v1087
        %v2812 = vunpack.c.l.s8.bf16 %v1088
        %v2813 = vunpack.c.l.s8.bf16 %v1089
        %v2814 = vunpack.c.h.s8.bf16 %v1088
        %v2815 = vunpack.c.h.s8.bf16 %v1089
        %v2816 = vunpack.c.l.s8.bf16 %v1090
        %v2817 = vunpack.c.l.s8.bf16 %v1091
        %v2818 = vunpack.c.h.s8.bf16 %v1090
        %v2819 = vunpack.c.h.s8.bf16 %v1091
        %v2820 = vunpack.c.l.s8.bf16 %v1092
        %v2821 = vunpack.c.l.s8.bf16 %v1093
        %v2822 = vunpack.c.h.s8.bf16 %v1092
        %v2823 = vunpack.c.h.s8.bf16 %v1093
        %v2824 = vunpack.c.l.s8.bf16 %v1094
        %v2825 = vunpack.c.l.s8.bf16 %v1095
        %v2826 = vunpack.c.h.s8.bf16 %v1094
        %v2827 = vunpack.c.h.s8.bf16 %v1095
        %v2828 = vunpack.c.l.s8.bf16 %v1096
        %v2829 = vunpack.c.l.s8.bf16 %v1097
        %v2830 = vunpack.c.h.s8.bf16 %v1096
        %v2831 = vunpack.c.h.s8.bf16 %v1097
        %v2832 = vunpack.c.l.s8.bf16 %v1098
        %v2833 = vunpack.c.l.s8.bf16 %v1099
        %v2834 = vunpack.c.h.s8.bf16 %v1098
        %v2835 = vunpack.c.h.s8.bf16 %v1099
        %v2836 = vunpack.c.l.s8.bf16 %v1100
        %v2837 = vunpack.c.l.s8.bf16 %v1101
        %v2838 = vunpack.c.h.s8.bf16 %v1100
        %v2839 = vunpack.c.h.s8.bf16 %v1101
        %v2840 = vunpack.c.l.s8.bf16 %v1102
        %v2841 = vunpack.c.l.s8.bf16 %v1103
        %v2842 = vunpack.c.h.s8.bf16 %v1102
        %v2843 = vunpack.c.h.s8.bf16 %v1103
        %v2844 = vunpack.c.l.s8.bf16 %v1104
        %v2845 = vunpack.c.l.s8.bf16 %v1105
        %v2846 = vunpack.c.h.s8.bf16 %v1104
        %v2847 = vunpack.c.h.s8.bf16 %v1105
        %v2848 = vunpack.c.l.s8.bf16 %v1106
        %v2849 = vunpack.c.l.s8.bf16 %v1107
        %v2850 = vunpack.c.h.s8.bf16 %v1106
        %v2851 = vunpack.c.h.s8.bf16 %v1107
        %v2852 = vunpack.c.l.s8.bf16 %v1108
        %v2853 = vunpack.c.l.s8.bf16 %v1109
        %v2854 = vunpack.c.h.s8.bf16 %v1108
        %v2855 = vunpack.c.h.s8.bf16 %v1109
        %v2856 = vunpack.c.l.s8.bf16 %v1110
        %v2857 = vunpack.c.l.s8.bf16 %v1111
        %v2858 = vunpack.c.h.s8.bf16 %v1110
        %v2859 = vunpack.c.h.s8.bf16 %v1111
        %v2860 = vunpack.c.l.s8.bf16 %v1112
        %v2861 = vunpack.c.l.s8.bf16 %v1113
        %v2862 = vunpack.c.h.s8.bf16 %v1112
        %v2863 = vunpack.c.h.s8.bf16 %v1113
        %v2864 = vunpack.c.l.s8.bf16 %v1114
        %v2865 = vunpack.c.l.s8.bf16 %v1115
        %v2866 = vunpack.c.h.s8.bf16 %v1114
        %v2867 = vunpack.c.h.s8.bf16 %v1115
        %v2868 = vunpack.c.l.s8.bf16 %v1116
        %v2869 = vunpack.c.l.s8.bf16 %v1117
        %v2870 = vunpack.c.h.s8.bf16 %v1116
        %v2871 = vunpack.c.h.s8.bf16 %v1117
        %v2872 = vunpack.c.l.s8.bf16 %v1118
        %v2873 = vunpack.c.l.s8.bf16 %v1119
        %v2874 = vunpack.c.h.s8.bf16 %v1118
        %v2875 = vunpack.c.h.s8.bf16 %v1119
        %v2876 = vunpack.c.l.s8.bf16 %v1120
        %v2877 = vunpack.c.l.s8.bf16 %v1121
        %v2878 = vunpack.c.h.s8.bf16 %v1120
        %v2879 = vunpack.c.h.s8.bf16 %v1121
        %v2880 = vunpack.c.l.s8.bf16 %v1122
        %v2881 = vunpack.c.l.s8.bf16 %v1123
        %v2882 = vunpack.c.h.s8.bf16 %v1122
        %v2883 = vunpack.c.h.s8.bf16 %v1123
        %v2884 = vunpack.c.l.s8.bf16 %v1124
        %v2885 = vunpack.c.l.s8.bf16 %v1125
        %v2886 = vunpack.c.h.s8.bf16 %v1124
        %v2887 = vunpack.c.h.s8.bf16 %v1125
        %v2888 = vunpack.c.l.s8.bf16 %v1126
        %v2889 = vunpack.c.l.s8.bf16 %v1127
        %v2890 = vunpack.c.h.s8.bf16 %v1126
        %v2891 = vunpack.c.h.s8.bf16 %v1127
        %v2892 = vunpack.c.l.s8.bf16 %v1128
        %v2893 = vunpack.c.l.s8.bf16 %v1129
        %v2894 = vunpack.c.h.s8.bf16 %v1128
        %v2895 = vunpack.c.h.s8.bf16 %v1129
        %v2896 = vunpack.c.l.s8.bf16 %v1130
        %v2897 = vunpack.c.l.s8.bf16 %v1131
        %v2898 = vunpack.c.h.s8.bf16 %v1130
        %v2899 = vunpack.c.h.s8.bf16 %v1131
        %v2900 = vunpack.c.l.s8.bf16 %v1132
        %v2901 = vunpack.c.l.s8.bf16 %v1133
        %v2902 = vunpack.c.h.s8.bf16 %v1132
        %v2903 = vunpack.c.h.s8.bf16 %v1133
        %v2904 = vunpack.c.l.s8.bf16 %v1134
        %v2905 = vunpack.c.l.s8.bf16 %v1135
        %v2906 = vunpack.c.h.s8.bf16 %v1134
        %v2907 = vunpack.c.h.s8.bf16 %v1135
        %v2908 = vunpack.c.l.s8.bf16 %v1136
        %v2909 = vunpack.c.l.s8.bf16 %v1137
        %v2910 = vunpack.c.h.s8.bf16 %v1136
        %v2911 = vunpack.c.h.s8.bf16 %v1137
        %v2912 = vunpack.c.l.s8.bf16 %v1138
        %v2913 = vunpack.c.l.s8.bf16 %v1139
        %v2914 = vunpack.c.h.s8.bf16 %v1138
        %v2915 = vunpack.c.h.s8.bf16 %v1139
        %v2916 = vunpack.c.l.s8.bf16 %v1140
        %v2917 = vunpack.c.l.s8.bf16 %v1141
        %v2918 = vunpack.c.h.s8.bf16 %v1140
        %v2919 = vunpack.c.h.s8.bf16 %v1141
        %v2920 = vunpack.c.l.s8.bf16 %v1142
        %v2921 = vunpack.c.l.s8.bf16 %v1143
        %v2922 = vunpack.c.h.s8.bf16 %v1142
        %v2923 = vunpack.c.h.s8.bf16 %v1143
        %v2924 = vunpack.c.l.s8.bf16 %v1144
        %v2925 = vunpack.c.l.s8.bf16 %v1145
        %v2926 = vunpack.c.h.s8.bf16 %v1144
        %v2927 = vunpack.c.h.s8.bf16 %v1145
        %v2928 = vunpack.c.l.s8.bf16 %v1146
        %v2929 = vunpack.c.l.s8.bf16 %v1147
        %v2930 = vunpack.c.h.s8.bf16 %v1146
        %v2931 = vunpack.c.h.s8.bf16 %v1147
        %v2932 = vunpack.c.l.s8.bf16 %v1148
        %v2933 = vunpack.c.l.s8.bf16 %v1149
        %v2934 = vunpack.c.h.s8.bf16 %v1148
        %v2935 = vunpack.c.h.s8.bf16 %v1149
        %v2936 = vunpack.c.l.s8.bf16 %v1150
        %v2937 = vunpack.c.l.s8.bf16 %v1151
        %v2938 = vunpack.c.h.s8.bf16 %v1150
        %v2939 = vunpack.c.h.s8.bf16 %v1151
        %v2940 = vunpack.c.l.s8.bf16 %v1152
        %v2941 = vunpack.c.l.s8.bf16 %v1153
        %v2942 = vunpack.c.h.s8.bf16 %v1152
        %v2943 = vunpack.c.h.s8.bf16 %v1153
        %v2944 = vunpack.c.l.s8.bf16 %v1154
        %v2945 = vunpack.c.l.s8.bf16 %v1155
        %v2946 = vunpack.c.h.s8.bf16 %v1154
        %v2947 = vunpack.c.h.s8.bf16 %v1155
        %v2948 = vunpack.c.l.s8.bf16 %v1156
        %v2949 = vunpack.c.l.s8.bf16 %v1157
        %v2950 = vunpack.c.h.s8.bf16 %v1156
        %v2951 = vunpack.c.h.s8.bf16 %v1157
        %v2952 = vunpack.c.l.s8.bf16 %v1158
        %v2953 = vunpack.c.l.s8.bf16 %v1159
        %v2954 = vunpack.c.h.s8.bf16 %v1158
        %v2955 = vunpack.c.h.s8.bf16 %v1159
        %v2956 = vunpack.c.l.s8.bf16 %v1160
        %v2957 = vunpack.c.l.s8.bf16 %v1161
        %v2958 = vunpack.c.h.s8.bf16 %v1160
        %v2959 = vunpack.c.h.s8.bf16 %v1161
        %v2960 = vunpack.c.l.s8.bf16 %v1162
        %v2961 = vunpack.c.l.s8.bf16 %v1163
        %v2962 = vunpack.c.h.s8.bf16 %v1162
        %v2963 = vunpack.c.h.s8.bf16 %v1163
        %v2964 = vunpack.c.l.s8.bf16 %v1164
        %v2965 = vunpack.c.l.s8.bf16 %v1165
        %v2966 = vunpack.c.h.s8.bf16 %v1164
        %v2967 = vunpack.c.h.s8.bf16 %v1165
        %v2968 = vunpack.c.l.s8.bf16 %v1166
        %v2969 = vunpack.c.l.s8.bf16 %v1167
        %v2970 = vunpack.c.h.s8.bf16 %v1166
        %v2971 = vunpack.c.h.s8.bf16 %v1167
        %v2972 = vunpack.c.l.s8.bf16 %v1168
        %v2973 = vunpack.c.l.s8.bf16 %v1169
        %v2974 = vunpack.c.h.s8.bf16 %v1168
        %v2975 = vunpack.c.h.s8.bf16 %v1169
        %v2976 = vunpack.c.l.s8.bf16 %v1170
        %v2977 = vunpack.c.l.s8.bf16 %v1171
        %v2978 = vunpack.c.h.s8.bf16 %v1170
        %v2979 = vunpack.c.h.s8.bf16 %v1171
        %v2980 = vunpack.c.l.s8.bf16 %v1172
        %v2981 = vunpack.c.l.s8.bf16 %v1173
        %v2982 = vunpack.c.h.s8.bf16 %v1172
        %v2983 = vunpack.c.h.s8.bf16 %v1173
        %v2984 = vunpack.c.l.s8.bf16 %v1174
        %v2985 = vunpack.c.l.s8.bf16 %v1175
        %v2986 = vunpack.c.h.s8.bf16 %v1174
        %v2987 = vunpack.c.h.s8.bf16 %v1175
        %v2988 = vunpack.c.l.s8.bf16 %v1176
        %v2989 = vunpack.c.l.s8.bf16 %v1177
        %v2990 = vunpack.c.h.s8.bf16 %v1176
        %v2991 = vunpack.c.h.s8.bf16 %v1177
        %v2992 = vunpack.c.l.s8.bf16 %v1178
        %v2993 = vunpack.c.l.s8.bf16 %v1179
        %v2994 = vunpack.c.h.s8.bf16 %v1178
        %v2995 = vunpack.c.h.s8.bf16 %v1179
        %v2996 = vunpack.c.l.s8.bf16 %v1180
        %v2997 = vunpack.c.l.s8.bf16 %v1181
        %v2998 = vunpack.c.h.s8.bf16 %v1180
        %v2999 = vunpack.c.h.s8.bf16 %v1181
        %v3000 = vunpack.c.l.s8.bf16 %v1182
        %v3001 = vunpack.c.l.s8.bf16 %v1183
        %v3002 = vunpack.c.h.s8.bf16 %v1182
        %v3003 = vunpack.c.h.s8.bf16 %v1183
        %v3004 = vunpack.c.l.s8.bf16 %v1184
        %v3005 = vunpack.c.l.s8.bf16 %v1185
        %v3006 = vunpack.c.h.s8.bf16 %v1184
        %v3007 = vunpack.c.h.s8.bf16 %v1185
        %v3008 = vunpack.c.l.s8.bf16 %v1186
        %v3009 = vunpack.c.l.s8.bf16 %v1187
        %v3010 = vunpack.c.h.s8.bf16 %v1186
        %v3011 = vunpack.c.h.s8.bf16 %v1187
        %v3012 = vunpack.c.l.s8.bf16 %v1188
        %v3013 = vunpack.c.l.s8.bf16 %v1189
        %v3014 = vunpack.c.h.s8.bf16 %v1188
        %v3015 = vunpack.c.h.s8.bf16 %v1189
        %v3016 = vunpack.c.l.s8.bf16 %v1190
        %v3017 = vunpack.c.l.s8.bf16 %v1191
        %v3018 = vunpack.c.h.s8.bf16 %v1190
        %v3019 = vunpack.c.h.s8.bf16 %v1191
        %v3020 = vunpack.c.l.s8.bf16 %v1192
        %v3021 = vunpack.c.l.s8.bf16 %v1193
        %v3022 = vunpack.c.h.s8.bf16 %v1192
        %v3023 = vunpack.c.h.s8.bf16 %v1193
        %v3024 = vunpack.c.l.s8.bf16 %v1194
        %v3025 = vunpack.c.l.s8.bf16 %v1195
        %v3026 = vunpack.c.h.s8.bf16 %v1194
        %v3027 = vunpack.c.h.s8.bf16 %v1195
        %v3028 = vunpack.c.l.s8.bf16 %v1196
        %v3029 = vunpack.c.l.s8.bf16 %v1197
        %v3030 = vunpack.c.h.s8.bf16 %v1196
        %v3031 = vunpack.c.h.s8.bf16 %v1197
        %v3032 = vunpack.c.l.s8.bf16 %v1198
        %v3033 = vunpack.c.l.s8.bf16 %v1199
        %v3034 = vunpack.c.h.s8.bf16 %v1198
        %v3035 = vunpack.c.h.s8.bf16 %v1199
        %v3036 = vunpack.c.l.s8.bf16 %v1200
        %v3037 = vunpack.c.l.s8.bf16 %v1201
        %v3038 = vunpack.c.h.s8.bf16 %v1200
        %v3039 = vunpack.c.h.s8.bf16 %v1201
        %v3040 = vunpack.c.l.s8.bf16 %v1202
        %v3041 = vunpack.c.l.s8.bf16 %v1203
        %v3042 = vunpack.c.h.s8.bf16 %v1202
        %v3043 = vunpack.c.h.s8.bf16 %v1203
        %v3044 = vunpack.c.l.s8.bf16 %v1204
        %v3045 = vunpack.c.l.s8.bf16 %v1205
        %v3046 = vunpack.c.h.s8.bf16 %v1204
        %v3047 = vunpack.c.h.s8.bf16 %v1205
        %v3048 = vunpack.c.l.s8.bf16 %v1206
        %v3049 = vunpack.c.l.s8.bf16 %v1207
        %v3050 = vunpack.c.h.s8.bf16 %v1206
        %v3051 = vunpack.c.h.s8.bf16 %v1207
        %v3052 = vunpack.c.l.s8.bf16 %v1208
        %v3053 = vunpack.c.l.s8.bf16 %v1209
        %v3054 = vunpack.c.h.s8.bf16 %v1208
        %v3055 = vunpack.c.h.s8.bf16 %v1209
        %v3056 = vunpack.c.l.s8.bf16 %v1210
        %v3057 = vunpack.c.l.s8.bf16 %v1211
        %v3058 = vunpack.c.h.s8.bf16 %v1210
        %v3059 = vunpack.c.h.s8.bf16 %v1211
        %v3060 = vunpack.c.l.s8.bf16 %v1212
        %v3061 = vunpack.c.l.s8.bf16 %v1213
        %v3062 = vunpack.c.h.s8.bf16 %v1212
        %v3063 = vunpack.c.h.s8.bf16 %v1213
        %v3064 = vunpack.c.l.s8.bf16 %v1214
        %v3065 = vunpack.c.l.s8.bf16 %v1215
        %v3066 = vunpack.c.h.s8.bf16 %v1214
        %v3067 = vunpack.c.h.s8.bf16 %v1215
        %v3068 = vunpack.c.l.s8.bf16 %v1216
        %v3069 = vunpack.c.l.s8.bf16 %v1217
        %v3070 = vunpack.c.h.s8.bf16 %v1216
        %v3071 = vunpack.c.h.s8.bf16 %v1217
        %v3072 = vunpack.c.l.s8.bf16 %v1218
        %v3073 = vunpack.c.l.s8.bf16 %v1219
        %v3074 = vunpack.c.h.s8.bf16 %v1218
        %v3075 = vunpack.c.h.s8.bf16 %v1219
        %v3076 = vunpack.c.l.s8.bf16 %v1220
        %v3077 = vunpack.c.l.s8.bf16 %v1221
        %v3078 = vunpack.c.h.s8.bf16 %v1220
        %v3079 = vunpack.c.h.s8.bf16 %v1221
        %v3080 = vunpack.c.l.s8.bf16 %v1222
        %v3081 = vunpack.c.l.s8.bf16 %v1223
        %v3082 = vunpack.c.h.s8.bf16 %v1222
        %v3083 = vunpack.c.h.s8.bf16 %v1223
        %v3084 = vunpack.c.l.s8.bf16 %v1224
        %v3085 = vunpack.c.l.s8.bf16 %v1225
        %v3086 = vunpack.c.h.s8.bf16 %v1224
        %v3087 = vunpack.c.h.s8.bf16 %v1225
        %v3088 = vunpack.c.l.s8.bf16 %v1226
        %v3089 = vunpack.c.l.s8.bf16 %v1227
        %v3090 = vunpack.c.h.s8.bf16 %v1226
        %v3091 = vunpack.c.h.s8.bf16 %v1227
        %v3092 = vunpack.c.l.s8.bf16 %v1228
        %v3093 = vunpack.c.l.s8.bf16 %v1229
        %v3094 = vunpack.c.h.s8.bf16 %v1228
        %v3095 = vunpack.c.h.s8.bf16 %v1229
        %v3096 = vunpack.c.l.s8.bf16 %v1230
        %v3097 = vunpack.c.l.s8.bf16 %v1231
        %v3098 = vunpack.c.h.s8.bf16 %v1230
        %v3099 = vunpack.c.h.s8.bf16 %v1231
        %v3100 = vunpack.c.l.s8.bf16 %v1232
        %v3101 = vunpack.c.l.s8.bf16 %v1233
        %v3102 = vunpack.c.h.s8.bf16 %v1232
        %v3103 = vunpack.c.h.s8.bf16 %v1233
        %v3104 = vunpack.c.l.s8.bf16 %v1234
        %v3105 = vunpack.c.l.s8.bf16 %v1235
        %v3106 = vunpack.c.h.s8.bf16 %v1234
        %v3107 = vunpack.c.h.s8.bf16 %v1235
        %v3108 = vunpack.c.l.s8.bf16 %v1236
        %v3109 = vunpack.c.l.s8.bf16 %v1237
        %v3110 = vunpack.c.h.s8.bf16 %v1236
        %v3111 = vunpack.c.h.s8.bf16 %v1237
        %v3112 = vunpack.c.l.s8.bf16 %v1238
        %v3113 = vunpack.c.l.s8.bf16 %v1239
        %v3114 = vunpack.c.h.s8.bf16 %v1238
        %v3115 = vunpack.c.h.s8.bf16 %v1239
        %v3116 = vunpack.c.l.s8.bf16 %v1240
        %v3117 = vunpack.c.l.s8.bf16 %v1241
        %v3118 = vunpack.c.h.s8.bf16 %v1240
        %v3119 = vunpack.c.h.s8.bf16 %v1241
        %v3120 = vunpack.c.l.s8.bf16 %v1242
        %v3121 = vunpack.c.l.s8.bf16 %v1243
        %v3122 = vunpack.c.h.s8.bf16 %v1242
        %v3123 = vunpack.c.h.s8.bf16 %v1243
        %v3124 = vunpack.c.l.s8.bf16 %v1244
        %v3125 = vunpack.c.l.s8.bf16 %v1245
        %v3126 = vunpack.c.h.s8.bf16 %v1244
        %v3127 = vunpack.c.h.s8.bf16 %v1245
        %v3128 = vunpack.c.l.s8.bf16 %v1246
        %v3129 = vunpack.c.l.s8.bf16 %v1247
        %v3130 = vunpack.c.h.s8.bf16 %v1246
        %v3131 = vunpack.c.h.s8.bf16 %v1247
        %v3132 = vunpack.c.l.s8.bf16 %v1248
        %v3133 = vunpack.c.l.s8.bf16 %v1249
        %v3134 = vunpack.c.h.s8.bf16 %v1248
        %v3135 = vunpack.c.h.s8.bf16 %v1249
        %v3136 = vunpack.c.l.s8.bf16 %v1250
        %v3137 = vunpack.c.l.s8.bf16 %v1251
        %v3138 = vunpack.c.h.s8.bf16 %v1250
        %v3139 = vunpack.c.h.s8.bf16 %v1251
        %v3140 = vunpack.c.l.s8.bf16 %v1252
        %v3141 = vunpack.c.l.s8.bf16 %v1253
        %v3142 = vunpack.c.h.s8.bf16 %v1252
        %v3143 = vunpack.c.h.s8.bf16 %v1253
        %v3144 = vunpack.c.l.s8.bf16 %v1254
        %v3145 = vunpack.c.l.s8.bf16 %v1255
        %v3146 = vunpack.c.h.s8.bf16 %v1254
        %v3147 = vunpack.c.h.s8.bf16 %v1255
        %v3148 = vunpack.c.l.s8.bf16 %v1256
        %v3149 = vunpack.c.l.s8.bf16 %v1257
        %v3150 = vunpack.c.h.s8.bf16 %v1256
        %v3151 = vunpack.c.h.s8.bf16 %v1257
        %v3152 = vunpack.c.l.s8.bf16 %v1258
        %v3153 = vunpack.c.l.s8.bf16 %v1259
        %v3154 = vunpack.c.h.s8.bf16 %v1258
        %v3155 = vunpack.c.h.s8.bf16 %v1259
        %v3156 = vunpack.c.l.s8.bf16 %v1260
        %v3157 = vunpack.c.l.s8.bf16 %v1261
        %v3158 = vunpack.c.h.s8.bf16 %v1260
        %v3159 = vunpack.c.h.s8.bf16 %v1261
        %v3160 = vunpack.c.l.s8.bf16 %v1262
        %v3161 = vunpack.c.l.s8.bf16 %v1263
        %v3162 = vunpack.c.h.s8.bf16 %v1262
        %v3163 = vunpack.c.h.s8.bf16 %v1263
        %v3164 = vunpack.c.l.s8.bf16 %v1264
        %v3165 = vunpack.c.l.s8.bf16 %v1265
        %v3166 = vunpack.c.h.s8.bf16 %v1264
        %v3167 = vunpack.c.h.s8.bf16 %v1265
        %v3168 = vunpack.c.l.s8.bf16 %v1266
        %v3169 = vunpack.c.l.s8.bf16 %v1267
        %v3170 = vunpack.c.h.s8.bf16 %v1266
        %v3171 = vunpack.c.h.s8.bf16 %v1267
        %v3172 = vunpack.c.l.s8.bf16 %v1268
        %v3173 = vunpack.c.l.s8.bf16 %v1269
        %v3174 = vunpack.c.h.s8.bf16 %v1268
        %v3175 = vunpack.c.h.s8.bf16 %v1269
        %v3176 = vunpack.c.l.s8.bf16 %v1270
        %v3177 = vunpack.c.l.s8.bf16 %v1271
        %v3178 = vunpack.c.h.s8.bf16 %v1270
        %v3179 = vunpack.c.h.s8.bf16 %v1271
        %v3180 = vunpack.c.l.s8.bf16 %v1272
        %v3181 = vunpack.c.l.s8.bf16 %v1273
        %v3182 = vunpack.c.h.s8.bf16 %v1272
        %v3183 = vunpack.c.h.s8.bf16 %v1273
        %v3184 = vunpack.c.l.s8.bf16 %v1274
        %v3185 = vunpack.c.l.s8.bf16 %v1275
        %v3186 = vunpack.c.h.s8.bf16 %v1274
        %v3187 = vunpack.c.h.s8.bf16 %v1275
        %v3188 = vunpack.c.l.s8.bf16 %v1276
        %v3189 = vunpack.c.l.s8.bf16 %v1277
        %v3190 = vunpack.c.h.s8.bf16 %v1276
        %v3191 = vunpack.c.h.s8.bf16 %v1277
        %v3192 = vunpack.c.l.s8.bf16 %v1278
        %v3193 = vunpack.c.l.s8.bf16 %v1279
        %v3194 = vunpack.c.h.s8.bf16 %v1278
        %v3195 = vunpack.c.h.s8.bf16 %v1279
        %v3196 = vunpack.c.l.s8.bf16 %v1280
        %v3197 = vunpack.c.l.s8.bf16 %v1281
        %v3198 = vunpack.c.h.s8.bf16 %v1280
        %v3199 = vunpack.c.h.s8.bf16 %v1281
        %v3200 = vunpack.c.l.s8.bf16 %v1282
        %v3201 = vunpack.c.l.s8.bf16 %v1283
        %v3202 = vunpack.c.h.s8.bf16 %v1282
        %v3203 = vunpack.c.h.s8.bf16 %v1283
        %v3204 = vunpack.c.l.s8.bf16 %v1284
        %v3205 = vunpack.c.l.s8.bf16 %v1285
        %v3206 = vunpack.c.h.s8.bf16 %v1284
        %v3207 = vunpack.c.h.s8.bf16 %v1285
        %v3208 = vunpack.c.l.s8.bf16 %v1286
        %v3209 = vunpack.c.l.s8.bf16 %v1287
        %v3210 = vunpack.c.h.s8.bf16 %v1286
        %v3211 = vunpack.c.h.s8.bf16 %v1287
        %v3212 = vunpack.c.l.s8.bf16 %v1288
        %v3213 = vunpack.c.l.s8.bf16 %v1289
        %v3214 = vunpack.c.h.s8.bf16 %v1288
        %v3215 = vunpack.c.h.s8.bf16 %v1289
        %v3216 = vunpack.c.l.s8.bf16 %v1290
        %v3217 = vunpack.c.l.s8.bf16 %v1291
        %v3218 = vunpack.c.h.s8.bf16 %v1290
        %v3219 = vunpack.c.h.s8.bf16 %v1291
        %v3220 = vunpack.c.l.s8.bf16 %v1292
        %v3221 = vunpack.c.l.s8.bf16 %v1293
        %v3222 = vunpack.c.h.s8.bf16 %v1292
        %v3223 = vunpack.c.h.s8.bf16 %v1293
        %v3224 = vunpack.c.l.s8.bf16 %v1294
        %v3225 = vunpack.c.l.s8.bf16 %v1295
        %v3226 = vunpack.c.h.s8.bf16 %v1294
        %v3227 = vunpack.c.h.s8.bf16 %v1295
        %v3228 = vunpack.c.l.s8.bf16 %v1296
        %v3229 = vunpack.c.l.s8.bf16 %v1297
        %v3230 = vunpack.c.h.s8.bf16 %v1296
        %v3231 = vunpack.c.h.s8.bf16 %v1297
        %v3232 = vunpack.c.l.s8.bf16 %v1298
        %v3233 = vunpack.c.l.s8.bf16 %v1299
        %v3234 = vunpack.c.h.s8.bf16 %v1298
        %v3235 = vunpack.c.h.s8.bf16 %v1299
        %v3236 = vunpack.c.l.s8.bf16 %v1300
        %v3237 = vunpack.c.l.s8.bf16 %v1301
        %v3238 = vunpack.c.h.s8.bf16 %v1300
        %v3239 = vunpack.c.h.s8.bf16 %v1301
        %v3240 = vunpack.c.l.s8.bf16 %v1302
        %v3241 = vunpack.c.l.s8.bf16 %v1303
        %v3242 = vunpack.c.h.s8.bf16 %v1302
        %v3243 = vunpack.c.h.s8.bf16 %v1303
        %v3244 = vunpack.c.l.s8.bf16 %v1304
        %v3245 = vunpack.c.l.s8.bf16 %v1305
        %v3246 = vunpack.c.h.s8.bf16 %v1304
        %v3247 = vunpack.c.h.s8.bf16 %v1305
        %v3248 = vunpack.c.l.s8.bf16 %v1306
        %v3249 = vunpack.c.l.s8.bf16 %v1307
        %v3250 = vunpack.c.h.s8.bf16 %v1306
        %v3251 = vunpack.c.h.s8.bf16 %v1307
        %v3252 = vunpack.c.l.s8.bf16 %v1308
        %v3253 = vunpack.c.l.s8.bf16 %v1309
        %v3254 = vunpack.c.h.s8.bf16 %v1308
        %v3255 = vunpack.c.h.s8.bf16 %v1309
        %v3256 = vunpack.c.l.s8.bf16 %v1310
        %v3257 = vunpack.c.l.s8.bf16 %v1311
        %v3258 = vunpack.c.h.s8.bf16 %v1310
        %v3259 = vunpack.c.h.s8.bf16 %v1311
        %v3260 = vunpack.c.l.s8.bf16 %v1312
        %v3261 = vunpack.c.l.s8.bf16 %v1313
        %v3262 = vunpack.c.h.s8.bf16 %v1312
        %v3263 = vunpack.c.h.s8.bf16 %v1313
        %v3264 = vunpack.c.l.s8.bf16 %v1314
        %v3265 = vunpack.c.l.s8.bf16 %v1315
        %v3266 = vunpack.c.h.s8.bf16 %v1314
        %v3267 = vunpack.c.h.s8.bf16 %v1315
        %v3268 = vunpack.c.l.s8.bf16 %v1316
        %v3269 = vunpack.c.l.s8.bf16 %v1317
        %v3270 = vunpack.c.h.s8.bf16 %v1316
        %v3271 = vunpack.c.h.s8.bf16 %v1317
        %v3272 = vunpack.c.l.s8.bf16 %v1318
        %v3273 = vunpack.c.l.s8.bf16 %v1319
        %v3274 = vunpack.c.h.s8.bf16 %v1318
        %v3275 = vunpack.c.h.s8.bf16 %v1319
        %v3276 = vunpack.c.l.s8.bf16 %v1320
        %v3277 = vunpack.c.l.s8.bf16 %v1321
        %v3278 = vunpack.c.h.s8.bf16 %v1320
        %v3279 = vunpack.c.h.s8.bf16 %v1321
        %v3280 = vunpack.c.l.s8.bf16 %v1322
        %v3281 = vunpack.c.l.s8.bf16 %v1323
        %v3282 = vunpack.c.h.s8.bf16 %v1322
        %v3283 = vunpack.c.h.s8.bf16 %v1323
        %v3284 = vunpack.c.l.s8.bf16 %v1324
        %v3285 = vunpack.c.l.s8.bf16 %v1325
        %v3286 = vunpack.c.h.s8.bf16 %v1324
        %v3287 = vunpack.c.h.s8.bf16 %v1325
        %v3288 = vunpack.c.l.s8.bf16 %v1326
        %v3289 = vunpack.c.l.s8.bf16 %v1327
        %v3290 = vunpack.c.h.s8.bf16 %v1326
        %v3291 = vunpack.c.h.s8.bf16 %v1327
        %v3292 = vunpack.c.l.s8.bf16 %v1328
        %v3293 = vunpack.c.l.s8.bf16 %v1329
        %v3294 = vunpack.c.h.s8.bf16 %v1328
        %v3295 = vunpack.c.h.s8.bf16 %v1329
        %v3296 = vunpack.c.l.s8.bf16 %v1330
        %v3297 = vunpack.c.l.s8.bf16 %v1331
        %v3298 = vunpack.c.h.s8.bf16 %v1330
        %v3299 = vunpack.c.h.s8.bf16 %v1331
        %v3300 = vunpack.c.l.s8.bf16 %v1332
        %v3301 = vunpack.c.l.s8.bf16 %v1333
        %v3302 = vunpack.c.h.s8.bf16 %v1332
        %v3303 = vunpack.c.h.s8.bf16 %v1333
        %v3304 = vunpack.c.l.s8.bf16 %v1334
        %v3305 = vunpack.c.l.s8.bf16 %v1335
        %v3306 = vunpack.c.h.s8.bf16 %v1334
        %v3307 = vunpack.c.h.s8.bf16 %v1335
        %v3308 = vunpack.c.l.s8.bf16 %v1336
        %v3309 = vunpack.c.l.s8.bf16 %v1337
        %v3310 = vunpack.c.h.s8.bf16 %v1336
        %v3311 = vunpack.c.h.s8.bf16 %v1337
        %v3312 = vunpack.c.l.s8.bf16 %v1338
        %v3313 = vunpack.c.l.s8.bf16 %v1339
        %v3314 = vunpack.c.h.s8.bf16 %v1338
        %v3315 = vunpack.c.h.s8.bf16 %v1339
        %v3316 = vunpack.c.l.s8.bf16 %v1340
        %v3317 = vunpack.c.l.s8.bf16 %v1341
        %v3318 = vunpack.c.h.s8.bf16 %v1340
        %v3319 = vunpack.c.h.s8.bf16 %v1341
        %v3320 = vunpack.c.l.s8.bf16 %v1342
        %v3321 = vunpack.c.l.s8.bf16 %v1343
        %v3322 = vunpack.c.h.s8.bf16 %v1342
        %v3323 = vunpack.c.h.s8.bf16 %v1343
        %v3324 = vunpack.c.l.s8.bf16 %v1344
        %v3325 = vunpack.c.l.s8.bf16 %v1345
        %v3326 = vunpack.c.h.s8.bf16 %v1344
        %v3327 = vunpack.c.h.s8.bf16 %v1345
        %v3328 = vunpack.c.l.s8.bf16 %v1346
        %v3329 = vunpack.c.l.s8.bf16 %v1347
        %v3330 = vunpack.c.h.s8.bf16 %v1346
        %v3331 = vunpack.c.h.s8.bf16 %v1347
        %v3332 = vunpack.c.l.s8.bf16 %v1348
        %v3333 = vunpack.c.l.s8.bf16 %v1349
        %v3334 = vunpack.c.h.s8.bf16 %v1348
        %v3335 = vunpack.c.h.s8.bf16 %v1349
        %v3336 = vunpack.c.l.s8.bf16 %v1350
        %v3337 = vunpack.c.l.s8.bf16 %v1351
        %v3338 = vunpack.c.h.s8.bf16 %v1350
        %v3339 = vunpack.c.h.s8.bf16 %v1351
        %v3340 = vunpack.c.l.s8.bf16 %v1352
        %v3341 = vunpack.c.l.s8.bf16 %v1353
        %v3342 = vunpack.c.h.s8.bf16 %v1352
        %v3343 = vunpack.c.h.s8.bf16 %v1353
        %v3344 = vunpack.c.l.s8.bf16 %v1354
        %v3345 = vunpack.c.l.s8.bf16 %v1355
        %v3346 = vunpack.c.h.s8.bf16 %v1354
        %v3347 = vunpack.c.h.s8.bf16 %v1355
        %v3348 = vunpack.c.l.s8.bf16 %v1356
        %v3349 = vunpack.c.l.s8.bf16 %v1357
        %v3350 = vunpack.c.h.s8.bf16 %v1356
        %v3351 = vunpack.c.h.s8.bf16 %v1357
        %v3352 = vunpack.c.l.s8.bf16 %v1358
        %v3353 = vunpack.c.l.s8.bf16 %v1359
        %v3354 = vunpack.c.h.s8.bf16 %v1358
        %v3355 = vunpack.c.h.s8.bf16 %v1359
        %v3356 = vunpack.c.l.s8.bf16 %v1360
        %v3357 = vunpack.c.l.s8.bf16 %v1361
        %v3358 = vunpack.c.h.s8.bf16 %v1360
        %v3359 = vunpack.c.h.s8.bf16 %v1361
        %v3360 = vunpack.c.l.s8.bf16 %v1362
        %v3361 = vunpack.c.l.s8.bf16 %v1363
        %v3362 = vunpack.c.h.s8.bf16 %v1362
        %v3363 = vunpack.c.h.s8.bf16 %v1363
        %v3364 = vunpack.c.l.s8.bf16 %v1364
        %v3365 = vunpack.c.l.s8.bf16 %v1365
        %v3366 = vunpack.c.h.s8.bf16 %v1364
        %v3367 = vunpack.c.h.s8.bf16 %v1365
        %v3368 = vunpack.c.l.s8.bf16 %v1366
        %v3369 = vunpack.c.l.s8.bf16 %v1367
        %v3370 = vunpack.c.h.s8.bf16 %v1366
        %v3371 = vunpack.c.h.s8.bf16 %v1367
        %v3372 = vunpack.c.l.s8.bf16 %v1368
        %v3373 = vunpack.c.l.s8.bf16 %v1369
        %v3374 = vunpack.c.h.s8.bf16 %v1368
        %v3375 = vunpack.c.h.s8.bf16 %v1369
        %v3376 = vunpack.c.l.s8.bf16 %v1370
        %v3377 = vunpack.c.l.s8.bf16 %v1371
        %v3378 = vunpack.c.h.s8.bf16 %v1370
        %v3379 = vunpack.c.h.s8.bf16 %v1371
        %v3380 = vunpack.c.l.s8.bf16 %v1372
        %v3381 = vunpack.c.l.s8.bf16 %v1373
        %v3382 = vunpack.c.h.s8.bf16 %v1372
        %v3383 = vunpack.c.h.s8.bf16 %v1373
        %v3384 = vunpack.c.l.s8.bf16 %v1374
        %v3385 = vunpack.c.l.s8.bf16 %v1375
        %v3386 = vunpack.c.h.s8.bf16 %v1374
        %v3387 = vunpack.c.h.s8.bf16 %v1375
        %v3388 = vunpack.c.l.s8.bf16 %v1376
        %v3389 = vunpack.c.l.s8.bf16 %v1377
        %v3390 = vunpack.c.h.s8.bf16 %v1376
        %v3391 = vunpack.c.h.s8.bf16 %v1377
        %v3392 = vunpack.c.l.s8.bf16 %v1378
        %v3393 = vunpack.c.l.s8.bf16 %v1379
        %v3394 = vunpack.c.h.s8.bf16 %v1378
        %v3395 = vunpack.c.h.s8.bf16 %v1379
        %v3396 = vunpack.c.l.s8.bf16 %v1380
        %v3397 = vunpack.c.l.s8.bf16 %v1381
        %v3398 = vunpack.c.h.s8.bf16 %v1380
        %v3399 = vunpack.c.h.s8.bf16 %v1381
        %v3400 = vunpack.c.l.s8.bf16 %v1382
        %v3401 = vunpack.c.l.s8.bf16 %v1383
        %v3402 = vunpack.c.h.s8.bf16 %v1382
        %v3403 = vunpack.c.h.s8.bf16 %v1383
        %v3404 = vunpack.c.l.s8.bf16 %v1384
        %v3405 = vunpack.c.l.s8.bf16 %v1385
        %v3406 = vunpack.c.h.s8.bf16 %v1384
        %v3407 = vunpack.c.h.s8.bf16 %v1385
        %v3408 = vunpack.c.l.s8.bf16 %v1386
        %v3409 = vunpack.c.l.s8.bf16 %v1387
        %v3410 = vunpack.c.h.s8.bf16 %v1386
        %v3411 = vunpack.c.h.s8.bf16 %v1387
        %v3412 = vunpack.c.l.s8.bf16 %v1388
        %v3413 = vunpack.c.l.s8.bf16 %v1389
        %v3414 = vunpack.c.h.s8.bf16 %v1388
        %v3415 = vunpack.c.h.s8.bf16 %v1389
        %v3416 = vunpack.c.l.s8.bf16 %v1390
        %v3417 = vunpack.c.l.s8.bf16 %v1391
        %v3418 = vunpack.c.h.s8.bf16 %v1390
        %v3419 = vunpack.c.h.s8.bf16 %v1391
        %v3420 = vunpack.c.l.s8.bf16 %v1392
        %v3421 = vunpack.c.l.s8.bf16 %v1393
        %v3422 = vunpack.c.h.s8.bf16 %v1392
        %v3423 = vunpack.c.h.s8.bf16 %v1393
        %v3424 = vunpack.c.l.s8.bf16 %v1394
        %v3425 = vunpack.c.l.s8.bf16 %v1395
        %v3426 = vunpack.c.h.s8.bf16 %v1394
        %v3427 = vunpack.c.h.s8.bf16 %v1395
        %v3428 = vunpack.c.l.s8.bf16 %v1396
        %v3429 = vunpack.c.l.s8.bf16 %v1397
        %v3430 = vunpack.c.h.s8.bf16 %v1396
        %v3431 = vunpack.c.h.s8.bf16 %v1397
        %v3432 = vunpack.c.l.s8.bf16 %v1398
        %v3433 = vunpack.c.l.s8.bf16 %v1399
        %v3434 = vunpack.c.h.s8.bf16 %v1398
        %v3435 = vunpack.c.h.s8.bf16 %v1399
        %v3436 = vunpack.c.l.s8.bf16 %v1400
        %v3437 = vunpack.c.l.s8.bf16 %v1401
        %v3438 = vunpack.c.h.s8.bf16 %v1400
        %v3439 = vunpack.c.h.s8.bf16 %v1401
        %v3440 = vunpack.c.l.s8.bf16 %v1402
        %v3441 = vunpack.c.l.s8.bf16 %v1403
        %v3442 = vunpack.c.h.s8.bf16 %v1402
        %v3443 = vunpack.c.h.s8.bf16 %v1403
        %v3444 = vunpack.c.l.s8.bf16 %v1404
        %v3445 = vunpack.c.l.s8.bf16 %v1405
        %v3446 = vunpack.c.h.s8.bf16 %v1404
        %v3447 = vunpack.c.h.s8.bf16 %v1405
        %v3448 = vunpack.c.l.s8.bf16 %v1406
        %v3449 = vunpack.c.l.s8.bf16 %v1407
        %v3450 = vunpack.c.h.s8.bf16 %v1406
        %v3451 = vunpack.c.h.s8.bf16 %v1407
        %v3452 = vunpack.c.l.s8.bf16 %v1408
        %v3453 = vunpack.c.l.s8.bf16 %v1409
        %v3454 = vunpack.c.h.s8.bf16 %v1408
        %v3455 = vunpack.c.h.s8.bf16 %v1409
        %v3456 = vunpack.c.l.s8.bf16 %v1410
        %v3457 = vunpack.c.l.s8.bf16 %v1411
        %v3458 = vunpack.c.h.s8.bf16 %v1410
        %v3459 = vunpack.c.h.s8.bf16 %v1411
        %v3460 = vunpack.c.l.s8.bf16 %v1412
        %v3461 = vunpack.c.l.s8.bf16 %v1413
        %v3462 = vunpack.c.h.s8.bf16 %v1412
        %v3463 = vunpack.c.h.s8.bf16 %v1413
        %v3464 = vunpack.c.l.s8.bf16 %v1414
        %v3465 = vunpack.c.l.s8.bf16 %v1415
        %v3466 = vunpack.c.h.s8.bf16 %v1414
        %v3467 = vunpack.c.h.s8.bf16 %v1415
        %v3468 = vunpack.c.l.s8.bf16 %v1416
        %v3469 = vunpack.c.l.s8.bf16 %v1417
        %v3470 = vunpack.c.h.s8.bf16 %v1416
        %v3471 = vunpack.c.h.s8.bf16 %v1417
        %v3472 = vunpack.c.l.s8.bf16 %v1418
        %v3473 = vunpack.c.l.s8.bf16 %v1419
        %v3474 = vunpack.c.h.s8.bf16 %v1418
        %v3475 = vunpack.c.h.s8.bf16 %v1419
        %v3476 = vunpack.c.l.s8.bf16 %v1420
        %v3477 = vunpack.c.l.s8.bf16 %v1421
        %v3478 = vunpack.c.h.s8.bf16 %v1420
        %v3479 = vunpack.c.h.s8.bf16 %v1421
        %v3480 = vunpack.c.l.s8.bf16 %v1422
        %v3481 = vunpack.c.l.s8.bf16 %v1423
        %v3482 = vunpack.c.h.s8.bf16 %v1422
        %v3483 = vunpack.c.h.s8.bf16 %v1423
        %v3484 = vunpack.c.l.s8.bf16 %v1424
        %v3485 = vunpack.c.l.s8.bf16 %v1425
        %v3486 = vunpack.c.h.s8.bf16 %v1424
        %v3487 = vunpack.c.h.s8.bf16 %v1425
        %v3488 = vunpack.c.l.s8.bf16 %v1426
        %v3489 = vunpack.c.l.s8.bf16 %v1427
        %v3490 = vunpack.c.h.s8.bf16 %v1426
        %v3491 = vunpack.c.h.s8.bf16 %v1427
        %v3492 = vunpack.c.l.s8.bf16 %v1428
        %v3493 = vunpack.c.l.s8.bf16 %v1429
        %v3494 = vunpack.c.h.s8.bf16 %v1428
        %v3495 = vunpack.c.h.s8.bf16 %v1429
        %v3496 = vunpack.c.l.s8.bf16 %v1430
        %v3497 = vunpack.c.l.s8.bf16 %v1431
        %v3498 = vunpack.c.h.s8.bf16 %v1430
        %v3499 = vunpack.c.h.s8.bf16 %v1431
        %v3500 = vunpack.c.l.s8.bf16 %v1432
        %v3501 = vunpack.c.l.s8.bf16 %v1433
        %v3502 = vunpack.c.h.s8.bf16 %v1432
        %v3503 = vunpack.c.h.s8.bf16 %v1433
        %v3504 = vunpack.c.l.s8.bf16 %v1434
        %v3505 = vunpack.c.l.s8.bf16 %v1435
        %v3506 = vunpack.c.h.s8.bf16 %v1434
        %v3507 = vunpack.c.h.s8.bf16 %v1435
        %v3508 = vunpack.c.l.s8.bf16 %v1436
        %v3509 = vunpack.c.l.s8.bf16 %v1437
        %v3510 = vunpack.c.h.s8.bf16 %v1436
        %v3511 = vunpack.c.h.s8.bf16 %v1437
        %v3512 = vunpack.c.l.s8.bf16 %v1438
        %v3513 = vunpack.c.l.s8.bf16 %v1439
        %v3514 = vunpack.c.h.s8.bf16 %v1438
        %v3515 = vunpack.c.h.s8.bf16 %v1439
        %v3516 = vunpack.c.l.s8.bf16 %v1440
        %v3517 = vunpack.c.l.s8.bf16 %v1441
        %v3518 = vunpack.c.h.s8.bf16 %v1440
        %v3519 = vunpack.c.h.s8.bf16 %v1441
        %v3520 = vunpack.c.l.s8.bf16 %v1442
        %v3521 = vunpack.c.l.s8.bf16 %v1443
        %v3522 = vunpack.c.h.s8.bf16 %v1442
        %v3523 = vunpack.c.h.s8.bf16 %v1443
        %v3524 = vunpack.c.l.s8.bf16 %v1444
        %v3525 = vunpack.c.l.s8.bf16 %v1445
        %v3526 = vunpack.c.h.s8.bf16 %v1444
        %v3527 = vunpack.c.h.s8.bf16 %v1445
        %v3528 = vunpack.c.l.s8.bf16 %v1446
        %v3529 = vunpack.c.l.s8.bf16 %v1447
        %v3530 = vunpack.c.h.s8.bf16 %v1446
        %v3531 = vunpack.c.h.s8.bf16 %v1447
        %v3532 = vunpack.c.l.s8.bf16 %v1448
        %v3533 = vunpack.c.l.s8.bf16 %v1449
        %v3534 = vunpack.c.h.s8.bf16 %v1448
        %v3535 = vunpack.c.h.s8.bf16 %v1449
        %v3536 = vunpack.c.l.s8.bf16 %v1450
        %v3537 = vunpack.c.l.s8.bf16 %v1451
        %v3538 = vunpack.c.h.s8.bf16 %v1450
        %v3539 = vunpack.c.h.s8.bf16 %v1451
        %v3540 = vunpack.c.l.s8.bf16 %v1452
        %v3541 = vunpack.c.l.s8.bf16 %v1453
        %v3542 = vunpack.c.h.s8.bf16 %v1452
        %v3543 = vunpack.c.h.s8.bf16 %v1453
        %v3544 = vunpack.c.l.s8.bf16 %v1454
        %v3545 = vunpack.c.l.s8.bf16 %v1455
        %v3546 = vunpack.c.h.s8.bf16 %v1454
        %v3547 = vunpack.c.h.s8.bf16 %v1455
        %v3548 = vunpack.c.l.s8.bf16 %v1456
        %v3549 = vunpack.c.l.s8.bf16 %v1457
        %v3550 = vunpack.c.h.s8.bf16 %v1456
        %v3551 = vunpack.c.h.s8.bf16 %v1457
        %v3552 = vunpack.c.l.s8.bf16 %v1458
        %v3553 = vunpack.c.l.s8.bf16 %v1459
        %v3554 = vunpack.c.h.s8.bf16 %v1458
        %v3555 = vunpack.c.h.s8.bf16 %v1459
        %v3556 = vunpack.c.l.s8.bf16 %v1460
        %v3557 = vunpack.c.l.s8.bf16 %v1461
        %v3558 = vunpack.c.h.s8.bf16 %v1460
        %v3559 = vunpack.c.h.s8.bf16 %v1461
        %v3560 = vunpack.c.l.s8.bf16 %v1462
        %v3561 = vunpack.c.l.s8.bf16 %v1463
        %v3562 = vunpack.c.h.s8.bf16 %v1462
        %v3563 = vunpack.c.h.s8.bf16 %v1463
        %v3564 = vunpack.c.l.s8.bf16 %v1464
        %v3565 = vunpack.c.l.s8.bf16 %v1465
        %v3566 = vunpack.c.h.s8.bf16 %v1464
        %v3567 = vunpack.c.h.s8.bf16 %v1465
        %v3568 = vunpack.c.l.s8.bf16 %v1466
        %v3569 = vunpack.c.l.s8.bf16 %v1467
        %v3570 = vunpack.c.h.s8.bf16 %v1466
        %v3571 = vunpack.c.h.s8.bf16 %v1467
        %v3572 = vunpack.c.l.s8.bf16 %v1468
        %v3573 = vunpack.c.l.s8.bf16 %v1469
        %v3574 = vunpack.c.h.s8.bf16 %v1468
        %v3575 = vunpack.c.h.s8.bf16 %v1469
        %v3576 = vunpack.c.l.s8.bf16 %v1470
        %v3577 = vunpack.c.l.s8.bf16 %v1471
        %v3578 = vunpack.c.h.s8.bf16 %v1470
        %v3579 = vunpack.c.h.s8.bf16 %v1471
        %v3580 = vunpack.c.l.s8.bf16 %v1472
        %v3581 = vunpack.c.l.s8.bf16 %v1473
        %v3582 = vunpack.c.h.s8.bf16 %v1472
        %v3583 = vunpack.c.h.s8.bf16 %v1473
        %v3584 = vunpack.c.l.s8.bf16 %v1474
        %v3585 = vunpack.c.l.s8.bf16 %v1475
        %v3586 = vunpack.c.h.s8.bf16 %v1474
        %v3587 = vunpack.c.h.s8.bf16 %v1475
        %v3588 = vunpack.c.l.s8.bf16 %v1476
        %v3589 = vunpack.c.l.s8.bf16 %v1477
        %v3590 = vunpack.c.h.s8.bf16 %v1476
        %v3591 = vunpack.c.h.s8.bf16 %v1477
        %v3592 = vunpack.c.l.s8.bf16 %v1478
        %v3593 = vunpack.c.l.s8.bf16 %v1479
        %v3594 = vunpack.c.h.s8.bf16 %v1478
        %v3595 = vunpack.c.h.s8.bf16 %v1479
        %v3596 = vunpack.c.l.s8.bf16 %v1480
        %v3597 = vunpack.c.l.s8.bf16 %v1481
        %v3598 = vunpack.c.h.s8.bf16 %v1480
        %v3599 = vunpack.c.h.s8.bf16 %v1481
        %v3600 = vunpack.c.l.s8.bf16 %v1482
        %v3601 = vunpack.c.l.s8.bf16 %v1483
        %v3602 = vunpack.c.h.s8.bf16 %v1482
        %v3603 = vunpack.c.h.s8.bf16 %v1483
        %v3604 = vunpack.c.l.s8.bf16 %v1484
        %v3605 = vunpack.c.l.s8.bf16 %v1485
        %v3606 = vunpack.c.h.s8.bf16 %v1484
        %v3607 = vunpack.c.h.s8.bf16 %v1485
        %v3608 = vunpack.c.l.s8.bf16 %v1486
        %v3609 = vunpack.c.l.s8.bf16 %v1487
        %v3610 = vunpack.c.h.s8.bf16 %v1486
        %v3611 = vunpack.c.h.s8.bf16 %v1487
        %v3612 = vunpack.c.l.s8.bf16 %v1488
        %v3613 = vunpack.c.l.s8.bf16 %v1489
        %v3614 = vunpack.c.h.s8.bf16 %v1488
        %v3615 = vunpack.c.h.s8.bf16 %v1489
        %v3616 = vunpack.c.l.s8.bf16 %v1490
        %v3617 = vunpack.c.l.s8.bf16 %v1491
        %v3618 = vunpack.c.h.s8.bf16 %v1490
        %v3619 = vunpack.c.h.s8.bf16 %v1491
        %v3620 = vunpack.c.l.s8.bf16 %v1492
        %v3621 = vunpack.c.l.s8.bf16 %v1493
        %v3622 = vunpack.c.h.s8.bf16 %v1492
        %v3623 = vunpack.c.h.s8.bf16 %v1493
        %v3624 = vunpack.c.l.s8.bf16 %v1494
        %v3625 = vunpack.c.l.s8.bf16 %v1495
        %v3626 = vunpack.c.h.s8.bf16 %v1494
        %v3627 = vunpack.c.h.s8.bf16 %v1495
        %v3628 = vunpack.c.l.s8.bf16 %v1496
        %v3629 = vunpack.c.l.s8.bf16 %v1497
        %v3630 = vunpack.c.h.s8.bf16 %v1496
        %v3631 = vunpack.c.h.s8.bf16 %v1497
        %v3632 = vunpack.c.l.s8.bf16 %v1498
        %v3633 = vunpack.c.l.s8.bf16 %v1499
        %v3634 = vunpack.c.h.s8.bf16 %v1498
        %v3635 = vunpack.c.h.s8.bf16 %v1499
        %v3636 = vunpack.c.l.s8.bf16 %v1500
        %v3637 = vunpack.c.l.s8.bf16 %v1501
        %v3638 = vunpack.c.h.s8.bf16 %v1500
        %v3639 = vunpack.c.h.s8.bf16 %v1501
        %v3640 = vunpack.c.l.s8.bf16 %v1502
        %v3641 = vunpack.c.l.s8.bf16 %v1503
        %v3642 = vunpack.c.h.s8.bf16 %v1502
        %v3643 = vunpack.c.h.s8.bf16 %v1503
        %v3644 = vunpack.c.l.s8.bf16 %v1504
        %v3645 = vunpack.c.l.s8.bf16 %v1505
        %v3646 = vunpack.c.h.s8.bf16 %v1504
        %v3647 = vunpack.c.h.s8.bf16 %v1505
        %v3648 = vunpack.c.l.s8.bf16 %v1506
        %v3649 = vunpack.c.l.s8.bf16 %v1507
        %v3650 = vunpack.c.h.s8.bf16 %v1506
        %v3651 = vunpack.c.h.s8.bf16 %v1507
        %v3652 = vunpack.c.l.s8.bf16 %v1508
        %v3653 = vunpack.c.l.s8.bf16 %v1509
        %v3654 = vunpack.c.h.s8.bf16 %v1508
        %v3655 = vunpack.c.h.s8.bf16 %v1509
        %v3656 = vunpack.c.l.s8.bf16 %v1510
        %v3657 = vunpack.c.l.s8.bf16 %v1511
        %v3658 = vunpack.c.h.s8.bf16 %v1510
        %v3659 = vunpack.c.h.s8.bf16 %v1511
        %v3660 = vunpack.c.l.s8.bf16 %v1512
        %v3661 = vunpack.c.l.s8.bf16 %v1513
        %v3662 = vunpack.c.h.s8.bf16 %v1512
        %v3663 = vunpack.c.h.s8.bf16 %v1513
        %v3664 = vunpack.c.l.s8.bf16 %v1514
        %v3665 = vunpack.c.l.s8.bf16 %v1515
        %v3666 = vunpack.c.h.s8.bf16 %v1514
        %v3667 = vunpack.c.h.s8.bf16 %v1515
        %v3668 = vunpack.c.l.s8.bf16 %v1516
        %v3669 = vunpack.c.l.s8.bf16 %v1517
        %v3670 = vunpack.c.h.s8.bf16 %v1516
        %v3671 = vunpack.c.h.s8.bf16 %v1517
        %v3672 = vunpack.c.l.s8.bf16 %v1518
        %v3673 = vunpack.c.l.s8.bf16 %v1519
        %v3674 = vunpack.c.h.s8.bf16 %v1518
        %v3675 = vunpack.c.h.s8.bf16 %v1519
        %v3676 = vunpack.c.l.s8.bf16 %v1520
        %v3677 = vunpack.c.l.s8.bf16 %v1521
        %v3678 = vunpack.c.h.s8.bf16 %v1520
        %v3679 = vunpack.c.h.s8.bf16 %v1521
        %v3680 = vunpack.c.l.s8.bf16 %v1522
        %v3681 = vunpack.c.l.s8.bf16 %v1523
        %v3682 = vunpack.c.h.s8.bf16 %v1522
        %v3683 = vunpack.c.h.s8.bf16 %v1523
        %v3684 = vunpack.c.l.s8.bf16 %v1524
        %v3685 = vunpack.c.l.s8.bf16 %v1525
        %v3686 = vunpack.c.h.s8.bf16 %v1524
        %v3687 = vunpack.c.h.s8.bf16 %v1525
        %v3688 = vunpack.c.l.s8.bf16 %v1526
        %v3689 = vunpack.c.l.s8.bf16 %v1527
        %v3690 = vunpack.c.h.s8.bf16 %v1526
        %v3691 = vunpack.c.h.s8.bf16 %v1527
        %v3692 = vunpack.c.l.s8.bf16 %v1528
        %v3693 = vunpack.c.l.s8.bf16 %v1529
        %v3694 = vunpack.c.h.s8.bf16 %v1528
        %v3695 = vunpack.c.h.s8.bf16 %v1529
        %v3696 = vunpack.c.l.s8.bf16 %v1530
        %v3697 = vunpack.c.l.s8.bf16 %v1531
        %v3698 = vunpack.c.h.s8.bf16 %v1530
        %v3699 = vunpack.c.h.s8.bf16 %v1531
        %v3700 = vunpack.c.l.s8.bf16 %v1532
        %v3701 = vunpack.c.l.s8.bf16 %v1533
        %v3702 = vunpack.c.h.s8.bf16 %v1532
        %v3703 = vunpack.c.h.s8.bf16 %v1533
        %v3704 = vunpack.c.l.s8.bf16 %v1534
        %v3705 = vunpack.c.l.s8.bf16 %v1535
        %v3706 = vunpack.c.h.s8.bf16 %v1534
        %v3707 = vunpack.c.h.s8.bf16 %v1535
        %v3708 = vunpack.c.l.s8.bf16 %v1536
        %v3709 = vunpack.c.l.s8.bf16 %v1537
        %v3710 = vunpack.c.h.s8.bf16 %v1536
        %v3711 = vunpack.c.h.s8.bf16 %v1537
        %v3712 = vunpack.c.l.s8.bf16 %v1538
        %v3713 = vunpack.c.l.s8.bf16 %v1539
        %v3714 = vunpack.c.h.s8.bf16 %v1538
        %v3715 = vunpack.c.h.s8.bf16 %v1539
        %v3716 = vunpack.c.l.s8.bf16 %v1540
        %v3717 = vunpack.c.l.s8.bf16 %v1541
        %v3718 = vunpack.c.h.s8.bf16 %v1540
        %v3719 = vunpack.c.h.s8.bf16 %v1541
        %v3720 = vunpack.c.l.s8.bf16 %v1542
        %v3721 = vunpack.c.l.s8.bf16 %v1543
        %v3722 = vunpack.c.h.s8.bf16 %v1542
        %v3723 = vunpack.c.h.s8.bf16 %v1543
        %v3724 = vunpack.c.l.s8.bf16 %v1544
        %v3725 = vunpack.c.l.s8.bf16 %v1545
        %v3726 = vunpack.c.h.s8.bf16 %v1544
        %v3727 = vunpack.c.h.s8.bf16 %v1545
        %v3728 = vunpack.c.l.s8.bf16 %v1546
        %v3729 = vunpack.c.l.s8.bf16 %v1547
        %v3730 = vunpack.c.h.s8.bf16 %v1546
        %v3731 = vunpack.c.h.s8.bf16 %v1547
        %v3732 = vunpack.c.l.s8.bf16 %v1548
        %v3733 = vunpack.c.l.s8.bf16 %v1549
        %v3734 = vunpack.c.h.s8.bf16 %v1548
        %v3735 = vunpack.c.h.s8.bf16 %v1549
        %v3736 = vunpack.c.l.s8.bf16 %v1550
        %v3737 = vunpack.c.l.s8.bf16 %v1551
        %v3738 = vunpack.c.h.s8.bf16 %v1550
        %v3739 = vunpack.c.h.s8.bf16 %v1551
        %v3740 = vunpack.c.l.s8.bf16 %v1552
        %v3741 = vunpack.c.l.s8.bf16 %v1553
        %v3742 = vunpack.c.h.s8.bf16 %v1552
        %v3743 = vunpack.c.h.s8.bf16 %v1553
        %v3744 = vunpack.c.l.s8.bf16 %v1554
        %v3745 = vunpack.c.l.s8.bf16 %v1555
        %v3746 = vunpack.c.h.s8.bf16 %v1554
        %v3747 = vunpack.c.h.s8.bf16 %v1555
        %v3748 = vunpack.c.l.s8.bf16 %v1556
        %v3749 = vunpack.c.l.s8.bf16 %v1557
        %v3750 = vunpack.c.h.s8.bf16 %v1556
        %v3751 = vunpack.c.h.s8.bf16 %v1557
        %v3752 = vunpack.c.l.s8.bf16 %v1558
        %v3753 = vunpack.c.l.s8.bf16 %v1559
        %v3754 = vunpack.c.h.s8.bf16 %v1558
        %v3755 = vunpack.c.h.s8.bf16 %v1559
        %v3756 = vunpack.c.l.s8.bf16 %v1560
        %v3757 = vunpack.c.l.s8.bf16 %v1561
        %v3758 = vunpack.c.h.s8.bf16 %v1560
        %v3759 = vunpack.c.h.s8.bf16 %v1561
        %v3760 = vunpack.c.l.s8.bf16 %v1562
        %v3761 = vunpack.c.l.s8.bf16 %v1563
        %v3762 = vunpack.c.h.s8.bf16 %v1562
        %v3763 = vunpack.c.h.s8.bf16 %v1563
        %v3764 = vunpack.c.l.s8.bf16 %v1564
        %v3765 = vunpack.c.l.s8.bf16 %v1565
        %v3766 = vunpack.c.h.s8.bf16 %v1564
        %v3767 = vunpack.c.h.s8.bf16 %v1565
        %v3768 = vunpack.c.l.s8.bf16 %v1566
        %v3769 = vunpack.c.l.s8.bf16 %v1567
        %v3770 = vunpack.c.h.s8.bf16 %v1566
        %v3771 = vunpack.c.h.s8.bf16 %v1567
        %v3772 = vunpack.c.l.s8.bf16 %v1568
        %v3773 = vunpack.c.l.s8.bf16 %v1569
        %v3774 = vunpack.c.h.s8.bf16 %v1568
        %v3775 = vunpack.c.h.s8.bf16 %v1569
        %v3776 = vunpack.c.l.s8.bf16 %v1570
        %v3777 = vunpack.c.l.s8.bf16 %v1571
        %v3778 = vunpack.c.h.s8.bf16 %v1570
        %v3779 = vunpack.c.h.s8.bf16 %v1571
        %v3780 = vunpack.c.l.s8.bf16 %v1572
        %v3781 = vunpack.c.l.s8.bf16 %v1573
        %v3782 = vunpack.c.h.s8.bf16 %v1572
        %v3783 = vunpack.c.h.s8.bf16 %v1573
        %v3784 = vunpack.c.l.s8.bf16 %v1574
        %v3785 = vunpack.c.l.s8.bf16 %v1575
        %v3786 = vunpack.c.h.s8.bf16 %v1574
        %v3787 = vunpack.c.h.s8.bf16 %v1575
        %v3788 = vunpack.c.l.s8.bf16 %v1576
        %v3789 = vunpack.c.l.s8.bf16 %v1577
        %v3790 = vunpack.c.h.s8.bf16 %v1576
        %v3791 = vunpack.c.h.s8.bf16 %v1577
        %v3792 = vunpack.c.l.s8.bf16 %v1578
        %v3793 = vunpack.c.l.s8.bf16 %v1579
        %v3794 = vunpack.c.h.s8.bf16 %v1578
        %v3795 = vunpack.c.h.s8.bf16 %v1579
        %v3796 = vunpack.c.l.s8.bf16 %v1580
        %v3797 = vunpack.c.l.s8.bf16 %v1581
        %v3798 = vunpack.c.h.s8.bf16 %v1580
        %v3799 = vunpack.c.h.s8.bf16 %v1581
        %v3800 = vunpack.c.l.s8.bf16 %v1582
        %v3801 = vunpack.c.l.s8.bf16 %v1583
        %v3802 = vunpack.c.h.s8.bf16 %v1582
        %v3803 = vunpack.c.h.s8.bf16 %v1583
        %v3804 = vunpack.c.l.s8.bf16 %v1584
        %v3805 = vunpack.c.l.s8.bf16 %v1585
        %v3806 = vunpack.c.h.s8.bf16 %v1584
        %v3807 = vunpack.c.h.s8.bf16 %v1585
        %v3808 = vunpack.c.l.s8.bf16 %v1586
        %v3809 = vunpack.c.l.s8.bf16 %v1587
        %v3810 = vunpack.c.h.s8.bf16 %v1586
        %v3811 = vunpack.c.h.s8.bf16 %v1587
        %v3812 = vunpack.c.l.s8.bf16 %v1588
        %v3813 = vunpack.c.l.s8.bf16 %v1589
        %v3814 = vunpack.c.h.s8.bf16 %v1588
        %v3815 = vunpack.c.h.s8.bf16 %v1589
        %v3816 = vunpack.c.l.s8.bf16 %v1590
        %v3817 = vunpack.c.l.s8.bf16 %v1591
        %v3818 = vunpack.c.h.s8.bf16 %v1590
        %v3819 = vunpack.c.h.s8.bf16 %v1591
        %v3820 = vunpack.c.l.s8.bf16 %v1592
        %v3821 = vunpack.c.l.s8.bf16 %v1593
        %v3822 = vunpack.c.h.s8.bf16 %v1592
        %v3823 = vunpack.c.h.s8.bf16 %v1593
        %v3824 = vunpack.c.l.s8.bf16 %v1594
        %v3825 = vunpack.c.l.s8.bf16 %v1595
        %v3826 = vunpack.c.h.s8.bf16 %v1594
        %v3827 = vunpack.c.h.s8.bf16 %v1595
        %v3828 = vunpack.c.l.s8.bf16 %v1596
        %v3829 = vunpack.c.l.s8.bf16 %v1597
        %v3830 = vunpack.c.h.s8.bf16 %v1596
        %v3831 = vunpack.c.h.s8.bf16 %v1597
        %v3832 = vunpack.c.l.s8.bf16 %v1598
        %v3833 = vunpack.c.l.s8.bf16 %v1599
        %v3834 = vunpack.c.h.s8.bf16 %v1598
        %v3835 = vunpack.c.h.s8.bf16 %v1599
        %v3836 = vunpack.c.l.s8.bf16 %v1600
        %v3837 = vunpack.c.l.s8.bf16 %v1601
        %v3838 = vunpack.c.h.s8.bf16 %v1600
        %v3839 = vunpack.c.h.s8.bf16 %v1601
        %v3840 = vunpack.c.l.s8.bf16 %v1602
        %v3841 = vunpack.c.l.s8.bf16 %v1603
        %v3842 = vunpack.c.h.s8.bf16 %v1602
        %v3843 = vunpack.c.h.s8.bf16 %v1603
        %v3844 = vunpack.c.l.s8.bf16 %v1604
        %v3845 = vunpack.c.l.s8.bf16 %v1605
        %v3846 = vunpack.c.h.s8.bf16 %v1604
        %v3847 = vunpack.c.h.s8.bf16 %v1605
        %v3848 = vunpack.c.l.s8.bf16 %v1606
        %v3849 = vunpack.c.l.s8.bf16 %v1607
        %v3850 = vunpack.c.h.s8.bf16 %v1606
        %v3851 = vunpack.c.h.s8.bf16 %v1607
        %v3852 = vunpack.c.l.s8.bf16 %v1608
        %v3853 = vunpack.c.l.s8.bf16 %v1609
        %v3854 = vunpack.c.h.s8.bf16 %v1608
        %v3855 = vunpack.c.h.s8.bf16 %v1609
        %v3856 = vunpack.c.l.s8.bf16 %v1610
        %v3857 = vunpack.c.l.s8.bf16 %v1611
        %v3858 = vunpack.c.h.s8.bf16 %v1610
        %v3859 = vunpack.c.h.s8.bf16 %v1611
        %v3860 = vunpack.c.l.s8.bf16 %v1612
        %v3861 = vunpack.c.l.s8.bf16 %v1613
        %v3862 = vunpack.c.h.s8.bf16 %v1612
        %v3863 = vunpack.c.h.s8.bf16 %v1613
        %v3864 = vunpack.c.l.s8.bf16 %v1614
        %v3865 = vunpack.c.l.s8.bf16 %v1615
        %v3866 = vunpack.c.h.s8.bf16 %v1614
        %v3867 = vunpack.c.h.s8.bf16 %v1615
        %v3868 = vunpack.c.l.s8.bf16 %v1616
        %v3869 = vunpack.c.l.s8.bf16 %v1617
        %v3870 = vunpack.c.h.s8.bf16 %v1616
        %v3871 = vunpack.c.h.s8.bf16 %v1617
        %v3872 = vunpack.c.l.s8.bf16 %v1618
        %v3873 = vunpack.c.l.s8.bf16 %v1619
        %v3874 = vunpack.c.h.s8.bf16 %v1618
        %v3875 = vunpack.c.h.s8.bf16 %v1619
        %v3876 = vunpack.c.l.s8.bf16 %v1620
        %v3877 = vunpack.c.l.s8.bf16 %v1621
        %v3878 = vunpack.c.h.s8.bf16 %v1620
        %v3879 = vunpack.c.h.s8.bf16 %v1621
        %v3880 = vunpack.c.l.s8.bf16 %v1622
        %v3881 = vunpack.c.l.s8.bf16 %v1623
        %v3882 = vunpack.c.h.s8.bf16 %v1622
        %v3883 = vunpack.c.h.s8.bf16 %v1623
        %v3884 = vunpack.c.l.s8.bf16 %v1624
        %v3885 = vunpack.c.l.s8.bf16 %v1625
        %v3886 = vunpack.c.h.s8.bf16 %v1624
        %v3887 = vunpack.c.h.s8.bf16 %v1625
        %v3888 = vunpack.c.l.s8.bf16 %v1626
        %v3889 = vunpack.c.l.s8.bf16 %v1627
        %v3890 = vunpack.c.h.s8.bf16 %v1626
        %v3891 = vunpack.c.h.s8.bf16 %v1627
        %v3892 = vunpack.c.l.s8.bf16 %v1628
        %v3893 = vunpack.c.l.s8.bf16 %v1629
        %v3894 = vunpack.c.h.s8.bf16 %v1628
        %v3895 = vunpack.c.h.s8.bf16 %v1629
        %v3896 = vunpack.c.l.s8.bf16 %v1630
        %v3897 = vunpack.c.l.s8.bf16 %v1631
        %v3898 = vunpack.c.h.s8.bf16 %v1630
        %v3899 = vunpack.c.h.s8.bf16 %v1631
        %v3900 = vunpack.c.l.s8.bf16 %v1632
        %v3901 = vunpack.c.l.s8.bf16 %v1633
        %v3902 = vunpack.c.h.s8.bf16 %v1632
        %v3903 = vunpack.c.h.s8.bf16 %v1633
        %v3904 = vunpack.c.l.s8.bf16 %v1634
        %v3905 = vunpack.c.l.s8.bf16 %v1635
        %v3906 = vunpack.c.h.s8.bf16 %v1634
        %v3907 = vunpack.c.h.s8.bf16 %v1635
        %v3908 = vunpack.c.l.s8.bf16 %v1636
        %v3909 = vunpack.c.l.s8.bf16 %v1637
        %v3910 = vunpack.c.h.s8.bf16 %v1636
        %v3911 = vunpack.c.h.s8.bf16 %v1637
        %v3912 = vunpack.c.l.s8.bf16 %v1638
        %v3913 = vunpack.c.l.s8.bf16 %v1639
        %v3914 = vunpack.c.h.s8.bf16 %v1638
        %v3915 = vunpack.c.h.s8.bf16 %v1639
        %v3916 = vunpack.c.l.s8.bf16 %v1640
        %v3917 = vunpack.c.l.s8.bf16 %v1641
        %v3918 = vunpack.c.h.s8.bf16 %v1640
        %v3919 = vunpack.c.h.s8.bf16 %v1641
        %v3920 = vunpack.c.l.s8.bf16 %v1642
        %v3921 = vunpack.c.l.s8.bf16 %v1643
        %v3922 = vunpack.c.h.s8.bf16 %v1642
        %v3923 = vunpack.c.h.s8.bf16 %v1643
        %v3924 = vunpack.c.l.s8.bf16 %v1644
        %v3925 = vunpack.c.l.s8.bf16 %v1645
        %v3926 = vunpack.c.h.s8.bf16 %v1644
        %v3927 = vunpack.c.h.s8.bf16 %v1645
        %v3928 = vunpack.c.l.s8.bf16 %v1646
        %v3929 = vunpack.c.l.s8.bf16 %v1647
        %v3930 = vunpack.c.h.s8.bf16 %v1646
        %v3931 = vunpack.c.h.s8.bf16 %v1647
        %v3932 = vunpack.c.l.s8.bf16 %v1648
        %v3933 = vunpack.c.l.s8.bf16 %v1649
        %v3934 = vunpack.c.h.s8.bf16 %v1648
        %v3935 = vunpack.c.h.s8.bf16 %v1649
        %v3936 = vunpack.c.l.s8.bf16 %v1650
        %v3937 = vunpack.c.l.s8.bf16 %v1651
        %v3938 = vunpack.c.h.s8.bf16 %v1650
        %v3939 = vunpack.c.h.s8.bf16 %v1651
        %v3940 = vunpack.c.l.s8.bf16 %v1652
        %v3941 = vunpack.c.l.s8.bf16 %v1653
        %v3942 = vunpack.c.h.s8.bf16 %v1652
        %v3943 = vunpack.c.h.s8.bf16 %v1653
        %v3944 = vunpack.c.l.s8.bf16 %v1654
        %v3945 = vunpack.c.l.s8.bf16 %v1655
        %v3946 = vunpack.c.h.s8.bf16 %v1654
        %v3947 = vunpack.c.h.s8.bf16 %v1655
        %v3948 = vunpack.c.l.s8.bf16 %v1656
        %v3949 = vunpack.c.l.s8.bf16 %v1657
        %v3950 = vunpack.c.h.s8.bf16 %v1656
        %v3951 = vunpack.c.h.s8.bf16 %v1657
        %v3952 = vunpack.c.l.s8.bf16 %v1658
        %v3953 = vunpack.c.l.s8.bf16 %v1659
        %v3954 = vunpack.c.h.s8.bf16 %v1658
        %v3955 = vunpack.c.h.s8.bf16 %v1659
        %v3956 = vunpack.c.l.s8.bf16 %v1660
        %v3957 = vunpack.c.l.s8.bf16 %v1661
        %v3958 = vunpack.c.h.s8.bf16 %v1660
        %v3959 = vunpack.c.h.s8.bf16 %v1661
        %v3960 = vunpack.c.l.s8.bf16 %v1662
        %v3961 = vunpack.c.l.s8.bf16 %v1663
        %v3962 = vunpack.c.h.s8.bf16 %v1662
        %v3963 = vunpack.c.h.s8.bf16 %v1663
        %v3964 = vunpack.c.l.s8.bf16 %v1664
        %v3965 = vunpack.c.l.s8.bf16 %v1665
        %v3966 = vunpack.c.h.s8.bf16 %v1664
        %v3967 = vunpack.c.h.s8.bf16 %v1665
        %v3968 = vunpack.c.l.s8.bf16 %v1666
        %v3969 = vunpack.c.l.s8.bf16 %v1667
        %v3970 = vunpack.c.h.s8.bf16 %v1666
        %v3971 = vunpack.c.h.s8.bf16 %v1667
        %v3972 = vunpack.c.l.s8.bf16 %v1668
        %v3973 = vunpack.c.l.s8.bf16 %v1669
        %v3974 = vunpack.c.h.s8.bf16 %v1668
        %v3975 = vunpack.c.h.s8.bf16 %v1669
        %v3976 = vunpack.c.l.s8.bf16 %v1670
        %v3977 = vunpack.c.l.s8.bf16 %v1671
        %v3978 = vunpack.c.h.s8.bf16 %v1670
        %v3979 = vunpack.c.h.s8.bf16 %v1671
        %v3980 = vunpack.c.l.s8.bf16 %v1672
        %v3981 = vunpack.c.l.s8.bf16 %v1673
        %v3982 = vunpack.c.h.s8.bf16 %v1672
        %v3983 = vunpack.c.h.s8.bf16 %v1673
        %v3984 = vunpack.c.l.s8.bf16 %v1674
        %v3985 = vunpack.c.l.s8.bf16 %v1675
        %v3986 = vunpack.c.h.s8.bf16 %v1674
        %v3987 = vunpack.c.h.s8.bf16 %v1675
        %v3988 = vunpack.c.l.s8.bf16 %v1676
        %v3989 = vunpack.c.l.s8.bf16 %v1677
        %v3990 = vunpack.c.h.s8.bf16 %v1676
        %v3991 = vunpack.c.h.s8.bf16 %v1677
        %v3992 = vunpack.c.l.s8.bf16 %v1678
        %v3993 = vunpack.c.l.s8.bf16 %v1679
        %v3994 = vunpack.c.h.s8.bf16 %v1678
        %v3995 = vunpack.c.h.s8.bf16 %v1679
        %v3996 = vunpack.c.l.s8.bf16 %v1680
        %v3997 = vunpack.c.l.s8.bf16 %v1681
        %v3998 = vunpack.c.h.s8.bf16 %v1680
        %v3999 = vunpack.c.h.s8.bf16 %v1681
        %v4000 = vunpack.c.l.s8.bf16 %v1682
        %v4001 = vunpack.c.l.s8.bf16 %v1683
        %v4002 = vunpack.c.h.s8.bf16 %v1682
        %v4003 = vunpack.c.h.s8.bf16 %v1683
        %v4004 = vunpack.c.l.s8.bf16 %v1684
        %v4005 = vunpack.c.l.s8.bf16 %v1685
        %v4006 = vunpack.c.h.s8.bf16 %v1684
        %v4007 = vunpack.c.h.s8.bf16 %v1685
        %v4008 = vunpack.c.l.s8.bf16 %v1686
        %v4009 = vunpack.c.l.s8.bf16 %v1687
        %v4010 = vunpack.c.h.s8.bf16 %v1686
        %v4011 = vunpack.c.h.s8.bf16 %v1687
        %v4012 = vunpack.c.l.s8.bf16 %v1688
        %v4013 = vunpack.c.l.s8.bf16 %v1689
        %v4014 = vunpack.c.h.s8.bf16 %v1688
        %v4015 = vunpack.c.h.s8.bf16 %v1689
        %v4016 = vunpack.c.l.s8.bf16 %v1690
        %v4017 = vunpack.c.l.s8.bf16 %v1691
        %v4018 = vunpack.c.h.s8.bf16 %v1690
        %v4019 = vunpack.c.h.s8.bf16 %v1691
        %v4020 = vunpack.c.l.s8.bf16 %v1692
        %v4021 = vunpack.c.l.s8.bf16 %v1693
        %v4022 = vunpack.c.h.s8.bf16 %v1692
        %v4023 = vunpack.c.h.s8.bf16 %v1693
        %v4024 = vunpack.c.l.s8.bf16 %v1694
        %v4025 = vunpack.c.l.s8.bf16 %v1695
        %v4026 = vunpack.c.h.s8.bf16 %v1694
        %v4027 = vunpack.c.h.s8.bf16 %v1695
        %v4028 = vunpack.c.l.s8.bf16 %v1696
        %v4029 = vunpack.c.l.s8.bf16 %v1697
        %v4030 = vunpack.c.h.s8.bf16 %v1696
        %v4031 = vunpack.c.h.s8.bf16 %v1697
        %v4032 = vunpack.c.l.s8.bf16 %v1698
        %v4033 = vunpack.c.l.s8.bf16 %v1699
        %v4034 = vunpack.c.h.s8.bf16 %v1698
        %v4035 = vunpack.c.h.s8.bf16 %v1699
        %v4036 = vunpack.c.l.s8.bf16 %v1700
        %v4037 = vunpack.c.l.s8.bf16 %v1701
        %v4038 = vunpack.c.h.s8.bf16 %v1700
        %v4039 = vunpack.c.h.s8.bf16 %v1701
        %v4040 = vunpack.c.l.s8.bf16 %v1702
        %v4041 = vunpack.c.l.s8.bf16 %v1703
        %v4042 = vunpack.c.h.s8.bf16 %v1702
        %v4043 = vunpack.c.h.s8.bf16 %v1703
        %v4044 = vunpack.c.l.s8.bf16 %v1704
        %v4045 = vunpack.c.l.s8.bf16 %v1705
        %v4046 = vunpack.c.h.s8.bf16 %v1704
        %v4047 = vunpack.c.h.s8.bf16 %v1705
        %v4048 = vunpack.c.l.s8.bf16 %v1706
        %v4049 = vunpack.c.l.s8.bf16 %v1707
        %v4050 = vunpack.c.h.s8.bf16 %v1706
        %v4051 = vunpack.c.h.s8.bf16 %v1707
        %v4052 = vunpack.c.l.s8.bf16 %v1708
        %v4053 = vunpack.c.l.s8.bf16 %v1709
        %v4054 = vunpack.c.h.s8.bf16 %v1708
        %v4055 = vunpack.c.h.s8.bf16 %v1709
        %v4056 = vunpack.c.l.s8.bf16 %v1710
        %v4057 = vunpack.c.l.s8.bf16 %v1711
        %v4058 = vunpack.c.h.s8.bf16 %v1710
        %v4059 = vunpack.c.h.s8.bf16 %v1711
        %v4060 = vunpack.c.l.s8.bf16 %v1712
        %v4061 = vunpack.c.l.s8.bf16 %v1713
        %v4062 = vunpack.c.h.s8.bf16 %v1712
        %v4063 = vunpack.c.h.s8.bf16 %v1713
        %v4064 = vunpack.c.l.s8.bf16 %v1714
        %v4065 = vunpack.c.l.s8.bf16 %v1715
        %v4066 = vunpack.c.h.s8.bf16 %v1714
        %v4067 = vunpack.c.h.s8.bf16 %v1715
        %v4068 = vld [vmem:[#allocation2] sm:$0xf]
        %v4069 = vld [vmem:[%s531] sm:$0xff]
        %v4070 = vld [vmem:[%s531 + $0x8] sm:$0xff]
        %v4071 = vld [vmem:[%s531 + $0x10] sm:$0xff]
        %v4072 = vld [vmem:[%s531 + $0x18] sm:$0xff]
        %v4073 = vld [vmem:[%s531 + $0x20] sm:$0xff]
        %v4074 = vld [vmem:[%s531 + $0x28] sm:$0xff]
        %v4075 = vld [vmem:[%s531 + $0x30] sm:$0xff]
        %v4076 = vld [vmem:[%s531 + $0x38] sm:$0xff]
        %v4077 = vld [vmem:[%s531 + $0x40] sm:$0xff]
        %v4078 = vld [vmem:[%s531 + $0x48] sm:$0xff]
        %v4079 = vld [vmem:[%s531 + $0x50] sm:$0xff]
        %v4080 = vld [vmem:[%s531 + $0x58] sm:$0xff]
        %v4081 = vld [vmem:[%s531 + $0x60] sm:$0xff]
        %v4082 = vld [vmem:[%s531 + $0x68] sm:$0xff]
        %v4083 = vld [vmem:[%s531 + $0x70] sm:$0xff]
        %v4084 = vld [vmem:[%s531 + $0x78] sm:$0xff]
        %v4085 = vld [vmem:[%s531 + $0x80] sm:$0xff]
        %v4086 = vld [vmem:[%s531 + $0x88] sm:$0xff]
        %v4087 = vld [vmem:[%s531 + $0x90] sm:$0x7]
        %v4107 = vcombine.high %v4069, %v4069
        %v4109 = vunpack.c.l.s4 1966171168
        %v4110 = vunpack.c.0.s8 %v4109
        %v4111 = vlaneseq
        %v4112 = vshrl.u32 %v4111, 7
        %v4113 = vsub.s32 %v4110, %v4112
        %v4114 = vrot.slane %v4069, %v4113
        %v4116 = vunpack.c.l.s4 1966171168
        %v4117 = vunpack.c.0.s8 %v4116
        %v4118 = vlaneseq
        %v4119 = vshrl.u32 %v4118, 7
        %v4120 = vsub.s32 %v4117, %v4119
        %v4121 = vrot.slane %v4107, %v4120
        %v4122 = vcombine.high %v4114, %v4114
        %v4123 = vcombine.high %v4121, %v4121
        %v4125 = vunpack.c.l.s4 1966171168
        %v4126 = vunpack.c.0.s8 %v4125
        %v4127 = vlaneseq
        %v4128 = vshrl.u32 %v4127, 7
        %v4129 = vsub.s32 %v4126, %v4128
        %v4130 = vrot.slane %v4114, %v4129
        %v4132 = vunpack.c.l.s4 1966171168
        %v4133 = vunpack.c.0.s8 %v4132
        %v4134 = vlaneseq
        %v4135 = vshrl.u32 %v4134, 7
        %v4136 = vsub.s32 %v4133, %v4135
        %v4137 = vrot.slane %v4121, %v4136
        %v4139 = vunpack.c.l.s4 1966171168
        %v4140 = vunpack.c.0.s8 %v4139
        %v4141 = vlaneseq
        %v4142 = vshrl.u32 %v4141, 7
        %v4143 = vsub.s32 %v4140, %v4142
        %v4144 = vrot.slane %v4122, %v4143
        %v4146 = vunpack.c.l.s4 1966171168
        %v4147 = vunpack.c.0.s8 %v4146
        %v4148 = vlaneseq
        %v4149 = vshrl.u32 %v4148, 7
        %v4150 = vsub.s32 %v4147, %v4149
        %v4151 = vrot.slane %v4123, %v4150
        %v4152 = vcombine.high %v4130, %v4130
        %v4153 = vcombine.high %v4137, %v4137
        %v4154 = vcombine.high %v4144, %v4144
        %v4155 = vcombine.high %v4151, %v4151
        %v4156 = vcombine.high %v4070, %v4070
        %v4158 = vunpack.c.l.s4 1966171168
        %v4159 = vunpack.c.0.s8 %v4158
        %v4160 = vlaneseq
        %v4161 = vshrl.u32 %v4160, 7
        %v4162 = vsub.s32 %v4159, %v4161
        %v4163 = vrot.slane %v4070, %v4162
        %v4165 = vunpack.c.l.s4 1966171168
        %v4166 = vunpack.c.0.s8 %v4165
        %v4167 = vlaneseq
        %v4168 = vshrl.u32 %v4167, 7
        %v4169 = vsub.s32 %v4166, %v4168
        %v4170 = vrot.slane %v4156, %v4169
        %v4171 = vcombine.high %v4163, %v4163
        %v4172 = vcombine.high %v4170, %v4170
        %v4174 = vunpack.c.l.s4 1966171168
        %v4175 = vunpack.c.0.s8 %v4174
        %v4176 = vlaneseq
        %v4177 = vshrl.u32 %v4176, 7
        %v4178 = vsub.s32 %v4175, %v4177
        %v4179 = vrot.slane %v4163, %v4178
        %v4181 = vunpack.c.l.s4 1966171168
        %v4182 = vunpack.c.0.s8 %v4181
        %v4183 = vlaneseq
        %v4184 = vshrl.u32 %v4183, 7
        %v4185 = vsub.s32 %v4182, %v4184
        %v4186 = vrot.slane %v4170, %v4185
        %v4188 = vunpack.c.l.s4 1966171168
        %v4189 = vunpack.c.0.s8 %v4188
        %v4190 = vlaneseq
        %v4191 = vshrl.u32 %v4190, 7
        %v4192 = vsub.s32 %v4189, %v4191
        %v4193 = vrot.slane %v4171, %v4192
        %v4195 = vunpack.c.l.s4 1966171168
        %v4196 = vunpack.c.0.s8 %v4195
        %v4197 = vlaneseq
        %v4198 = vshrl.u32 %v4197, 7
        %v4199 = vsub.s32 %v4196, %v4198
        %v4200 = vrot.slane %v4172, %v4199
        %v4201 = vcombine.high %v4179, %v4179
        %v4202 = vcombine.high %v4186, %v4186
        %v4203 = vcombine.high %v4193, %v4193
        %v4204 = vcombine.high %v4200, %v4200
        %v4205 = vcombine.high %v4071, %v4071
        %v4207 = vunpack.c.l.s4 1966171168
        %v4208 = vunpack.c.0.s8 %v4207
        %v4209 = vlaneseq
        %v4210 = vshrl.u32 %v4209, 7
        %v4211 = vsub.s32 %v4208, %v4210
        %v4212 = vrot.slane %v4071, %v4211
        %v4214 = vunpack.c.l.s4 1966171168
        %v4215 = vunpack.c.0.s8 %v4214
        %v4216 = vlaneseq
        %v4217 = vshrl.u32 %v4216, 7
        %v4218 = vsub.s32 %v4215, %v4217
        %v4219 = vrot.slane %v4205, %v4218
        %v4220 = vcombine.high %v4212, %v4212
        %v4221 = vcombine.high %v4219, %v4219
        %v4223 = vunpack.c.l.s4 1966171168
        %v4224 = vunpack.c.0.s8 %v4223
        %v4225 = vlaneseq
        %v4226 = vshrl.u32 %v4225, 7
        %v4227 = vsub.s32 %v4224, %v4226
        %v4228 = vrot.slane %v4212, %v4227
        %v4230 = vunpack.c.l.s4 1966171168
        %v4231 = vunpack.c.0.s8 %v4230
        %v4232 = vlaneseq
        %v4233 = vshrl.u32 %v4232, 7
        %v4234 = vsub.s32 %v4231, %v4233
        %v4235 = vrot.slane %v4219, %v4234
        %v4237 = vunpack.c.l.s4 1966171168
        %v4238 = vunpack.c.0.s8 %v4237
        %v4239 = vlaneseq
        %v4240 = vshrl.u32 %v4239, 7
        %v4241 = vsub.s32 %v4238, %v4240
        %v4242 = vrot.slane %v4220, %v4241
        %v4244 = vunpack.c.l.s4 1966171168
        %v4245 = vunpack.c.0.s8 %v4244
        %v4246 = vlaneseq
        %v4247 = vshrl.u32 %v4246, 7
        %v4248 = vsub.s32 %v4245, %v4247
        %v4249 = vrot.slane %v4221, %v4248
        %v4250 = vcombine.high %v4228, %v4228
        %v4251 = vcombine.high %v4235, %v4235
        %v4252 = vcombine.high %v4242, %v4242
        %v4253 = vcombine.high %v4249, %v4249
        %v4254 = vcombine.high %v4072, %v4072
        %v4256 = vunpack.c.l.s4 1966171168
        %v4257 = vunpack.c.0.s8 %v4256
        %v4258 = vlaneseq
        %v4259 = vshrl.u32 %v4258, 7
        %v4260 = vsub.s32 %v4257, %v4259
        %v4261 = vrot.slane %v4072, %v4260
        %v4263 = vunpack.c.l.s4 1966171168
        %v4264 = vunpack.c.0.s8 %v4263
        %v4265 = vlaneseq
        %v4266 = vshrl.u32 %v4265, 7
        %v4267 = vsub.s32 %v4264, %v4266
        %v4268 = vrot.slane %v4254, %v4267
        %v4269 = vcombine.high %v4261, %v4261
        %v4270 = vcombine.high %v4268, %v4268
        %v4272 = vunpack.c.l.s4 1966171168
        %v4273 = vunpack.c.0.s8 %v4272
        %v4274 = vlaneseq
        %v4275 = vshrl.u32 %v4274, 7
        %v4276 = vsub.s32 %v4273, %v4275
        %v4277 = vrot.slane %v4261, %v4276
        %v4279 = vunpack.c.l.s4 1966171168
        %v4280 = vunpack.c.0.s8 %v4279
        %v4281 = vlaneseq
        %v4282 = vshrl.u32 %v4281, 7
        %v4283 = vsub.s32 %v4280, %v4282
        %v4284 = vrot.slane %v4268, %v4283
        %v4286 = vunpack.c.l.s4 1966171168
        %v4287 = vunpack.c.0.s8 %v4286
        %v4288 = vlaneseq
        %v4289 = vshrl.u32 %v4288, 7
        %v4290 = vsub.s32 %v4287, %v4289
        %v4291 = vrot.slane %v4269, %v4290
        %v4293 = vunpack.c.l.s4 1966171168
        %v4294 = vunpack.c.0.s8 %v4293
        %v4295 = vlaneseq
        %v4296 = vshrl.u32 %v4295, 7
        %v4297 = vsub.s32 %v4294, %v4296
        %v4298 = vrot.slane %v4270, %v4297
        %v4299 = vcombine.high %v4277, %v4277
        %v4300 = vcombine.high %v4284, %v4284
        %v4301 = vcombine.high %v4291, %v4291
        %v4302 = vcombine.high %v4298, %v4298
        %v4303 = vcombine.high %v4073, %v4073
        %v4305 = vunpack.c.l.s4 1966171168
        %v4306 = vunpack.c.0.s8 %v4305
        %v4307 = vlaneseq
        %v4308 = vshrl.u32 %v4307, 7
        %v4309 = vsub.s32 %v4306, %v4308
        %v4310 = vrot.slane %v4073, %v4309
        %v4312 = vunpack.c.l.s4 1966171168
        %v4313 = vunpack.c.0.s8 %v4312
        %v4314 = vlaneseq
        %v4315 = vshrl.u32 %v4314, 7
        %v4316 = vsub.s32 %v4313, %v4315
        %v4317 = vrot.slane %v4303, %v4316
        %v4318 = vcombine.high %v4310, %v4310
        %v4319 = vcombine.high %v4317, %v4317
        %v4321 = vunpack.c.l.s4 1966171168
        %v4322 = vunpack.c.0.s8 %v4321
        %v4323 = vlaneseq
        %v4324 = vshrl.u32 %v4323, 7
        %v4325 = vsub.s32 %v4322, %v4324
        %v4326 = vrot.slane %v4310, %v4325
        %v4328 = vunpack.c.l.s4 1966171168
        %v4329 = vunpack.c.0.s8 %v4328
        %v4330 = vlaneseq
        %v4331 = vshrl.u32 %v4330, 7
        %v4332 = vsub.s32 %v4329, %v4331
        %v4333 = vrot.slane %v4317, %v4332
        %v4335 = vunpack.c.l.s4 1966171168
        %v4336 = vunpack.c.0.s8 %v4335
        %v4337 = vlaneseq
        %v4338 = vshrl.u32 %v4337, 7
        %v4339 = vsub.s32 %v4336, %v4338
        %v4340 = vrot.slane %v4318, %v4339
        %v4342 = vunpack.c.l.s4 1966171168
        %v4343 = vunpack.c.0.s8 %v4342
        %v4344 = vlaneseq
        %v4345 = vshrl.u32 %v4344, 7
        %v4346 = vsub.s32 %v4343, %v4345
        %v4347 = vrot.slane %v4319, %v4346
        %v4348 = vcombine.high %v4326, %v4326
        %v4349 = vcombine.high %v4333, %v4333
        %v4350 = vcombine.high %v4340, %v4340
        %v4351 = vcombine.high %v4347, %v4347
        %v4352 = vcombine.high %v4074, %v4074
        %v4354 = vunpack.c.l.s4 1966171168
        %v4355 = vunpack.c.0.s8 %v4354
        %v4356 = vlaneseq
        %v4357 = vshrl.u32 %v4356, 7
        %v4358 = vsub.s32 %v4355, %v4357
        %v4359 = vrot.slane %v4074, %v4358
        %v4361 = vunpack.c.l.s4 1966171168
        %v4362 = vunpack.c.0.s8 %v4361
        %v4363 = vlaneseq
        %v4364 = vshrl.u32 %v4363, 7
        %v4365 = vsub.s32 %v4362, %v4364
        %v4366 = vrot.slane %v4352, %v4365
        %v4367 = vcombine.high %v4359, %v4359
        %v4368 = vcombine.high %v4366, %v4366
        %v4370 = vunpack.c.l.s4 1966171168
        %v4371 = vunpack.c.0.s8 %v4370
        %v4372 = vlaneseq
        %v4373 = vshrl.u32 %v4372, 7
        %v4374 = vsub.s32 %v4371, %v4373
        %v4375 = vrot.slane %v4359, %v4374
        %v4377 = vunpack.c.l.s4 1966171168
        %v4378 = vunpack.c.0.s8 %v4377
        %v4379 = vlaneseq
        %v4380 = vshrl.u32 %v4379, 7
        %v4381 = vsub.s32 %v4378, %v4380
        %v4382 = vrot.slane %v4366, %v4381
        %v4384 = vunpack.c.l.s4 1966171168
        %v4385 = vunpack.c.0.s8 %v4384
        %v4386 = vlaneseq
        %v4387 = vshrl.u32 %v4386, 7
        %v4388 = vsub.s32 %v4385, %v4387
        %v4389 = vrot.slane %v4367, %v4388
        %v4391 = vunpack.c.l.s4 1966171168
        %v4392 = vunpack.c.0.s8 %v4391
        %v4393 = vlaneseq
        %v4394 = vshrl.u32 %v4393, 7
        %v4395 = vsub.s32 %v4392, %v4394
        %v4396 = vrot.slane %v4368, %v4395
        %v4397 = vcombine.high %v4375, %v4375
        %v4398 = vcombine.high %v4382, %v4382
        %v4399 = vcombine.high %v4389, %v4389
        %v4400 = vcombine.high %v4396, %v4396
        %v4401 = vcombine.high %v4075, %v4075
        %v4403 = vunpack.c.l.s4 1966171168
        %v4404 = vunpack.c.0.s8 %v4403
        %v4405 = vlaneseq
        %v4406 = vshrl.u32 %v4405, 7
        %v4407 = vsub.s32 %v4404, %v4406
        %v4408 = vrot.slane %v4075, %v4407
        %v4410 = vunpack.c.l.s4 1966171168
        %v4411 = vunpack.c.0.s8 %v4410
        %v4412 = vlaneseq
        %v4413 = vshrl.u32 %v4412, 7
        %v4414 = vsub.s32 %v4411, %v4413
        %v4415 = vrot.slane %v4401, %v4414
        %v4416 = vcombine.high %v4408, %v4408
        %v4417 = vcombine.high %v4415, %v4415
        %v4419 = vunpack.c.l.s4 1966171168
        %v4420 = vunpack.c.0.s8 %v4419
        %v4421 = vlaneseq
        %v4422 = vshrl.u32 %v4421, 7
        %v4423 = vsub.s32 %v4420, %v4422
        %v4424 = vrot.slane %v4408, %v4423
        %v4426 = vunpack.c.l.s4 1966171168
        %v4427 = vunpack.c.0.s8 %v4426
        %v4428 = vlaneseq
        %v4429 = vshrl.u32 %v4428, 7
        %v4430 = vsub.s32 %v4427, %v4429
        %v4431 = vrot.slane %v4415, %v4430
        %v4433 = vunpack.c.l.s4 1966171168
        %v4434 = vunpack.c.0.s8 %v4433
        %v4435 = vlaneseq
        %v4436 = vshrl.u32 %v4435, 7
        %v4437 = vsub.s32 %v4434, %v4436
        %v4438 = vrot.slane %v4416, %v4437
        %v4440 = vunpack.c.l.s4 1966171168
        %v4441 = vunpack.c.0.s8 %v4440
        %v4442 = vlaneseq
        %v4443 = vshrl.u32 %v4442, 7
        %v4444 = vsub.s32 %v4441, %v4443
        %v4445 = vrot.slane %v4417, %v4444
        %v4446 = vcombine.high %v4424, %v4424
        %v4447 = vcombine.high %v4431, %v4431
        %v4448 = vcombine.high %v4438, %v4438
        %v4449 = vcombine.high %v4445, %v4445
        %v4450 = vcombine.high %v4076, %v4076
        %v4452 = vunpack.c.l.s4 1966171168
        %v4453 = vunpack.c.0.s8 %v4452
        %v4454 = vlaneseq
        %v4455 = vshrl.u32 %v4454, 7
        %v4456 = vsub.s32 %v4453, %v4455
        %v4457 = vrot.slane %v4076, %v4456
        %v4459 = vunpack.c.l.s4 1966171168
        %v4460 = vunpack.c.0.s8 %v4459
        %v4461 = vlaneseq
        %v4462 = vshrl.u32 %v4461, 7
        %v4463 = vsub.s32 %v4460, %v4462
        %v4464 = vrot.slane %v4450, %v4463
        %v4465 = vcombine.high %v4457, %v4457
        %v4466 = vcombine.high %v4464, %v4464
        %v4468 = vunpack.c.l.s4 1966171168
        %v4469 = vunpack.c.0.s8 %v4468
        %v4470 = vlaneseq
        %v4471 = vshrl.u32 %v4470, 7
        %v4472 = vsub.s32 %v4469, %v4471
        %v4473 = vrot.slane %v4457, %v4472
        %v4475 = vunpack.c.l.s4 1966171168
        %v4476 = vunpack.c.0.s8 %v4475
        %v4477 = vlaneseq
        %v4478 = vshrl.u32 %v4477, 7
        %v4479 = vsub.s32 %v4476, %v4478
        %v4480 = vrot.slane %v4464, %v4479
        %v4482 = vunpack.c.l.s4 1966171168
        %v4483 = vunpack.c.0.s8 %v4482
        %v4484 = vlaneseq
        %v4485 = vshrl.u32 %v4484, 7
        %v4486 = vsub.s32 %v4483, %v4485
        %v4487 = vrot.slane %v4465, %v4486
        %v4489 = vunpack.c.l.s4 1966171168
        %v4490 = vunpack.c.0.s8 %v4489
        %v4491 = vlaneseq
        %v4492 = vshrl.u32 %v4491, 7
        %v4493 = vsub.s32 %v4490, %v4492
        %v4494 = vrot.slane %v4466, %v4493
        %v4495 = vcombine.high %v4473, %v4473
        %v4496 = vcombine.high %v4480, %v4480
        %v4497 = vcombine.high %v4487, %v4487
        %v4498 = vcombine.high %v4494, %v4494
        %v4499 = vcombine.high %v4077, %v4077
        %v4501 = vunpack.c.l.s4 1966171168
        %v4502 = vunpack.c.0.s8 %v4501
        %v4503 = vlaneseq
        %v4504 = vshrl.u32 %v4503, 7
        %v4505 = vsub.s32 %v4502, %v4504
        %v4506 = vrot.slane %v4077, %v4505
        %v4508 = vunpack.c.l.s4 1966171168
        %v4509 = vunpack.c.0.s8 %v4508
        %v4510 = vlaneseq
        %v4511 = vshrl.u32 %v4510, 7
        %v4512 = vsub.s32 %v4509, %v4511
        %v4513 = vrot.slane %v4499, %v4512
        %v4514 = vcombine.high %v4506, %v4506
        %v4515 = vcombine.high %v4513, %v4513
        %v4517 = vunpack.c.l.s4 1966171168
        %v4518 = vunpack.c.0.s8 %v4517
        %v4519 = vlaneseq
        %v4520 = vshrl.u32 %v4519, 7
        %v4521 = vsub.s32 %v4518, %v4520
        %v4522 = vrot.slane %v4506, %v4521
        %v4524 = vunpack.c.l.s4 1966171168
        %v4525 = vunpack.c.0.s8 %v4524
        %v4526 = vlaneseq
        %v4527 = vshrl.u32 %v4526, 7
        %v4528 = vsub.s32 %v4525, %v4527
        %v4529 = vrot.slane %v4513, %v4528
        %v4531 = vunpack.c.l.s4 1966171168
        %v4532 = vunpack.c.0.s8 %v4531
        %v4533 = vlaneseq
        %v4534 = vshrl.u32 %v4533, 7
        %v4535 = vsub.s32 %v4532, %v4534
        %v4536 = vrot.slane %v4514, %v4535
        %v4538 = vunpack.c.l.s4 1966171168
        %v4539 = vunpack.c.0.s8 %v4538
        %v4540 = vlaneseq
        %v4541 = vshrl.u32 %v4540, 7
        %v4542 = vsub.s32 %v4539, %v4541
        %v4543 = vrot.slane %v4515, %v4542
        %v4544 = vcombine.high %v4522, %v4522
        %v4545 = vcombine.high %v4529, %v4529
        %v4546 = vcombine.high %v4536, %v4536
        %v4547 = vcombine.high %v4543, %v4543
        %v4548 = vcombine.high %v4078, %v4078
        %v4550 = vunpack.c.l.s4 1966171168
        %v4551 = vunpack.c.0.s8 %v4550
        %v4552 = vlaneseq
        %v4553 = vshrl.u32 %v4552, 7
        %v4554 = vsub.s32 %v4551, %v4553
        %v4555 = vrot.slane %v4078, %v4554
        %v4557 = vunpack.c.l.s4 1966171168
        %v4558 = vunpack.c.0.s8 %v4557
        %v4559 = vlaneseq
        %v4560 = vshrl.u32 %v4559, 7
        %v4561 = vsub.s32 %v4558, %v4560
        %v4562 = vrot.slane %v4548, %v4561
        %v4563 = vcombine.high %v4555, %v4555
        %v4564 = vcombine.high %v4562, %v4562
        %v4566 = vunpack.c.l.s4 1966171168
        %v4567 = vunpack.c.0.s8 %v4566
        %v4568 = vlaneseq
        %v4569 = vshrl.u32 %v4568, 7
        %v4570 = vsub.s32 %v4567, %v4569
        %v4571 = vrot.slane %v4555, %v4570
        %v4573 = vunpack.c.l.s4 1966171168
        %v4574 = vunpack.c.0.s8 %v4573
        %v4575 = vlaneseq
        %v4576 = vshrl.u32 %v4575, 7
        %v4577 = vsub.s32 %v4574, %v4576
        %v4578 = vrot.slane %v4562, %v4577
        %v4580 = vunpack.c.l.s4 1966171168
        %v4581 = vunpack.c.0.s8 %v4580
        %v4582 = vlaneseq
        %v4583 = vshrl.u32 %v4582, 7
        %v4584 = vsub.s32 %v4581, %v4583
        %v4585 = vrot.slane %v4563, %v4584
        %v4587 = vunpack.c.l.s4 1966171168
        %v4588 = vunpack.c.0.s8 %v4587
        %v4589 = vlaneseq
        %v4590 = vshrl.u32 %v4589, 7
        %v4591 = vsub.s32 %v4588, %v4590
        %v4592 = vrot.slane %v4564, %v4591
        %v4593 = vcombine.high %v4571, %v4571
        %v4594 = vcombine.high %v4578, %v4578
        %v4595 = vcombine.high %v4585, %v4585
        %v4596 = vcombine.high %v4592, %v4592
        %v4597 = vcombine.high %v4079, %v4079
        %v4599 = vunpack.c.l.s4 1966171168
        %v4600 = vunpack.c.0.s8 %v4599
        %v4601 = vlaneseq
        %v4602 = vshrl.u32 %v4601, 7
        %v4603 = vsub.s32 %v4600, %v4602
        %v4604 = vrot.slane %v4079, %v4603
        %v4606 = vunpack.c.l.s4 1966171168
        %v4607 = vunpack.c.0.s8 %v4606
        %v4608 = vlaneseq
        %v4609 = vshrl.u32 %v4608, 7
        %v4610 = vsub.s32 %v4607, %v4609
        %v4611 = vrot.slane %v4597, %v4610
        %v4612 = vcombine.high %v4604, %v4604
        %v4613 = vcombine.high %v4611, %v4611
        %v4615 = vunpack.c.l.s4 1966171168
        %v4616 = vunpack.c.0.s8 %v4615
        %v4617 = vlaneseq
        %v4618 = vshrl.u32 %v4617, 7
        %v4619 = vsub.s32 %v4616, %v4618
        %v4620 = vrot.slane %v4604, %v4619
        %v4622 = vunpack.c.l.s4 1966171168
        %v4623 = vunpack.c.0.s8 %v4622
        %v4624 = vlaneseq
        %v4625 = vshrl.u32 %v4624, 7
        %v4626 = vsub.s32 %v4623, %v4625
        %v4627 = vrot.slane %v4611, %v4626
        %v4629 = vunpack.c.l.s4 1966171168
        %v4630 = vunpack.c.0.s8 %v4629
        %v4631 = vlaneseq
        %v4632 = vshrl.u32 %v4631, 7
        %v4633 = vsub.s32 %v4630, %v4632
        %v4634 = vrot.slane %v4612, %v4633
        %v4636 = vunpack.c.l.s4 1966171168
        %v4637 = vunpack.c.0.s8 %v4636
        %v4638 = vlaneseq
        %v4639 = vshrl.u32 %v4638, 7
        %v4640 = vsub.s32 %v4637, %v4639
        %v4641 = vrot.slane %v4613, %v4640
        %v4642 = vcombine.high %v4620, %v4620
        %v4643 = vcombine.high %v4627, %v4627
        %v4644 = vcombine.high %v4634, %v4634
        %v4645 = vcombine.high %v4641, %v4641
        %v4646 = vcombine.high %v4080, %v4080
        %v4648 = vunpack.c.l.s4 1966171168
        %v4649 = vunpack.c.0.s8 %v4648
        %v4650 = vlaneseq
        %v4651 = vshrl.u32 %v4650, 7
        %v4652 = vsub.s32 %v4649, %v4651
        %v4653 = vrot.slane %v4080, %v4652
        %v4655 = vunpack.c.l.s4 1966171168
        %v4656 = vunpack.c.0.s8 %v4655
        %v4657 = vlaneseq
        %v4658 = vshrl.u32 %v4657, 7
        %v4659 = vsub.s32 %v4656, %v4658
        %v4660 = vrot.slane %v4646, %v4659
        %v4661 = vcombine.high %v4653, %v4653
        %v4662 = vcombine.high %v4660, %v4660
        %v4664 = vunpack.c.l.s4 1966171168
        %v4665 = vunpack.c.0.s8 %v4664
        %v4666 = vlaneseq
        %v4667 = vshrl.u32 %v4666, 7
        %v4668 = vsub.s32 %v4665, %v4667
        %v4669 = vrot.slane %v4653, %v4668
        %v4671 = vunpack.c.l.s4 1966171168
        %v4672 = vunpack.c.0.s8 %v4671
        %v4673 = vlaneseq
        %v4674 = vshrl.u32 %v4673, 7
        %v4675 = vsub.s32 %v4672, %v4674
        %v4676 = vrot.slane %v4660, %v4675
        %v4678 = vunpack.c.l.s4 1966171168
        %v4679 = vunpack.c.0.s8 %v4678
        %v4680 = vlaneseq
        %v4681 = vshrl.u32 %v4680, 7
        %v4682 = vsub.s32 %v4679, %v4681
        %v4683 = vrot.slane %v4661, %v4682
        %v4685 = vunpack.c.l.s4 1966171168
        %v4686 = vunpack.c.0.s8 %v4685
        %v4687 = vlaneseq
        %v4688 = vshrl.u32 %v4687, 7
        %v4689 = vsub.s32 %v4686, %v4688
        %v4690 = vrot.slane %v4662, %v4689
        %v4691 = vcombine.high %v4669, %v4669
        %v4692 = vcombine.high %v4676, %v4676
        %v4693 = vcombine.high %v4683, %v4683
        %v4694 = vcombine.high %v4690, %v4690
        %v4695 = vcombine.high %v4081, %v4081
        %v4697 = vunpack.c.l.s4 1966171168
        %v4698 = vunpack.c.0.s8 %v4697
        %v4699 = vlaneseq
        %v4700 = vshrl.u32 %v4699, 7
        %v4701 = vsub.s32 %v4698, %v4700
        %v4702 = vrot.slane %v4081, %v4701
        %v4704 = vunpack.c.l.s4 1966171168
        %v4705 = vunpack.c.0.s8 %v4704
        %v4706 = vlaneseq
        %v4707 = vshrl.u32 %v4706, 7
        %v4708 = vsub.s32 %v4705, %v4707
        %v4709 = vrot.slane %v4695, %v4708
        %v4710 = vcombine.high %v4702, %v4702
        %v4711 = vcombine.high %v4709, %v4709
        %v4713 = vunpack.c.l.s4 1966171168
        %v4714 = vunpack.c.0.s8 %v4713
        %v4715 = vlaneseq
        %v4716 = vshrl.u32 %v4715, 7
        %v4717 = vsub.s32 %v4714, %v4716
        %v4718 = vrot.slane %v4702, %v4717
        %v4720 = vunpack.c.l.s4 1966171168
        %v4721 = vunpack.c.0.s8 %v4720
        %v4722 = vlaneseq
        %v4723 = vshrl.u32 %v4722, 7
        %v4724 = vsub.s32 %v4721, %v4723
        %v4725 = vrot.slane %v4709, %v4724
        %v4727 = vunpack.c.l.s4 1966171168
        %v4728 = vunpack.c.0.s8 %v4727
        %v4729 = vlaneseq
        %v4730 = vshrl.u32 %v4729, 7
        %v4731 = vsub.s32 %v4728, %v4730
        %v4732 = vrot.slane %v4710, %v4731
        %v4734 = vunpack.c.l.s4 1966171168
        %v4735 = vunpack.c.0.s8 %v4734
        %v4736 = vlaneseq
        %v4737 = vshrl.u32 %v4736, 7
        %v4738 = vsub.s32 %v4735, %v4737
        %v4739 = vrot.slane %v4711, %v4738
        %v4740 = vcombine.high %v4718, %v4718
        %v4741 = vcombine.high %v4725, %v4725
        %v4742 = vcombine.high %v4732, %v4732
        %v4743 = vcombine.high %v4739, %v4739
        %v4744 = vcombine.high %v4082, %v4082
        %v4746 = vunpack.c.l.s4 1966171168
        %v4747 = vunpack.c.0.s8 %v4746
        %v4748 = vlaneseq
        %v4749 = vshrl.u32 %v4748, 7
        %v4750 = vsub.s32 %v4747, %v4749
        %v4751 = vrot.slane %v4082, %v4750
        %v4753 = vunpack.c.l.s4 1966171168
        %v4754 = vunpack.c.0.s8 %v4753
        %v4755 = vlaneseq
        %v4756 = vshrl.u32 %v4755, 7
        %v4757 = vsub.s32 %v4754, %v4756
        %v4758 = vrot.slane %v4744, %v4757
        %v4759 = vcombine.high %v4751, %v4751
        %v4760 = vcombine.high %v4758, %v4758
        %v4762 = vunpack.c.l.s4 1966171168
        %v4763 = vunpack.c.0.s8 %v4762
        %v4764 = vlaneseq
        %v4765 = vshrl.u32 %v4764, 7
        %v4766 = vsub.s32 %v4763, %v4765
        %v4767 = vrot.slane %v4751, %v4766
        %v4769 = vunpack.c.l.s4 1966171168
        %v4770 = vunpack.c.0.s8 %v4769
        %v4771 = vlaneseq
        %v4772 = vshrl.u32 %v4771, 7
        %v4773 = vsub.s32 %v4770, %v4772
        %v4774 = vrot.slane %v4758, %v4773
        %v4776 = vunpack.c.l.s4 1966171168
        %v4777 = vunpack.c.0.s8 %v4776
        %v4778 = vlaneseq
        %v4779 = vshrl.u32 %v4778, 7
        %v4780 = vsub.s32 %v4777, %v4779
        %v4781 = vrot.slane %v4759, %v4780
        %v4783 = vunpack.c.l.s4 1966171168
        %v4784 = vunpack.c.0.s8 %v4783
        %v4785 = vlaneseq
        %v4786 = vshrl.u32 %v4785, 7
        %v4787 = vsub.s32 %v4784, %v4786
        %v4788 = vrot.slane %v4760, %v4787
        %v4789 = vcombine.high %v4767, %v4767
        %v4790 = vcombine.high %v4774, %v4774
        %v4791 = vcombine.high %v4781, %v4781
        %v4792 = vcombine.high %v4788, %v4788
        %v4793 = vcombine.high %v4083, %v4083
        %v4795 = vunpack.c.l.s4 1966171168
        %v4796 = vunpack.c.0.s8 %v4795
        %v4797 = vlaneseq
        %v4798 = vshrl.u32 %v4797, 7
        %v4799 = vsub.s32 %v4796, %v4798
        %v4800 = vrot.slane %v4083, %v4799
        %v4802 = vunpack.c.l.s4 1966171168
        %v4803 = vunpack.c.0.s8 %v4802
        %v4804 = vlaneseq
        %v4805 = vshrl.u32 %v4804, 7
        %v4806 = vsub.s32 %v4803, %v4805
        %v4807 = vrot.slane %v4793, %v4806
        %v4808 = vcombine.high %v4800, %v4800
        %v4809 = vcombine.high %v4807, %v4807
        %v4811 = vunpack.c.l.s4 1966171168
        %v4812 = vunpack.c.0.s8 %v4811
        %v4813 = vlaneseq
        %v4814 = vshrl.u32 %v4813, 7
        %v4815 = vsub.s32 %v4812, %v4814
        %v4816 = vrot.slane %v4800, %v4815
        %v4818 = vunpack.c.l.s4 1966171168
        %v4819 = vunpack.c.0.s8 %v4818
        %v4820 = vlaneseq
        %v4821 = vshrl.u32 %v4820, 7
        %v4822 = vsub.s32 %v4819, %v4821
        %v4823 = vrot.slane %v4807, %v4822
        %v4825 = vunpack.c.l.s4 1966171168
        %v4826 = vunpack.c.0.s8 %v4825
        %v4827 = vlaneseq
        %v4828 = vshrl.u32 %v4827, 7
        %v4829 = vsub.s32 %v4826, %v4828
        %v4830 = vrot.slane %v4808, %v4829
        %v4832 = vunpack.c.l.s4 1966171168
        %v4833 = vunpack.c.0.s8 %v4832
        %v4834 = vlaneseq
        %v4835 = vshrl.u32 %v4834, 7
        %v4836 = vsub.s32 %v4833, %v4835
        %v4837 = vrot.slane %v4809, %v4836
        %v4838 = vcombine.high %v4816, %v4816
        %v4839 = vcombine.high %v4823, %v4823
        %v4840 = vcombine.high %v4830, %v4830
        %v4841 = vcombine.high %v4837, %v4837
        %v4842 = vcombine.high %v4084, %v4084
        %v4844 = vunpack.c.l.s4 1966171168
        %v4845 = vunpack.c.0.s8 %v4844
        %v4846 = vlaneseq
        %v4847 = vshrl.u32 %v4846, 7
        %v4848 = vsub.s32 %v4845, %v4847
        %v4849 = vrot.slane %v4084, %v4848
        %v4851 = vunpack.c.l.s4 1966171168
        %v4852 = vunpack.c.0.s8 %v4851
        %v4853 = vlaneseq
        %v4854 = vshrl.u32 %v4853, 7
        %v4855 = vsub.s32 %v4852, %v4854
        %v4856 = vrot.slane %v4842, %v4855
        %v4857 = vcombine.high %v4849, %v4849
        %v4858 = vcombine.high %v4856, %v4856
        %v4860 = vunpack.c.l.s4 1966171168
        %v4861 = vunpack.c.0.s8 %v4860
        %v4862 = vlaneseq
        %v4863 = vshrl.u32 %v4862, 7
        %v4864 = vsub.s32 %v4861, %v4863
        %v4865 = vrot.slane %v4849, %v4864
        %v4867 = vunpack.c.l.s4 1966171168
        %v4868 = vunpack.c.0.s8 %v4867
        %v4869 = vlaneseq
        %v4870 = vshrl.u32 %v4869, 7
        %v4871 = vsub.s32 %v4868, %v4870
        %v4872 = vrot.slane %v4856, %v4871
        %v4874 = vunpack.c.l.s4 1966171168
        %v4875 = vunpack.c.0.s8 %v4874
        %v4876 = vlaneseq
        %v4877 = vshrl.u32 %v4876, 7
        %v4878 = vsub.s32 %v4875, %v4877
        %v4879 = vrot.slane %v4857, %v4878
        %v4881 = vunpack.c.l.s4 1966171168
        %v4882 = vunpack.c.0.s8 %v4881
        %v4883 = vlaneseq
        %v4884 = vshrl.u32 %v4883, 7
        %v4885 = vsub.s32 %v4882, %v4884
        %v4886 = vrot.slane %v4858, %v4885
        %v4887 = vcombine.high %v4865, %v4865
        %v4888 = vcombine.high %v4872, %v4872
        %v4889 = vcombine.high %v4879, %v4879
        %v4890 = vcombine.high %v4886, %v4886
        %v4891 = vcombine.high %v4085, %v4085
        %v4893 = vunpack.c.l.s4 1966171168
        %v4894 = vunpack.c.0.s8 %v4893
        %v4895 = vlaneseq
        %v4896 = vshrl.u32 %v4895, 7
        %v4897 = vsub.s32 %v4894, %v4896
        %v4898 = vrot.slane %v4085, %v4897
        %v4900 = vunpack.c.l.s4 1966171168
        %v4901 = vunpack.c.0.s8 %v4900
        %v4902 = vlaneseq
        %v4903 = vshrl.u32 %v4902, 7
        %v4904 = vsub.s32 %v4901, %v4903
        %v4905 = vrot.slane %v4891, %v4904
        %v4906 = vcombine.high %v4898, %v4898
        %v4907 = vcombine.high %v4905, %v4905
        %v4909 = vunpack.c.l.s4 1966171168
        %v4910 = vunpack.c.0.s8 %v4909
        %v4911 = vlaneseq
        %v4912 = vshrl.u32 %v4911, 7
        %v4913 = vsub.s32 %v4910, %v4912
        %v4914 = vrot.slane %v4898, %v4913
        %v4916 = vunpack.c.l.s4 1966171168
        %v4917 = vunpack.c.0.s8 %v4916
        %v4918 = vlaneseq
        %v4919 = vshrl.u32 %v4918, 7
        %v4920 = vsub.s32 %v4917, %v4919
        %v4921 = vrot.slane %v4905, %v4920
        %v4923 = vunpack.c.l.s4 1966171168
        %v4924 = vunpack.c.0.s8 %v4923
        %v4925 = vlaneseq
        %v4926 = vshrl.u32 %v4925, 7
        %v4927 = vsub.s32 %v4924, %v4926
        %v4928 = vrot.slane %v4906, %v4927
        %v4930 = vunpack.c.l.s4 1966171168
        %v4931 = vunpack.c.0.s8 %v4930
        %v4932 = vlaneseq
        %v4933 = vshrl.u32 %v4932, 7
        %v4934 = vsub.s32 %v4931, %v4933
        %v4935 = vrot.slane %v4907, %v4934
        %v4936 = vcombine.high %v4914, %v4914
        %v4937 = vcombine.high %v4921, %v4921
        %v4938 = vcombine.high %v4928, %v4928
        %v4939 = vcombine.high %v4935, %v4935
        %v4940 = vcombine.high %v4086, %v4086
        %v4942 = vunpack.c.l.s4 1966171168
        %v4943 = vunpack.c.0.s8 %v4942
        %v4944 = vlaneseq
        %v4945 = vshrl.u32 %v4944, 7
        %v4946 = vsub.s32 %v4943, %v4945
        %v4947 = vrot.slane %v4086, %v4946
        %v4949 = vunpack.c.l.s4 1966171168
        %v4950 = vunpack.c.0.s8 %v4949
        %v4951 = vlaneseq
        %v4952 = vshrl.u32 %v4951, 7
        %v4953 = vsub.s32 %v4950, %v4952
        %v4954 = vrot.slane %v4940, %v4953
        %v4955 = vcombine.high %v4947, %v4947
        %v4956 = vcombine.high %v4954, %v4954
        %v4958 = vunpack.c.l.s4 1966171168
        %v4959 = vunpack.c.0.s8 %v4958
        %v4960 = vlaneseq
        %v4961 = vshrl.u32 %v4960, 7
        %v4962 = vsub.s32 %v4959, %v4961
        %v4963 = vrot.slane %v4947, %v4962
        %v4965 = vunpack.c.l.s4 1966171168
        %v4966 = vunpack.c.0.s8 %v4965
        %v4967 = vlaneseq
        %v4968 = vshrl.u32 %v4967, 7
        %v4969 = vsub.s32 %v4966, %v4968
        %v4970 = vrot.slane %v4954, %v4969
        %v4972 = vunpack.c.l.s4 1966171168
        %v4973 = vunpack.c.0.s8 %v4972
        %v4974 = vlaneseq
        %v4975 = vshrl.u32 %v4974, 7
        %v4976 = vsub.s32 %v4973, %v4975
        %v4977 = vrot.slane %v4955, %v4976
        %v4979 = vunpack.c.l.s4 1966171168
        %v4980 = vunpack.c.0.s8 %v4979
        %v4981 = vlaneseq
        %v4982 = vshrl.u32 %v4981, 7
        %v4983 = vsub.s32 %v4980, %v4982
        %v4984 = vrot.slane %v4956, %v4983
        %v4985 = vcombine.high %v4963, %v4963
        %v4986 = vcombine.high %v4970, %v4970
        %v4987 = vcombine.high %v4977, %v4977
        %v4988 = vcombine.high %v4984, %v4984
        %v4990 = vunpack.c.l.s4 1966171168
        %v4991 = vunpack.c.0.s8 %v4990
        %v4992 = vlaneseq
        %v4993 = vshrl.u32 %v4992, 7
        %v4994 = vsub.s32 %v4991, %v4993
        %v4995 = vrot.slane %v4087, %v4994
        %v4996 = vcombine.high %v4995, %v4995
        %v4998 = vunpack.c.l.s4 1966171168
        %v4999 = vunpack.c.0.s8 %v4998
        %v5000 = vlaneseq
        %v5001 = vshrl.u32 %v5000, 7
        %v5002 = vsub.s32 %v4999, %v5001
        %v5003 = vrot.slane %v4995, %v5002
        %v5005 = vunpack.c.l.s4 1966171168
        %v5006 = vunpack.c.0.s8 %v5005
        %v5007 = vlaneseq
        %v5008 = vshrl.u32 %v5007, 7
        %v5009 = vsub.s32 %v5006, %v5008
        %v5010 = vrot.slane %v4996, %v5009
        %v5011 = vcombine.high %v5003, %v5003
        %5159 = vmatprep.subr.bf16.mxu0 %v1717
        %5160 = vmatpush1.bf16.msra.mxu0 %v1716
        %5161 = vmatprep.subr.bf16.mxu0 %v1719
        %5162 = vmatpush1.bf16.msra.mxu0 %v1718
        %5163 = vmatprep.subr.bf16.mxu0 %v1721
        %5164 = vmatpush1.bf16.msra.mxu0 %v1720
        %5165 = vmatprep.subr.bf16.mxu0 %v1723
        %5166 = vmatpush1.bf16.msra.mxu0 %v1722
        %5167 = vmatprep.subr.bf16.mxu0 %v1725
        %5168 = vmatpush1.bf16.msra.mxu0 %v1724
        %5169 = vmatprep.subr.bf16.mxu0 %v1727
        %5170 = vmatpush1.bf16.msra.mxu0 %v1726
        %5171 = vmatprep.subr.bf16.mxu0 %v1729
        %5172 = vmatpush1.bf16.msra.mxu0 %v1728
        %5173 = vmatprep.subr.bf16.mxu0 %v1731
        %5174 = vmatpush1.bf16.msra.mxu0 %v1730
        %5175 = vmatprep.subr.bf16.mxu0 %v1733
        %5176 = vmatpush1.bf16.msra.mxu0 %v1732
        %5177 = vmatprep.subr.bf16.mxu0 %v1735
        %5178 = vmatpush1.bf16.msra.mxu0 %v1734
        %5179 = vmatprep.subr.bf16.mxu0 %v1737
        %5180 = vmatpush1.bf16.msra.mxu0 %v1736
        %5181 = vmatprep.subr.bf16.mxu0 %v1739
        %5182 = vmatpush1.bf16.msra.mxu0 %v1738
        %5183 = vmatprep.subr.bf16.mxu0 %v1741
        %5184 = vmatpush1.bf16.msra.mxu0 %v1740
        %5185 = vmatprep.subr.bf16.mxu0 %v1743
        %5186 = vmatpush1.bf16.msra.mxu0 %v1742
        %5187 = vmatprep.subr.bf16.mxu0 %v1745
        %5188 = vmatpush1.bf16.msra.mxu0 %v1744
        %5189 = vmatprep.subr.bf16.mxu0 %v1747
        %5190 = vmatpush1.bf16.msra.mxu0 %v1746
        %5191 = vmatprep.mubr.bf16.mxu0 %v4144
        %5192 = vmatmul.mubr.bf16.gmra.mrb[0].mxu0 %v4130
        %v5193 = vpop.f32.mrb[0].mxu0
        %v5194 = vadd.f32 0.0, %v5193
        %v5195 = vpop.f32.mrb[0].mxu0
        %v5196 = vadd.f32 0.0, %v5195
        %v5197 = vpop.f32.mrb[0].mxu0
        %v5198 = vpop.f32.mrb[0].mxu0
        %5199 = vdwg.mxu0
        %5200 = vmatprep.subr.bf16.mxu0 %v1749
        %5201 = vmatpush1.bf16.msra.mxu0 %v1748
        %5202 = vmatprep.subr.bf16.mxu0 %v1751
        %5203 = vmatpush1.bf16.msra.mxu0 %v1750
        %5204 = vmatprep.subr.bf16.mxu0 %v1753
        %5205 = vmatpush1.bf16.msra.mxu0 %v1752
        %5206 = vmatprep.subr.bf16.mxu0 %v1755
        %5207 = vmatpush1.bf16.msra.mxu0 %v1754
        %5208 = vmatprep.subr.bf16.mxu0 %v1757
        %5209 = vmatpush1.bf16.msra.mxu0 %v1756
        %5210 = vmatprep.subr.bf16.mxu0 %v1759
        %5211 = vmatpush1.bf16.msra.mxu0 %v1758
        %5212 = vmatprep.subr.bf16.mxu0 %v1761
        %5213 = vmatpush1.bf16.msra.mxu0 %v1760
        %5214 = vmatprep.subr.bf16.mxu0 %v1763
        %5215 = vmatpush1.bf16.msra.mxu0 %v1762
        %5216 = vmatprep.subr.bf16.mxu0 %v1765
        %5217 = vmatpush1.bf16.msra.mxu0 %v1764
        %5218 = vmatprep.subr.bf16.mxu0 %v1767
        %5219 = vmatpush1.bf16.msra.mxu0 %v1766
        %5220 = vmatprep.subr.bf16.mxu0 %v1769
        %5221 = vmatpush1.bf16.msra.mxu0 %v1768
        %5222 = vmatprep.subr.bf16.mxu0 %v1771
        %5223 = vmatpush1.bf16.msra.mxu0 %v1770
        %5224 = vmatprep.subr.bf16.mxu0 %v1773
        %5225 = vmatpush1.bf16.msra.mxu0 %v1772
        %5226 = vmatprep.subr.bf16.mxu0 %v1775
        %5227 = vmatpush1.bf16.msra.mxu0 %v1774
        %5228 = vmatprep.subr.bf16.mxu0 %v1777
        %5229 = vmatpush1.bf16.msra.mxu0 %v1776
        %5230 = vmatprep.subr.bf16.mxu0 %v1779
        %5231 = vmatpush1.bf16.msra.mxu0 %v1778
        %5232 = vmatprep.mubr.bf16.mxu0 %v4154
        %5233 = vmatmul.mubr.bf16.gmra.mrb[0].mxu0 %v4152
        %v5234 = vpop.f32.mrb[0].mxu0
        %v5235 = vadd.f32 %v5194, %v5234
        %v5236 = vpop.f32.mrb[0].mxu0
        %v5237 = vadd.f32 %v5196, %v5236
        %v5238 = vpop.f32.mrb[0].mxu0
        %v5239 = vpop.f32.mrb[0].mxu0
        %5240 = vdwg.mxu0
        %5241 = vmatprep.subr.bf16.mxu0 %v1781
        %5242 = vmatpush1.bf16.msra.mxu0 %v1780
        %5243 = vmatprep.subr.bf16.mxu0 %v1783
        %5244 = vmatpush1.bf16.msra.mxu0 %v1782
        %5245 = vmatprep.subr.bf16.mxu0 %v1785
        %5246 = vmatpush1.bf16.msra.mxu0 %v1784
        %5247 = vmatprep.subr.bf16.mxu0 %v1787
        %5248 = vmatpush1.bf16.msra.mxu0 %v1786
        %5249 = vmatprep.subr.bf16.mxu0 %v1789
        %5250 = vmatpush1.bf16.msra.mxu0 %v1788
        %5251 = vmatprep.subr.bf16.mxu0 %v1791
        %5252 = vmatpush1.bf16.msra.mxu0 %v1790
        %5253 = vmatprep.subr.bf16.mxu0 %v1793
        %5254 = vmatpush1.bf16.msra.mxu0 %v1792
        %5255 = vmatprep.subr.bf16.mxu0 %v1795
        %5256 = vmatpush1.bf16.msra.mxu0 %v1794
        %5257 = vmatprep.subr.bf16.mxu0 %v1797
        %5258 = vmatpush1.bf16.msra.mxu0 %v1796
        %5259 = vmatprep.subr.bf16.mxu0 %v1799
        %5260 = vmatpush1.bf16.msra.mxu0 %v1798
        %5261 = vmatprep.subr.bf16.mxu0 %v1801
        %5262 = vmatpush1.bf16.msra.mxu0 %v1800
        %5263 = vmatprep.subr.bf16.mxu0 %v1803
        %5264 = vmatpush1.bf16.msra.mxu0 %v1802
        %5265 = vmatprep.subr.bf16.mxu0 %v1805
        %5266 = vmatpush1.bf16.msra.mxu0 %v1804
        %5267 = vmatprep.subr.bf16.mxu0 %v1807
        %5268 = vmatpush1.bf16.msra.mxu0 %v1806
        %5269 = vmatprep.subr.bf16.mxu0 %v1809
        %5270 = vmatpush1.bf16.msra.mxu0 %v1808
        %5271 = vmatprep.subr.bf16.mxu0 %v1811
        %5272 = vmatpush1.bf16.msra.mxu0 %v1810
        %5273 = vmatprep.mubr.bf16.mxu0 %v4151
        %5274 = vmatmul.mubr.bf16.gmra.mrb[0].mxu0 %v4137
        %v5275 = vpop.f32.mrb[0].mxu0
        %v5276 = vadd.f32 %v5235, %v5275
        %v5277 = vpop.f32.mrb[0].mxu0
        %v5278 = vadd.f32 %v5237, %v5277
        %v5279 = vpop.f32.mrb[0].mxu0
        %v5280 = vpop.f32.mrb[0].mxu0
        %5281 = vdwg.mxu0
        %5282 = vmatprep.subr.bf16.mxu0 %v1813
        %5283 = vmatpush1.bf16.msra.mxu0 %v1812
        %5284 = vmatprep.subr.bf16.mxu0 %v1815
        %5285 = vmatpush1.bf16.msra.mxu0 %v1814
        %5286 = vmatprep.subr.bf16.mxu0 %v1817
        %5287 = vmatpush1.bf16.msra.mxu0 %v1816
        %5288 = vmatprep.subr.bf16.mxu0 %v1819
        %5289 = vmatpush1.bf16.msra.mxu0 %v1818
        %5290 = vmatprep.subr.bf16.mxu0 %v1821
        %5291 = vmatpush1.bf16.msra.mxu0 %v1820
        %5292 = vmatprep.subr.bf16.mxu0 %v1823
        %5293 = vmatpush1.bf16.msra.mxu0 %v1822
        %5294 = vmatprep.subr.bf16.mxu0 %v1825
        %5295 = vmatpush1.bf16.msra.mxu0 %v1824
        %5296 = vmatprep.subr.bf16.mxu0 %v1827
        %5297 = vmatpush1.bf16.msra.mxu0 %v1826
        %5298 = vmatprep.subr.bf16.mxu0 %v1829
        %5299 = vmatpush1.bf16.msra.mxu0 %v1828
        %5300 = vmatprep.subr.bf16.mxu0 %v1831
        %5301 = vmatpush1.bf16.msra.mxu0 %v1830
        %5302 = vmatprep.subr.bf16.mxu0 %v1833
        %5303 = vmatpush1.bf16.msra.mxu0 %v1832
        %5304 = vmatprep.subr.bf16.mxu0 %v1835
        %5305 = vmatpush1.bf16.msra.mxu0 %v1834
        %5306 = vmatprep.subr.bf16.mxu0 %v1837
        %5307 = vmatpush1.bf16.msra.mxu0 %v1836
        %5308 = vmatprep.subr.bf16.mxu0 %v1839
        %5309 = vmatpush1.bf16.msra.mxu0 %v1838
        %5310 = vmatprep.subr.bf16.mxu0 %v1841
        %5311 = vmatpush1.bf16.msra.mxu0 %v1840
        %5312 = vmatprep.subr.bf16.mxu0 %v1843
        %5313 = vmatpush1.bf16.msra.mxu0 %v1842
        %5314 = vmatprep.mubr.bf16.mxu0 %v4155
        %5315 = vmatmul.mubr.bf16.gmra.mrb[0].mxu0 %v4153
        %v5316 = vpop.f32.mrb[0].mxu0
        %v5317 = vadd.f32 %v5276, %v5316
        %v5318 = vpop.f32.mrb[0].mxu0
        %v5319 = vadd.f32 %v5278, %v5318
        %v5320 = vpop.f32.mrb[0].mxu0
        %v5321 = vpop.f32.mrb[0].mxu0
        %5322 = vdwg.mxu0
        %5323 = vmatprep.subr.bf16.mxu0 %v1845
        %5324 = vmatpush1.bf16.msra.mxu0 %v1844
        %5325 = vmatprep.subr.bf16.mxu0 %v1847
        %5326 = vmatpush1.bf16.msra.mxu0 %v1846
        %5327 = vmatprep.subr.bf16.mxu0 %v1849
        %5328 = vmatpush1.bf16.msra.mxu0 %v1848
        %5329 = vmatprep.subr.bf16.mxu0 %v1851
        %5330 = vmatpush1.bf16.msra.mxu0 %v1850
        %5331 = vmatprep.subr.bf16.mxu0 %v1853
        %5332 = vmatpush1.bf16.msra.mxu0 %v1852
        %5333 = vmatprep.subr.bf16.mxu0 %v1855
        %5334 = vmatpush1.bf16.msra.mxu0 %v1854
        %5335 = vmatprep.subr.bf16.mxu0 %v1857
        %5336 = vmatpush1.bf16.msra.mxu0 %v1856
        %5337 = vmatprep.subr.bf16.mxu0 %v1859
        %5338 = vmatpush1.bf16.msra.mxu0 %v1858
        %5339 = vmatprep.subr.bf16.mxu0 %v1861
        %5340 = vmatpush1.bf16.msra.mxu0 %v1860
        %5341 = vmatprep.subr.bf16.mxu0 %v1863
        %5342 = vmatpush1.bf16.msra.mxu0 %v1862
        %5343 = vmatprep.subr.bf16.mxu0 %v1865
        %5344 = vmatpush1.bf16.msra.mxu0 %v1864
        %5345 = vmatprep.subr.bf16.mxu0 %v1867
        %5346 = vmatpush1.bf16.msra.mxu0 %v1866
        %5347 = vmatprep.subr.bf16.mxu0 %v1869
        %5348 = vmatpush1.bf16.msra.mxu0 %v1868
        %5349 = vmatprep.subr.bf16.mxu0 %v1871
        %5350 = vmatpush1.bf16.msra.mxu0 %v1870
        %5351 = vmatprep.subr.bf16.mxu0 %v1873
        %5352 = vmatpush1.bf16.msra.mxu0 %v1872
        %5353 = vmatprep.subr.bf16.mxu0 %v1875
        %5354 = vmatpush1.bf16.msra.mxu0 %v1874
        %5355 = vmatprep.mubr.bf16.mxu0 %v4193
        %5356 = vmatmul.mubr.bf16.gmra.mrb[0].mxu0 %v4179
        %v5357 = vpop.f32.mrb[0].mxu0
        %v5358 = vadd.f32 %v5317, %v5357
        %v5359 = vpop.f32.mrb[0].mxu0
        %v5360 = vadd.f32 %v5319, %v5359
        %v5361 = vpop.f32.mrb[0].mxu0
        %v5362 = vpop.f32.mrb[0].mxu0
        %5363 = vdwg.mxu0
        %5364 = vmatprep.subr.bf16.mxu0 %v1877
        %5365 = vmatpush1.bf16.msra.mxu0 %v1876
        %5366 = vmatprep.subr.bf16.mxu0 %v1879
        %5367 = vmatpush1.bf16.msra.mxu0 %v1878
        %5368 = vmatprep.subr.bf16.mxu0 %v1881
        %5369 = vmatpush1.bf16.msra.mxu0 %v1880
        %5370 = vmatprep.subr.bf16.mxu0 %v1883
        %5371 = vmatpush1.bf16.msra.mxu0 %v1882
        %5372 = vmatprep.subr.bf16.mxu0 %v1885
        %5373 = vmatpush1.bf16.msra.mxu0 %v1884
        %5374 = vmatprep.subr.bf16.mxu0 %v1887
        %5375 = vmatpush1.bf16.msra.mxu0 %v1886
        %5376 = vmatprep.subr.bf16.mxu0 %v1889
        %5377 = vmatpush1.bf16.msra.mxu0 %v1888
        %5378 = vmatprep.subr.bf16.mxu0 %v1891
        %5379 = vmatpush1.bf16.msra.mxu0 %v1890
        %5380 = vmatprep.subr.bf16.mxu0 %v1893
        %5381 = vmatpush1.bf16.msra.mxu0 %v1892
        %5382 = vmatprep.subr.bf16.mxu0 %v1895
        %5383 = vmatpush1.bf16.msra.mxu0 %v1894
        %5384 = vmatprep.subr.bf16.mxu0 %v1897
        %5385 = vmatpush1.bf16.msra.mxu0 %v1896
        %5386 = vmatprep.subr.bf16.mxu0 %v1899
        %5387 = vmatpush1.bf16.msra.mxu0 %v1898
        %5388 = vmatprep.subr.bf16.mxu0 %v1901
        %5389 = vmatpush1.bf16.msra.mxu0 %v1900
        %5390 = vmatprep.subr.bf16.mxu0 %v1903
        %5391 = vmatpush1.bf16.msra.mxu0 %v1902
        %5392 = vmatprep.subr.bf16.mxu0 %v1905
        %5393 = vmatpush1.bf16.msra.mxu0 %v1904
        %5394 = vmatprep.subr.bf16.mxu0 %v1907
        %5395 = vmatpush1.bf16.msra.mxu0 %v1906
        %5396 = vmatprep.mubr.bf16.mxu0 %v4203
        %5397 = vmatmul.mubr.bf16.gmra.mrb[0].mxu0 %v4201
        %v5398 = vpop.f32.mrb[0].mxu0
        %v5399 = vadd.f32 %v5358, %v5398
        %v5400 = vpop.f32.mrb[0].mxu0
        %v5401 = vadd.f32 %v5360, %v5400
        %v5402 = vpop.f32.mrb[0].mxu0
        %v5403 = vpop.f32.mrb[0].mxu0
        %5404 = vdwg.mxu0
        %5405 = vmatprep.subr.bf16.mxu0 %v1909
        %5406 = vmatpush1.bf16.msra.mxu0 %v1908
        %5407 = vmatprep.subr.bf16.mxu0 %v1911
        %5408 = vmatpush1.bf16.msra.mxu0 %v1910
        %5409 = vmatprep.subr.bf16.mxu0 %v1913
        %5410 = vmatpush1.bf16.msra.mxu0 %v1912
        %5411 = vmatprep.subr.bf16.mxu0 %v1915
        %5412 = vmatpush1.bf16.msra.mxu0 %v1914
        %5413 = vmatprep.subr.bf16.mxu0 %v1917
        %5414 = vmatpush1.bf16.msra.mxu0 %v1916
        %5415 = vmatprep.subr.bf16.mxu0 %v1919
        %5416 = vmatpush1.bf16.msra.mxu0 %v1918
        %5417 = vmatprep.subr.bf16.mxu0 %v1921
        %5418 = vmatpush1.bf16.msra.mxu0 %v1920
        %5419 = vmatprep.subr.bf16.mxu0 %v1923
        %5420 = vmatpush1.bf16.msra.mxu0 %v1922
        %5421 = vmatprep.subr.bf16.mxu0 %v1925
        %5422 = vmatpush1.bf16.msra.mxu0 %v1924
        %5423 = vmatprep.subr.bf16.mxu0 %v1927
        %5424 = vmatpush1.bf16.msra.mxu0 %v1926
        %5425 = vmatprep.subr.bf16.mxu0 %v1929
        %5426 = vmatpush1.bf16.msra.mxu0 %v1928
        %5427 = vmatprep.subr.bf16.mxu0 %v1931
        %5428 = vmatpush1.bf16.msra.mxu0 %v1930
        %5429 = vmatprep.subr.bf16.mxu0 %v1933
        %5430 = vmatpush1.bf16.msra.mxu0 %v1932
        %5431 = vmatprep.subr.bf16.mxu0 %v1935
        %5432 = vmatpush1.bf16.msra.mxu0 %v1934
        %5433 = vmatprep.subr.bf16.mxu0 %v1937
        %5434 = vmatpush1.bf16.msra.mxu0 %v1936
        %5435 = vmatprep.subr.bf16.mxu0 %v1939
        %5436 = vmatpush1.bf16.msra.mxu0 %v1938
        %5437 = vmatprep.mubr.bf16.mxu0 %v4200
        %5438 = vmatmul.mubr.bf16.gmra.mrb[0].mxu0 %v4186
        %v5439 = vpop.f32.mrb[0].mxu0
        %v5440 = vadd.f32 %v5399, %v5439
        %v5441 = vpop.f32.mrb[0].mxu0
        %v5442 = vadd.f32 %v5401, %v5441
        %v5443 = vpop.f32.mrb[0].mxu0
        %v5444 = vpop.f32.mrb[0].mxu0
        %5445 = vdwg.mxu0
        %5446 = vmatprep.subr.bf16.mxu0 %v1941
        %5447 = vmatpush1.bf16.msra.mxu0 %v1940
        %5448 = vmatprep.subr.bf16.mxu0 %v1943
        %5449 = vmatpush1.bf16.msra.mxu0 %v1942
        %5450 = vmatprep.subr.bf16.mxu0 %v1945
        %5451 = vmatpush1.bf16.msra.mxu0 %v1944
        %5452 = vmatprep.subr.bf16.mxu0 %v1947
        %5453 = vmatpush1.bf16.msra.mxu0 %v1946
        %5454 = vmatprep.subr.bf16.mxu0 %v1949
        %5455 = vmatpush1.bf16.msra.mxu0 %v1948
        %5456 = vmatprep.subr.bf16.mxu0 %v1951
        %5457 = vmatpush1.bf16.msra.mxu0 %v1950
        %5458 = vmatprep.subr.bf16.mxu0 %v1953
        %5459 = vmatpush1.bf16.msra.mxu0 %v1952
        %5460 = vmatprep.subr.bf16.mxu0 %v1955
        %5461 = vmatpush1.bf16.msra.mxu0 %v1954
        %5462 = vmatprep.subr.bf16.mxu0 %v1957
        %5463 = vmatpush1.bf16.msra.mxu0 %v1956
        %5464 = vmatprep.subr.bf16.mxu0 %v1959
        %5465 = vmatpush1.bf16.msra.mxu0 %v1958
        %5466 = vmatprep.subr.bf16.mxu0 %v1961
        %5467 = vmatpush1.bf16.msra.mxu0 %v1960
        %5468 = vmatprep.subr.bf16.mxu0 %v1963
        %5469 = vmatpush1.bf16.msra.mxu0 %v1962
        %5470 = vmatprep.subr.bf16.mxu0 %v1965
        %5471 = vmatpush1.bf16.msra.mxu0 %v1964
        %5472 = vmatprep.subr.bf16.mxu0 %v1967
        %5473 = vmatpush1.bf16.msra.mxu0 %v1966
        %5474 = vmatprep.subr.bf16.mxu0 %v1969
        %5475 = vmatpush1.bf16.msra.mxu0 %v1968
        %5476 = vmatprep.subr.bf16.mxu0 %v1971
        %5477 = vmatpush1.bf16.msra.mxu0 %v1970
        %5478 = vmatprep.mubr.bf16.mxu0 %v4204
        %5479 = vmatmul.mubr.bf16.gmra.mrb[0].mxu0 %v4202
        %v5480 = vpop.f32.mrb[0].mxu0
        %v5481 = vadd.f32 %v5440, %v5480
        %v5482 = vpop.f32.mrb[0].mxu0
        %v5483 = vadd.f32 %v5442, %v5482
        %v5484 = vpop.f32.mrb[0].mxu0
        %v5485 = vpop.f32.mrb[0].mxu0
        %5486 = vdwg.mxu0
        %5487 = vmatprep.subr.bf16.mxu0 %v1973
        %5488 = vmatpush1.bf16.msra.mxu0 %v1972
        %5489 = vmatprep.subr.bf16.mxu0 %v1975
        %5490 = vmatpush1.bf16.msra.mxu0 %v1974
        %5491 = vmatprep.subr.bf16.mxu0 %v1977
        %5492 = vmatpush1.bf16.msra.mxu0 %v1976
        %5493 = vmatprep.subr.bf16.mxu0 %v1979
        %5494 = vmatpush1.bf16.msra.mxu0 %v1978
        %5495 = vmatprep.subr.bf16.mxu0 %v1981
        %5496 = vmatpush1.bf16.msra.mxu0 %v1980
        %5497 = vmatprep.subr.bf16.mxu0 %v1983
        %5498 = vmatpush1.bf16.msra.mxu0 %v1982
        %5499 = vmatprep.subr.bf16.mxu0 %v1985
        %5500 = vmatpush1.bf16.msra.mxu0 %v1984
        %5501 = vmatprep.subr.bf16.mxu0 %v1987
        %5502 = vmatpush1.bf16.msra.mxu0 %v1986
        %5503 = vmatprep.subr.bf16.mxu0 %v1989
        %5504 = vmatpush1.bf16.msra.mxu0 %v1988
        %5505 = vmatprep.subr.bf16.mxu0 %v1991
        %5506 = vmatpush1.bf16.msra.mxu0 %v1990
        %5507 = vmatprep.subr.bf16.mxu0 %v1993
        %5508 = vmatpush1.bf16.msra.mxu0 %v1992
        %5509 = vmatprep.subr.bf16.mxu0 %v1995
        %5510 = vmatpush1.bf16.msra.mxu0 %v1994
        %5511 = vmatprep.subr.bf16.mxu0 %v1997
        %5512 = vmatpush1.bf16.msra.mxu0 %v1996
        %5513 = vmatprep.subr.bf16.mxu0 %v1999
        %5514 = vmatpush1.bf16.msra.mxu0 %v1998
        %5515 = vmatprep.subr.bf16.mxu0 %v2001
        %5516 = vmatpush1.bf16.msra.mxu0 %v2000
        %5517 = vmatprep.subr.bf16.mxu0 %v2003
        %5518 = vmatpush1.bf16.msra.mxu0 %v2002
        %5519 = vmatprep.mubr.bf16.mxu0 %v4242
        %5520 = vmatmul.mubr.bf16.gmra.mrb[0].mxu0 %v4228
        %v5521 = vpop.f32.mrb[0].mxu0
        %v5522 = vadd.f32 %v5481, %v5521
        %v5523 = vpop.f32.mrb[0].mxu0
        %v5524 = vadd.f32 %v5483, %v5523
        %v5525 = vpop.f32.mrb[0].mxu0
        %v5526 = vpop.f32.mrb[0].mxu0
        %5527 = vdwg.mxu0
        %5528 = vmatprep.subr.bf16.mxu0 %v2005
        %5529 = vmatpush1.bf16.msra.mxu0 %v2004
        %5530 = vmatprep.subr.bf16.mxu0 %v2007
        %5531 = vmatpush1.bf16.msra.mxu0 %v2006
        %5532 = vmatprep.subr.bf16.mxu0 %v2009
        %5533 = vmatpush1.bf16.msra.mxu0 %v2008
        %5534 = vmatprep.subr.bf16.mxu0 %v2011
        %5535 = vmatpush1.bf16.msra.mxu0 %v2010
        %5536 = vmatprep.subr.bf16.mxu0 %v2013
        %5537 = vmatpush1.bf16.msra.mxu0 %v2012
        %5538 = vmatprep.subr.bf16.mxu0 %v2015
        %5539 = vmatpush1.bf16.msra.mxu0 %v2014
        %5540 = vmatprep.subr.bf16.mxu0 %v2017
        %5541 = vmatpush1.bf16.msra.mxu0 %v2016
        %5542 = vmatprep.subr.bf16.mxu0 %v2019
        %5543 = vmatpush1.bf16.msra.mxu0 %v2018
        %5544 = vmatprep.subr.bf16.mxu0 %v2021
        %5545 = vmatpush1.bf16.msra.mxu0 %v2020
        %5546 = vmatprep.subr.bf16.mxu0 %v2023
        %5547 = vmatpush1.bf16.msra.mxu0 %v2022
        %5548 = vmatprep.subr.bf16.mxu0 %v2025
        %5549 = vmatpush1.bf16.msra.mxu0 %v2024
        %5550 = vmatprep.subr.bf16.mxu0 %v2027
        %5551 = vmatpush1.bf16.msra.mxu0 %v2026
        %5552 = vmatprep.subr.bf16.mxu0 %v2029
        %5553 = vmatpush1.bf16.msra.mxu0 %v2028
        %5554 = vmatprep.subr.bf16.mxu0 %v2031
        %5555 = vmatpush1.bf16.msra.mxu0 %v2030
        %5556 = vmatprep.subr.bf16.mxu0 %v2033
        %5557 = vmatpush1.bf16.msra.mxu0 %v2032
        %5558 = vmatprep.subr.bf16.mxu0 %v2035
        %5559 = vmatpush1.bf16.msra.mxu0 %v2034
        %5560 = vmatprep.mubr.bf16.mxu0 %v4252
        %5561 = vmatmul.mubr.bf16.gmra.mrb[0].mxu0 %v4250
        %v5562 = vpop.f32.mrb[0].mxu0
        %v5563 = vadd.f32 %v5522, %v5562
        %v5564 = vpop.f32.mrb[0].mxu0
        %v5565 = vadd.f32 %v5524, %v5564
        %v5566 = vpop.f32.mrb[0].mxu0
        %v5567 = vpop.f32.mrb[0].mxu0
        %5568 = vdwg.mxu0
        %5569 = vmatprep.subr.bf16.mxu0 %v2037
        %5570 = vmatpush1.bf16.msra.mxu0 %v2036
        %5571 = vmatprep.subr.bf16.mxu0 %v2039
        %5572 = vmatpush1.bf16.msra.mxu0 %v2038
        %5573 = vmatprep.subr.bf16.mxu0 %v2041
        %5574 = vmatpush1.bf16.msra.mxu0 %v2040
        %5575 = vmatprep.subr.bf16.mxu0 %v2043
        %5576 = vmatpush1.bf16.msra.mxu0 %v2042
        %5577 = vmatprep.subr.bf16.mxu0 %v2045
        %5578 = vmatpush1.bf16.msra.mxu0 %v2044
        %5579 = vmatprep.subr.bf16.mxu0 %v2047
        %5580 = vmatpush1.bf16.msra.mxu0 %v2046
        %5581 = vmatprep.subr.bf16.mxu0 %v2049
        %5582 = vmatpush1.bf16.msra.mxu0 %v2048
        %5583 = vmatprep.subr.bf16.mxu0 %v2051
        %5584 = vmatpush1.bf16.msra.mxu0 %v2050
        %5585 = vmatprep.subr.bf16.mxu0 %v2053
        %5586 = vmatpush1.bf16.msra.mxu0 %v2052
        %5587 = vmatprep.subr.bf16.mxu0 %v2055
        %5588 = vmatpush1.bf16.msra.mxu0 %v2054
        %5589 = vmatprep.subr.bf16.mxu0 %v2057
        %5590 = vmatpush1.bf16.msra.mxu0 %v2056
        %5591 = vmatprep.subr.bf16.mxu0 %v2059
        %5592 = vmatpush1.bf16.msra.mxu0 %v2058
        %5593 = vmatprep.subr.bf16.mxu0 %v2061
        %5594 = vmatpush1.bf16.msra.mxu0 %v2060
        %5595 = vmatprep.subr.bf16.mxu0 %v2063
        %5596 = vmatpush1.bf16.msra.mxu0 %v2062
        %5597 = vmatprep.subr.bf16.mxu0 %v2065
        %5598 = vmatpush1.bf16.msra.mxu0 %v2064
        %5599 = vmatprep.subr.bf16.mxu0 %v2067
        %5600 = vmatpush1.bf16.msra.mxu0 %v2066
        %5601 = vmatprep.mubr.bf16.mxu0 %v4249
        %5602 = vmatmul.mubr.bf16.gmra.mrb[0].mxu0 %v4235
        %v5603 = vpop.f32.mrb[0].mxu0
        %v5604 = vadd.f32 %v5563, %v5603
        %v5605 = vpop.f32.mrb[0].mxu0
        %v5606 = vadd.f32 %v5565, %v5605
        %v5607 = vpop.f32.mrb[0].mxu0
        %v5608 = vpop.f32.mrb[0].mxu0
        %5609 = vdwg.mxu0
        %5610 = vmatprep.subr.bf16.mxu0 %v2069
        %5611 = vmatpush1.bf16.msra.mxu0 %v2068
        %5612 = vmatprep.subr.bf16.mxu0 %v2071
        %5613 = vmatpush1.bf16.msra.mxu0 %v2070
        %5614 = vmatprep.subr.bf16.mxu0 %v2073
        %5615 = vmatpush1.bf16.msra.mxu0 %v2072
        %5616 = vmatprep.subr.bf16.mxu0 %v2075
        %5617 = vmatpush1.bf16.msra.mxu0 %v2074
        %5618 = vmatprep.subr.bf16.mxu0 %v2077
        %5619 = vmatpush1.bf16.msra.mxu0 %v2076
        %5620 = vmatprep.subr.bf16.mxu0 %v2079
        %5621 = vmatpush1.bf16.msra.mxu0 %v2078
        %5622 = vmatprep.subr.bf16.mxu0 %v2081
        %5623 = vmatpush1.bf16.msra.mxu0 %v2080
        %5624 = vmatprep.subr.bf16.mxu0 %v2083
        %5625 = vmatpush1.bf16.msra.mxu0 %v2082
        %5626 = vmatprep.subr.bf16.mxu0 %v2085
        %5627 = vmatpush1.bf16.msra.mxu0 %v2084
        %5628 = vmatprep.subr.bf16.mxu0 %v2087
        %5629 = vmatpush1.bf16.msra.mxu0 %v2086
        %5630 = vmatprep.subr.bf16.mxu0 %v2089
        %5631 = vmatpush1.bf16.msra.mxu0 %v2088
        %5632 = vmatprep.subr.bf16.mxu0 %v2091
        %5633 = vmatpush1.bf16.msra.mxu0 %v2090
        %5634 = vmatprep.subr.bf16.mxu0 %v2093
        %5635 = vmatpush1.bf16.msra.mxu0 %v2092
        %5636 = vmatprep.subr.bf16.mxu0 %v2095
        %5637 = vmatpush1.bf16.msra.mxu0 %v2094
        %5638 = vmatprep.subr.bf16.mxu0 %v2097
        %5639 = vmatpush1.bf16.msra.mxu0 %v2096
        %5640 = vmatprep.subr.bf16.mxu0 %v2099
        %5641 = vmatpush1.bf16.msra.mxu0 %v2098
        %5642 = vmatprep.mubr.bf16.mxu0 %v4253
        %5643 = vmatmul.mubr.bf16.gmra.mrb[0].mxu0 %v4251
        %v5644 = vpop.f32.mrb[0].mxu0
        %v5645 = vadd.f32 %v5604, %v5644
        %v5646 = vpop.f32.mrb[0].mxu0
        %v5647 = vadd.f32 %v5606, %v5646
        %v5648 = vpop.f32.mrb[0].mxu0
        %v5649 = vpop.f32.mrb[0].mxu0
        %5650 = vdwg.mxu0
        %5651 = vmatprep.subr.bf16.mxu0 %v2101
        %5652 = vmatpush1.bf16.msra.mxu0 %v2100
        %5653 = vmatprep.subr.bf16.mxu0 %v2103
        %5654 = vmatpush1.bf16.msra.mxu0 %v2102
        %5655 = vmatprep.subr.bf16.mxu0 %v2105
        %5656 = vmatpush1.bf16.msra.mxu0 %v2104
        %5657 = vmatprep.subr.bf16.mxu0 %v2107
        %5658 = vmatpush1.bf16.msra.mxu0 %v2106
        %5659 = vmatprep.subr.bf16.mxu0 %v2109
        %5660 = vmatpush1.bf16.msra.mxu0 %v2108
        %5661 = vmatprep.subr.bf16.mxu0 %v2111
        %5662 = vmatpush1.bf16.msra.mxu0 %v2110
        %5663 = vmatprep.subr.bf16.mxu0 %v2113
        %5664 = vmatpush1.bf16.msra.mxu0 %v2112
        %5665 = vmatprep.subr.bf16.mxu0 %v2115
        %5666 = vmatpush1.bf16.msra.mxu0 %v2114
        %5667 = vmatprep.subr.bf16.mxu0 %v2117
        %5668 = vmatpush1.bf16.msra.mxu0 %v2116
        %5669 = vmatprep.subr.bf16.mxu0 %v2119
        %5670 = vmatpush1.bf16.msra.mxu0 %v2118
        %5671 = vmatprep.subr.bf16.mxu0 %v2121
        %5672 = vmatpush1.bf16.msra.mxu0 %v2120
        %5673 = vmatprep.subr.bf16.mxu0 %v2123
        %5674 = vmatpush1.bf16.msra.mxu0 %v2122
        %5675 = vmatprep.subr.bf16.mxu0 %v2125
        %5676 = vmatpush1.bf16.msra.mxu0 %v2124
        %5677 = vmatprep.subr.bf16.mxu0 %v2127
        %5678 = vmatpush1.bf16.msra.mxu0 %v2126
        %5679 = vmatprep.subr.bf16.mxu0 %v2129
        %5680 = vmatpush1.bf16.msra.mxu0 %v2128
        %5681 = vmatprep.subr.bf16.mxu0 %v2131
        %5682 = vmatpush1.bf16.msra.mxu0 %v2130
        %5683 = vmatprep.mubr.bf16.mxu0 %v4291
        %5684 = vmatmul.mubr.bf16.gmra.mrb[0].mxu0 %v4277
        %v5685 = vpop.f32.mrb[0].mxu0
        %v5686 = vadd.f32 %v5645, %v5685
        %v5687 = vpop.f32.mrb[0].mxu0
        %v5688 = vadd.f32 %v5647, %v5687
        %v5689 = vpop.f32.mrb[0].mxu0
        %v5690 = vpop.f32.mrb[0].mxu0
        %5691 = vdwg.mxu0
        %5692 = vmatprep.subr.bf16.mxu0 %v2133
        %5693 = vmatpush1.bf16.msra.mxu0 %v2132
        %5694 = vmatprep.subr.bf16.mxu0 %v2135
        %5695 = vmatpush1.bf16.msra.mxu0 %v2134
        %5696 = vmatprep.subr.bf16.mxu0 %v2137
        %5697 = vmatpush1.bf16.msra.mxu0 %v2136
        %5698 = vmatprep.subr.bf16.mxu0 %v2139
        %5699 = vmatpush1.bf16.msra.mxu0 %v2138
        %5700 = vmatprep.subr.bf16.mxu0 %v2141
        %5701 = vmatpush1.bf16.msra.mxu0 %v2140
        %5702 = vmatprep.subr.bf16.mxu0 %v2143
        %5703 = vmatpush1.bf16.msra.mxu0 %v2142
        %5704 = vmatprep.subr.bf16.mxu0 %v2145
        %5705 = vmatpush1.bf16.msra.mxu0 %v2144
        %5706 = vmatprep.subr.bf16.mxu0 %v2147
        %5707 = vmatpush1.bf16.msra.mxu0 %v2146
        %5708 = vmatprep.subr.bf16.mxu0 %v2149
        %5709 = vmatpush1.bf16.msra.mxu0 %v2148
        %5710 = vmatprep.subr.bf16.mxu0 %v2151
        %5711 = vmatpush1.bf16.msra.mxu0 %v2150
        %5712 = vmatprep.subr.bf16.mxu0 %v2153
        %5713 = vmatpush1.bf16.msra.mxu0 %v2152
        %5714 = vmatprep.subr.bf16.mxu0 %v2155
        %5715 = vmatpush1.bf16.msra.mxu0 %v2154
        %5716 = vmatprep.subr.bf16.mxu0 %v2157
        %5717 = vmatpush1.bf16.msra.mxu0 %v2156
        %5718 = vmatprep.subr.bf16.mxu0 %v2159
        %5719 = vmatpush1.bf16.msra.mxu0 %v2158
        %5720 = vmatprep.subr.bf16.mxu0 %v2161
        %5721 = vmatpush1.bf16.msra.mxu0 %v2160
        %5722 = vmatprep.subr.bf16.mxu0 %v2163
        %5723 = vmatpush1.bf16.msra.mxu0 %v2162
        %5724 = vmatprep.mubr.bf16.mxu0 %v4301
        %5725 = vmatmul.mubr.bf16.gmra.mrb[0].mxu0 %v4299
        %v5726 = vpop.f32.mrb[0].mxu0
        %v5727 = vadd.f32 %v5686, %v5726
        %v5728 = vpop.f32.mrb[0].mxu0
        %v5729 = vadd.f32 %v5688, %v5728
        %v5730 = vpop.f32.mrb[0].mxu0
        %v5731 = vpop.f32.mrb[0].mxu0
        %5732 = vdwg.mxu0
        %5733 = vmatprep.subr.bf16.mxu0 %v2165
        %5734 = vmatpush1.bf16.msra.mxu0 %v2164
        %5735 = vmatprep.subr.bf16.mxu0 %v2167
        %5736 = vmatpush1.bf16.msra.mxu0 %v2166
        %5737 = vmatprep.subr.bf16.mxu0 %v2169
        %5738 = vmatpush1.bf16.msra.mxu0 %v2168
        %5739 = vmatprep.subr.bf16.mxu0 %v2171
        %5740 = vmatpush1.bf16.msra.mxu0 %v2170
        %5741 = vmatprep.subr.bf16.mxu0 %v2173
        %5742 = vmatpush1.bf16.msra.mxu0 %v2172
        %5743 = vmatprep.subr.bf16.mxu0 %v2175
        %5744 = vmatpush1.bf16.msra.mxu0 %v2174
        %5745 = vmatprep.subr.bf16.mxu0 %v2177
        %5746 = vmatpush1.bf16.msra.mxu0 %v2176
        %5747 = vmatprep.subr.bf16.mxu0 %v2179
        %5748 = vmatpush1.bf16.msra.mxu0 %v2178
        %5749 = vmatprep.subr.bf16.mxu0 %v2181
        %5750 = vmatpush1.bf16.msra.mxu0 %v2180
        %5751 = vmatprep.subr.bf16.mxu0 %v2183
        %5752 = vmatpush1.bf16.msra.mxu0 %v2182
        %5753 = vmatprep.subr.bf16.mxu0 %v2185
        %5754 = vmatpush1.bf16.msra.mxu0 %v2184
        %5755 = vmatprep.subr.bf16.mxu0 %v2187
        %5756 = vmatpush1.bf16.msra.mxu0 %v2186
        %5757 = vmatprep.subr.bf16.mxu0 %v2189
        %5758 = vmatpush1.bf16.msra.mxu0 %v2188
        %5759 = vmatprep.subr.bf16.mxu0 %v2191
        %5760 = vmatpush1.bf16.msra.mxu0 %v2190
        %5761 = vmatprep.subr.bf16.mxu0 %v2193
        %5762 = vmatpush1.bf16.msra.mxu0 %v2192
        %5763 = vmatprep.subr.bf16.mxu0 %v2195
        %5764 = vmatpush1.bf16.msra.mxu0 %v2194
        %5765 = vmatprep.mubr.bf16.mxu0 %v4298
        %5766 = vmatmul.mubr.bf16.gmra.mrb[0].mxu0 %v4284
        %v5767 = vpop.f32.mrb[0].mxu0
        %v5768 = vadd.f32 %v5727, %v5767
        %v5769 = vpop.f32.mrb[0].mxu0
        %v5770 = vadd.f32 %v5729, %v5769
        %v5771 = vpop.f32.mrb[0].mxu0
        %v5772 = vpop.f32.mrb[0].mxu0
        %5773 = vdwg.mxu0
        %5774 = vmatprep.subr.bf16.mxu0 %v2197
        %5775 = vmatpush1.bf16.msra.mxu0 %v2196
        %5776 = vmatprep.subr.bf16.mxu0 %v2199
        %5777 = vmatpush1.bf16.msra.mxu0 %v2198
        %5778 = vmatprep.subr.bf16.mxu0 %v2201
        %5779 = vmatpush1.bf16.msra.mxu0 %v2200
        %5780 = vmatprep.subr.bf16.mxu0 %v2203
        %5781 = vmatpush1.bf16.msra.mxu0 %v2202
        %5782 = vmatprep.subr.bf16.mxu0 %v2205
        %5783 = vmatpush1.bf16.msra.mxu0 %v2204
        %5784 = vmatprep.subr.bf16.mxu0 %v2207
        %5785 = vmatpush1.bf16.msra.mxu0 %v2206
        %5786 = vmatprep.subr.bf16.mxu0 %v2209
        %5787 = vmatpush1.bf16.msra.mxu0 %v2208
        %5788 = vmatprep.subr.bf16.mxu0 %v2211
        %5789 = vmatpush1.bf16.msra.mxu0 %v2210
        %5790 = vmatprep.subr.bf16.mxu0 %v2213
        %5791 = vmatpush1.bf16.msra.mxu0 %v2212
        %5792 = vmatprep.subr.bf16.mxu0 %v2215
        %5793 = vmatpush1.bf16.msra.mxu0 %v2214
        %5794 = vmatprep.subr.bf16.mxu0 %v2217
        %5795 = vmatpush1.bf16.msra.mxu0 %v2216
        %5796 = vmatprep.subr.bf16.mxu0 %v2219
        %5797 = vmatpush1.bf16.msra.mxu0 %v2218
        %5798 = vmatprep.subr.bf16.mxu0 %v2221
        %5799 = vmatpush1.bf16.msra.mxu0 %v2220
        %5800 = vmatprep.subr.bf16.mxu0 %v2223
        %5801 = vmatpush1.bf16.msra.mxu0 %v2222
        %5802 = vmatprep.subr.bf16.mxu0 %v2225
        %5803 = vmatpush1.bf16.msra.mxu0 %v2224
        %5804 = vmatprep.subr.bf16.mxu0 %v2227
        %5805 = vmatpush1.bf16.msra.mxu0 %v2226
        %5806 = vmatprep.mubr.bf16.mxu0 %v4302
        %5807 = vmatmul.mubr.bf16.gmra.mrb[0].mxu0 %v4300
        %v5808 = vpop.f32.mrb[0].mxu0
        %v5809 = vadd.f32 %v5768, %v5808
        %v5810 = vpop.f32.mrb[0].mxu0
        %v5811 = vadd.f32 %v5770, %v5810
        %v5812 = vpop.f32.mrb[0].mxu0
        %v5813 = vpop.f32.mrb[0].mxu0
        %5814 = vdwg.mxu0
        %5815 = vmatprep.subr.bf16.mxu0 %v2229
        %5816 = vmatpush1.bf16.msra.mxu0 %v2228
        %5817 = vmatprep.subr.bf16.mxu0 %v2231
        %5818 = vmatpush1.bf16.msra.mxu0 %v2230
        %5819 = vmatprep.subr.bf16.mxu0 %v2233
        %5820 = vmatpush1.bf16.msra.mxu0 %v2232
        %5821 = vmatprep.subr.bf16.mxu0 %v2235
        %5822 = vmatpush1.bf16.msra.mxu0 %v2234
        %5823 = vmatprep.subr.bf16.mxu0 %v2237
        %5824 = vmatpush1.bf16.msra.mxu0 %v2236
        %5825 = vmatprep.subr.bf16.mxu0 %v2239
        %5826 = vmatpush1.bf16.msra.mxu0 %v2238
        %5827 = vmatprep.subr.bf16.mxu0 %v2241
        %5828 = vmatpush1.bf16.msra.mxu0 %v2240
        %5829 = vmatprep.subr.bf16.mxu0 %v2243
        %5830 = vmatpush1.bf16.msra.mxu0 %v2242
        %5831 = vmatprep.subr.bf16.mxu0 %v2245
        %5832 = vmatpush1.bf16.msra.mxu0 %v2244
        %5833 = vmatprep.subr.bf16.mxu0 %v2247
        %5834 = vmatpush1.bf16.msra.mxu0 %v2246
        %5835 = vmatprep.subr.bf16.mxu0 %v2249
        %5836 = vmatpush1.bf16.msra.mxu0 %v2248
        %5837 = vmatprep.subr.bf16.mxu0 %v2251
        %5838 = vmatpush1.bf16.msra.mxu0 %v2250
        %5839 = vmatprep.subr.bf16.mxu0 %v2253
        %5840 = vmatpush1.bf16.msra.mxu0 %v2252
        %5841 = vmatprep.subr.bf16.mxu0 %v2255
        %5842 = vmatpush1.bf16.msra.mxu0 %v2254
        %5843 = vmatprep.subr.bf16.mxu0 %v2257
        %5844 = vmatpush1.bf16.msra.mxu0 %v2256
        %5845 = vmatprep.subr.bf16.mxu0 %v2259
        %5846 = vmatpush1.bf16.msra.mxu0 %v2258
        %5847 = vmatprep.mubr.bf16.mxu0 %v4340
        %5848 = vmatmul.mubr.bf16.gmra.mrb[0].mxu0 %v4326
        %v5849 = vpop.f32.mrb[0].mxu0
        %v5850 = vadd.f32 %v5809, %v5849
        %v5851 = vpop.f32.mrb[0].mxu0
        %v5852 = vadd.f32 %v5811, %v5851
        %v5853 = vpop.f32.mrb[0].mxu0
        %v5854 = vpop.f32.mrb[0].mxu0
        %5855 = vdwg.mxu0
        %5856 = vmatprep.subr.bf16.mxu0 %v2261
        %5857 = vmatpush1.bf16.msra.mxu0 %v2260
        %5858 = vmatprep.subr.bf16.mxu0 %v2263
        %5859 = vmatpush1.bf16.msra.mxu0 %v2262
        %5860 = vmatprep.subr.bf16.mxu0 %v2265
        %5861 = vmatpush1.bf16.msra.mxu0 %v2264
        %5862 = vmatprep.subr.bf16.mxu0 %v2267
        %5863 = vmatpush1.bf16.msra.mxu0 %v2266
        %5864 = vmatprep.subr.bf16.mxu0 %v2269
        %5865 = vmatpush1.bf16.msra.mxu0 %v2268
        %5866 = vmatprep.subr.bf16.mxu0 %v2271
        %5867 = vmatpush1.bf16.msra.mxu0 %v2270
        %5868 = vmatprep.subr.bf16.mxu0 %v2273
        %5869 = vmatpush1.bf16.msra.mxu0 %v2272
        %5870 = vmatprep.subr.bf16.mxu0 %v2275
        %5871 = vmatpush1.bf16.msra.mxu0 %v2274
        %5872 = vmatprep.subr.bf16.mxu0 %v2277
        %5873 = vmatpush1.bf16.msra.mxu0 %v2276
        %5874 = vmatprep.subr.bf16.mxu0 %v2279
        %5875 = vmatpush1.bf16.msra.mxu0 %v2278
        %5876 = vmatprep.subr.bf16.mxu0 %v2281
        %5877 = vmatpush1.bf16.msra.mxu0 %v2280
        %5878 = vmatprep.subr.bf16.mxu0 %v2283
        %5879 = vmatpush1.bf16.msra.mxu0 %v2282
        %5880 = vmatprep.subr.bf16.mxu0 %v2285
        %5881 = vmatpush1.bf16.msra.mxu0 %v2284
        %5882 = vmatprep.subr.bf16.mxu0 %v2287
        %5883 = vmatpush1.bf16.msra.mxu0 %v2286
        %5884 = vmatprep.subr.bf16.mxu0 %v2289
        %5885 = vmatpush1.bf16.msra.mxu0 %v2288
        %5886 = vmatprep.subr.bf16.mxu0 %v2291
        %5887 = vmatpush1.bf16.msra.mxu0 %v2290
        %5888 = vmatprep.mubr.bf16.mxu0 %v4350
        %5889 = vmatmul.mubr.bf16.gmra.mrb[0].mxu0 %v4348
        %v5890 = vpop.f32.mrb[0].mxu0
        %v5891 = vadd.f32 %v5850, %v5890
        %v5892 = vpop.f32.mrb[0].mxu0
        %v5893 = vadd.f32 %v5852, %v5892
        %v5894 = vpop.f32.mrb[0].mxu0
        %v5895 = vpop.f32.mrb[0].mxu0
        %5896 = vdwg.mxu0
        %5897 = vmatprep.subr.bf16.mxu0 %v2293
        %5898 = vmatpush1.bf16.msra.mxu0 %v2292
        %5899 = vmatprep.subr.bf16.mxu0 %v2295
        %5900 = vmatpush1.bf16.msra.mxu0 %v2294
        %5901 = vmatprep.subr.bf16.mxu0 %v2297
        %5902 = vmatpush1.bf16.msra.mxu0 %v2296
        %5903 = vmatprep.subr.bf16.mxu0 %v2299
        %5904 = vmatpush1.bf16.msra.mxu0 %v2298
        %5905 = vmatprep.subr.bf16.mxu0 %v2301
        %5906 = vmatpush1.bf16.msra.mxu0 %v2300
        %5907 = vmatprep.subr.bf16.mxu0 %v2303
        %5908 = vmatpush1.bf16.msra.mxu0 %v2302
        %5909 = vmatprep.subr.bf16.mxu0 %v2305
        %5910 = vmatpush1.bf16.msra.mxu0 %v2304
        %5911 = vmatprep.subr.bf16.mxu0 %v2307
        %5912 = vmatpush1.bf16.msra.mxu0 %v2306
        %5913 = vmatprep.subr.bf16.mxu0 %v2309
        %5914 = vmatpush1.bf16.msra.mxu0 %v2308
        %5915 = vmatprep.subr.bf16.mxu0 %v2311
        %5916 = vmatpush1.bf16.msra.mxu0 %v2310
        %5917 = vmatprep.subr.bf16.mxu0 %v2313
        %5918 = vmatpush1.bf16.msra.mxu0 %v2312
        %5919 = vmatprep.subr.bf16.mxu0 %v2315
        %5920 = vmatpush1.bf16.msra.mxu0 %v2314
        %5921 = vmatprep.subr.bf16.mxu0 %v2317
        %5922 = vmatpush1.bf16.msra.mxu0 %v2316
        %5923 = vmatprep.subr.bf16.mxu0 %v2319
        %5924 = vmatpush1.bf16.msra.mxu0 %v2318
        %5925 = vmatprep.subr.bf16.mxu0 %v2321
        %5926 = vmatpush1.bf16.msra.mxu0 %v2320
        %5927 = vmatprep.subr.bf16.mxu0 %v2323
        %5928 = vmatpush1.bf16.msra.mxu0 %v2322
        %5929 = vmatprep.mubr.bf16.mxu0 %v4347
        %5930 = vmatmul.mubr.bf16.gmra.mrb[0].mxu0 %v4333
        %v5931 = vpop.f32.mrb[0].mxu0
        %v5932 = vadd.f32 %v5891, %v5931
        %v5933 = vpop.f32.mrb[0].mxu0
        %v5934 = vadd.f32 %v5893, %v5933
        %v5935 = vpop.f32.mrb[0].mxu0
        %v5936 = vpop.f32.mrb[0].mxu0
        %5937 = vdwg.mxu0
        %5938 = vmatprep.subr.bf16.mxu0 %v2325
        %5939 = vmatpush1.bf16.msra.mxu0 %v2324
        %5940 = vmatprep.subr.bf16.mxu0 %v2327
        %5941 = vmatpush1.bf16.msra.mxu0 %v2326
        %5942 = vmatprep.subr.bf16.mxu0 %v2329
        %5943 = vmatpush1.bf16.msra.mxu0 %v2328
        %5944 = vmatprep.subr.bf16.mxu0 %v2331
        %5945 = vmatpush1.bf16.msra.mxu0 %v2330
        %5946 = vmatprep.subr.bf16.mxu0 %v2333
        %5947 = vmatpush1.bf16.msra.mxu0 %v2332
        %5948 = vmatprep.subr.bf16.mxu0 %v2335
        %5949 = vmatpush1.bf16.msra.mxu0 %v2334
        %5950 = vmatprep.subr.bf16.mxu0 %v2337
        %5951 = vmatpush1.bf16.msra.mxu0 %v2336
        %5952 = vmatprep.subr.bf16.mxu0 %v2339
        %5953 = vmatpush1.bf16.msra.mxu0 %v2338
        %5954 = vmatprep.subr.bf16.mxu0 %v2341
        %5955 = vmatpush1.bf16.msra.mxu0 %v2340
        %5956 = vmatprep.subr.bf16.mxu0 %v2343
        %5957 = vmatpush1.bf16.msra.mxu0 %v2342
        %5958 = vmatprep.subr.bf16.mxu0 %v2345
        %5959 = vmatpush1.bf16.msra.mxu0 %v2344
        %5960 = vmatprep.subr.bf16.mxu0 %v2347
        %5961 = vmatpush1.bf16.msra.mxu0 %v2346
        %5962 = vmatprep.subr.bf16.mxu0 %v2349
        %5963 = vmatpush1.bf16.msra.mxu0 %v2348
        %5964 = vmatprep.subr.bf16.mxu0 %v2351
        %5965 = vmatpush1.bf16.msra.mxu0 %v2350
        %5966 = vmatprep.subr.bf16.mxu0 %v2353
        %5967 = vmatpush1.bf16.msra.mxu0 %v2352
        %5968 = vmatprep.subr.bf16.mxu0 %v2355
        %5969 = vmatpush1.bf16.msra.mxu0 %v2354
        %5970 = vmatprep.mubr.bf16.mxu0 %v4351
        %5971 = vmatmul.mubr.bf16.gmra.mrb[0].mxu0 %v4349
        %v5972 = vpop.f32.mrb[0].mxu0
        %v5973 = vadd.f32 %v5932, %v5972
        %v5974 = vpop.f32.mrb[0].mxu0
        %v5975 = vadd.f32 %v5934, %v5974
        %v5976 = vpop.f32.mrb[0].mxu0
        %v5977 = vpop.f32.mrb[0].mxu0
        %5978 = vdwg.mxu0
        %5979 = vmatprep.subr.bf16.mxu0 %v2357
        %5980 = vmatpush1.bf16.msra.mxu0 %v2356
        %5981 = vmatprep.subr.bf16.mxu0 %v2359
        %5982 = vmatpush1.bf16.msra.mxu0 %v2358
        %5983 = vmatprep.subr.bf16.mxu0 %v2361
        %5984 = vmatpush1.bf16.msra.mxu0 %v2360
        %5985 = vmatprep.subr.bf16.mxu0 %v2363
        %5986 = vmatpush1.bf16.msra.mxu0 %v2362
        %5987 = vmatprep.subr.bf16.mxu0 %v2365
        %5988 = vmatpush1.bf16.msra.mxu0 %v2364
        %5989 = vmatprep.subr.bf16.mxu0 %v2367
        %5990 = vmatpush1.bf16.msra.mxu0 %v2366
        %5991 = vmatprep.subr.bf16.mxu0 %v2369
        %5992 = vmatpush1.bf16.msra.mxu0 %v2368
        %5993 = vmatprep.subr.bf16.mxu0 %v2371
        %5994 = vmatpush1.bf16.msra.mxu0 %v2370
        %5995 = vmatprep.subr.bf16.mxu0 %v2373
        %5996 = vmatpush1.bf16.msra.mxu0 %v2372
        %5997 = vmatprep.subr.bf16.mxu0 %v2375
        %5998 = vmatpush1.bf16.msra.mxu0 %v2374
        %5999 = vmatprep.subr.bf16.mxu0 %v2377
        %6000 = vmatpush1.bf16.msra.mxu0 %v2376
        %6001 = vmatprep.subr.bf16.mxu0 %v2379
        %6002 = vmatpush1.bf16.msra.mxu0 %v2378
        %6003 = vmatprep.subr.bf16.mxu0 %v2381
        %6004 = vmatpush1.bf16.msra.mxu0 %v2380
        %6005 = vmatprep.subr.bf16.mxu0 %v2383
        %6006 = vmatpush1.bf16.msra.mxu0 %v2382
        %6007 = vmatprep.subr.bf16.mxu0 %v2385
        %6008 = vmatpush1.bf16.msra.mxu0 %v2384
        %6009 = vmatprep.subr.bf16.mxu0 %v2387
        %6010 = vmatpush1.bf16.msra.mxu0 %v2386
        %6011 = vmatprep.mubr.bf16.mxu0 %v4389
        %6012 = vmatmul.mubr.bf16.gmra.mrb[0].mxu0 %v4375
        %v6013 = vpop.f32.mrb[0].mxu0
        %v6014 = vadd.f32 %v5973, %v6013
        %v6015 = vpop.f32.mrb[0].mxu0
        %v6016 = vadd.f32 %v5975, %v6015
        %v6017 = vpop.f32.mrb[0].mxu0
        %v6018 = vpop.f32.mrb[0].mxu0
        %6019 = vdwg.mxu0
        %6020 = vmatprep.subr.bf16.mxu0 %v2389
        %6021 = vmatpush1.bf16.msra.mxu0 %v2388
        %6022 = vmatprep.subr.bf16.mxu0 %v2391
        %6023 = vmatpush1.bf16.msra.mxu0 %v2390
        %6024 = vmatprep.subr.bf16.mxu0 %v2393
        %6025 = vmatpush1.bf16.msra.mxu0 %v2392
        %6026 = vmatprep.subr.bf16.mxu0 %v2395
        %6027 = vmatpush1.bf16.msra.mxu0 %v2394
        %6028 = vmatprep.subr.bf16.mxu0 %v2397
        %6029 = vmatpush1.bf16.msra.mxu0 %v2396
        %6030 = vmatprep.subr.bf16.mxu0 %v2399
        %6031 = vmatpush1.bf16.msra.mxu0 %v2398
        %6032 = vmatprep.subr.bf16.mxu0 %v2401
        %6033 = vmatpush1.bf16.msra.mxu0 %v2400
        %6034 = vmatprep.subr.bf16.mxu0 %v2403
        %6035 = vmatpush1.bf16.msra.mxu0 %v2402
        %6036 = vmatprep.subr.bf16.mxu0 %v2405
        %6037 = vmatpush1.bf16.msra.mxu0 %v2404
        %6038 = vmatprep.subr.bf16.mxu0 %v2407
        %6039 = vmatpush1.bf16.msra.mxu0 %v2406
        %6040 = vmatprep.subr.bf16.mxu0 %v2409
        %6041 = vmatpush1.bf16.msra.mxu0 %v2408
        %6042 = vmatprep.subr.bf16.mxu0 %v2411
        %6043 = vmatpush1.bf16.msra.mxu0 %v2410
        %6044 = vmatprep.subr.bf16.mxu0 %v2413
        %6045 = vmatpush1.bf16.msra.mxu0 %v2412
        %6046 = vmatprep.subr.bf16.mxu0 %v2415
        %6047 = vmatpush1.bf16.msra.mxu0 %v2414
        %6048 = vmatprep.subr.bf16.mxu0 %v2417
        %6049 = vmatpush1.bf16.msra.mxu0 %v2416
        %6050 = vmatprep.subr.bf16.mxu0 %v2419
        %6051 = vmatpush1.bf16.msra.mxu0 %v2418
        %6052 = vmatprep.mubr.bf16.mxu0 %v4399
        %6053 = vmatmul.mubr.bf16.gmra.mrb[0].mxu0 %v4397
        %v6054 = vpop.f32.mrb[0].mxu0
        %v6055 = vadd.f32 %v6014, %v6054
        %v6056 = vpop.f32.mrb[0].mxu0
        %v6057 = vadd.f32 %v6016, %v6056
        %v6058 = vpop.f32.mrb[0].mxu0
        %v6059 = vpop.f32.mrb[0].mxu0
        %6060 = vdwg.mxu0
        %6061 = vmatprep.subr.bf16.mxu0 %v2421
        %6062 = vmatpush1.bf16.msra.mxu0 %v2420
        %6063 = vmatprep.subr.bf16.mxu0 %v2423
        %6064 = vmatpush1.bf16.msra.mxu0 %v2422
        %6065 = vmatprep.subr.bf16.mxu0 %v2425
        %6066 = vmatpush1.bf16.msra.mxu0 %v2424
        %6067 = vmatprep.subr.bf16.mxu0 %v2427
        %6068 = vmatpush1.bf16.msra.mxu0 %v2426
        %6069 = vmatprep.subr.bf16.mxu0 %v2429
        %6070 = vmatpush1.bf16.msra.mxu0 %v2428
        %6071 = vmatprep.subr.bf16.mxu0 %v2431
        %6072 = vmatpush1.bf16.msra.mxu0 %v2430
        %6073 = vmatprep.subr.bf16.mxu0 %v2433
        %6074 = vmatpush1.bf16.msra.mxu0 %v2432
        %6075 = vmatprep.subr.bf16.mxu0 %v2435
        %6076 = vmatpush1.bf16.msra.mxu0 %v2434
        %6077 = vmatprep.subr.bf16.mxu0 %v2437
        %6078 = vmatpush1.bf16.msra.mxu0 %v2436
        %6079 = vmatprep.subr.bf16.mxu0 %v2439
        %6080 = vmatpush1.bf16.msra.mxu0 %v2438
        %6081 = vmatprep.subr.bf16.mxu0 %v2441
        %6082 = vmatpush1.bf16.msra.mxu0 %v2440
        %6083 = vmatprep.subr.bf16.mxu0 %v2443
        %6084 = vmatpush1.bf16.msra.mxu0 %v2442
        %6085 = vmatprep.subr.bf16.mxu0 %v2445
        %6086 = vmatpush1.bf16.msra.mxu0 %v2444
        %6087 = vmatprep.subr.bf16.mxu0 %v2447
        %6088 = vmatpush1.bf16.msra.mxu0 %v2446
        %6089 = vmatprep.subr.bf16.mxu0 %v2449
        %6090 = vmatpush1.bf16.msra.mxu0 %v2448
        %6091 = vmatprep.subr.bf16.mxu0 %v2451
        %6092 = vmatpush1.bf16.msra.mxu0 %v2450
        %6093 = vmatprep.mubr.bf16.mxu0 %v4396
        %6094 = vmatmul.mubr.bf16.gmra.mrb[0].mxu0 %v4382
        %v6095 = vpop.f32.mrb[0].mxu0
        %v6096 = vadd.f32 %v6055, %v6095
        %v6097 = vpop.f32.mrb[0].mxu0
        %v6098 = vadd.f32 %v6057, %v6097
        %v6099 = vpop.f32.mrb[0].mxu0
        %v6100 = vpop.f32.mrb[0].mxu0
        %6101 = vdwg.mxu0
        %6102 = vmatprep.subr.bf16.mxu0 %v2453
        %6103 = vmatpush1.bf16.msra.mxu0 %v2452
        %6104 = vmatprep.subr.bf16.mxu0 %v2455
        %6105 = vmatpush1.bf16.msra.mxu0 %v2454
        %6106 = vmatprep.subr.bf16.mxu0 %v2457
        %6107 = vmatpush1.bf16.msra.mxu0 %v2456
        %6108 = vmatprep.subr.bf16.mxu0 %v2459
        %6109 = vmatpush1.bf16.msra.mxu0 %v2458
        %6110 = vmatprep.subr.bf16.mxu0 %v2461
        %6111 = vmatpush1.bf16.msra.mxu0 %v2460
        %6112 = vmatprep.subr.bf16.mxu0 %v2463
        %6113 = vmatpush1.bf16.msra.mxu0 %v2462
        %6114 = vmatprep.subr.bf16.mxu0 %v2465
        %6115 = vmatpush1.bf16.msra.mxu0 %v2464
        %6116 = vmatprep.subr.bf16.mxu0 %v2467
        %6117 = vmatpush1.bf16.msra.mxu0 %v2466
        %6118 = vmatprep.subr.bf16.mxu0 %v2469
        %6119 = vmatpush1.bf16.msra.mxu0 %v2468
        %6120 = vmatprep.subr.bf16.mxu0 %v2471
        %6121 = vmatpush1.bf16.msra.mxu0 %v2470
        %6122 = vmatprep.subr.bf16.mxu0 %v2473
        %6123 = vmatpush1.bf16.msra.mxu0 %v2472
        %6124 = vmatprep.subr.bf16.mxu0 %v2475
        %6125 = vmatpush1.bf16.msra.mxu0 %v2474
        %6126 = vmatprep.subr.bf16.mxu0 %v2477
        %6127 = vmatpush1.bf16.msra.mxu0 %v2476
        %6128 = vmatprep.subr.bf16.mxu0 %v2479
        %6129 = vmatpush1.bf16.msra.mxu0 %v2478
        %6130 = vmatprep.subr.bf16.mxu0 %v2481
        %6131 = vmatpush1.bf16.msra.mxu0 %v2480
        %6132 = vmatprep.subr.bf16.mxu0 %v2483
        %6133 = vmatpush1.bf16.msra.mxu0 %v2482
        %6134 = vmatprep.mubr.bf16.mxu0 %v4400
        %6135 = vmatmul.mubr.bf16.gmra.mrb[0].mxu0 %v4398
        %v6136 = vpop.f32.mrb[0].mxu0
        %v6137 = vadd.f32 %v6096, %v6136
        %v6138 = vpop.f32.mrb[0].mxu0
        %v6139 = vadd.f32 %v6098, %v6138
        %v6140 = vpop.f32.mrb[0].mxu0
        %v6141 = vpop.f32.mrb[0].mxu0
        %6142 = vdwg.mxu0
        %6143 = vmatprep.subr.bf16.mxu0 %v2485
        %6144 = vmatpush1.bf16.msra.mxu0 %v2484
        %6145 = vmatprep.subr.bf16.mxu0 %v2487
        %6146 = vmatpush1.bf16.msra.mxu0 %v2486
        %6147 = vmatprep.subr.bf16.mxu0 %v2489
        %6148 = vmatpush1.bf16.msra.mxu0 %v2488
        %6149 = vmatprep.subr.bf16.mxu0 %v2491
        %6150 = vmatpush1.bf16.msra.mxu0 %v2490
        %6151 = vmatprep.subr.bf16.mxu0 %v2493
        %6152 = vmatpush1.bf16.msra.mxu0 %v2492
        %6153 = vmatprep.subr.bf16.mxu0 %v2495
        %6154 = vmatpush1.bf16.msra.mxu0 %v2494
        %6155 = vmatprep.subr.bf16.mxu0 %v2497
        %6156 = vmatpush1.bf16.msra.mxu0 %v2496
        %6157 = vmatprep.subr.bf16.mxu0 %v2499
        %6158 = vmatpush1.bf16.msra.mxu0 %v2498
        %6159 = vmatprep.subr.bf16.mxu0 %v2501
        %6160 = vmatpush1.bf16.msra.mxu0 %v2500
        %6161 = vmatprep.subr.bf16.mxu0 %v2503
        %6162 = vmatpush1.bf16.msra.mxu0 %v2502
        %6163 = vmatprep.subr.bf16.mxu0 %v2505
        %6164 = vmatpush1.bf16.msra.mxu0 %v2504
        %6165 = vmatprep.subr.bf16.mxu0 %v2507
        %6166 = vmatpush1.bf16.msra.mxu0 %v2506
        %6167 = vmatprep.subr.bf16.mxu0 %v2509
        %6168 = vmatpush1.bf16.msra.mxu0 %v2508
        %6169 = vmatprep.subr.bf16.mxu0 %v2511
        %6170 = vmatpush1.bf16.msra.mxu0 %v2510
        %6171 = vmatprep.subr.bf16.mxu0 %v2513
        %6172 = vmatpush1.bf16.msra.mxu0 %v2512
        %6173 = vmatprep.subr.bf16.mxu0 %v2515
        %6174 = vmatpush1.bf16.msra.mxu0 %v2514
        %6175 = vmatprep.mubr.bf16.mxu0 %v4438
        %6176 = vmatmul.mubr.bf16.gmra.mrb[0].mxu0 %v4424
        %v6177 = vpop.f32.mrb[0].mxu0
        %v6178 = vadd.f32 %v6137, %v6177
        %v6179 = vpop.f32.mrb[0].mxu0
        %v6180 = vadd.f32 %v6139, %v6179
        %v6181 = vpop.f32.mrb[0].mxu0
        %v6182 = vpop.f32.mrb[0].mxu0
        %6183 = vdwg.mxu0
        %6184 = vmatprep.subr.bf16.mxu0 %v2517
        %6185 = vmatpush1.bf16.msra.mxu0 %v2516
        %6186 = vmatprep.subr.bf16.mxu0 %v2519
        %6187 = vmatpush1.bf16.msra.mxu0 %v2518
        %6188 = vmatprep.subr.bf16.mxu0 %v2521
        %6189 = vmatpush1.bf16.msra.mxu0 %v2520
        %6190 = vmatprep.subr.bf16.mxu0 %v2523
        %6191 = vmatpush1.bf16.msra.mxu0 %v2522
        %6192 = vmatprep.subr.bf16.mxu0 %v2525
        %6193 = vmatpush1.bf16.msra.mxu0 %v2524
        %6194 = vmatprep.subr.bf16.mxu0 %v2527
        %6195 = vmatpush1.bf16.msra.mxu0 %v2526
        %6196 = vmatprep.subr.bf16.mxu0 %v2529
        %6197 = vmatpush1.bf16.msra.mxu0 %v2528
        %6198 = vmatprep.subr.bf16.mxu0 %v2531
        %6199 = vmatpush1.bf16.msra.mxu0 %v2530
        %6200 = vmatprep.subr.bf16.mxu0 %v2533
        %6201 = vmatpush1.bf16.msra.mxu0 %v2532
        %6202 = vmatprep.subr.bf16.mxu0 %v2535
        %6203 = vmatpush1.bf16.msra.mxu0 %v2534
        %6204 = vmatprep.subr.bf16.mxu0 %v2537
        %6205 = vmatpush1.bf16.msra.mxu0 %v2536
        %6206 = vmatprep.subr.bf16.mxu0 %v2539
        %6207 = vmatpush1.bf16.msra.mxu0 %v2538
        %6208 = vmatprep.subr.bf16.mxu0 %v2541
        %6209 = vmatpush1.bf16.msra.mxu0 %v2540
        %6210 = vmatprep.subr.bf16.mxu0 %v2543
        %6211 = vmatpush1.bf16.msra.mxu0 %v2542
        %6212 = vmatprep.subr.bf16.mxu0 %v2545
        %6213 = vmatpush1.bf16.msra.mxu0 %v2544
        %6214 = vmatprep.subr.bf16.mxu0 %v2547
        %6215 = vmatpush1.bf16.msra.mxu0 %v2546
        %6216 = vmatprep.mubr.bf16.mxu0 %v4448
        %6217 = vmatmul.mubr.bf16.gmra.mrb[0].mxu0 %v4446
        %v6218 = vpop.f32.mrb[0].mxu0
        %v6219 = vadd.f32 %v6178, %v6218
        %v6220 = vpop.f32.mrb[0].mxu0
        %v6221 = vadd.f32 %v6180, %v6220
        %v6222 = vpop.f32.mrb[0].mxu0
        %v6223 = vpop.f32.mrb[0].mxu0
        %6224 = vdwg.mxu0
        %6225 = vmatprep.subr.bf16.mxu0 %v2549
        %6226 = vmatpush1.bf16.msra.mxu0 %v2548
        %6227 = vmatprep.subr.bf16.mxu0 %v2551
        %6228 = vmatpush1.bf16.msra.mxu0 %v2550
        %6229 = vmatprep.subr.bf16.mxu0 %v2553
        %6230 = vmatpush1.bf16.msra.mxu0 %v2552
        %6231 = vmatprep.subr.bf16.mxu0 %v2555
        %6232 = vmatpush1.bf16.msra.mxu0 %v2554
        %6233 = vmatprep.subr.bf16.mxu0 %v2557
        %6234 = vmatpush1.bf16.msra.mxu0 %v2556
        %6235 = vmatprep.subr.bf16.mxu0 %v2559
        %6236 = vmatpush1.bf16.msra.mxu0 %v2558
        %6237 = vmatprep.subr.bf16.mxu0 %v2561
        %6238 = vmatpush1.bf16.msra.mxu0 %v2560
        %6239 = vmatprep.subr.bf16.mxu0 %v2563
        %6240 = vmatpush1.bf16.msra.mxu0 %v2562
        %6241 = vmatprep.subr.bf16.mxu0 %v2565
        %6242 = vmatpush1.bf16.msra.mxu0 %v2564
        %6243 = vmatprep.subr.bf16.mxu0 %v2567
        %6244 = vmatpush1.bf16.msra.mxu0 %v2566
        %6245 = vmatprep.subr.bf16.mxu0 %v2569
        %6246 = vmatpush1.bf16.msra.mxu0 %v2568
        %6247 = vmatprep.subr.bf16.mxu0 %v2571
        %6248 = vmatpush1.bf16.msra.mxu0 %v2570
        %6249 = vmatprep.subr.bf16.mxu0 %v2573
        %6250 = vmatpush1.bf16.msra.mxu0 %v2572
        %6251 = vmatprep.subr.bf16.mxu0 %v2575
        %6252 = vmatpush1.bf16.msra.mxu0 %v2574
        %6253 = vmatprep.subr.bf16.mxu0 %v2577
        %6254 = vmatpush1.bf16.msra.mxu0 %v2576
        %6255 = vmatprep.subr.bf16.mxu0 %v2579
        %6256 = vmatpush1.bf16.msra.mxu0 %v2578
        %6257 = vmatprep.mubr.bf16.mxu0 %v4445
        %6258 = vmatmul.mubr.bf16.gmra.mrb[0].mxu0 %v4431
        %v6259 = vpop.f32.mrb[0].mxu0
        %v6260 = vadd.f32 %v6219, %v6259
        %v6261 = vpop.f32.mrb[0].mxu0
        %v6262 = vadd.f32 %v6221, %v6261
        %v6263 = vpop.f32.mrb[0].mxu0
        %v6264 = vpop.f32.mrb[0].mxu0
        %6265 = vdwg.mxu0
        %6266 = vmatprep.subr.bf16.mxu0 %v2581
        %6267 = vmatpush1.bf16.msra.mxu0 %v2580
        %6268 = vmatprep.subr.bf16.mxu0 %v2583
        %6269 = vmatpush1.bf16.msra.mxu0 %v2582
        %6270 = vmatprep.subr.bf16.mxu0 %v2585
        %6271 = vmatpush1.bf16.msra.mxu0 %v2584
        %6272 = vmatprep.subr.bf16.mxu0 %v2587
        %6273 = vmatpush1.bf16.msra.mxu0 %v2586
        %6274 = vmatprep.subr.bf16.mxu0 %v2589
        %6275 = vmatpush1.bf16.msra.mxu0 %v2588
        %6276 = vmatprep.subr.bf16.mxu0 %v2591
        %6277 = vmatpush1.bf16.msra.mxu0 %v2590
        %6278 = vmatprep.subr.bf16.mxu0 %v2593
        %6279 = vmatpush1.bf16.msra.mxu0 %v2592
        %6280 = vmatprep.subr.bf16.mxu0 %v2595
        %6281 = vmatpush1.bf16.msra.mxu0 %v2594
        %6282 = vmatprep.subr.bf16.mxu0 %v2597
        %6283 = vmatpush1.bf16.msra.mxu0 %v2596
        %6284 = vmatprep.subr.bf16.mxu0 %v2599
        %6285 = vmatpush1.bf16.msra.mxu0 %v2598
        %6286 = vmatprep.subr.bf16.mxu0 %v2601
        %6287 = vmatpush1.bf16.msra.mxu0 %v2600
        %6288 = vmatprep.subr.bf16.mxu0 %v2603
        %6289 = vmatpush1.bf16.msra.mxu0 %v2602
        %6290 = vmatprep.subr.bf16.mxu0 %v2605
        %6291 = vmatpush1.bf16.msra.mxu0 %v2604
        %6292 = vmatprep.subr.bf16.mxu0 %v2607
        %6293 = vmatpush1.bf16.msra.mxu0 %v2606
        %6294 = vmatprep.subr.bf16.mxu0 %v2609
        %6295 = vmatpush1.bf16.msra.mxu0 %v2608
        %6296 = vmatprep.subr.bf16.mxu0 %v2611
        %6297 = vmatpush1.bf16.msra.mxu0 %v2610
        %6298 = vmatprep.mubr.bf16.mxu0 %v4449
        %6299 = vmatmul.mubr.bf16.gmra.mrb[0].mxu0 %v4447
        %v6300 = vpop.f32.mrb[0].mxu0
        %v6301 = vadd.f32 %v6260, %v6300
        %v6302 = vpop.f32.mrb[0].mxu0
        %v6303 = vadd.f32 %v6262, %v6302
        %v6304 = vpop.f32.mrb[0].mxu0
        %v6305 = vpop.f32.mrb[0].mxu0
        %6306 = vdwg.mxu0
        %6307 = vmatprep.subr.bf16.mxu0 %v2613
        %6308 = vmatpush1.bf16.msra.mxu0 %v2612
        %6309 = vmatprep.subr.bf16.mxu0 %v2615
        %6310 = vmatpush1.bf16.msra.mxu0 %v2614
        %6311 = vmatprep.subr.bf16.mxu0 %v2617
        %6312 = vmatpush1.bf16.msra.mxu0 %v2616
        %6313 = vmatprep.subr.bf16.mxu0 %v2619
        %6314 = vmatpush1.bf16.msra.mxu0 %v2618
        %6315 = vmatprep.subr.bf16.mxu0 %v2621
        %6316 = vmatpush1.bf16.msra.mxu0 %v2620
        %6317 = vmatprep.subr.bf16.mxu0 %v2623
        %6318 = vmatpush1.bf16.msra.mxu0 %v2622
        %6319 = vmatprep.subr.bf16.mxu0 %v2625
        %6320 = vmatpush1.bf16.msra.mxu0 %v2624
        %6321 = vmatprep.subr.bf16.mxu0 %v2627
        %6322 = vmatpush1.bf16.msra.mxu0 %v2626
        %6323 = vmatprep.subr.bf16.mxu0 %v2629
        %6324 = vmatpush1.bf16.msra.mxu0 %v2628
        %6325 = vmatprep.subr.bf16.mxu0 %v2631
        %6326 = vmatpush1.bf16.msra.mxu0 %v2630
        %6327 = vmatprep.subr.bf16.mxu0 %v2633
        %6328 = vmatpush1.bf16.msra.mxu0 %v2632
        %6329 = vmatprep.subr.bf16.mxu0 %v2635
        %6330 = vmatpush1.bf16.msra.mxu0 %v2634
        %6331 = vmatprep.subr.bf16.mxu0 %v2637
        %6332 = vmatpush1.bf16.msra.mxu0 %v2636
        %6333 = vmatprep.subr.bf16.mxu0 %v2639
        %6334 = vmatpush1.bf16.msra.mxu0 %v2638
        %6335 = vmatprep.subr.bf16.mxu0 %v2641
        %6336 = vmatpush1.bf16.msra.mxu0 %v2640
        %6337 = vmatprep.subr.bf16.mxu0 %v2643
        %6338 = vmatpush1.bf16.msra.mxu0 %v2642
        %6339 = vmatprep.mubr.bf16.mxu0 %v4487
        %6340 = vmatmul.mubr.bf16.gmra.mrb[0].mxu0 %v4473
        %v6341 = vpop.f32.mrb[0].mxu0
        %v6342 = vadd.f32 %v6301, %v6341
        %v6343 = vpop.f32.mrb[0].mxu0
        %v6344 = vadd.f32 %v6303, %v6343
        %v6345 = vpop.f32.mrb[0].mxu0
        %v6346 = vpop.f32.mrb[0].mxu0
        %6347 = vdwg.mxu0
        %6348 = vmatprep.subr.bf16.mxu0 %v2645
        %6349 = vmatpush1.bf16.msra.mxu0 %v2644
        %6350 = vmatprep.subr.bf16.mxu0 %v2647
        %6351 = vmatpush1.bf16.msra.mxu0 %v2646
        %6352 = vmatprep.subr.bf16.mxu0 %v2649
        %6353 = vmatpush1.bf16.msra.mxu0 %v2648
        %6354 = vmatprep.subr.bf16.mxu0 %v2651
        %6355 = vmatpush1.bf16.msra.mxu0 %v2650
        %6356 = vmatprep.subr.bf16.mxu0 %v2653
        %6357 = vmatpush1.bf16.msra.mxu0 %v2652
        %6358 = vmatprep.subr.bf16.mxu0 %v2655
        %6359 = vmatpush1.bf16.msra.mxu0 %v2654
        %6360 = vmatprep.subr.bf16.mxu0 %v2657
        %6361 = vmatpush1.bf16.msra.mxu0 %v2656
        %6362 = vmatprep.subr.bf16.mxu0 %v2659
        %6363 = vmatpush1.bf16.msra.mxu0 %v2658
        %6364 = vmatprep.subr.bf16.mxu0 %v2661
        %6365 = vmatpush1.bf16.msra.mxu0 %v2660
        %6366 = vmatprep.subr.bf16.mxu0 %v2663
        %6367 = vmatpush1.bf16.msra.mxu0 %v2662
        %6368 = vmatprep.subr.bf16.mxu0 %v2665
        %6369 = vmatpush1.bf16.msra.mxu0 %v2664
        %6370 = vmatprep.subr.bf16.mxu0 %v2667
        %6371 = vmatpush1.bf16.msra.mxu0 %v2666
        %6372 = vmatprep.subr.bf16.mxu0 %v2669
        %6373 = vmatpush1.bf16.msra.mxu0 %v2668
        %6374 = vmatprep.subr.bf16.mxu0 %v2671
        %6375 = vmatpush1.bf16.msra.mxu0 %v2670
        %6376 = vmatprep.subr.bf16.mxu0 %v2673
        %6377 = vmatpush1.bf16.msra.mxu0 %v2672
        %6378 = vmatprep.subr.bf16.mxu0 %v2675
        %6379 = vmatpush1.bf16.msra.mxu0 %v2674
        %6380 = vmatprep.mubr.bf16.mxu0 %v4497
        %6381 = vmatmul.mubr.bf16.gmra.mrb[0].mxu0 %v4495
        %v6382 = vpop.f32.mrb[0].mxu0
        %v6383 = vadd.f32 %v6342, %v6382
        %v6384 = vpop.f32.mrb[0].mxu0
        %v6385 = vadd.f32 %v6344, %v6384
        %v6386 = vpop.f32.mrb[0].mxu0
        %v6387 = vpop.f32.mrb[0].mxu0
        %6388 = vdwg.mxu0
        %6389 = vmatprep.subr.bf16.mxu0 %v2677
        %6390 = vmatpush1.bf16.msra.mxu0 %v2676
        %6391 = vmatprep.subr.bf16.mxu0 %v2679
        %6392 = vmatpush1.bf16.msra.mxu0 %v2678
        %6393 = vmatprep.subr.bf16.mxu0 %v2681
        %6394 = vmatpush1.bf16.msra.mxu0 %v2680
        %6395 = vmatprep.subr.bf16.mxu0 %v2683
        %6396 = vmatpush1.bf16.msra.mxu0 %v2682
        %6397 = vmatprep.subr.bf16.mxu0 %v2685
        %6398 = vmatpush1.bf16.msra.mxu0 %v2684
        %6399 = vmatprep.subr.bf16.mxu0 %v2687
        %6400 = vmatpush1.bf16.msra.mxu0 %v2686
        %6401 = vmatprep.subr.bf16.mxu0 %v2689
        %6402 = vmatpush1.bf16.msra.mxu0 %v2688
        %6403 = vmatprep.subr.bf16.mxu0 %v2691
        %6404 = vmatpush1.bf16.msra.mxu0 %v2690
        %6405 = vmatprep.subr.bf16.mxu0 %v2693
        %6406 = vmatpush1.bf16.msra.mxu0 %v2692
        %6407 = vmatprep.subr.bf16.mxu0 %v2695
        %6408 = vmatpush1.bf16.msra.mxu0 %v2694
        %6409 = vmatprep.subr.bf16.mxu0 %v2697
        %6410 = vmatpush1.bf16.msra.mxu0 %v2696
        %6411 = vmatprep.subr.bf16.mxu0 %v2699
        %6412 = vmatpush1.bf16.msra.mxu0 %v2698
        %6413 = vmatprep.subr.bf16.mxu0 %v2701
        %6414 = vmatpush1.bf16.msra.mxu0 %v2700
        %6415 = vmatprep.subr.bf16.mxu0 %v2703
        %6416 = vmatpush1.bf16.msra.mxu0 %v2702
        %6417 = vmatprep.subr.bf16.mxu0 %v2705
        %6418 = vmatpush1.bf16.msra.mxu0 %v2704
        %6419 = vmatprep.subr.bf16.mxu0 %v2707
        %6420 = vmatpush1.bf16.msra.mxu0 %v2706
        %6421 = vmatprep.mubr.bf16.mxu0 %v4494
        %6422 = vmatmul.mubr.bf16.gmra.mrb[0].mxu0 %v4480
        %v6423 = vpop.f32.mrb[0].mxu0
        %v6424 = vadd.f32 %v6383, %v6423
        %v6425 = vpop.f32.mrb[0].mxu0
        %v6426 = vadd.f32 %v6385, %v6425
        %v6427 = vpop.f32.mrb[0].mxu0
        %v6428 = vpop.f32.mrb[0].mxu0
        %6429 = vdwg.mxu0
        %6430 = vmatprep.subr.bf16.mxu0 %v2709
        %6431 = vmatpush1.bf16.msra.mxu0 %v2708
        %6432 = vmatprep.subr.bf16.mxu0 %v2711
        %6433 = vmatpush1.bf16.msra.mxu0 %v2710
        %6434 = vmatprep.subr.bf16.mxu0 %v2713
        %6435 = vmatpush1.bf16.msra.mxu0 %v2712
        %6436 = vmatprep.subr.bf16.mxu0 %v2715
        %6437 = vmatpush1.bf16.msra.mxu0 %v2714
        %6438 = vmatprep.subr.bf16.mxu0 %v2717
        %6439 = vmatpush1.bf16.msra.mxu0 %v2716
        %6440 = vmatprep.subr.bf16.mxu0 %v2719
        %6441 = vmatpush1.bf16.msra.mxu0 %v2718
        %6442 = vmatprep.subr.bf16.mxu0 %v2721
        %6443 = vmatpush1.bf16.msra.mxu0 %v2720
        %6444 = vmatprep.subr.bf16.mxu0 %v2723
        %6445 = vmatpush1.bf16.msra.mxu0 %v2722
        %6446 = vmatprep.subr.bf16.mxu0 %v2725
        %6447 = vmatpush1.bf16.msra.mxu0 %v2724
        %6448 = vmatprep.subr.bf16.mxu0 %v2727
        %6449 = vmatpush1.bf16.msra.mxu0 %v2726
        %6450 = vmatprep.subr.bf16.mxu0 %v2729
        %6451 = vmatpush1.bf16.msra.mxu0 %v2728
        %6452 = vmatprep.subr.bf16.mxu0 %v2731
        %6453 = vmatpush1.bf16.msra.mxu0 %v2730
        %6454 = vmatprep.subr.bf16.mxu0 %v2733
        %6455 = vmatpush1.bf16.msra.mxu0 %v2732
        %6456 = vmatprep.subr.bf16.mxu0 %v2735
        %6457 = vmatpush1.bf16.msra.mxu0 %v2734
        %6458 = vmatprep.subr.bf16.mxu0 %v2737
        %6459 = vmatpush1.bf16.msra.mxu0 %v2736
        %6460 = vmatprep.subr.bf16.mxu0 %v2739
        %6461 = vmatpush1.bf16.msra.mxu0 %v2738
        %6462 = vmatprep.mubr.bf16.mxu0 %v4498
        %6463 = vmatmul.mubr.bf16.gmra.mrb[0].mxu0 %v4496
        %v6464 = vpop.f32.mrb[0].mxu0
        %v6465 = vadd.f32 %v6424, %v6464
        %v6466 = vpop.f32.mrb[0].mxu0
        %v6467 = vadd.f32 %v6426, %v6466
        %v6468 = vpop.f32.mrb[0].mxu0
        %v6469 = vpop.f32.mrb[0].mxu0
        %6470 = vdwg.mxu0
        %6471 = vmatprep.subr.bf16.mxu0 %v2741
        %6472 = vmatpush1.bf16.msra.mxu0 %v2740
        %6473 = vmatprep.subr.bf16.mxu0 %v2743
        %6474 = vmatpush1.bf16.msra.mxu0 %v2742
        %6475 = vmatprep.subr.bf16.mxu0 %v2745
        %6476 = vmatpush1.bf16.msra.mxu0 %v2744
        %6477 = vmatprep.subr.bf16.mxu0 %v2747
        %6478 = vmatpush1.bf16.msra.mxu0 %v2746
        %6479 = vmatprep.subr.bf16.mxu0 %v2749
        %6480 = vmatpush1.bf16.msra.mxu0 %v2748
        %6481 = vmatprep.subr.bf16.mxu0 %v2751
        %6482 = vmatpush1.bf16.msra.mxu0 %v2750
        %6483 = vmatprep.subr.bf16.mxu0 %v2753
        %6484 = vmatpush1.bf16.msra.mxu0 %v2752
        %6485 = vmatprep.subr.bf16.mxu0 %v2755
        %6486 = vmatpush1.bf16.msra.mxu0 %v2754
        %6487 = vmatprep.subr.bf16.mxu0 %v2757
        %6488 = vmatpush1.bf16.msra.mxu0 %v2756
        %6489 = vmatprep.subr.bf16.mxu0 %v2759
        %6490 = vmatpush1.bf16.msra.mxu0 %v2758
        %6491 = vmatprep.subr.bf16.mxu0 %v2761
        %6492 = vmatpush1.bf16.msra.mxu0 %v2760
        %6493 = vmatprep.subr.bf16.mxu0 %v2763
        %6494 = vmatpush1.bf16.msra.mxu0 %v2762
        %6495 = vmatprep.subr.bf16.mxu0 %v2765
        %6496 = vmatpush1.bf16.msra.mxu0 %v2764
        %6497 = vmatprep.subr.bf16.mxu0 %v2767
        %6498 = vmatpush1.bf16.msra.mxu0 %v2766
        %6499 = vmatprep.subr.bf16.mxu0 %v2769
        %6500 = vmatpush1.bf16.msra.mxu0 %v2768
        %6501 = vmatprep.subr.bf16.mxu0 %v2771
        %6502 = vmatpush1.bf16.msra.mxu0 %v2770
        %6503 = vmatprep.mubr.bf16.mxu0 %v4536
        %6504 = vmatmul.mubr.bf16.gmra.mrb[0].mxu0 %v4522
        %v6505 = vpop.f32.mrb[0].mxu0
        %v6506 = vadd.f32 %v6465, %v6505
        %v6507 = vpop.f32.mrb[0].mxu0
        %v6508 = vadd.f32 %v6467, %v6507
        %v6509 = vpop.f32.mrb[0].mxu0
        %v6510 = vpop.f32.mrb[0].mxu0
        %6511 = vdwg.mxu0
        %6512 = vmatprep.subr.bf16.mxu0 %v2773
        %6513 = vmatpush1.bf16.msra.mxu0 %v2772
        %6514 = vmatprep.subr.bf16.mxu0 %v2775
        %6515 = vmatpush1.bf16.msra.mxu0 %v2774
        %6516 = vmatprep.subr.bf16.mxu0 %v2777
        %6517 = vmatpush1.bf16.msra.mxu0 %v2776
        %6518 = vmatprep.subr.bf16.mxu0 %v2779
        %6519 = vmatpush1.bf16.msra.mxu0 %v2778
        %6520 = vmatprep.subr.bf16.mxu0 %v2781
        %6521 = vmatpush1.bf16.msra.mxu0 %v2780
        %6522 = vmatprep.subr.bf16.mxu0 %v2783
        %6523 = vmatpush1.bf16.msra.mxu0 %v2782
        %6524 = vmatprep.subr.bf16.mxu0 %v2785
        %6525 = vmatpush1.bf16.msra.mxu0 %v2784
        %6526 = vmatprep.subr.bf16.mxu0 %v2787
        %6527 = vmatpush1.bf16.msra.mxu0 %v2786
        %6528 = vmatprep.subr.bf16.mxu0 %v2789
        %6529 = vmatpush1.bf16.msra.mxu0 %v2788
        %6530 = vmatprep.subr.bf16.mxu0 %v2791
        %6531 = vmatpush1.bf16.msra.mxu0 %v2790
        %6532 = vmatprep.subr.bf16.mxu0 %v2793
        %6533 = vmatpush1.bf16.msra.mxu0 %v2792
        %6534 = vmatprep.subr.bf16.mxu0 %v2795
        %6535 = vmatpush1.bf16.msra.mxu0 %v2794
        %6536 = vmatprep.subr.bf16.mxu0 %v2797
        %6537 = vmatpush1.bf16.msra.mxu0 %v2796
        %6538 = vmatprep.subr.bf16.mxu0 %v2799
        %6539 = vmatpush1.bf16.msra.mxu0 %v2798
        %6540 = vmatprep.subr.bf16.mxu0 %v2801
        %6541 = vmatpush1.bf16.msra.mxu0 %v2800
        %6542 = vmatprep.subr.bf16.mxu0 %v2803
        %6543 = vmatpush1.bf16.msra.mxu0 %v2802
        %6544 = vmatprep.mubr.bf16.mxu0 %v4546
        %6545 = vmatmul.mubr.bf16.gmra.mrb[0].mxu0 %v4544
        %v6546 = vpop.f32.mrb[0].mxu0
        %v6547 = vadd.f32 %v6506, %v6546
        %v6548 = vpop.f32.mrb[0].mxu0
        %v6549 = vadd.f32 %v6508, %v6548
        %v6550 = vpop.f32.mrb[0].mxu0
        %v6551 = vpop.f32.mrb[0].mxu0
        %6552 = vdwg.mxu0
        %6553 = vmatprep.subr.bf16.mxu0 %v2805
        %6554 = vmatpush1.bf16.msra.mxu0 %v2804
        %6555 = vmatprep.subr.bf16.mxu0 %v2807
        %6556 = vmatpush1.bf16.msra.mxu0 %v2806
        %6557 = vmatprep.subr.bf16.mxu0 %v2809
        %6558 = vmatpush1.bf16.msra.mxu0 %v2808
        %6559 = vmatprep.subr.bf16.mxu0 %v2811
        %6560 = vmatpush1.bf16.msra.mxu0 %v2810
        %6561 = vmatprep.subr.bf16.mxu0 %v2813
        %6562 = vmatpush1.bf16.msra.mxu0 %v2812
        %6563 = vmatprep.subr.bf16.mxu0 %v2815
        %6564 = vmatpush1.bf16.msra.mxu0 %v2814
        %6565 = vmatprep.subr.bf16.mxu0 %v2817
        %6566 = vmatpush1.bf16.msra.mxu0 %v2816
        %6567 = vmatprep.subr.bf16.mxu0 %v2819
        %6568 = vmatpush1.bf16.msra.mxu0 %v2818
        %6569 = vmatprep.subr.bf16.mxu0 %v2821
        %6570 = vmatpush1.bf16.msra.mxu0 %v2820
        %6571 = vmatprep.subr.bf16.mxu0 %v2823
        %6572 = vmatpush1.bf16.msra.mxu0 %v2822
        %6573 = vmatprep.subr.bf16.mxu0 %v2825
        %6574 = vmatpush1.bf16.msra.mxu0 %v2824
        %6575 = vmatprep.subr.bf16.mxu0 %v2827
        %6576 = vmatpush1.bf16.msra.mxu0 %v2826
        %6577 = vmatprep.subr.bf16.mxu0 %v2829
        %6578 = vmatpush1.bf16.msra.mxu0 %v2828
        %6579 = vmatprep.subr.bf16.mxu0 %v2831
        %6580 = vmatpush1.bf16.msra.mxu0 %v2830
        %6581 = vmatprep.subr.bf16.mxu0 %v2833
        %6582 = vmatpush1.bf16.msra.mxu0 %v2832
        %6583 = vmatprep.subr.bf16.mxu0 %v2835
        %6584 = vmatpush1.bf16.msra.mxu0 %v2834
        %6585 = vmatprep.mubr.bf16.mxu0 %v4543
        %6586 = vmatmul.mubr.bf16.gmra.mrb[0].mxu0 %v4529
        %v6587 = vpop.f32.mrb[0].mxu0
        %v6588 = vadd.f32 %v6547, %v6587
        %v6589 = vpop.f32.mrb[0].mxu0
        %v6590 = vadd.f32 %v6549, %v6589
        %v6591 = vpop.f32.mrb[0].mxu0
        %v6592 = vpop.f32.mrb[0].mxu0
        %6593 = vdwg.mxu0
        %6594 = vmatprep.subr.bf16.mxu0 %v2837
        %6595 = vmatpush1.bf16.msra.mxu0 %v2836
        %6596 = vmatprep.subr.bf16.mxu0 %v2839
        %6597 = vmatpush1.bf16.msra.mxu0 %v2838
        %6598 = vmatprep.subr.bf16.mxu0 %v2841
        %6599 = vmatpush1.bf16.msra.mxu0 %v2840
        %6600 = vmatprep.subr.bf16.mxu0 %v2843
        %6601 = vmatpush1.bf16.msra.mxu0 %v2842
        %6602 = vmatprep.subr.bf16.mxu0 %v2845
        %6603 = vmatpush1.bf16.msra.mxu0 %v2844
        %6604 = vmatprep.subr.bf16.mxu0 %v2847
        %6605 = vmatpush1.bf16.msra.mxu0 %v2846
        %6606 = vmatprep.subr.bf16.mxu0 %v2849
        %6607 = vmatpush1.bf16.msra.mxu0 %v2848
        %6608 = vmatprep.subr.bf16.mxu0 %v2851
        %6609 = vmatpush1.bf16.msra.mxu0 %v2850
        %6610 = vmatprep.subr.bf16.mxu0 %v2853
        %6611 = vmatpush1.bf16.msra.mxu0 %v2852
        %6612 = vmatprep.subr.bf16.mxu0 %v2855
        %6613 = vmatpush1.bf16.msra.mxu0 %v2854
        %6614 = vmatprep.subr.bf16.mxu0 %v2857
        %6615 = vmatpush1.bf16.msra.mxu0 %v2856
        %6616 = vmatprep.subr.bf16.mxu0 %v2859
        %6617 = vmatpush1.bf16.msra.mxu0 %v2858
        %6618 = vmatprep.subr.bf16.mxu0 %v2861
        %6619 = vmatpush1.bf16.msra.mxu0 %v2860
        %6620 = vmatprep.subr.bf16.mxu0 %v2863
        %6621 = vmatpush1.bf16.msra.mxu0 %v2862
        %6622 = vmatprep.subr.bf16.mxu0 %v2865
        %6623 = vmatpush1.bf16.msra.mxu0 %v2864
        %6624 = vmatprep.subr.bf16.mxu0 %v2867
        %6625 = vmatpush1.bf16.msra.mxu0 %v2866
        %6626 = vmatprep.mubr.bf16.mxu0 %v4547
        %6627 = vmatmul.mubr.bf16.gmra.mrb[0].mxu0 %v4545
        %v6628 = vpop.f32.mrb[0].mxu0
        %v6629 = vadd.f32 %v6588, %v6628
        %v6630 = vpop.f32.mrb[0].mxu0
        %v6631 = vadd.f32 %v6590, %v6630
        %v6632 = vpop.f32.mrb[0].mxu0
        %v6633 = vpop.f32.mrb[0].mxu0
        %6634 = vdwg.mxu0
        %6635 = vmatprep.subr.bf16.mxu0 %v2869
        %6636 = vmatpush1.bf16.msra.mxu0 %v2868
        %6637 = vmatprep.subr.bf16.mxu0 %v2871
        %6638 = vmatpush1.bf16.msra.mxu0 %v2870
        %6639 = vmatprep.subr.bf16.mxu0 %v2873
        %6640 = vmatpush1.bf16.msra.mxu0 %v2872
        %6641 = vmatprep.subr.bf16.mxu0 %v2875
        %6642 = vmatpush1.bf16.msra.mxu0 %v2874
        %6643 = vmatprep.subr.bf16.mxu0 %v2877
        %6644 = vmatpush1.bf16.msra.mxu0 %v2876
        %6645 = vmatprep.subr.bf16.mxu0 %v2879
        %6646 = vmatpush1.bf16.msra.mxu0 %v2878
        %6647 = vmatprep.subr.bf16.mxu0 %v2881
        %6648 = vmatpush1.bf16.msra.mxu0 %v2880
        %6649 = vmatprep.subr.bf16.mxu0 %v2883
        %6650 = vmatpush1.bf16.msra.mxu0 %v2882
        %6651 = vmatprep.subr.bf16.mxu0 %v2885
        %6652 = vmatpush1.bf16.msra.mxu0 %v2884
        %6653 = vmatprep.subr.bf16.mxu0 %v2887
        %6654 = vmatpush1.bf16.msra.mxu0 %v2886
        %6655 = vmatprep.subr.bf16.mxu0 %v2889
        %6656 = vmatpush1.bf16.msra.mxu0 %v2888
        %6657 = vmatprep.subr.bf16.mxu0 %v2891
        %6658 = vmatpush1.bf16.msra.mxu0 %v2890
        %6659 = vmatprep.subr.bf16.mxu0 %v2893
        %6660 = vmatpush1.bf16.msra.mxu0 %v2892
        %6661 = vmatprep.subr.bf16.mxu0 %v2895
        %6662 = vmatpush1.bf16.msra.mxu0 %v2894
        %6663 = vmatprep.subr.bf16.mxu0 %v2897
        %6664 = vmatpush1.bf16.msra.mxu0 %v2896
        %6665 = vmatprep.subr.bf16.mxu0 %v2899
        %6666 = vmatpush1.bf16.msra.mxu0 %v2898
        %6667 = vmatprep.mubr.bf16.mxu0 %v4585
        %6668 = vmatmul.mubr.bf16.gmra.mrb[0].mxu0 %v4571
        %v6669 = vpop.f32.mrb[0].mxu0
        %v6670 = vadd.f32 %v6629, %v6669
        %v6671 = vpop.f32.mrb[0].mxu0
        %v6672 = vadd.f32 %v6631, %v6671
        %v6673 = vpop.f32.mrb[0].mxu0
        %v6674 = vpop.f32.mrb[0].mxu0
        %6675 = vdwg.mxu0
        %6676 = vmatprep.subr.bf16.mxu0 %v2901
        %6677 = vmatpush1.bf16.msra.mxu0 %v2900
        %6678 = vmatprep.subr.bf16.mxu0 %v2903
        %6679 = vmatpush1.bf16.msra.mxu0 %v2902
        %6680 = vmatprep.subr.bf16.mxu0 %v2905
        %6681 = vmatpush1.bf16.msra.mxu0 %v2904
        %6682 = vmatprep.subr.bf16.mxu0 %v2907
        %6683 = vmatpush1.bf16.msra.mxu0 %v2906
        %6684 = vmatprep.subr.bf16.mxu0 %v2909
        %6685 = vmatpush1.bf16.msra.mxu0 %v2908
        %6686 = vmatprep.subr.bf16.mxu0 %v2911
        %6687 = vmatpush1.bf16.msra.mxu0 %v2910
        %6688 = vmatprep.subr.bf16.mxu0 %v2913
        %6689 = vmatpush1.bf16.msra.mxu0 %v2912
        %6690 = vmatprep.subr.bf16.mxu0 %v2915
        %6691 = vmatpush1.bf16.msra.mxu0 %v2914
        %6692 = vmatprep.subr.bf16.mxu0 %v2917
        %6693 = vmatpush1.bf16.msra.mxu0 %v2916
        %6694 = vmatprep.subr.bf16.mxu0 %v2919
        %6695 = vmatpush1.bf16.msra.mxu0 %v2918
        %6696 = vmatprep.subr.bf16.mxu0 %v2921
        %6697 = vmatpush1.bf16.msra.mxu0 %v2920
        %6698 = vmatprep.subr.bf16.mxu0 %v2923
        %6699 = vmatpush1.bf16.msra.mxu0 %v2922
        %6700 = vmatprep.subr.bf16.mxu0 %v2925
        %6701 = vmatpush1.bf16.msra.mxu0 %v2924
        %6702 = vmatprep.subr.bf16.mxu0 %v2927
        %6703 = vmatpush1.bf16.msra.mxu0 %v2926
        %6704 = vmatprep.subr.bf16.mxu0 %v2929
        %6705 = vmatpush1.bf16.msra.mxu0 %v2928
        %6706 = vmatprep.subr.bf16.mxu0 %v2931
        %6707 = vmatpush1.bf16.msra.mxu0 %v2930
        %6708 = vmatprep.mubr.bf16.mxu0 %v4595
        %6709 = vmatmul.mubr.bf16.gmra.mrb[0].mxu0 %v4593
        %v6710 = vpop.f32.mrb[0].mxu0
        %v6711 = vadd.f32 %v6670, %v6710
        %v6712 = vpop.f32.mrb[0].mxu0
        %v6713 = vadd.f32 %v6672, %v6712
        %v6714 = vpop.f32.mrb[0].mxu0
        %v6715 = vpop.f32.mrb[0].mxu0
        %6716 = vdwg.mxu0
        %6717 = vmatprep.subr.bf16.mxu0 %v2933
        %6718 = vmatpush1.bf16.msra.mxu0 %v2932
        %6719 = vmatprep.subr.bf16.mxu0 %v2935
        %6720 = vmatpush1.bf16.msra.mxu0 %v2934
        %6721 = vmatprep.subr.bf16.mxu0 %v2937
        %6722 = vmatpush1.bf16.msra.mxu0 %v2936
        %6723 = vmatprep.subr.bf16.mxu0 %v2939
        %6724 = vmatpush1.bf16.msra.mxu0 %v2938
        %6725 = vmatprep.subr.bf16.mxu0 %v2941
        %6726 = vmatpush1.bf16.msra.mxu0 %v2940
        %6727 = vmatprep.subr.bf16.mxu0 %v2943
        %6728 = vmatpush1.bf16.msra.mxu0 %v2942
        %6729 = vmatprep.subr.bf16.mxu0 %v2945
        %6730 = vmatpush1.bf16.msra.mxu0 %v2944
        %6731 = vmatprep.subr.bf16.mxu0 %v2947
        %6732 = vmatpush1.bf16.msra.mxu0 %v2946
        %6733 = vmatprep.subr.bf16.mxu0 %v2949
        %6734 = vmatpush1.bf16.msra.mxu0 %v2948
        %6735 = vmatprep.subr.bf16.mxu0 %v2951
        %6736 = vmatpush1.bf16.msra.mxu0 %v2950
        %6737 = vmatprep.subr.bf16.mxu0 %v2953
        %6738 = vmatpush1.bf16.msra.mxu0 %v2952
        %6739 = vmatprep.subr.bf16.mxu0 %v2955
        %6740 = vmatpush1.bf16.msra.mxu0 %v2954
        %6741 = vmatprep.subr.bf16.mxu0 %v2957
        %6742 = vmatpush1.bf16.msra.mxu0 %v2956
        %6743 = vmatprep.subr.bf16.mxu0 %v2959
        %6744 = vmatpush1.bf16.msra.mxu0 %v2958
        %6745 = vmatprep.subr.bf16.mxu0 %v2961
        %6746 = vmatpush1.bf16.msra.mxu0 %v2960
        %6747 = vmatprep.subr.bf16.mxu0 %v2963
        %6748 = vmatpush1.bf16.msra.mxu0 %v2962
        %6749 = vmatprep.mubr.bf16.mxu0 %v4592
        %6750 = vmatmul.mubr.bf16.gmra.mrb[0].mxu0 %v4578
        %v6751 = vpop.f32.mrb[0].mxu0
        %v6752 = vadd.f32 %v6711, %v6751
        %v6753 = vpop.f32.mrb[0].mxu0
        %v6754 = vadd.f32 %v6713, %v6753
        %v6755 = vpop.f32.mrb[0].mxu0
        %v6756 = vpop.f32.mrb[0].mxu0
        %6757 = vdwg.mxu0
        %6758 = vmatprep.subr.bf16.mxu0 %v2965
        %6759 = vmatpush1.bf16.msra.mxu0 %v2964
        %6760 = vmatprep.subr.bf16.mxu0 %v2967
        %6761 = vmatpush1.bf16.msra.mxu0 %v2966
        %6762 = vmatprep.subr.bf16.mxu0 %v2969
        %6763 = vmatpush1.bf16.msra.mxu0 %v2968
        %6764 = vmatprep.subr.bf16.mxu0 %v2971
        %6765 = vmatpush1.bf16.msra.mxu0 %v2970
        %6766 = vmatprep.subr.bf16.mxu0 %v2973
        %6767 = vmatpush1.bf16.msra.mxu0 %v2972
        %6768 = vmatprep.subr.bf16.mxu0 %v2975
        %6769 = vmatpush1.bf16.msra.mxu0 %v2974
        %6770 = vmatprep.subr.bf16.mxu0 %v2977
        %6771 = vmatpush1.bf16.msra.mxu0 %v2976
        %6772 = vmatprep.subr.bf16.mxu0 %v2979
        %6773 = vmatpush1.bf16.msra.mxu0 %v2978
        %6774 = vmatprep.subr.bf16.mxu0 %v2981
        %6775 = vmatpush1.bf16.msra.mxu0 %v2980
        %6776 = vmatprep.subr.bf16.mxu0 %v2983
        %6777 = vmatpush1.bf16.msra.mxu0 %v2982
        %6778 = vmatprep.subr.bf16.mxu0 %v2985
        %6779 = vmatpush1.bf16.msra.mxu0 %v2984
        %6780 = vmatprep.subr.bf16.mxu0 %v2987
        %6781 = vmatpush1.bf16.msra.mxu0 %v2986
        %6782 = vmatprep.subr.bf16.mxu0 %v2989
        %6783 = vmatpush1.bf16.msra.mxu0 %v2988
        %6784 = vmatprep.subr.bf16.mxu0 %v2991
        %6785 = vmatpush1.bf16.msra.mxu0 %v2990
        %6786 = vmatprep.subr.bf16.mxu0 %v2993
        %6787 = vmatpush1.bf16.msra.mxu0 %v2992
        %6788 = vmatprep.subr.bf16.mxu0 %v2995
        %6789 = vmatpush1.bf16.msra.mxu0 %v2994
        %6790 = vmatprep.mubr.bf16.mxu0 %v4596
        %6791 = vmatmul.mubr.bf16.gmra.mrb[0].mxu0 %v4594
        %v6792 = vpop.f32.mrb[0].mxu0
        %v6793 = vadd.f32 %v6752, %v6792
        %v6794 = vpop.f32.mrb[0].mxu0
        %v6795 = vadd.f32 %v6754, %v6794
        %v6796 = vpop.f32.mrb[0].mxu0
        %v6797 = vpop.f32.mrb[0].mxu0
        %6798 = vdwg.mxu0
        %6799 = vmatprep.subr.bf16.mxu0 %v2997
        %6800 = vmatpush1.bf16.msra.mxu0 %v2996
        %6801 = vmatprep.subr.bf16.mxu0 %v2999
        %6802 = vmatpush1.bf16.msra.mxu0 %v2998
        %6803 = vmatprep.subr.bf16.mxu0 %v3001
        %6804 = vmatpush1.bf16.msra.mxu0 %v3000
        %6805 = vmatprep.subr.bf16.mxu0 %v3003
        %6806 = vmatpush1.bf16.msra.mxu0 %v3002
        %6807 = vmatprep.subr.bf16.mxu0 %v3005
        %6808 = vmatpush1.bf16.msra.mxu0 %v3004
        %6809 = vmatprep.subr.bf16.mxu0 %v3007
        %6810 = vmatpush1.bf16.msra.mxu0 %v3006
        %6811 = vmatprep.subr.bf16.mxu0 %v3009
        %6812 = vmatpush1.bf16.msra.mxu0 %v3008
        %6813 = vmatprep.subr.bf16.mxu0 %v3011
        %6814 = vmatpush1.bf16.msra.mxu0 %v3010
        %6815 = vmatprep.subr.bf16.mxu0 %v3013
        %6816 = vmatpush1.bf16.msra.mxu0 %v3012
        %6817 = vmatprep.subr.bf16.mxu0 %v3015
        %6818 = vmatpush1.bf16.msra.mxu0 %v3014
        %6819 = vmatprep.subr.bf16.mxu0 %v3017
        %6820 = vmatpush1.bf16.msra.mxu0 %v3016
        %6821 = vmatprep.subr.bf16.mxu0 %v3019
        %6822 = vmatpush1.bf16.msra.mxu0 %v3018
        %6823 = vmatprep.subr.bf16.mxu0 %v3021
        %6824 = vmatpush1.bf16.msra.mxu0 %v3020
        %6825 = vmatprep.subr.bf16.mxu0 %v3023
        %6826 = vmatpush1.bf16.msra.mxu0 %v3022
        %6827 = vmatprep.subr.bf16.mxu0 %v3025
        %6828 = vmatpush1.bf16.msra.mxu0 %v3024
        %6829 = vmatprep.subr.bf16.mxu0 %v3027
        %6830 = vmatpush1.bf16.msra.mxu0 %v3026
        %6831 = vmatprep.mubr.bf16.mxu0 %v4634
        %6832 = vmatmul.mubr.bf16.gmra.mrb[0].mxu0 %v4620
        %v6833 = vpop.f32.mrb[0].mxu0
        %v6834 = vadd.f32 %v6793, %v6833
        %v6835 = vpop.f32.mrb[0].mxu0
        %v6836 = vadd.f32 %v6795, %v6835
        %v6837 = vpop.f32.mrb[0].mxu0
        %v6838 = vpop.f32.mrb[0].mxu0
        %6839 = vdwg.mxu0
        %6840 = vmatprep.subr.bf16.mxu0 %v3029
        %6841 = vmatpush1.bf16.msra.mxu0 %v3028
        %6842 = vmatprep.subr.bf16.mxu0 %v3031
        %6843 = vmatpush1.bf16.msra.mxu0 %v3030
        %6844 = vmatprep.subr.bf16.mxu0 %v3033
        %6845 = vmatpush1.bf16.msra.mxu0 %v3032
        %6846 = vmatprep.subr.bf16.mxu0 %v3035
        %6847 = vmatpush1.bf16.msra.mxu0 %v3034
        %6848 = vmatprep.subr.bf16.mxu0 %v3037
        %6849 = vmatpush1.bf16.msra.mxu0 %v3036
        %6850 = vmatprep.subr.bf16.mxu0 %v3039
        %6851 = vmatpush1.bf16.msra.mxu0 %v3038
        %6852 = vmatprep.subr.bf16.mxu0 %v3041
        %6853 = vmatpush1.bf16.msra.mxu0 %v3040
        %6854 = vmatprep.subr.bf16.mxu0 %v3043
        %6855 = vmatpush1.bf16.msra.mxu0 %v3042
        %6856 = vmatprep.subr.bf16.mxu0 %v3045
        %6857 = vmatpush1.bf16.msra.mxu0 %v3044
        %6858 = vmatprep.subr.bf16.mxu0 %v3047
        %6859 = vmatpush1.bf16.msra.mxu0 %v3046
        %6860 = vmatprep.subr.bf16.mxu0 %v3049
        %6861 = vmatpush1.bf16.msra.mxu0 %v3048
        %6862 = vmatprep.subr.bf16.mxu0 %v3051
        %6863 = vmatpush1.bf16.msra.mxu0 %v3050
        %6864 = vmatprep.subr.bf16.mxu0 %v3053
        %6865 = vmatpush1.bf16.msra.mxu0 %v3052
        %6866 = vmatprep.subr.bf16.mxu0 %v3055
        %6867 = vmatpush1.bf16.msra.mxu0 %v3054
        %6868 = vmatprep.subr.bf16.mxu0 %v3057
        %6869 = vmatpush1.bf16.msra.mxu0 %v3056
        %6870 = vmatprep.subr.bf16.mxu0 %v3059
        %6871 = vmatpush1.bf16.msra.mxu0 %v3058
        %6872 = vmatprep.mubr.bf16.mxu0 %v4644
        %6873 = vmatmul.mubr.bf16.gmra.mrb[0].mxu0 %v4642
        %v6874 = vpop.f32.mrb[0].mxu0
        %v6875 = vadd.f32 %v6834, %v6874
        %v6876 = vpop.f32.mrb[0].mxu0
        %v6877 = vadd.f32 %v6836, %v6876
        %v6878 = vpop.f32.mrb[0].mxu0
        %v6879 = vpop.f32.mrb[0].mxu0
        %6880 = vdwg.mxu0
        %6881 = vmatprep.subr.bf16.mxu0 %v3061
        %6882 = vmatpush1.bf16.msra.mxu0 %v3060
        %6883 = vmatprep.subr.bf16.mxu0 %v3063
        %6884 = vmatpush1.bf16.msra.mxu0 %v3062
        %6885 = vmatprep.subr.bf16.mxu0 %v3065
        %6886 = vmatpush1.bf16.msra.mxu0 %v3064
        %6887 = vmatprep.subr.bf16.mxu0 %v3067
        %6888 = vmatpush1.bf16.msra.mxu0 %v3066
        %6889 = vmatprep.subr.bf16.mxu0 %v3069
        %6890 = vmatpush1.bf16.msra.mxu0 %v3068
        %6891 = vmatprep.subr.bf16.mxu0 %v3071
        %6892 = vmatpush1.bf16.msra.mxu0 %v3070
        %6893 = vmatprep.subr.bf16.mxu0 %v3073
        %6894 = vmatpush1.bf16.msra.mxu0 %v3072
        %6895 = vmatprep.subr.bf16.mxu0 %v3075
        %6896 = vmatpush1.bf16.msra.mxu0 %v3074
        %6897 = vmatprep.subr.bf16.mxu0 %v3077
        %6898 = vmatpush1.bf16.msra.mxu0 %v3076
        %6899 = vmatprep.subr.bf16.mxu0 %v3079
        %6900 = vmatpush1.bf16.msra.mxu0 %v3078
        %6901 = vmatprep.subr.bf16.mxu0 %v3081
        %6902 = vmatpush1.bf16.msra.mxu0 %v3080
        %6903 = vmatprep.subr.bf16.mxu0 %v3083
        %6904 = vmatpush1.bf16.msra.mxu0 %v3082
        %6905 = vmatprep.subr.bf16.mxu0 %v3085
        %6906 = vmatpush1.bf16.msra.mxu0 %v3084
        %6907 = vmatprep.subr.bf16.mxu0 %v3087
        %6908 = vmatpush1.bf16.msra.mxu0 %v3086
        %6909 = vmatprep.subr.bf16.mxu0 %v3089
        %6910 = vmatpush1.bf16.msra.mxu0 %v3088
        %6911 = vmatprep.subr.bf16.mxu0 %v3091
        %6912 = vmatpush1.bf16.msra.mxu0 %v3090
        %6913 = vmatprep.mubr.bf16.mxu0 %v4641
        %6914 = vmatmul.mubr.bf16.gmra.mrb[0].mxu0 %v4627
        %v6915 = vpop.f32.mrb[0].mxu0
        %v6916 = vadd.f32 %v6875, %v6915
        %v6917 = vpop.f32.mrb[0].mxu0
        %v6918 = vadd.f32 %v6877, %v6917
        %v6919 = vpop.f32.mrb[0].mxu0
        %v6920 = vpop.f32.mrb[0].mxu0
        %6921 = vdwg.mxu0
        %6922 = vmatprep.subr.bf16.mxu0 %v3093
        %6923 = vmatpush1.bf16.msra.mxu0 %v3092
        %6924 = vmatprep.subr.bf16.mxu0 %v3095
        %6925 = vmatpush1.bf16.msra.mxu0 %v3094
        %6926 = vmatprep.subr.bf16.mxu0 %v3097
        %6927 = vmatpush1.bf16.msra.mxu0 %v3096
        %6928 = vmatprep.subr.bf16.mxu0 %v3099
        %6929 = vmatpush1.bf16.msra.mxu0 %v3098
        %6930 = vmatprep.subr.bf16.mxu0 %v3101
        %6931 = vmatpush1.bf16.msra.mxu0 %v3100
        %6932 = vmatprep.subr.bf16.mxu0 %v3103
        %6933 = vmatpush1.bf16.msra.mxu0 %v3102
        %6934 = vmatprep.subr.bf16.mxu0 %v3105
        %6935 = vmatpush1.bf16.msra.mxu0 %v3104
        %6936 = vmatprep.subr.bf16.mxu0 %v3107
        %6937 = vmatpush1.bf16.msra.mxu0 %v3106
        %6938 = vmatprep.subr.bf16.mxu0 %v3109
        %6939 = vmatpush1.bf16.msra.mxu0 %v3108
        %6940 = vmatprep.subr.bf16.mxu0 %v3111
        %6941 = vmatpush1.bf16.msra.mxu0 %v3110
        %6942 = vmatprep.subr.bf16.mxu0 %v3113
        %6943 = vmatpush1.bf16.msra.mxu0 %v3112
        %6944 = vmatprep.subr.bf16.mxu0 %v3115
        %6945 = vmatpush1.bf16.msra.mxu0 %v3114
        %6946 = vmatprep.subr.bf16.mxu0 %v3117
        %6947 = vmatpush1.bf16.msra.mxu0 %v3116
        %6948 = vmatprep.subr.bf16.mxu0 %v3119
        %6949 = vmatpush1.bf16.msra.mxu0 %v3118
        %6950 = vmatprep.subr.bf16.mxu0 %v3121
        %6951 = vmatpush1.bf16.msra.mxu0 %v3120
        %6952 = vmatprep.subr.bf16.mxu0 %v3123
        %6953 = vmatpush1.bf16.msra.mxu0 %v3122
        %6954 = vmatprep.mubr.bf16.mxu0 %v4645
        %6955 = vmatmul.mubr.bf16.gmra.mrb[0].mxu0 %v4643
        %v6956 = vpop.f32.mrb[0].mxu0
        %v6957 = vadd.f32 %v6916, %v6956
        %v6958 = vpop.f32.mrb[0].mxu0
        %v6959 = vadd.f32 %v6918, %v6958
        %v6960 = vpop.f32.mrb[0].mxu0
        %v6961 = vpop.f32.mrb[0].mxu0
        %6962 = vdwg.mxu0
        %6963 = vmatprep.subr.bf16.mxu0 %v3125
        %6964 = vmatpush1.bf16.msra.mxu0 %v3124
        %6965 = vmatprep.subr.bf16.mxu0 %v3127
        %6966 = vmatpush1.bf16.msra.mxu0 %v3126
        %6967 = vmatprep.subr.bf16.mxu0 %v3129
        %6968 = vmatpush1.bf16.msra.mxu0 %v3128
        %6969 = vmatprep.subr.bf16.mxu0 %v3131
        %6970 = vmatpush1.bf16.msra.mxu0 %v3130
        %6971 = vmatprep.subr.bf16.mxu0 %v3133
        %6972 = vmatpush1.bf16.msra.mxu0 %v3132
        %6973 = vmatprep.subr.bf16.mxu0 %v3135
        %6974 = vmatpush1.bf16.msra.mxu0 %v3134
        %6975 = vmatprep.subr.bf16.mxu0 %v3137
        %6976 = vmatpush1.bf16.msra.mxu0 %v3136
        %6977 = vmatprep.subr.bf16.mxu0 %v3139
        %6978 = vmatpush1.bf16.msra.mxu0 %v3138
        %6979 = vmatprep.subr.bf16.mxu0 %v3141
        %6980 = vmatpush1.bf16.msra.mxu0 %v3140
        %6981 = vmatprep.subr.bf16.mxu0 %v3143
        %6982 = vmatpush1.bf16.msra.mxu0 %v3142
        %6983 = vmatprep.subr.bf16.mxu0 %v3145
        %6984 = vmatpush1.bf16.msra.mxu0 %v3144
        %6985 = vmatprep.subr.bf16.mxu0 %v3147
        %6986 = vmatpush1.bf16.msra.mxu0 %v3146
        %6987 = vmatprep.subr.bf16.mxu0 %v3149
        %6988 = vmatpush1.bf16.msra.mxu0 %v3148
        %6989 = vmatprep.subr.bf16.mxu0 %v3151
        %6990 = vmatpush1.bf16.msra.mxu0 %v3150
        %6991 = vmatprep.subr.bf16.mxu0 %v3153
        %6992 = vmatpush1.bf16.msra.mxu0 %v3152
        %6993 = vmatprep.subr.bf16.mxu0 %v3155
        %6994 = vmatpush1.bf16.msra.mxu0 %v3154
        %6995 = vmatprep.mubr.bf16.mxu0 %v4683
        %6996 = vmatmul.mubr.bf16.gmra.mrb[0].mxu0 %v4669
        %v6997 = vpop.f32.mrb[0].mxu0
        %v6998 = vadd.f32 %v6957, %v6997
        %v6999 = vpop.f32.mrb[0].mxu0
        %v7000 = vadd.f32 %v6959, %v6999
        %v7001 = vpop.f32.mrb[0].mxu0
        %v7002 = vpop.f32.mrb[0].mxu0
        %7003 = vdwg.mxu0
        %7004 = vmatprep.subr.bf16.mxu0 %v3157
        %7005 = vmatpush1.bf16.msra.mxu0 %v3156
        %7006 = vmatprep.subr.bf16.mxu0 %v3159
        %7007 = vmatpush1.bf16.msra.mxu0 %v3158
        %7008 = vmatprep.subr.bf16.mxu0 %v3161
        %7009 = vmatpush1.bf16.msra.mxu0 %v3160
        %7010 = vmatprep.subr.bf16.mxu0 %v3163
        %7011 = vmatpush1.bf16.msra.mxu0 %v3162
        %7012 = vmatprep.subr.bf16.mxu0 %v3165
        %7013 = vmatpush1.bf16.msra.mxu0 %v3164
        %7014 = vmatprep.subr.bf16.mxu0 %v3167
        %7015 = vmatpush1.bf16.msra.mxu0 %v3166
        %7016 = vmatprep.subr.bf16.mxu0 %v3169
        %7017 = vmatpush1.bf16.msra.mxu0 %v3168
        %7018 = vmatprep.subr.bf16.mxu0 %v3171
        %7019 = vmatpush1.bf16.msra.mxu0 %v3170
        %7020 = vmatprep.subr.bf16.mxu0 %v3173
        %7021 = vmatpush1.bf16.msra.mxu0 %v3172
        %7022 = vmatprep.subr.bf16.mxu0 %v3175
        %7023 = vmatpush1.bf16.msra.mxu0 %v3174
        %7024 = vmatprep.subr.bf16.mxu0 %v3177
        %7025 = vmatpush1.bf16.msra.mxu0 %v3176
        %7026 = vmatprep.subr.bf16.mxu0 %v3179
        %7027 = vmatpush1.bf16.msra.mxu0 %v3178
        %7028 = vmatprep.subr.bf16.mxu0 %v3181
        %7029 = vmatpush1.bf16.msra.mxu0 %v3180
        %7030 = vmatprep.subr.bf16.mxu0 %v3183
        %7031 = vmatpush1.bf16.msra.mxu0 %v3182
        %7032 = vmatprep.subr.bf16.mxu0 %v3185
        %7033 = vmatpush1.bf16.msra.mxu0 %v3184
        %7034 = vmatprep.subr.bf16.mxu0 %v3187
        %7035 = vmatpush1.bf16.msra.mxu0 %v3186
        %7036 = vmatprep.mubr.bf16.mxu0 %v4693
        %7037 = vmatmul.mubr.bf16.gmra.mrb[0].mxu0 %v4691
        %v7038 = vpop.f32.mrb[0].mxu0
        %v7039 = vadd.f32 %v6998, %v7038
        %v7040 = vpop.f32.mrb[0].mxu0
        %v7041 = vadd.f32 %v7000, %v7040
        %v7042 = vpop.f32.mrb[0].mxu0
        %v7043 = vpop.f32.mrb[0].mxu0
        %7044 = vdwg.mxu0
        %7045 = vmatprep.subr.bf16.mxu0 %v3189
        %7046 = vmatpush1.bf16.msra.mxu0 %v3188
        %7047 = vmatprep.subr.bf16.mxu0 %v3191
        %7048 = vmatpush1.bf16.msra.mxu0 %v3190
        %7049 = vmatprep.subr.bf16.mxu0 %v3193
        %7050 = vmatpush1.bf16.msra.mxu0 %v3192
        %7051 = vmatprep.subr.bf16.mxu0 %v3195
        %7052 = vmatpush1.bf16.msra.mxu0 %v3194
        %7053 = vmatprep.subr.bf16.mxu0 %v3197
        %7054 = vmatpush1.bf16.msra.mxu0 %v3196
        %7055 = vmatprep.subr.bf16.mxu0 %v3199
        %7056 = vmatpush1.bf16.msra.mxu0 %v3198
        %7057 = vmatprep.subr.bf16.mxu0 %v3201
        %7058 = vmatpush1.bf16.msra.mxu0 %v3200
        %7059 = vmatprep.subr.bf16.mxu0 %v3203
        %7060 = vmatpush1.bf16.msra.mxu0 %v3202
        %7061 = vmatprep.subr.bf16.mxu0 %v3205
        %7062 = vmatpush1.bf16.msra.mxu0 %v3204
        %7063 = vmatprep.subr.bf16.mxu0 %v3207
        %7064 = vmatpush1.bf16.msra.mxu0 %v3206
        %7065 = vmatprep.subr.bf16.mxu0 %v3209
        %7066 = vmatpush1.bf16.msra.mxu0 %v3208
        %7067 = vmatprep.subr.bf16.mxu0 %v3211
        %7068 = vmatpush1.bf16.msra.mxu0 %v3210
        %7069 = vmatprep.subr.bf16.mxu0 %v3213
        %7070 = vmatpush1.bf16.msra.mxu0 %v3212
        %7071 = vmatprep.subr.bf16.mxu0 %v3215
        %7072 = vmatpush1.bf16.msra.mxu0 %v3214
        %7073 = vmatprep.subr.bf16.mxu0 %v3217
        %7074 = vmatpush1.bf16.msra.mxu0 %v3216
        %7075 = vmatprep.subr.bf16.mxu0 %v3219
        %7076 = vmatpush1.bf16.msra.mxu0 %v3218
        %7077 = vmatprep.mubr.bf16.mxu0 %v4690
        %7078 = vmatmul.mubr.bf16.gmra.mrb[0].mxu0 %v4676
        %v7079 = vpop.f32.mrb[0].mxu0
        %v7080 = vadd.f32 %v7039, %v7079
        %v7081 = vpop.f32.mrb[0].mxu0
        %v7082 = vadd.f32 %v7041, %v7081
        %v7083 = vpop.f32.mrb[0].mxu0
        %v7084 = vpop.f32.mrb[0].mxu0
        %7085 = vdwg.mxu0
        %7086 = vmatprep.subr.bf16.mxu0 %v3221
        %7087 = vmatpush1.bf16.msra.mxu0 %v3220
        %7088 = vmatprep.subr.bf16.mxu0 %v3223
        %7089 = vmatpush1.bf16.msra.mxu0 %v3222
        %7090 = vmatprep.subr.bf16.mxu0 %v3225
        %7091 = vmatpush1.bf16.msra.mxu0 %v3224
        %7092 = vmatprep.subr.bf16.mxu0 %v3227
        %7093 = vmatpush1.bf16.msra.mxu0 %v3226
        %7094 = vmatprep.subr.bf16.mxu0 %v3229
        %7095 = vmatpush1.bf16.msra.mxu0 %v3228
        %7096 = vmatprep.subr.bf16.mxu0 %v3231
        %7097 = vmatpush1.bf16.msra.mxu0 %v3230
        %7098 = vmatprep.subr.bf16.mxu0 %v3233
        %7099 = vmatpush1.bf16.msra.mxu0 %v3232
        %7100 = vmatprep.subr.bf16.mxu0 %v3235
        %7101 = vmatpush1.bf16.msra.mxu0 %v3234
        %7102 = vmatprep.subr.bf16.mxu0 %v3237
        %7103 = vmatpush1.bf16.msra.mxu0 %v3236
        %7104 = vmatprep.subr.bf16.mxu0 %v3239
        %7105 = vmatpush1.bf16.msra.mxu0 %v3238
        %7106 = vmatprep.subr.bf16.mxu0 %v3241
        %7107 = vmatpush1.bf16.msra.mxu0 %v3240
        %7108 = vmatprep.subr.bf16.mxu0 %v3243
        %7109 = vmatpush1.bf16.msra.mxu0 %v3242
        %7110 = vmatprep.subr.bf16.mxu0 %v3245
        %7111 = vmatpush1.bf16.msra.mxu0 %v3244
        %7112 = vmatprep.subr.bf16.mxu0 %v3247
        %7113 = vmatpush1.bf16.msra.mxu0 %v3246
        %7114 = vmatprep.subr.bf16.mxu0 %v3249
        %7115 = vmatpush1.bf16.msra.mxu0 %v3248
        %7116 = vmatprep.subr.bf16.mxu0 %v3251
        %7117 = vmatpush1.bf16.msra.mxu0 %v3250
        %7118 = vmatprep.mubr.bf16.mxu0 %v4694
        %7119 = vmatmul.mubr.bf16.gmra.mrb[0].mxu0 %v4692
        %v7120 = vpop.f32.mrb[0].mxu0
        %v7121 = vadd.f32 %v7080, %v7120
        %v7122 = vpop.f32.mrb[0].mxu0
        %v7123 = vadd.f32 %v7082, %v7122
        %v7124 = vpop.f32.mrb[0].mxu0
        %v7125 = vpop.f32.mrb[0].mxu0
        %7126 = vdwg.mxu0
        %7127 = vmatprep.subr.bf16.mxu0 %v3253
        %7128 = vmatpush1.bf16.msra.mxu0 %v3252
        %7129 = vmatprep.subr.bf16.mxu0 %v3255
        %7130 = vmatpush1.bf16.msra.mxu0 %v3254
        %7131 = vmatprep.subr.bf16.mxu0 %v3257
        %7132 = vmatpush1.bf16.msra.mxu0 %v3256
        %7133 = vmatprep.subr.bf16.mxu0 %v3259
        %7134 = vmatpush1.bf16.msra.mxu0 %v3258
        %7135 = vmatprep.subr.bf16.mxu0 %v3261
        %7136 = vmatpush1.bf16.msra.mxu0 %v3260
        %7137 = vmatprep.subr.bf16.mxu0 %v3263
        %7138 = vmatpush1.bf16.msra.mxu0 %v3262
        %7139 = vmatprep.subr.bf16.mxu0 %v3265
        %7140 = vmatpush1.bf16.msra.mxu0 %v3264
        %7141 = vmatprep.subr.bf16.mxu0 %v3267
        %7142 = vmatpush1.bf16.msra.mxu0 %v3266
        %7143 = vmatprep.subr.bf16.mxu0 %v3269
        %7144 = vmatpush1.bf16.msra.mxu0 %v3268
        %7145 = vmatprep.subr.bf16.mxu0 %v3271
        %7146 = vmatpush1.bf16.msra.mxu0 %v3270
        %7147 = vmatprep.subr.bf16.mxu0 %v3273
        %7148 = vmatpush1.bf16.msra.mxu0 %v3272
        %7149 = vmatprep.subr.bf16.mxu0 %v3275
        %7150 = vmatpush1.bf16.msra.mxu0 %v3274
        %7151 = vmatprep.subr.bf16.mxu0 %v3277
        %7152 = vmatpush1.bf16.msra.mxu0 %v3276
        %7153 = vmatprep.subr.bf16.mxu0 %v3279
        %7154 = vmatpush1.bf16.msra.mxu0 %v3278
        %7155 = vmatprep.subr.bf16.mxu0 %v3281
        %7156 = vmatpush1.bf16.msra.mxu0 %v3280
        %7157 = vmatprep.subr.bf16.mxu0 %v3283
        %7158 = vmatpush1.bf16.msra.mxu0 %v3282
        %7159 = vmatprep.mubr.bf16.mxu0 %v4732
        %7160 = vmatmul.mubr.bf16.gmra.mrb[0].mxu0 %v4718
        %v7161 = vpop.f32.mrb[0].mxu0
        %v7162 = vadd.f32 %v7121, %v7161
        %v7163 = vpop.f32.mrb[0].mxu0
        %v7164 = vadd.f32 %v7123, %v7163
        %v7165 = vpop.f32.mrb[0].mxu0
        %v7166 = vpop.f32.mrb[0].mxu0
        %7167 = vdwg.mxu0
        %7168 = vmatprep.subr.bf16.mxu0 %v3285
        %7169 = vmatpush1.bf16.msra.mxu0 %v3284
        %7170 = vmatprep.subr.bf16.mxu0 %v3287
        %7171 = vmatpush1.bf16.msra.mxu0 %v3286
        %7172 = vmatprep.subr.bf16.mxu0 %v3289
        %7173 = vmatpush1.bf16.msra.mxu0 %v3288
        %7174 = vmatprep.subr.bf16.mxu0 %v3291
        %7175 = vmatpush1.bf16.msra.mxu0 %v3290
        %7176 = vmatprep.subr.bf16.mxu0 %v3293
        %7177 = vmatpush1.bf16.msra.mxu0 %v3292
        %7178 = vmatprep.subr.bf16.mxu0 %v3295
        %7179 = vmatpush1.bf16.msra.mxu0 %v3294
        %7180 = vmatprep.subr.bf16.mxu0 %v3297
        %7181 = vmatpush1.bf16.msra.mxu0 %v3296
        %7182 = vmatprep.subr.bf16.mxu0 %v3299
        %7183 = vmatpush1.bf16.msra.mxu0 %v3298
        %7184 = vmatprep.subr.bf16.mxu0 %v3301
        %7185 = vmatpush1.bf16.msra.mxu0 %v3300
        %7186 = vmatprep.subr.bf16.mxu0 %v3303
        %7187 = vmatpush1.bf16.msra.mxu0 %v3302
        %7188 = vmatprep.subr.bf16.mxu0 %v3305
        %7189 = vmatpush1.bf16.msra.mxu0 %v3304
        %7190 = vmatprep.subr.bf16.mxu0 %v3307
        %7191 = vmatpush1.bf16.msra.mxu0 %v3306
        %7192 = vmatprep.subr.bf16.mxu0 %v3309
        %7193 = vmatpush1.bf16.msra.mxu0 %v3308
        %7194 = vmatprep.subr.bf16.mxu0 %v3311
        %7195 = vmatpush1.bf16.msra.mxu0 %v3310
        %7196 = vmatprep.subr.bf16.mxu0 %v3313
        %7197 = vmatpush1.bf16.msra.mxu0 %v3312
        %7198 = vmatprep.subr.bf16.mxu0 %v3315
        %7199 = vmatpush1.bf16.msra.mxu0 %v3314
        %7200 = vmatprep.mubr.bf16.mxu0 %v4742
        %7201 = vmatmul.mubr.bf16.gmra.mrb[0].mxu0 %v4740
        %v7202 = vpop.f32.mrb[0].mxu0
        %v7203 = vadd.f32 %v7162, %v7202
        %v7204 = vpop.f32.mrb[0].mxu0
        %v7205 = vadd.f32 %v7164, %v7204
        %v7206 = vpop.f32.mrb[0].mxu0
        %v7207 = vpop.f32.mrb[0].mxu0
        %7208 = vdwg.mxu0
        %7209 = vmatprep.subr.bf16.mxu0 %v3317
        %7210 = vmatpush1.bf16.msra.mxu0 %v3316
        %7211 = vmatprep.subr.bf16.mxu0 %v3319
        %7212 = vmatpush1.bf16.msra.mxu0 %v3318
        %7213 = vmatprep.subr.bf16.mxu0 %v3321
        %7214 = vmatpush1.bf16.msra.mxu0 %v3320
        %7215 = vmatprep.subr.bf16.mxu0 %v3323
        %7216 = vmatpush1.bf16.msra.mxu0 %v3322
        %7217 = vmatprep.subr.bf16.mxu0 %v3325
        %7218 = vmatpush1.bf16.msra.mxu0 %v3324
        %7219 = vmatprep.subr.bf16.mxu0 %v3327
        %7220 = vmatpush1.bf16.msra.mxu0 %v3326
        %7221 = vmatprep.subr.bf16.mxu0 %v3329
        %7222 = vmatpush1.bf16.msra.mxu0 %v3328
        %7223 = vmatprep.subr.bf16.mxu0 %v3331
        %7224 = vmatpush1.bf16.msra.mxu0 %v3330
        %7225 = vmatprep.subr.bf16.mxu0 %v3333
        %7226 = vmatpush1.bf16.msra.mxu0 %v3332
        %7227 = vmatprep.subr.bf16.mxu0 %v3335
        %7228 = vmatpush1.bf16.msra.mxu0 %v3334
        %7229 = vmatprep.subr.bf16.mxu0 %v3337
        %7230 = vmatpush1.bf16.msra.mxu0 %v3336
        %7231 = vmatprep.subr.bf16.mxu0 %v3339
        %7232 = vmatpush1.bf16.msra.mxu0 %v3338
        %7233 = vmatprep.subr.bf16.mxu0 %v3341
        %7234 = vmatpush1.bf16.msra.mxu0 %v3340
        %7235 = vmatprep.subr.bf16.mxu0 %v3343
        %7236 = vmatpush1.bf16.msra.mxu0 %v3342
        %7237 = vmatprep.subr.bf16.mxu0 %v3345
        %7238 = vmatpush1.bf16.msra.mxu0 %v3344
        %7239 = vmatprep.subr.bf16.mxu0 %v3347
        %7240 = vmatpush1.bf16.msra.mxu0 %v3346
        %7241 = vmatprep.mubr.bf16.mxu0 %v4739
        %7242 = vmatmul.mubr.bf16.gmra.mrb[0].mxu0 %v4725
        %v7243 = vpop.f32.mrb[0].mxu0
        %v7244 = vadd.f32 %v7203, %v7243
        %v7245 = vpop.f32.mrb[0].mxu0
        %v7246 = vadd.f32 %v7205, %v7245
        %v7247 = vpop.f32.mrb[0].mxu0
        %v7248 = vpop.f32.mrb[0].mxu0
        %7249 = vdwg.mxu0
        %7250 = vmatprep.subr.bf16.mxu0 %v3349
        %7251 = vmatpush1.bf16.msra.mxu0 %v3348
        %7252 = vmatprep.subr.bf16.mxu0 %v3351
        %7253 = vmatpush1.bf16.msra.mxu0 %v3350
        %7254 = vmatprep.subr.bf16.mxu0 %v3353
        %7255 = vmatpush1.bf16.msra.mxu0 %v3352
        %7256 = vmatprep.subr.bf16.mxu0 %v3355
        %7257 = vmatpush1.bf16.msra.mxu0 %v3354
        %7258 = vmatprep.subr.bf16.mxu0 %v3357
        %7259 = vmatpush1.bf16.msra.mxu0 %v3356
        %7260 = vmatprep.subr.bf16.mxu0 %v3359
        %7261 = vmatpush1.bf16.msra.mxu0 %v3358
        %7262 = vmatprep.subr.bf16.mxu0 %v3361
        %7263 = vmatpush1.bf16.msra.mxu0 %v3360
        %7264 = vmatprep.subr.bf16.mxu0 %v3363
        %7265 = vmatpush1.bf16.msra.mxu0 %v3362
        %7266 = vmatprep.subr.bf16.mxu0 %v3365
        %7267 = vmatpush1.bf16.msra.mxu0 %v3364
        %7268 = vmatprep.subr.bf16.mxu0 %v3367
        %7269 = vmatpush1.bf16.msra.mxu0 %v3366
        %7270 = vmatprep.subr.bf16.mxu0 %v3369
        %7271 = vmatpush1.bf16.msra.mxu0 %v3368
        %7272 = vmatprep.subr.bf16.mxu0 %v3371
        %7273 = vmatpush1.bf16.msra.mxu0 %v3370
        %7274 = vmatprep.subr.bf16.mxu0 %v3373
        %7275 = vmatpush1.bf16.msra.mxu0 %v3372
        %7276 = vmatprep.subr.bf16.mxu0 %v3375
        %7277 = vmatpush1.bf16.msra.mxu0 %v3374
        %7278 = vmatprep.subr.bf16.mxu0 %v3377
        %7279 = vmatpush1.bf16.msra.mxu0 %v3376
        %7280 = vmatprep.subr.bf16.mxu0 %v3379
        %7281 = vmatpush1.bf16.msra.mxu0 %v3378
        %7282 = vmatprep.mubr.bf16.mxu0 %v4743
        %7283 = vmatmul.mubr.bf16.gmra.mrb[0].mxu0 %v4741
        %v7284 = vpop.f32.mrb[0].mxu0
        %v7285 = vadd.f32 %v7244, %v7284
        %v7286 = vpop.f32.mrb[0].mxu0
        %v7287 = vadd.f32 %v7246, %v7286
        %v7288 = vpop.f32.mrb[0].mxu0
        %v7289 = vpop.f32.mrb[0].mxu0
        %7290 = vdwg.mxu0
        %7291 = vmatprep.subr.bf16.mxu0 %v3381
        %7292 = vmatpush1.bf16.msra.mxu0 %v3380
        %7293 = vmatprep.subr.bf16.mxu0 %v3383
        %7294 = vmatpush1.bf16.msra.mxu0 %v3382
        %7295 = vmatprep.subr.bf16.mxu0 %v3385
        %7296 = vmatpush1.bf16.msra.mxu0 %v3384
        %7297 = vmatprep.subr.bf16.mxu0 %v3387
        %7298 = vmatpush1.bf16.msra.mxu0 %v3386
        %7299 = vmatprep.subr.bf16.mxu0 %v3389
        %7300 = vmatpush1.bf16.msra.mxu0 %v3388
        %7301 = vmatprep.subr.bf16.mxu0 %v3391
        %7302 = vmatpush1.bf16.msra.mxu0 %v3390
        %7303 = vmatprep.subr.bf16.mxu0 %v3393
        %7304 = vmatpush1.bf16.msra.mxu0 %v3392
        %7305 = vmatprep.subr.bf16.mxu0 %v3395
        %7306 = vmatpush1.bf16.msra.mxu0 %v3394
        %7307 = vmatprep.subr.bf16.mxu0 %v3397
        %7308 = vmatpush1.bf16.msra.mxu0 %v3396
        %7309 = vmatprep.subr.bf16.mxu0 %v3399
        %7310 = vmatpush1.bf16.msra.mxu0 %v3398
        %7311 = vmatprep.subr.bf16.mxu0 %v3401
        %7312 = vmatpush1.bf16.msra.mxu0 %v3400
        %7313 = vmatprep.subr.bf16.mxu0 %v3403
        %7314 = vmatpush1.bf16.msra.mxu0 %v3402
        %7315 = vmatprep.subr.bf16.mxu0 %v3405
        %7316 = vmatpush1.bf16.msra.mxu0 %v3404
        %7317 = vmatprep.subr.bf16.mxu0 %v3407
        %7318 = vmatpush1.bf16.msra.mxu0 %v3406
        %7319 = vmatprep.subr.bf16.mxu0 %v3409
        %7320 = vmatpush1.bf16.msra.mxu0 %v3408
        %7321 = vmatprep.subr.bf16.mxu0 %v3411
        %7322 = vmatpush1.bf16.msra.mxu0 %v3410
        %7323 = vmatprep.mubr.bf16.mxu0 %v4781
        %7324 = vmatmul.mubr.bf16.gmra.mrb[0].mxu0 %v4767
        %v7325 = vpop.f32.mrb[0].mxu0
        %v7326 = vadd.f32 %v7285, %v7325
        %v7327 = vpop.f32.mrb[0].mxu0
        %v7328 = vadd.f32 %v7287, %v7327
        %v7329 = vpop.f32.mrb[0].mxu0
        %v7330 = vpop.f32.mrb[0].mxu0
        %7331 = vdwg.mxu0
        %7332 = vmatprep.subr.bf16.mxu0 %v3413
        %7333 = vmatpush1.bf16.msra.mxu0 %v3412
        %7334 = vmatprep.subr.bf16.mxu0 %v3415
        %7335 = vmatpush1.bf16.msra.mxu0 %v3414
        %7336 = vmatprep.subr.bf16.mxu0 %v3417
        %7337 = vmatpush1.bf16.msra.mxu0 %v3416
        %7338 = vmatprep.subr.bf16.mxu0 %v3419
        %7339 = vmatpush1.bf16.msra.mxu0 %v3418
        %7340 = vmatprep.subr.bf16.mxu0 %v3421
        %7341 = vmatpush1.bf16.msra.mxu0 %v3420
        %7342 = vmatprep.subr.bf16.mxu0 %v3423
        %7343 = vmatpush1.bf16.msra.mxu0 %v3422
        %7344 = vmatprep.subr.bf16.mxu0 %v3425
        %7345 = vmatpush1.bf16.msra.mxu0 %v3424
        %7346 = vmatprep.subr.bf16.mxu0 %v3427
        %7347 = vmatpush1.bf16.msra.mxu0 %v3426
        %7348 = vmatprep.subr.bf16.mxu0 %v3429
        %7349 = vmatpush1.bf16.msra.mxu0 %v3428
        %7350 = vmatprep.subr.bf16.mxu0 %v3431
        %7351 = vmatpush1.bf16.msra.mxu0 %v3430
        %7352 = vmatprep.subr.bf16.mxu0 %v3433
        %7353 = vmatpush1.bf16.msra.mxu0 %v3432
        %7354 = vmatprep.subr.bf16.mxu0 %v3435
        %7355 = vmatpush1.bf16.msra.mxu0 %v3434
        %7356 = vmatprep.subr.bf16.mxu0 %v3437
        %7357 = vmatpush1.bf16.msra.mxu0 %v3436
        %7358 = vmatprep.subr.bf16.mxu0 %v3439
        %7359 = vmatpush1.bf16.msra.mxu0 %v3438
        %7360 = vmatprep.subr.bf16.mxu0 %v3441
        %7361 = vmatpush1.bf16.msra.mxu0 %v3440
        %7362 = vmatprep.subr.bf16.mxu0 %v3443
        %7363 = vmatpush1.bf16.msra.mxu0 %v3442
        %7364 = vmatprep.mubr.bf16.mxu0 %v4791
        %7365 = vmatmul.mubr.bf16.gmra.mrb[0].mxu0 %v4789
        %v7366 = vpop.f32.mrb[0].mxu0
        %v7367 = vadd.f32 %v7326, %v7366
        %v7368 = vpop.f32.mrb[0].mxu0
        %v7369 = vadd.f32 %v7328, %v7368
        %v7370 = vpop.f32.mrb[0].mxu0
        %v7371 = vpop.f32.mrb[0].mxu0
        %7372 = vdwg.mxu0
        %7373 = vmatprep.subr.bf16.mxu0 %v3445
        %7374 = vmatpush1.bf16.msra.mxu0 %v3444
        %7375 = vmatprep.subr.bf16.mxu0 %v3447
        %7376 = vmatpush1.bf16.msra.mxu0 %v3446
        %7377 = vmatprep.subr.bf16.mxu0 %v3449
        %7378 = vmatpush1.bf16.msra.mxu0 %v3448
        %7379 = vmatprep.subr.bf16.mxu0 %v3451
        %7380 = vmatpush1.bf16.msra.mxu0 %v3450
        %7381 = vmatprep.subr.bf16.mxu0 %v3453
        %7382 = vmatpush1.bf16.msra.mxu0 %v3452
        %7383 = vmatprep.subr.bf16.mxu0 %v3455
        %7384 = vmatpush1.bf16.msra.mxu0 %v3454
        %7385 = vmatprep.subr.bf16.mxu0 %v3457
        %7386 = vmatpush1.bf16.msra.mxu0 %v3456
        %7387 = vmatprep.subr.bf16.mxu0 %v3459
        %7388 = vmatpush1.bf16.msra.mxu0 %v3458
        %7389 = vmatprep.subr.bf16.mxu0 %v3461
        %7390 = vmatpush1.bf16.msra.mxu0 %v3460
        %7391 = vmatprep.subr.bf16.mxu0 %v3463
        %7392 = vmatpush1.bf16.msra.mxu0 %v3462
        %7393 = vmatprep.subr.bf16.mxu0 %v3465
        %7394 = vmatpush1.bf16.msra.mxu0 %v3464
        %7395 = vmatprep.subr.bf16.mxu0 %v3467
        %7396 = vmatpush1.bf16.msra.mxu0 %v3466
        %7397 = vmatprep.subr.bf16.mxu0 %v3469
        %7398 = vmatpush1.bf16.msra.mxu0 %v3468
        %7399 = vmatprep.subr.bf16.mxu0 %v3471
        %7400 = vmatpush1.bf16.msra.mxu0 %v3470
        %7401 = vmatprep.subr.bf16.mxu0 %v3473
        %7402 = vmatpush1.bf16.msra.mxu0 %v3472
        %7403 = vmatprep.subr.bf16.mxu0 %v3475
        %7404 = vmatpush1.bf16.msra.mxu0 %v3474
        %7405 = vmatprep.mubr.bf16.mxu0 %v4788
        %7406 = vmatmul.mubr.bf16.gmra.mrb[0].mxu0 %v4774
        %v7407 = vpop.f32.mrb[0].mxu0
        %v7408 = vadd.f32 %v7367, %v7407
        %v7409 = vpop.f32.mrb[0].mxu0
        %v7410 = vadd.f32 %v7369, %v7409
        %v7411 = vpop.f32.mrb[0].mxu0
        %v7412 = vpop.f32.mrb[0].mxu0
        %7413 = vdwg.mxu0
        %7414 = vmatprep.subr.bf16.mxu0 %v3477
        %7415 = vmatpush1.bf16.msra.mxu0 %v3476
        %7416 = vmatprep.subr.bf16.mxu0 %v3479
        %7417 = vmatpush1.bf16.msra.mxu0 %v3478
        %7418 = vmatprep.subr.bf16.mxu0 %v3481
        %7419 = vmatpush1.bf16.msra.mxu0 %v3480
        %7420 = vmatprep.subr.bf16.mxu0 %v3483
        %7421 = vmatpush1.bf16.msra.mxu0 %v3482
        %7422 = vmatprep.subr.bf16.mxu0 %v3485
        %7423 = vmatpush1.bf16.msra.mxu0 %v3484
        %7424 = vmatprep.subr.bf16.mxu0 %v3487
        %7425 = vmatpush1.bf16.msra.mxu0 %v3486
        %7426 = vmatprep.subr.bf16.mxu0 %v3489
        %7427 = vmatpush1.bf16.msra.mxu0 %v3488
        %7428 = vmatprep.subr.bf16.mxu0 %v3491
        %7429 = vmatpush1.bf16.msra.mxu0 %v3490
        %7430 = vmatprep.subr.bf16.mxu0 %v3493
        %7431 = vmatpush1.bf16.msra.mxu0 %v3492
        %7432 = vmatprep.subr.bf16.mxu0 %v3495
        %7433 = vmatpush1.bf16.msra.mxu0 %v3494
        %7434 = vmatprep.subr.bf16.mxu0 %v3497
        %7435 = vmatpush1.bf16.msra.mxu0 %v3496
        %7436 = vmatprep.subr.bf16.mxu0 %v3499
        %7437 = vmatpush1.bf16.msra.mxu0 %v3498
        %7438 = vmatprep.subr.bf16.mxu0 %v3501
        %7439 = vmatpush1.bf16.msra.mxu0 %v3500
        %7440 = vmatprep.subr.bf16.mxu0 %v3503
        %7441 = vmatpush1.bf16.msra.mxu0 %v3502
        %7442 = vmatprep.subr.bf16.mxu0 %v3505
        %7443 = vmatpush1.bf16.msra.mxu0 %v3504
        %7444 = vmatprep.subr.bf16.mxu0 %v3507
        %7445 = vmatpush1.bf16.msra.mxu0 %v3506
        %7446 = vmatprep.mubr.bf16.mxu0 %v4792
        %7447 = vmatmul.mubr.bf16.gmra.mrb[0].mxu0 %v4790
        %v7448 = vpop.f32.mrb[0].mxu0
        %v7449 = vadd.f32 %v7408, %v7448
        %v7450 = vpop.f32.mrb[0].mxu0
        %v7451 = vadd.f32 %v7410, %v7450
        %v7452 = vpop.f32.mrb[0].mxu0
        %v7453 = vpop.f32.mrb[0].mxu0
        %7454 = vdwg.mxu0
        %7455 = vmatprep.subr.bf16.mxu0 %v3509
        %7456 = vmatpush1.bf16.msra.mxu0 %v3508
        %7457 = vmatprep.subr.bf16.mxu0 %v3511
        %7458 = vmatpush1.bf16.msra.mxu0 %v3510
        %7459 = vmatprep.subr.bf16.mxu0 %v3513
        %7460 = vmatpush1.bf16.msra.mxu0 %v3512
        %7461 = vmatprep.subr.bf16.mxu0 %v3515
        %7462 = vmatpush1.bf16.msra.mxu0 %v3514
        %7463 = vmatprep.subr.bf16.mxu0 %v3517
        %7464 = vmatpush1.bf16.msra.mxu0 %v3516
        %7465 = vmatprep.subr.bf16.mxu0 %v3519
        %7466 = vmatpush1.bf16.msra.mxu0 %v3518
        %7467 = vmatprep.subr.bf16.mxu0 %v3521
        %7468 = vmatpush1.bf16.msra.mxu0 %v3520
        %7469 = vmatprep.subr.bf16.mxu0 %v3523
        %7470 = vmatpush1.bf16.msra.mxu0 %v3522
        %7471 = vmatprep.subr.bf16.mxu0 %v3525
        %7472 = vmatpush1.bf16.msra.mxu0 %v3524
        %7473 = vmatprep.subr.bf16.mxu0 %v3527
        %7474 = vmatpush1.bf16.msra.mxu0 %v3526
        %7475 = vmatprep.subr.bf16.mxu0 %v3529
        %7476 = vmatpush1.bf16.msra.mxu0 %v3528
        %7477 = vmatprep.subr.bf16.mxu0 %v3531
        %7478 = vmatpush1.bf16.msra.mxu0 %v3530
        %7479 = vmatprep.subr.bf16.mxu0 %v3533
        %7480 = vmatpush1.bf16.msra.mxu0 %v3532
        %7481 = vmatprep.subr.bf16.mxu0 %v3535
        %7482 = vmatpush1.bf16.msra.mxu0 %v3534
        %7483 = vmatprep.subr.bf16.mxu0 %v3537
        %7484 = vmatpush1.bf16.msra.mxu0 %v3536
        %7485 = vmatprep.subr.bf16.mxu0 %v3539
        %7486 = vmatpush1.bf16.msra.mxu0 %v3538
        %7487 = vmatprep.mubr.bf16.mxu0 %v4830
        %7488 = vmatmul.mubr.bf16.gmra.mrb[0].mxu0 %v4816
        %v7489 = vpop.f32.mrb[0].mxu0
        %v7490 = vadd.f32 %v7449, %v7489
        %v7491 = vpop.f32.mrb[0].mxu0
        %v7492 = vadd.f32 %v7451, %v7491
        %v7493 = vpop.f32.mrb[0].mxu0
        %v7494 = vpop.f32.mrb[0].mxu0
        %7495 = vdwg.mxu0
        %7496 = vmatprep.subr.bf16.mxu0 %v3541
        %7497 = vmatpush1.bf16.msra.mxu0 %v3540
        %7498 = vmatprep.subr.bf16.mxu0 %v3543
        %7499 = vmatpush1.bf16.msra.mxu0 %v3542
        %7500 = vmatprep.subr.bf16.mxu0 %v3545
        %7501 = vmatpush1.bf16.msra.mxu0 %v3544
        %7502 = vmatprep.subr.bf16.mxu0 %v3547
        %7503 = vmatpush1.bf16.msra.mxu0 %v3546
        %7504 = vmatprep.subr.bf16.mxu0 %v3549
        %7505 = vmatpush1.bf16.msra.mxu0 %v3548
        %7506 = vmatprep.subr.bf16.mxu0 %v3551
        %7507 = vmatpush1.bf16.msra.mxu0 %v3550
        %7508 = vmatprep.subr.bf16.mxu0 %v3553
        %7509 = vmatpush1.bf16.msra.mxu0 %v3552
        %7510 = vmatprep.subr.bf16.mxu0 %v3555
        %7511 = vmatpush1.bf16.msra.mxu0 %v3554
        %7512 = vmatprep.subr.bf16.mxu0 %v3557
        %7513 = vmatpush1.bf16.msra.mxu0 %v3556
        %7514 = vmatprep.subr.bf16.mxu0 %v3559
        %7515 = vmatpush1.bf16.msra.mxu0 %v3558
        %7516 = vmatprep.subr.bf16.mxu0 %v3561
        %7517 = vmatpush1.bf16.msra.mxu0 %v3560
        %7518 = vmatprep.subr.bf16.mxu0 %v3563
        %7519 = vmatpush1.bf16.msra.mxu0 %v3562
        %7520 = vmatprep.subr.bf16.mxu0 %v3565
        %7521 = vmatpush1.bf16.msra.mxu0 %v3564
        %7522 = vmatprep.subr.bf16.mxu0 %v3567
        %7523 = vmatpush1.bf16.msra.mxu0 %v3566
        %7524 = vmatprep.subr.bf16.mxu0 %v3569
        %7525 = vmatpush1.bf16.msra.mxu0 %v3568
        %7526 = vmatprep.subr.bf16.mxu0 %v3571
        %7527 = vmatpush1.bf16.msra.mxu0 %v3570
        %7528 = vmatprep.mubr.bf16.mxu0 %v4840
        %7529 = vmatmul.mubr.bf16.gmra.mrb[0].mxu0 %v4838
        %v7530 = vpop.f32.mrb[0].mxu0
        %v7531 = vadd.f32 %v7490, %v7530
        %v7532 = vpop.f32.mrb[0].mxu0
        %v7533 = vadd.f32 %v7492, %v7532
        %v7534 = vpop.f32.mrb[0].mxu0
        %v7535 = vpop.f32.mrb[0].mxu0
        %7536 = vdwg.mxu0
        %7537 = vmatprep.subr.bf16.mxu0 %v3573
        %7538 = vmatpush1.bf16.msra.mxu0 %v3572
        %7539 = vmatprep.subr.bf16.mxu0 %v3575
        %7540 = vmatpush1.bf16.msra.mxu0 %v3574
        %7541 = vmatprep.subr.bf16.mxu0 %v3577
        %7542 = vmatpush1.bf16.msra.mxu0 %v3576
        %7543 = vmatprep.subr.bf16.mxu0 %v3579
        %7544 = vmatpush1.bf16.msra.mxu0 %v3578
        %7545 = vmatprep.subr.bf16.mxu0 %v3581
        %7546 = vmatpush1.bf16.msra.mxu0 %v3580
        %7547 = vmatprep.subr.bf16.mxu0 %v3583
        %7548 = vmatpush1.bf16.msra.mxu0 %v3582
        %7549 = vmatprep.subr.bf16.mxu0 %v3585
        %7550 = vmatpush1.bf16.msra.mxu0 %v3584
        %7551 = vmatprep.subr.bf16.mxu0 %v3587
        %7552 = vmatpush1.bf16.msra.mxu0 %v3586
        %7553 = vmatprep.subr.bf16.mxu0 %v3589
        %7554 = vmatpush1.bf16.msra.mxu0 %v3588
        %7555 = vmatprep.subr.bf16.mxu0 %v3591
        %7556 = vmatpush1.bf16.msra.mxu0 %v3590
        %7557 = vmatprep.subr.bf16.mxu0 %v3593
        %7558 = vmatpush1.bf16.msra.mxu0 %v3592
        %7559 = vmatprep.subr.bf16.mxu0 %v3595
        %7560 = vmatpush1.bf16.msra.mxu0 %v3594
        %7561 = vmatprep.subr.bf16.mxu0 %v3597
        %7562 = vmatpush1.bf16.msra.mxu0 %v3596
        %7563 = vmatprep.subr.bf16.mxu0 %v3599
        %7564 = vmatpush1.bf16.msra.mxu0 %v3598
        %7565 = vmatprep.subr.bf16.mxu0 %v3601
        %7566 = vmatpush1.bf16.msra.mxu0 %v3600
        %7567 = vmatprep.subr.bf16.mxu0 %v3603
        %7568 = vmatpush1.bf16.msra.mxu0 %v3602
        %7569 = vmatprep.mubr.bf16.mxu0 %v4837
        %7570 = vmatmul.mubr.bf16.gmra.mrb[0].mxu0 %v4823
        %v7571 = vpop.f32.mrb[0].mxu0
        %v7572 = vadd.f32 %v7531, %v7571
        %v7573 = vpop.f32.mrb[0].mxu0
        %v7574 = vadd.f32 %v7533, %v7573
        %v7575 = vpop.f32.mrb[0].mxu0
        %v7576 = vpop.f32.mrb[0].mxu0
        %7577 = vdwg.mxu0
        %7578 = vmatprep.subr.bf16.mxu0 %v3605
        %7579 = vmatpush1.bf16.msra.mxu0 %v3604
        %7580 = vmatprep.subr.bf16.mxu0 %v3607
        %7581 = vmatpush1.bf16.msra.mxu0 %v3606
        %7582 = vmatprep.subr.bf16.mxu0 %v3609
        %7583 = vmatpush1.bf16.msra.mxu0 %v3608
        %7584 = vmatprep.subr.bf16.mxu0 %v3611
        %7585 = vmatpush1.bf16.msra.mxu0 %v3610
        %7586 = vmatprep.subr.bf16.mxu0 %v3613
        %7587 = vmatpush1.bf16.msra.mxu0 %v3612
        %7588 = vmatprep.subr.bf16.mxu0 %v3615
        %7589 = vmatpush1.bf16.msra.mxu0 %v3614
        %7590 = vmatprep.subr.bf16.mxu0 %v3617
        %7591 = vmatpush1.bf16.msra.mxu0 %v3616
        %7592 = vmatprep.subr.bf16.mxu0 %v3619
        %7593 = vmatpush1.bf16.msra.mxu0 %v3618
        %7594 = vmatprep.subr.bf16.mxu0 %v3621
        %7595 = vmatpush1.bf16.msra.mxu0 %v3620
        %7596 = vmatprep.subr.bf16.mxu0 %v3623
        %7597 = vmatpush1.bf16.msra.mxu0 %v3622
        %7598 = vmatprep.subr.bf16.mxu0 %v3625
        %7599 = vmatpush1.bf16.msra.mxu0 %v3624
        %7600 = vmatprep.subr.bf16.mxu0 %v3627
        %7601 = vmatpush1.bf16.msra.mxu0 %v3626
        %7602 = vmatprep.subr.bf16.mxu0 %v3629
        %7603 = vmatpush1.bf16.msra.mxu0 %v3628
        %7604 = vmatprep.subr.bf16.mxu0 %v3631
        %7605 = vmatpush1.bf16.msra.mxu0 %v3630
        %7606 = vmatprep.subr.bf16.mxu0 %v3633
        %7607 = vmatpush1.bf16.msra.mxu0 %v3632
        %7608 = vmatprep.subr.bf16.mxu0 %v3635
        %7609 = vmatpush1.bf16.msra.mxu0 %v3634
        %7610 = vmatprep.mubr.bf16.mxu0 %v4841
        %7611 = vmatmul.mubr.bf16.gmra.mrb[0].mxu0 %v4839
        %v7612 = vpop.f32.mrb[0].mxu0
        %v7613 = vadd.f32 %v7572, %v7612
        %v7614 = vpop.f32.mrb[0].mxu0
        %v7615 = vadd.f32 %v7574, %v7614
        %v7616 = vpop.f32.mrb[0].mxu0
        %v7617 = vpop.f32.mrb[0].mxu0
        %7618 = vdwg.mxu0
        %7619 = vmatprep.subr.bf16.mxu0 %v3637
        %7620 = vmatpush1.bf16.msra.mxu0 %v3636
        %7621 = vmatprep.subr.bf16.mxu0 %v3639
        %7622 = vmatpush1.bf16.msra.mxu0 %v3638
        %7623 = vmatprep.subr.bf16.mxu0 %v3641
        %7624 = vmatpush1.bf16.msra.mxu0 %v3640
        %7625 = vmatprep.subr.bf16.mxu0 %v3643
        %7626 = vmatpush1.bf16.msra.mxu0 %v3642
        %7627 = vmatprep.subr.bf16.mxu0 %v3645
        %7628 = vmatpush1.bf16.msra.mxu0 %v3644
        %7629 = vmatprep.subr.bf16.mxu0 %v3647
        %7630 = vmatpush1.bf16.msra.mxu0 %v3646
        %7631 = vmatprep.subr.bf16.mxu0 %v3649
        %7632 = vmatpush1.bf16.msra.mxu0 %v3648
        %7633 = vmatprep.subr.bf16.mxu0 %v3651
        %7634 = vmatpush1.bf16.msra.mxu0 %v3650
        %7635 = vmatprep.subr.bf16.mxu0 %v3653
        %7636 = vmatpush1.bf16.msra.mxu0 %v3652
        %7637 = vmatprep.subr.bf16.mxu0 %v3655
        %7638 = vmatpush1.bf16.msra.mxu0 %v3654
        %7639 = vmatprep.subr.bf16.mxu0 %v3657
        %7640 = vmatpush1.bf16.msra.mxu0 %v3656
        %7641 = vmatprep.subr.bf16.mxu0 %v3659
        %7642 = vmatpush1.bf16.msra.mxu0 %v3658
        %7643 = vmatprep.subr.bf16.mxu0 %v3661
        %7644 = vmatpush1.bf16.msra.mxu0 %v3660
        %7645 = vmatprep.subr.bf16.mxu0 %v3663
        %7646 = vmatpush1.bf16.msra.mxu0 %v3662
        %7647 = vmatprep.subr.bf16.mxu0 %v3665
        %7648 = vmatpush1.bf16.msra.mxu0 %v3664
        %7649 = vmatprep.subr.bf16.mxu0 %v3667
        %7650 = vmatpush1.bf16.msra.mxu0 %v3666
        %7651 = vmatprep.mubr.bf16.mxu0 %v4879
        %7652 = vmatmul.mubr.bf16.gmra.mrb[0].mxu0 %v4865
        %v7653 = vpop.f32.mrb[0].mxu0
        %v7654 = vadd.f32 %v7613, %v7653
        %v7655 = vpop.f32.mrb[0].mxu0
        %v7656 = vadd.f32 %v7615, %v7655
        %v7657 = vpop.f32.mrb[0].mxu0
        %v7658 = vpop.f32.mrb[0].mxu0
        %7659 = vdwg.mxu0
        %7660 = vmatprep.subr.bf16.mxu0 %v3669
        %7661 = vmatpush1.bf16.msra.mxu0 %v3668
        %7662 = vmatprep.subr.bf16.mxu0 %v3671
        %7663 = vmatpush1.bf16.msra.mxu0 %v3670
        %7664 = vmatprep.subr.bf16.mxu0 %v3673
        %7665 = vmatpush1.bf16.msra.mxu0 %v3672
        %7666 = vmatprep.subr.bf16.mxu0 %v3675
        %7667 = vmatpush1.bf16.msra.mxu0 %v3674
        %7668 = vmatprep.subr.bf16.mxu0 %v3677
        %7669 = vmatpush1.bf16.msra.mxu0 %v3676
        %7670 = vmatprep.subr.bf16.mxu0 %v3679
        %7671 = vmatpush1.bf16.msra.mxu0 %v3678
        %7672 = vmatprep.subr.bf16.mxu0 %v3681
        %7673 = vmatpush1.bf16.msra.mxu0 %v3680
        %7674 = vmatprep.subr.bf16.mxu0 %v3683
        %7675 = vmatpush1.bf16.msra.mxu0 %v3682
        %7676 = vmatprep.subr.bf16.mxu0 %v3685
        %7677 = vmatpush1.bf16.msra.mxu0 %v3684
        %7678 = vmatprep.subr.bf16.mxu0 %v3687
        %7679 = vmatpush1.bf16.msra.mxu0 %v3686
        %7680 = vmatprep.subr.bf16.mxu0 %v3689
        %7681 = vmatpush1.bf16.msra.mxu0 %v3688
        %7682 = vmatprep.subr.bf16.mxu0 %v3691
        %7683 = vmatpush1.bf16.msra.mxu0 %v3690
        %7684 = vmatprep.subr.bf16.mxu0 %v3693
        %7685 = vmatpush1.bf16.msra.mxu0 %v3692
        %7686 = vmatprep.subr.bf16.mxu0 %v3695
        %7687 = vmatpush1.bf16.msra.mxu0 %v3694
        %7688 = vmatprep.subr.bf16.mxu0 %v3697
        %7689 = vmatpush1.bf16.msra.mxu0 %v3696
        %7690 = vmatprep.subr.bf16.mxu0 %v3699
        %7691 = vmatpush1.bf16.msra.mxu0 %v3698
        %7692 = vmatprep.mubr.bf16.mxu0 %v4889
        %7693 = vmatmul.mubr.bf16.gmra.mrb[0].mxu0 %v4887
        %v7694 = vpop.f32.mrb[0].mxu0
        %v7695 = vadd.f32 %v7654, %v7694
        %v7696 = vpop.f32.mrb[0].mxu0
        %v7697 = vadd.f32 %v7656, %v7696
        %v7698 = vpop.f32.mrb[0].mxu0
        %v7699 = vpop.f32.mrb[0].mxu0
        %7700 = vdwg.mxu0
        %7701 = vmatprep.subr.bf16.mxu0 %v3701
        %7702 = vmatpush1.bf16.msra.mxu0 %v3700
        %7703 = vmatprep.subr.bf16.mxu0 %v3703
        %7704 = vmatpush1.bf16.msra.mxu0 %v3702
        %7705 = vmatprep.subr.bf16.mxu0 %v3705
        %7706 = vmatpush1.bf16.msra.mxu0 %v3704
        %7707 = vmatprep.subr.bf16.mxu0 %v3707
        %7708 = vmatpush1.bf16.msra.mxu0 %v3706
        %7709 = vmatprep.subr.bf16.mxu0 %v3709
        %7710 = vmatpush1.bf16.msra.mxu0 %v3708
        %7711 = vmatprep.subr.bf16.mxu0 %v3711
        %7712 = vmatpush1.bf16.msra.mxu0 %v3710
        %7713 = vmatprep.subr.bf16.mxu0 %v3713
        %7714 = vmatpush1.bf16.msra.mxu0 %v3712
        %7715 = vmatprep.subr.bf16.mxu0 %v3715
        %7716 = vmatpush1.bf16.msra.mxu0 %v3714
        %7717 = vmatprep.subr.bf16.mxu0 %v3717
        %7718 = vmatpush1.bf16.msra.mxu0 %v3716
        %7719 = vmatprep.subr.bf16.mxu0 %v3719
        %7720 = vmatpush1.bf16.msra.mxu0 %v3718
        %7721 = vmatprep.subr.bf16.mxu0 %v3721
        %7722 = vmatpush1.bf16.msra.mxu0 %v3720
        %7723 = vmatprep.subr.bf16.mxu0 %v3723
        %7724 = vmatpush1.bf16.msra.mxu0 %v3722
        %7725 = vmatprep.subr.bf16.mxu0 %v3725
        %7726 = vmatpush1.bf16.msra.mxu0 %v3724
        %7727 = vmatprep.subr.bf16.mxu0 %v3727
        %7728 = vmatpush1.bf16.msra.mxu0 %v3726
        %7729 = vmatprep.subr.bf16.mxu0 %v3729
        %7730 = vmatpush1.bf16.msra.mxu0 %v3728
        %7731 = vmatprep.subr.bf16.mxu0 %v3731
        %7732 = vmatpush1.bf16.msra.mxu0 %v3730
        %7733 = vmatprep.mubr.bf16.mxu0 %v4886
        %7734 = vmatmul.mubr.bf16.gmra.mrb[0].mxu0 %v4872
        %v7735 = vpop.f32.mrb[0].mxu0
        %v7736 = vadd.f32 %v7695, %v7735
        %v7737 = vpop.f32.mrb[0].mxu0
        %v7738 = vadd.f32 %v7697, %v7737
        %v7739 = vpop.f32.mrb[0].mxu0
        %v7740 = vpop.f32.mrb[0].mxu0
        %7741 = vdwg.mxu0
        %7742 = vmatprep.subr.bf16.mxu0 %v3733
        %7743 = vmatpush1.bf16.msra.mxu0 %v3732
        %7744 = vmatprep.subr.bf16.mxu0 %v3735
        %7745 = vmatpush1.bf16.msra.mxu0 %v3734
        %7746 = vmatprep.subr.bf16.mxu0 %v3737
        %7747 = vmatpush1.bf16.msra.mxu0 %v3736
        %7748 = vmatprep.subr.bf16.mxu0 %v3739
        %7749 = vmatpush1.bf16.msra.mxu0 %v3738
        %7750 = vmatprep.subr.bf16.mxu0 %v3741
        %7751 = vmatpush1.bf16.msra.mxu0 %v3740
        %7752 = vmatprep.subr.bf16.mxu0 %v3743
        %7753 = vmatpush1.bf16.msra.mxu0 %v3742
        %7754 = vmatprep.subr.bf16.mxu0 %v3745
        %7755 = vmatpush1.bf16.msra.mxu0 %v3744
        %7756 = vmatprep.subr.bf16.mxu0 %v3747
        %7757 = vmatpush1.bf16.msra.mxu0 %v3746
        %7758 = vmatprep.subr.bf16.mxu0 %v3749
        %7759 = vmatpush1.bf16.msra.mxu0 %v3748
        %7760 = vmatprep.subr.bf16.mxu0 %v3751
        %7761 = vmatpush1.bf16.msra.mxu0 %v3750
        %7762 = vmatprep.subr.bf16.mxu0 %v3753
        %7763 = vmatpush1.bf16.msra.mxu0 %v3752
        %7764 = vmatprep.subr.bf16.mxu0 %v3755
        %7765 = vmatpush1.bf16.msra.mxu0 %v3754
        %7766 = vmatprep.subr.bf16.mxu0 %v3757
        %7767 = vmatpush1.bf16.msra.mxu0 %v3756
        %7768 = vmatprep.subr.bf16.mxu0 %v3759
        %7769 = vmatpush1.bf16.msra.mxu0 %v3758
        %7770 = vmatprep.subr.bf16.mxu0 %v3761
        %7771 = vmatpush1.bf16.msra.mxu0 %v3760
        %7772 = vmatprep.subr.bf16.mxu0 %v3763
        %7773 = vmatpush1.bf16.msra.mxu0 %v3762
        %7774 = vmatprep.mubr.bf16.mxu0 %v4890
        %7775 = vmatmul.mubr.bf16.gmra.mrb[0].mxu0 %v4888
        %v7776 = vpop.f32.mrb[0].mxu0
        %v7777 = vadd.f32 %v7736, %v7776
        %v7778 = vpop.f32.mrb[0].mxu0
        %v7779 = vadd.f32 %v7738, %v7778
        %v7780 = vpop.f32.mrb[0].mxu0
        %v7781 = vpop.f32.mrb[0].mxu0
        %7782 = vdwg.mxu0
        %7783 = vmatprep.subr.bf16.mxu0 %v3765
        %7784 = vmatpush1.bf16.msra.mxu0 %v3764
        %7785 = vmatprep.subr.bf16.mxu0 %v3767
        %7786 = vmatpush1.bf16.msra.mxu0 %v3766
        %7787 = vmatprep.subr.bf16.mxu0 %v3769
        %7788 = vmatpush1.bf16.msra.mxu0 %v3768
        %7789 = vmatprep.subr.bf16.mxu0 %v3771
        %7790 = vmatpush1.bf16.msra.mxu0 %v3770
        %7791 = vmatprep.subr.bf16.mxu0 %v3773
        %7792 = vmatpush1.bf16.msra.mxu0 %v3772
        %7793 = vmatprep.subr.bf16.mxu0 %v3775
        %7794 = vmatpush1.bf16.msra.mxu0 %v3774
        %7795 = vmatprep.subr.bf16.mxu0 %v3777
        %7796 = vmatpush1.bf16.msra.mxu0 %v3776
        %7797 = vmatprep.subr.bf16.mxu0 %v3779
        %7798 = vmatpush1.bf16.msra.mxu0 %v3778
        %7799 = vmatprep.subr.bf16.mxu0 %v3781
        %7800 = vmatpush1.bf16.msra.mxu0 %v3780
        %7801 = vmatprep.subr.bf16.mxu0 %v3783
        %7802 = vmatpush1.bf16.msra.mxu0 %v3782
        %7803 = vmatprep.subr.bf16.mxu0 %v3785
        %7804 = vmatpush1.bf16.msra.mxu0 %v3784
        %7805 = vmatprep.subr.bf16.mxu0 %v3787
        %7806 = vmatpush1.bf16.msra.mxu0 %v3786
        %7807 = vmatprep.subr.bf16.mxu0 %v3789
        %7808 = vmatpush1.bf16.msra.mxu0 %v3788
        %7809 = vmatprep.subr.bf16.mxu0 %v3791
        %7810 = vmatpush1.bf16.msra.mxu0 %v3790
        %7811 = vmatprep.subr.bf16.mxu0 %v3793
        %7812 = vmatpush1.bf16.msra.mxu0 %v3792
        %7813 = vmatprep.subr.bf16.mxu0 %v3795
        %7814 = vmatpush1.bf16.msra.mxu0 %v3794
        %7815 = vmatprep.mubr.bf16.mxu0 %v4928
        %7816 = vmatmul.mubr.bf16.gmra.mrb[0].mxu0 %v4914
        %v7817 = vpop.f32.mrb[0].mxu0
        %v7818 = vadd.f32 %v7777, %v7817
        %v7819 = vpop.f32.mrb[0].mxu0
        %v7820 = vadd.f32 %v7779, %v7819
        %v7821 = vpop.f32.mrb[0].mxu0
        %v7822 = vpop.f32.mrb[0].mxu0
        %7823 = vdwg.mxu0
        %7824 = vmatprep.subr.bf16.mxu0 %v3797
        %7825 = vmatpush1.bf16.msra.mxu0 %v3796
        %7826 = vmatprep.subr.bf16.mxu0 %v3799
        %7827 = vmatpush1.bf16.msra.mxu0 %v3798
        %7828 = vmatprep.subr.bf16.mxu0 %v3801
        %7829 = vmatpush1.bf16.msra.mxu0 %v3800
        %7830 = vmatprep.subr.bf16.mxu0 %v3803
        %7831 = vmatpush1.bf16.msra.mxu0 %v3802
        %7832 = vmatprep.subr.bf16.mxu0 %v3805
        %7833 = vmatpush1.bf16.msra.mxu0 %v3804
        %7834 = vmatprep.subr.bf16.mxu0 %v3807
        %7835 = vmatpush1.bf16.msra.mxu0 %v3806
        %7836 = vmatprep.subr.bf16.mxu0 %v3809
        %7837 = vmatpush1.bf16.msra.mxu0 %v3808
        %7838 = vmatprep.subr.bf16.mxu0 %v3811
        %7839 = vmatpush1.bf16.msra.mxu0 %v3810
        %7840 = vmatprep.subr.bf16.mxu0 %v3813
        %7841 = vmatpush1.bf16.msra.mxu0 %v3812
        %7842 = vmatprep.subr.bf16.mxu0 %v3815
        %7843 = vmatpush1.bf16.msra.mxu0 %v3814
        %7844 = vmatprep.subr.bf16.mxu0 %v3817
        %7845 = vmatpush1.bf16.msra.mxu0 %v3816
        %7846 = vmatprep.subr.bf16.mxu0 %v3819
        %7847 = vmatpush1.bf16.msra.mxu0 %v3818
        %7848 = vmatprep.subr.bf16.mxu0 %v3821
        %7849 = vmatpush1.bf16.msra.mxu0 %v3820
        %7850 = vmatprep.subr.bf16.mxu0 %v3823
        %7851 = vmatpush1.bf16.msra.mxu0 %v3822
        %7852 = vmatprep.subr.bf16.mxu0 %v3825
        %7853 = vmatpush1.bf16.msra.mxu0 %v3824
        %7854 = vmatprep.subr.bf16.mxu0 %v3827
        %7855 = vmatpush1.bf16.msra.mxu0 %v3826
        %7856 = vmatprep.mubr.bf16.mxu0 %v4938
        %7857 = vmatmul.mubr.bf16.gmra.mrb[0].mxu0 %v4936
        %v7858 = vpop.f32.mrb[0].mxu0
        %v7859 = vadd.f32 %v7818, %v7858
        %v7860 = vpop.f32.mrb[0].mxu0
        %v7861 = vadd.f32 %v7820, %v7860
        %v7862 = vpop.f32.mrb[0].mxu0
        %v7863 = vpop.f32.mrb[0].mxu0
        %7864 = vdwg.mxu0
        %7865 = vmatprep.subr.bf16.mxu0 %v3829
        %7866 = vmatpush1.bf16.msra.mxu0 %v3828
        %7867 = vmatprep.subr.bf16.mxu0 %v3831
        %7868 = vmatpush1.bf16.msra.mxu0 %v3830
        %7869 = vmatprep.subr.bf16.mxu0 %v3833
        %7870 = vmatpush1.bf16.msra.mxu0 %v3832
        %7871 = vmatprep.subr.bf16.mxu0 %v3835
        %7872 = vmatpush1.bf16.msra.mxu0 %v3834
        %7873 = vmatprep.subr.bf16.mxu0 %v3837
        %7874 = vmatpush1.bf16.msra.mxu0 %v3836
        %7875 = vmatprep.subr.bf16.mxu0 %v3839
        %7876 = vmatpush1.bf16.msra.mxu0 %v3838
        %7877 = vmatprep.subr.bf16.mxu0 %v3841
        %7878 = vmatpush1.bf16.msra.mxu0 %v3840
        %7879 = vmatprep.subr.bf16.mxu0 %v3843
        %7880 = vmatpush1.bf16.msra.mxu0 %v3842
        %7881 = vmatprep.subr.bf16.mxu0 %v3845
        %7882 = vmatpush1.bf16.msra.mxu0 %v3844
        %7883 = vmatprep.subr.bf16.mxu0 %v3847
        %7884 = vmatpush1.bf16.msra.mxu0 %v3846
        %7885 = vmatprep.subr.bf16.mxu0 %v3849
        %7886 = vmatpush1.bf16.msra.mxu0 %v3848
        %7887 = vmatprep.subr.bf16.mxu0 %v3851
        %7888 = vmatpush1.bf16.msra.mxu0 %v3850
        %7889 = vmatprep.subr.bf16.mxu0 %v3853
        %7890 = vmatpush1.bf16.msra.mxu0 %v3852
        %7891 = vmatprep.subr.bf16.mxu0 %v3855
        %7892 = vmatpush1.bf16.msra.mxu0 %v3854
        %7893 = vmatprep.subr.bf16.mxu0 %v3857
        %7894 = vmatpush1.bf16.msra.mxu0 %v3856
        %7895 = vmatprep.subr.bf16.mxu0 %v3859
        %7896 = vmatpush1.bf16.msra.mxu0 %v3858
        %7897 = vmatprep.mubr.bf16.mxu0 %v4935
        %7898 = vmatmul.mubr.bf16.gmra.mrb[0].mxu0 %v4921
        %v7899 = vpop.f32.mrb[0].mxu0
        %v7900 = vadd.f32 %v7859, %v7899
        %v7901 = vpop.f32.mrb[0].mxu0
        %v7902 = vadd.f32 %v7861, %v7901
        %v7903 = vpop.f32.mrb[0].mxu0
        %v7904 = vpop.f32.mrb[0].mxu0
        %7905 = vdwg.mxu0
        %7906 = vmatprep.subr.bf16.mxu0 %v3861
        %7907 = vmatpush1.bf16.msra.mxu0 %v3860
        %7908 = vmatprep.subr.bf16.mxu0 %v3863
        %7909 = vmatpush1.bf16.msra.mxu0 %v3862
        %7910 = vmatprep.subr.bf16.mxu0 %v3865
        %7911 = vmatpush1.bf16.msra.mxu0 %v3864
        %7912 = vmatprep.subr.bf16.mxu0 %v3867
        %7913 = vmatpush1.bf16.msra.mxu0 %v3866
        %7914 = vmatprep.subr.bf16.mxu0 %v3869
        %7915 = vmatpush1.bf16.msra.mxu0 %v3868
        %7916 = vmatprep.subr.bf16.mxu0 %v3871
        %7917 = vmatpush1.bf16.msra.mxu0 %v3870
        %7918 = vmatprep.subr.bf16.mxu0 %v3873
        %7919 = vmatpush1.bf16.msra.mxu0 %v3872
        %7920 = vmatprep.subr.bf16.mxu0 %v3875
        %7921 = vmatpush1.bf16.msra.mxu0 %v3874
        %7922 = vmatprep.subr.bf16.mxu0 %v3877
        %7923 = vmatpush1.bf16.msra.mxu0 %v3876
        %7924 = vmatprep.subr.bf16.mxu0 %v3879
        %7925 = vmatpush1.bf16.msra.mxu0 %v3878
        %7926 = vmatprep.subr.bf16.mxu0 %v3881
        %7927 = vmatpush1.bf16.msra.mxu0 %v3880
        %7928 = vmatprep.subr.bf16.mxu0 %v3883
        %7929 = vmatpush1.bf16.msra.mxu0 %v3882
        %7930 = vmatprep.subr.bf16.mxu0 %v3885
        %7931 = vmatpush1.bf16.msra.mxu0 %v3884
        %7932 = vmatprep.subr.bf16.mxu0 %v3887
        %7933 = vmatpush1.bf16.msra.mxu0 %v3886
        %7934 = vmatprep.subr.bf16.mxu0 %v3889
        %7935 = vmatpush1.bf16.msra.mxu0 %v3888
        %7936 = vmatprep.subr.bf16.mxu0 %v3891
        %7937 = vmatpush1.bf16.msra.mxu0 %v3890
        %7938 = vmatprep.mubr.bf16.mxu0 %v4939
        %7939 = vmatmul.mubr.bf16.gmra.mrb[0].mxu0 %v4937
        %v7940 = vpop.f32.mrb[0].mxu0
        %v7941 = vadd.f32 %v7900, %v7940
        %v7942 = vpop.f32.mrb[0].mxu0
        %v7943 = vadd.f32 %v7902, %v7942
        %v7944 = vpop.f32.mrb[0].mxu0
        %v7945 = vpop.f32.mrb[0].mxu0
        %7946 = vdwg.mxu0
        %7947 = vmatprep.subr.bf16.mxu0 %v3893
        %7948 = vmatpush1.bf16.msra.mxu0 %v3892
        %7949 = vmatprep.subr.bf16.mxu0 %v3895
        %7950 = vmatpush1.bf16.msra.mxu0 %v3894
        %7951 = vmatprep.subr.bf16.mxu0 %v3897
        %7952 = vmatpush1.bf16.msra.mxu0 %v3896
        %7953 = vmatprep.subr.bf16.mxu0 %v3899
        %7954 = vmatpush1.bf16.msra.mxu0 %v3898
        %7955 = vmatprep.subr.bf16.mxu0 %v3901
        %7956 = vmatpush1.bf16.msra.mxu0 %v3900
        %7957 = vmatprep.subr.bf16.mxu0 %v3903
        %7958 = vmatpush1.bf16.msra.mxu0 %v3902
        %7959 = vmatprep.subr.bf16.mxu0 %v3905
        %7960 = vmatpush1.bf16.msra.mxu0 %v3904
        %7961 = vmatprep.subr.bf16.mxu0 %v3907
        %7962 = vmatpush1.bf16.msra.mxu0 %v3906
        %7963 = vmatprep.subr.bf16.mxu0 %v3909
        %7964 = vmatpush1.bf16.msra.mxu0 %v3908
        %7965 = vmatprep.subr.bf16.mxu0 %v3911
        %7966 = vmatpush1.bf16.msra.mxu0 %v3910
        %7967 = vmatprep.subr.bf16.mxu0 %v3913
        %7968 = vmatpush1.bf16.msra.mxu0 %v3912
        %7969 = vmatprep.subr.bf16.mxu0 %v3915
        %7970 = vmatpush1.bf16.msra.mxu0 %v3914
        %7971 = vmatprep.subr.bf16.mxu0 %v3917
        %7972 = vmatpush1.bf16.msra.mxu0 %v3916
        %7973 = vmatprep.subr.bf16.mxu0 %v3919
        %7974 = vmatpush1.bf16.msra.mxu0 %v3918
        %7975 = vmatprep.subr.bf16.mxu0 %v3921
        %7976 = vmatpush1.bf16.msra.mxu0 %v3920
        %7977 = vmatprep.subr.bf16.mxu0 %v3923
        %7978 = vmatpush1.bf16.msra.mxu0 %v3922
        %7979 = vmatprep.mubr.bf16.mxu0 %v4977
        %7980 = vmatmul.mubr.bf16.gmra.mrb[0].mxu0 %v4963
        %v7981 = vpop.f32.mrb[0].mxu0
        %v7982 = vadd.f32 %v7941, %v7981
        %v7983 = vpop.f32.mrb[0].mxu0
        %v7984 = vadd.f32 %v7943, %v7983
        %v7985 = vpop.f32.mrb[0].mxu0
        %v7986 = vpop.f32.mrb[0].mxu0
        %7987 = vdwg.mxu0
        %7988 = vmatprep.subr.bf16.mxu0 %v3925
        %7989 = vmatpush1.bf16.msra.mxu0 %v3924
        %7990 = vmatprep.subr.bf16.mxu0 %v3927
        %7991 = vmatpush1.bf16.msra.mxu0 %v3926
        %7992 = vmatprep.subr.bf16.mxu0 %v3929
        %7993 = vmatpush1.bf16.msra.mxu0 %v3928
        %7994 = vmatprep.subr.bf16.mxu0 %v3931
        %7995 = vmatpush1.bf16.msra.mxu0 %v3930
        %7996 = vmatprep.subr.bf16.mxu0 %v3933
        %7997 = vmatpush1.bf16.msra.mxu0 %v3932
        %7998 = vmatprep.subr.bf16.mxu0 %v3935
        %7999 = vmatpush1.bf16.msra.mxu0 %v3934
        %8000 = vmatprep.subr.bf16.mxu0 %v3937
        %8001 = vmatpush1.bf16.msra.mxu0 %v3936
        %8002 = vmatprep.subr.bf16.mxu0 %v3939
        %8003 = vmatpush1.bf16.msra.mxu0 %v3938
        %8004 = vmatprep.subr.bf16.mxu0 %v3941
        %8005 = vmatpush1.bf16.msra.mxu0 %v3940
        %8006 = vmatprep.subr.bf16.mxu0 %v3943
        %8007 = vmatpush1.bf16.msra.mxu0 %v3942
        %8008 = vmatprep.subr.bf16.mxu0 %v3945
        %8009 = vmatpush1.bf16.msra.mxu0 %v3944
        %8010 = vmatprep.subr.bf16.mxu0 %v3947
        %8011 = vmatpush1.bf16.msra.mxu0 %v3946
        %8012 = vmatprep.subr.bf16.mxu0 %v3949
        %8013 = vmatpush1.bf16.msra.mxu0 %v3948
        %8014 = vmatprep.subr.bf16.mxu0 %v3951
        %8015 = vmatpush1.bf16.msra.mxu0 %v3950
        %8016 = vmatprep.subr.bf16.mxu0 %v3953
        %8017 = vmatpush1.bf16.msra.mxu0 %v3952
        %8018 = vmatprep.subr.bf16.mxu0 %v3955
        %8019 = vmatpush1.bf16.msra.mxu0 %v3954
        %8020 = vmatprep.mubr.bf16.mxu0 %v4987
        %8021 = vmatmul.mubr.bf16.gmra.mrb[0].mxu0 %v4985
        %v8022 = vpop.f32.mrb[0].mxu0
        %v8023 = vadd.f32 %v7982, %v8022
        %v8024 = vpop.f32.mrb[0].mxu0
        %v8025 = vadd.f32 %v7984, %v8024
        %v8026 = vpop.f32.mrb[0].mxu0
        %v8027 = vpop.f32.mrb[0].mxu0
        %8028 = vdwg.mxu0
        %8029 = vmatprep.subr.bf16.mxu0 %v3957
        %8030 = vmatpush1.bf16.msra.mxu0 %v3956
        %8031 = vmatprep.subr.bf16.mxu0 %v3959
        %8032 = vmatpush1.bf16.msra.mxu0 %v3958
        %8033 = vmatprep.subr.bf16.mxu0 %v3961
        %8034 = vmatpush1.bf16.msra.mxu0 %v3960
        %8035 = vmatprep.subr.bf16.mxu0 %v3963
        %8036 = vmatpush1.bf16.msra.mxu0 %v3962
        %8037 = vmatprep.subr.bf16.mxu0 %v3965
        %8038 = vmatpush1.bf16.msra.mxu0 %v3964
        %8039 = vmatprep.subr.bf16.mxu0 %v3967
        %8040 = vmatpush1.bf16.msra.mxu0 %v3966
        %8041 = vmatprep.subr.bf16.mxu0 %v3969
        %8042 = vmatpush1.bf16.msra.mxu0 %v3968
        %8043 = vmatprep.subr.bf16.mxu0 %v3971
        %8044 = vmatpush1.bf16.msra.mxu0 %v3970
        %8045 = vmatprep.subr.bf16.mxu0 %v3973
        %8046 = vmatpush1.bf16.msra.mxu0 %v3972
        %8047 = vmatprep.subr.bf16.mxu0 %v3975
        %8048 = vmatpush1.bf16.msra.mxu0 %v3974
        %8049 = vmatprep.subr.bf16.mxu0 %v3977
        %8050 = vmatpush1.bf16.msra.mxu0 %v3976
        %8051 = vmatprep.subr.bf16.mxu0 %v3979
        %8052 = vmatpush1.bf16.msra.mxu0 %v3978
        %8053 = vmatprep.subr.bf16.mxu0 %v3981
        %8054 = vmatpush1.bf16.msra.mxu0 %v3980
        %8055 = vmatprep.subr.bf16.mxu0 %v3983
        %8056 = vmatpush1.bf16.msra.mxu0 %v3982
        %8057 = vmatprep.subr.bf16.mxu0 %v3985
        %8058 = vmatpush1.bf16.msra.mxu0 %v3984
        %8059 = vmatprep.subr.bf16.mxu0 %v3987
        %8060 = vmatpush1.bf16.msra.mxu0 %v3986
        %8061 = vmatprep.mubr.bf16.mxu0 %v4984
        %8062 = vmatmul.mubr.bf16.gmra.mrb[0].mxu0 %v4970
        %v8063 = vpop.f32.mrb[0].mxu0
        %v8064 = vadd.f32 %v8023, %v8063
        %v8065 = vpop.f32.mrb[0].mxu0
        %v8066 = vadd.f32 %v8025, %v8065
        %v8067 = vpop.f32.mrb[0].mxu0
        %v8068 = vpop.f32.mrb[0].mxu0
        %8069 = vdwg.mxu0
        %8070 = vmatprep.subr.bf16.mxu0 %v3989
        %8071 = vmatpush1.bf16.msra.mxu0 %v3988
        %8072 = vmatprep.subr.bf16.mxu0 %v3991
        %8073 = vmatpush1.bf16.msra.mxu0 %v3990
        %8074 = vmatprep.subr.bf16.mxu0 %v3993
        %8075 = vmatpush1.bf16.msra.mxu0 %v3992
        %8076 = vmatprep.subr.bf16.mxu0 %v3995
        %8077 = vmatpush1.bf16.msra.mxu0 %v3994
        %8078 = vmatprep.subr.bf16.mxu0 %v3997
        %8079 = vmatpush1.bf16.msra.mxu0 %v3996
        %8080 = vmatprep.subr.bf16.mxu0 %v3999
        %8081 = vmatpush1.bf16.msra.mxu0 %v3998
        %8082 = vmatprep.subr.bf16.mxu0 %v4001
        %8083 = vmatpush1.bf16.msra.mxu0 %v4000
        %8084 = vmatprep.subr.bf16.mxu0 %v4003
        %8085 = vmatpush1.bf16.msra.mxu0 %v4002
        %8086 = vmatprep.subr.bf16.mxu0 %v4005
        %8087 = vmatpush1.bf16.msra.mxu0 %v4004
        %8088 = vmatprep.subr.bf16.mxu0 %v4007
        %8089 = vmatpush1.bf16.msra.mxu0 %v4006
        %8090 = vmatprep.subr.bf16.mxu0 %v4009
        %8091 = vmatpush1.bf16.msra.mxu0 %v4008
        %8092 = vmatprep.subr.bf16.mxu0 %v4011
        %8093 = vmatpush1.bf16.msra.mxu0 %v4010
        %8094 = vmatprep.subr.bf16.mxu0 %v4013
        %8095 = vmatpush1.bf16.msra.mxu0 %v4012
        %8096 = vmatprep.subr.bf16.mxu0 %v4015
        %8097 = vmatpush1.bf16.msra.mxu0 %v4014
        %8098 = vmatprep.subr.bf16.mxu0 %v4017
        %8099 = vmatpush1.bf16.msra.mxu0 %v4016
        %8100 = vmatprep.subr.bf16.mxu0 %v4019
        %8101 = vmatpush1.bf16.msra.mxu0 %v4018
        %8102 = vmatprep.mubr.bf16.mxu0 %v4988
        %8103 = vmatmul.mubr.bf16.gmra.mrb[0].mxu0 %v4986
        %v8104 = vpop.f32.mrb[0].mxu0
        %v8105 = vadd.f32 %v8064, %v8104
        %v8106 = vpop.f32.mrb[0].mxu0
        %v8107 = vadd.f32 %v8066, %v8106
        %v8108 = vpop.f32.mrb[0].mxu0
        %v8109 = vpop.f32.mrb[0].mxu0
        %8110 = vdwg.mxu0
        %8111 = vmatprep.subr.bf16.mxu0 %v4021
        %8112 = vmatpush1.bf16.msra.mxu0 %v4020
        %8113 = vmatprep.subr.bf16.mxu0 %v4023
        %8114 = vmatpush1.bf16.msra.mxu0 %v4022
        %8115 = vmatprep.subr.bf16.mxu0 %v4025
        %8116 = vmatpush1.bf16.msra.mxu0 %v4024
        %8117 = vmatprep.subr.bf16.mxu0 %v4027
        %8118 = vmatpush1.bf16.msra.mxu0 %v4026
        %8119 = vmatprep.subr.bf16.mxu0 %v4029
        %8120 = vmatpush1.bf16.msra.mxu0 %v4028
        %8121 = vmatprep.subr.bf16.mxu0 %v4031
        %8122 = vmatpush1.bf16.msra.mxu0 %v4030
        %8123 = vmatprep.subr.bf16.mxu0 %v4033
        %8124 = vmatpush1.bf16.msra.mxu0 %v4032
        %8125 = vmatprep.subr.bf16.mxu0 %v4035
        %8126 = vmatpush1.bf16.msra.mxu0 %v4034
        %8127 = vmatprep.subr.bf16.mxu0 %v4037
        %8128 = vmatpush1.bf16.msra.mxu0 %v4036
        %8129 = vmatprep.subr.bf16.mxu0 %v4039
        %8130 = vmatpush1.bf16.msra.mxu0 %v4038
        %8131 = vmatprep.subr.bf16.mxu0 %v4041
        %8132 = vmatpush1.bf16.msra.mxu0 %v4040
        %8133 = vmatprep.subr.bf16.mxu0 %v4043
        %8134 = vmatpush1.bf16.msra.mxu0 %v4042
        %8135 = vmatprep.subr.bf16.mxu0 %v4045
        %8136 = vmatpush1.bf16.msra.mxu0 %v4044
        %8137 = vmatprep.subr.bf16.mxu0 %v4047
        %8138 = vmatpush1.bf16.msra.mxu0 %v4046
        %8139 = vmatprep.subr.bf16.mxu0 %v4049
        %8140 = vmatpush1.bf16.msra.mxu0 %v4048
        %8141 = vmatprep.subr.bf16.mxu0 %v4051
        %8142 = vmatpush1.bf16.msra.mxu0 %v4050
        %8143 = vmatprep.mubr.bf16.mxu0 %v5010
        %8144 = vmatmul.mubr.bf16.gmra.mrb[0].mxu0 %v5003
        %v8145 = vpop.f32.mrb[0].mxu0
        %v8146 = vadd.f32 %v8105, %v8145
        %v8147 = vpop.f32.mrb[0].mxu0
        %v8148 = vadd.f32 %v8107, %v8147
        %v8149 = vpop.f32.mrb[0].mxu0
        %v8150 = vpop.f32.mrb[0].mxu0
        %8151 = vdwg.mxu0
        %8152 = vmatprep.subr.bf16.mxu0 %v4053
        %8153 = vmatpush1.bf16.msra.mxu0 %v4052
        %8154 = vmatprep.subr.bf16.mxu0 %v4055
        %8155 = vmatpush1.bf16.msra.mxu0 %v4054
        %8156 = vmatprep.subr.bf16.mxu0 %v4057
        %8157 = vmatpush1.bf16.msra.mxu0 %v4056
        %8158 = vmatprep.subr.bf16.mxu0 %v4059
        %8159 = vmatpush1.bf16.msra.mxu0 %v4058
        %8160 = vmatprep.subr.bf16.mxu0 %v4061
        %8161 = vmatpush1.bf16.msra.mxu0 %v4060
        %8162 = vmatprep.subr.bf16.mxu0 %v4063
        %8163 = vmatpush1.bf16.msra.mxu0 %v4062
        %8164 = vmatprep.subr.bf16.mxu0 %v4065
        %8165 = vmatpush1.bf16.msra.mxu0 %v4064
        %8166 = vmatprep.subr.bf16.mxu0 %v4067
        %8167 = vmatpush1.bf16.msra.mxu0 %v4066
        %8168 = vmatprep.subr.bf16.mxu0 0
        %8169 = vmatpush1.bf16.msra.mxu0 0
        %8170 = vmatprep.subr.bf16.mxu0 0
        %8171 = vmatpush1.bf16.msra.mxu0 0
        %8172 = vmatprep.subr.bf16.mxu0 0
        %8173 = vmatpush1.bf16.msra.mxu0 0
        %8174 = vmatprep.subr.bf16.mxu0 0
        %8175 = vmatpush1.bf16.msra.mxu0 0
        %8176 = vmatprep.subr.bf16.mxu0 0
        %8177 = vmatpush1.bf16.msra.mxu0 0
        %8178 = vmatprep.subr.bf16.mxu0 0
        %8179 = vmatpush1.bf16.msra.mxu0 0
        %8180 = vmatprep.subr.bf16.mxu0 0
        %8181 = vmatpush1.bf16.msra.mxu0 0
        %8182 = vmatprep.subr.bf16.mxu0 0
        %8183 = vmatpush1.bf16.msra.mxu0 0
        %8184 = vmatprep.mubr.bf16.mxu0 0
        %8185 = vmatmul.mubr.bf16.gmra.mrb[0].mxu0 %v5011
        %v8186 = vpop.f32.mrb[0].mxu0
        %v8187 = vadd.f32 %v8146, %v8186
        %v8188 = vpop.f32.mrb[0].mxu0
        %v8189 = vadd.f32 %v8148, %v8188
        %v8190 = vpop.f32.mrb[0].mxu0
        %v8191 = vpop.f32.mrb[0].mxu0
        %8192 = vdwg.mxu0
        %v8195 = vcombine.low %v8187, %v8189
        %v8197 = vunpack.c.l.s4 1983009808
        %v8198 = vunpack.c.0.s8 %v8197
        %v8199 = vlaneseq
        %v8200 = vshrl.u32 %v8199, 7
        %v8201 = vsub.s32 %v8198, %v8200
        %v8202 = vrot.slane %v8195, %v8201
        %v8204 = vadd.f32 %v4068, %v8202
        %8205 = vst [vmem:[#allocation2] sm:$0xf] %v8204
        %p8206 = scmp.eq.s32.totalorder %s32, 7
        // Predicated region
        $region105: #{mlp_forward.1} parent=67 // pred_check
          %p8207 = pneg %p8206
        $region106: #{mlp_forward.1} parent=67 // pred_check_branch
          %8209 = sbr.rel (%p8207) target = $region108
        $region107: #{mlp_forward.1} parent=67 // pred_region
          %v8210 = vld [vmem:[#allocation2] sm:$0xf]
          %v8211 = vld [vmem:[#allocation6] sm:$0x3]
          %v8213 = vlaneseq
          %v8214 = vshrl.u32 %v8213, 7
          %v8215 = vsub.s32 0, %v8214
          %v8216 = vrot.slane %v8211, %v8215
          %v8217 = vlaneseq
          %v8218 = vshrl.u32 %v8217, 7
          %v8219 = vsub.s32 1, %v8218
          %v8220 = vrot.slane %v8211, %v8219
          %v8221 = vcombine.low %v8216, %v8220
          %v8223 = vunpack.c.l.s4 1983009808
          %v8224 = vunpack.c.0.s8 %v8223
          %v8225 = vlaneseq
          %v8226 = vshrl.u32 %v8225, 7
          %v8227 = vsub.s32 %v8224, %v8226
          %v8228 = vrot.slane %v8221, %v8227
          %v8230 = vmul.f32 %v8210, %v8228
          %v8231 = vld [vmem:[#allocation8] sm:$0x3]
          %v8233 = vlaneseq
          %v8234 = vshrl.u32 %v8233, 7
          %v8235 = vsub.s32 0, %v8234
          %v8236 = vrot.slane %v8231, %v8235
          %v8237 = vlaneseq
          %v8238 = vshrl.u32 %v8237, 7
          %v8239 = vsub.s32 1, %v8238
          %v8240 = vrot.slane %v8231, %v8239
          %v8241 = vcombine.low %v8236, %v8240
          %v8243 = vunpack.c.l.s4 1983009808
          %v8244 = vunpack.c.0.s8 %v8243
          %v8245 = vlaneseq
          %v8246 = vshrl.u32 %v8245, 7
          %v8247 = vsub.s32 %v8244, %v8246
          %v8248 = vrot.slane %v8241, %v8247
          %v8250 = vadd.f32 %v8230, %v8248
          %v8251 = vmax.f32 %v8250, 0.0
          %v8252 = vld [vmem:[#allocation9] sm:$0xff]
          %v8253 = vld [vmem:[#allocation9 + $0x8] sm:$0xff]
          %v8254 = vld [vmem:[#allocation9 + $0x10] sm:$0xff]
          %v8255 = vld [vmem:[#allocation9 + $0x18] sm:$0xff]
          %v8256 = vld [vmem:[#allocation9 + $0x20] sm:$0xff]
          %v8257 = vld [vmem:[#allocation9 + $0x28] sm:$0xff]
          %v8258 = vld [vmem:[#allocation9 + $0x30] sm:$0xff]
          %v8259 = vld [vmem:[#allocation9 + $0x38] sm:$0xff]
          %v8260 = vld [vmem:[#allocation9 + $0x40] sm:$0xff]
          %v8261 = vld [vmem:[#allocation9 + $0x48] sm:$0xff]
          %v8262 = vld [vmem:[#allocation9 + $0x50] sm:$0xff]
          %v8263 = vld [vmem:[#allocation9 + $0x58] sm:$0xff]
          %v8264 = vld [vmem:[#allocation9 + $0x60] sm:$0xff]
          %v8265 = vld [vmem:[#allocation9 + $0x68] sm:$0xff]
          %v8266 = vld [vmem:[#allocation9 + $0x70] sm:$0xff]
          %v8267 = vld [vmem:[#allocation9 + $0x78] sm:$0xff]
          %v8268 = vld [vmem:[#allocation9 + $0x80] sm:$0xff]
          %v8269 = vld [vmem:[#allocation9 + $0x88] sm:$0xff]
          %v8270 = vld [vmem:[#allocation9 + $0x90] sm:$0xff]
          %v8271 = vld [vmem:[#allocation9 + $0x98] sm:$0xff]
          %v8272 = vld [vmem:[#allocation9 + $0xa0] sm:$0xff]
          %v8273 = vld [vmem:[#allocation9 + $0xa8] sm:$0xff]
          %v8274 = vld [vmem:[#allocation9 + $0xb0] sm:$0xff]
          %v8275 = vld [vmem:[#allocation9 + $0xb8] sm:$0xff]
          %v8276 = vld [vmem:[#allocation9 + $0xc0] sm:$0xff]
          %v8277 = vld [vmem:[#allocation9 + $0xc8] sm:$0xff]
          %v8278 = vld [vmem:[#allocation9 + $0xd0] sm:$0xff]
          %v8279 = vld [vmem:[#allocation9 + $0xd8] sm:$0xff]
          %v8280 = vld [vmem:[#allocation9 + $0xe0] sm:$0xff]
          %v8281 = vld [vmem:[#allocation9 + $0xe8] sm:$0xff]
          %v8282 = vld [vmem:[#allocation9 + $0xf0] sm:$0xff]
          %v8283 = vld [vmem:[#allocation9 + $0xf8] sm:$0xff]
          %v8284 = vld [vmem:[#allocation9 + $0x100] sm:$0xff]
          %v8285 = vld [vmem:[#allocation9 + $0x108] sm:$0xff]
          %v8286 = vld [vmem:[#allocation9 + $0x110] sm:$0xff]
          %v8287 = vld [vmem:[#allocation9 + $0x118] sm:$0xff]
          %v8288 = vld [vmem:[#allocation9 + $0x120] sm:$0xff]
          %v8289 = vld [vmem:[#allocation9 + $0x128] sm:$0xff]
          %v8290 = vld [vmem:[#allocation9 + $0x130] sm:$0xff]
          %v8291 = vld [vmem:[#allocation9 + $0x138] sm:$0xff]
          %v8292 = vld [vmem:[#allocation9 + $0x140] sm:$0xff]
          %v8293 = vld [vmem:[#allocation9 + $0x148] sm:$0xff]
          %v8294 = vld [vmem:[#allocation9 + $0x150] sm:$0xff]
          %v8295 = vld [vmem:[#allocation9 + $0x158] sm:$0xff]
          %v8296 = vld [vmem:[#allocation9 + $0x160] sm:$0xff]
          %v8297 = vld [vmem:[#allocation9 + $0x168] sm:$0xff]
          %v8298 = vld [vmem:[#allocation9 + $0x170] sm:$0xff]
          %v8299 = vld [vmem:[#allocation9 + $0x178] sm:$0xff]
          %v8300 = vld [vmem:[#allocation9 + $0x180] sm:$0xff]
          %v8301 = vld [vmem:[#allocation9 + $0x188] sm:$0xff]
          %v8302 = vld [vmem:[#allocation9 + $0x190] sm:$0xff]
          %v8303 = vld [vmem:[#allocation9 + $0x198] sm:$0xff]
          %v8304 = vld [vmem:[#allocation9 + $0x1a0] sm:$0xff]
          %v8305 = vld [vmem:[#allocation9 + $0x1a8] sm:$0xff]
          %v8306 = vld [vmem:[#allocation9 + $0x1b0] sm:$0xff]
          %v8307 = vld [vmem:[#allocation9 + $0x1b8] sm:$0xff]
          %v8308 = vld [vmem:[#allocation9 + $0x1c0] sm:$0xff]
          %v8309 = vld [vmem:[#allocation9 + $0x1c8] sm:$0xff]
          %v8310 = vld [vmem:[#allocation9 + $0x1d0] sm:$0xff]
          %v8311 = vld [vmem:[#allocation9 + $0x1d8] sm:$0xff]
          %v8312 = vld [vmem:[#allocation9 + $0x1e0] sm:$0xff]
          %v8313 = vld [vmem:[#allocation9 + $0x1e8] sm:$0xff]
          %v8314 = vld [vmem:[#allocation9 + $0x1f0] sm:$0xff]
          %v8315 = vld [vmem:[#allocation9 + $0x1f8] sm:$0xff]
          %v8316 = vld [vmem:[#allocation11] sm:$0x3]
          %v8318 = vlaneseq
          %v8319 = vshrl.u32 %v8318, 7
          %v8320 = vsub.s32 0, %v8319
          %v8321 = vrot.slane %v8316, %v8320
          %v8322 = vlaneseq
          %v8323 = vshrl.u32 %v8322, 7
          %v8324 = vsub.s32 1, %v8323
          %v8325 = vrot.slane %v8316, %v8324
          %v8330 = vunpack.c.l.s4 1983009808
          %v8331 = vunpack.c.0.s8 %v8330
          %v8332 = vlaneseq
          %v8333 = vshrl.u32 %v8332, 7
          %v8334 = vsub.s32 %v8331, %v8333
          %v8335 = vrot.slane %v8251, %v8334
          %v8336 = vcombine.high %v8335, %v8335
          %8339 = vmatprep.subr.mxu0 %v8253
          %8340 = vmatpush1.msra.mxu0 %v8252
          %8341 = vmatprep.subr.mxu0 %v8255
          %8342 = vmatpush1.msra.mxu0 %v8254
          %8343 = vmatprep.subr.mxu0 %v8257
          %8344 = vmatpush1.msra.mxu0 %v8256
          %8345 = vmatprep.subr.mxu0 %v8259
          %8346 = vmatpush1.msra.mxu0 %v8258
          %8347 = vmatprep.subr.mxu0 %v8261
          %8348 = vmatpush1.msra.mxu0 %v8260
          %8349 = vmatprep.subr.mxu0 %v8263
          %8350 = vmatpush1.msra.mxu0 %v8262
          %8351 = vmatprep.subr.mxu0 %v8265
          %8352 = vmatpush1.msra.mxu0 %v8264
          %8353 = vmatprep.subr.mxu0 %v8267
          %8354 = vmatpush1.msra.mxu0 %v8266
          %8355 = vmatprep.subr.mxu0 %v8269
          %8356 = vmatpush1.msra.mxu0 %v8268
          %8357 = vmatprep.subr.mxu0 %v8271
          %8358 = vmatpush1.msra.mxu0 %v8270
          %8359 = vmatprep.subr.mxu0 %v8273
          %8360 = vmatpush1.msra.mxu0 %v8272
          %8361 = vmatprep.subr.mxu0 %v8275
          %8362 = vmatpush1.msra.mxu0 %v8274
          %8363 = vmatprep.subr.mxu0 %v8277
          %8364 = vmatpush1.msra.mxu0 %v8276
          %8365 = vmatprep.subr.mxu0 %v8279
          %8366 = vmatpush1.msra.mxu0 %v8278
          %8367 = vmatprep.subr.mxu0 %v8281
          %8368 = vmatpush1.msra.mxu0 %v8280
          %8369 = vmatprep.subr.mxu0 %v8283
          %8370 = vmatpush1.msra.mxu0 %v8282
          %8371 = vmatprep.subr.mxu0 %v8285
          %8372 = vmatpush1.msra.mxu0 %v8284
          %8373 = vmatprep.subr.mxu0 %v8287
          %8374 = vmatpush1.msra.mxu0 %v8286
          %8375 = vmatprep.subr.mxu0 %v8289
          %8376 = vmatpush1.msra.mxu0 %v8288
          %8377 = vmatprep.subr.mxu0 %v8291
          %8378 = vmatpush1.msra.mxu0 %v8290
          %8379 = vmatprep.subr.mxu0 %v8293
          %8380 = vmatpush1.msra.mxu0 %v8292
          %8381 = vmatprep.subr.mxu0 %v8295
          %8382 = vmatpush1.msra.mxu0 %v8294
          %8383 = vmatprep.subr.mxu0 %v8297
          %8384 = vmatpush1.msra.mxu0 %v8296
          %8385 = vmatprep.subr.mxu0 %v8299
          %8386 = vmatpush1.msra.mxu0 %v8298
          %8387 = vmatprep.subr.mxu0 %v8301
          %8388 = vmatpush1.msra.mxu0 %v8300
          %8389 = vmatprep.subr.mxu0 %v8303
          %8390 = vmatpush1.msra.mxu0 %v8302
          %8391 = vmatprep.subr.mxu0 %v8305
          %8392 = vmatpush1.msra.mxu0 %v8304
          %8393 = vmatprep.subr.mxu0 %v8307
          %8394 = vmatpush1.msra.mxu0 %v8306
          %8395 = vmatprep.subr.mxu0 %v8309
          %8396 = vmatpush1.msra.mxu0 %v8308
          %8397 = vmatprep.subr.mxu0 %v8311
          %8398 = vmatpush1.msra.mxu0 %v8310
          %8399 = vmatprep.subr.mxu0 %v8313
          %8400 = vmatpush1.msra.mxu0 %v8312
          %8401 = vmatprep.subr.mxu0 %v8315
          %8402 = vmatpush1.msra.mxu0 %v8314
          %8403 = vmatprep.mubr.f32.mxu0 %v8336
          %8404 = vmatmul.mubr.f32.gmra.mrb[0].mxu0 %v8335
          %v8405 = vpop.f32.mrb[0].mxu0
          %v8406 = vadd.f32 %v8321, %v8405
          %v8407 = vpop.f32.mrb[0].mxu0
          %v8408 = vadd.f32 %v8325, %v8407
          %8409 = vdwg.mxu0
          %v8410 = vmax.f32 %v8406, 0.0
          %v8411 = vmax.f32 %v8408, 0.0
          %v8412 = vld [vmem:[#allocation12] sm:$0xff]
          %v8413 = vld [vmem:[#allocation12 + $0x8] sm:$0xff]
          %v8414 = vld [vmem:[#allocation12 + $0x10] sm:$0xff]
          %v8415 = vld [vmem:[#allocation12 + $0x18] sm:$0xff]
          %v8416 = vld [vmem:[#allocation12 + $0x20] sm:$0xff]
          %v8417 = vld [vmem:[#allocation12 + $0x28] sm:$0xff]
          %v8418 = vld [vmem:[#allocation12 + $0x30] sm:$0xff]
          %v8419 = vld [vmem:[#allocation12 + $0x38] sm:$0xff]
          %v8420 = vld [vmem:[#allocation12 + $0x40] sm:$0xff]
          %v8421 = vld [vmem:[#allocation12 + $0x48] sm:$0xff]
          %v8422 = vld [vmem:[#allocation12 + $0x50] sm:$0xff]
          %v8423 = vld [vmem:[#allocation12 + $0x58] sm:$0xff]
          %v8424 = vld [vmem:[#allocation12 + $0x60] sm:$0xff]
          %v8425 = vld [vmem:[#allocation12 + $0x68] sm:$0xff]
          %v8426 = vld [vmem:[#allocation12 + $0x70] sm:$0xff]
          %v8427 = vld [vmem:[#allocation12 + $0x78] sm:$0xff]
          %v8428 = vld [vmem:[#allocation12 + $0x80] sm:$0xff]
          %v8429 = vld [vmem:[#allocation12 + $0x88] sm:$0xff]
          %v8430 = vld [vmem:[#allocation12 + $0x90] sm:$0xff]
          %v8431 = vld [vmem:[#allocation12 + $0x98] sm:$0xff]
          %v8432 = vld [vmem:[#allocation12 + $0xa0] sm:$0xff]
          %v8433 = vld [vmem:[#allocation12 + $0xa8] sm:$0xff]
          %v8434 = vld [vmem:[#allocation12 + $0xb0] sm:$0xff]
          %v8435 = vld [vmem:[#allocation12 + $0xb8] sm:$0xff]
          %v8436 = vld [vmem:[#allocation12 + $0xc0] sm:$0xff]
          %v8437 = vld [vmem:[#allocation12 + $0xc8] sm:$0xff]
          %v8438 = vld [vmem:[#allocation12 + $0xd0] sm:$0xff]
          %v8439 = vld [vmem:[#allocation12 + $0xd8] sm:$0xff]
          %v8440 = vld [vmem:[#allocation12 + $0xe0] sm:$0xff]
          %v8441 = vld [vmem:[#allocation12 + $0xe8] sm:$0xff]
          %v8442 = vld [vmem:[#allocation12 + $0xf0] sm:$0xff]
          %v8443 = vld [vmem:[#allocation12 + $0xf8] sm:$0xff]
          %v8444 = vld [vmem:[#allocation14] sm:$0x1]
          %v8446 = vlaneseq
          %v8447 = vshrl.u32 %v8446, 7
          %v8448 = vsub.s32 0, %v8447
          %v8449 = vrot.slane %v8444, %v8448
          %8451 = vmatprep.subr.mxu0 0.0
          %8452 = vmatpush1.msra.mxu0 %v8412
          %8453 = vmatprep.subr.mxu0 0.0
          %8454 = vmatpush1.msra.mxu0 %v8413
          %8455 = vmatprep.subr.mxu0 0.0
          %8456 = vmatpush1.msra.mxu0 %v8414
          %8457 = vmatprep.subr.mxu0 0.0
          %8458 = vmatpush1.msra.mxu0 %v8415
          %8459 = vmatprep.subr.mxu0 0.0
          %8460 = vmatpush1.msra.mxu0 %v8416
          %8461 = vmatprep.subr.mxu0 0.0
          %8462 = vmatpush1.msra.mxu0 %v8417
          %8463 = vmatprep.subr.mxu0 0.0
          %8464 = vmatpush1.msra.mxu0 %v8418
          %8465 = vmatprep.subr.mxu0 0.0
          %8466 = vmatpush1.msra.mxu0 %v8419
          %8467 = vmatprep.subr.mxu0 0.0
          %8468 = vmatpush1.msra.mxu0 %v8420
          %8469 = vmatprep.subr.mxu0 0.0
          %8470 = vmatpush1.msra.mxu0 %v8421
          %8471 = vmatprep.subr.mxu0 0.0
          %8472 = vmatpush1.msra.mxu0 %v8422
          %8473 = vmatprep.subr.mxu0 0.0
          %8474 = vmatpush1.msra.mxu0 %v8423
          %8475 = vmatprep.subr.mxu0 0.0
          %8476 = vmatpush1.msra.mxu0 %v8424
          %8477 = vmatprep.subr.mxu0 0.0
          %8478 = vmatpush1.msra.mxu0 %v8425
          %8479 = vmatprep.subr.mxu0 0.0
          %8480 = vmatpush1.msra.mxu0 %v8426
          %8481 = vmatprep.subr.mxu0 0.0
          %8482 = vmatpush1.msra.mxu0 %v8427
          %8483 = vmatprep.subr.mxu0 0.0
          %8484 = vmatpush1.msra.mxu0 %v8428
          %8485 = vmatprep.subr.mxu0 0.0
          %8486 = vmatpush1.msra.mxu0 %v8429
          %8487 = vmatprep.subr.mxu0 0.0
          %8488 = vmatpush1.msra.mxu0 %v8430
          %8489 = vmatprep.subr.mxu0 0.0
          %8490 = vmatpush1.msra.mxu0 %v8431
          %8491 = vmatprep.subr.mxu0 0.0
          %8492 = vmatpush1.msra.mxu0 %v8432
          %8493 = vmatprep.subr.mxu0 0.0
          %8494 = vmatpush1.msra.mxu0 %v8433
          %8495 = vmatprep.subr.mxu0 0.0
          %8496 = vmatpush1.msra.mxu0 %v8434
          %8497 = vmatprep.subr.mxu0 0.0
          %8498 = vmatpush1.msra.mxu0 %v8435
          %8499 = vmatprep.subr.mxu0 0.0
          %8500 = vmatpush1.msra.mxu0 %v8436
          %8501 = vmatprep.subr.mxu0 0.0
          %8502 = vmatpush1.msra.mxu0 %v8437
          %8503 = vmatprep.subr.mxu0 0.0
          %8504 = vmatpush1.msra.mxu0 %v8438
          %8505 = vmatprep.subr.mxu0 0.0
          %8506 = vmatpush1.msra.mxu0 %v8439
          %8507 = vmatprep.subr.mxu0 0.0
          %8508 = vmatpush1.msra.mxu0 %v8440
          %8509 = vmatprep.subr.mxu0 0.0
          %8510 = vmatpush1.msra.mxu0 %v8441
          %8511 = vmatprep.subr.mxu0 0.0
          %8512 = vmatpush1.msra.mxu0 %v8442
          %8513 = vmatprep.subr.mxu0 0.0
          %8514 = vmatpush1.msra.mxu0 %v8443
          %8515 = vmatprep.mubr.f32.mxu0 %v8411
          %8516 = vmatmul.mubr.f32.gmra.mrb[0].mxu0 %v8410
          %v8517 = vpop.f32.mrb[0].mxu0
          %v8518 = vadd.f32 %v8449, %v8517
          %v8519 = vpop.f32.mrb[0].mxu0
          %8520 = vdwg.mxu0
          %v8521 = vmax.f32 %v8518, 0.0
          %v8522 = vld [vmem:[%s8] sm:$0xff]
          %v8523 = vld [vmem:[%s8 + $0x8] sm:$0xff]
          %v8524 = vld [vmem:[%s8 + $0x10] sm:$0xff]
          %v8525 = vld [vmem:[%s8 + $0x18] sm:$0xff]
          %v8526 = vld [vmem:[%s8 + $0x20] sm:$0xff]
          %v8527 = vld [vmem:[%s8 + $0x28] sm:$0xff]
          %v8528 = vld [vmem:[%s8 + $0x30] sm:$0xff]
          %v8529 = vld [vmem:[%s8 + $0x38] sm:$0xff]
          %v8530 = vld [vmem:[%s8 + $0x40] sm:$0xff]
          %v8531 = vld [vmem:[%s8 + $0x48] sm:$0xff]
          %v8532 = vld [vmem:[%s8 + $0x50] sm:$0xff]
          %v8533 = vld [vmem:[%s8 + $0x58] sm:$0xff]
          %v8534 = vld [vmem:[%s8 + $0x60] sm:$0xff]
          %v8535 = vld [vmem:[%s8 + $0x68] sm:$0xff]
          %v8536 = vld [vmem:[%s8 + $0x70] sm:$0xff]
          %v8537 = vld [vmem:[%s8 + $0x78] sm:$0xff]
          %v8538 = vld [vmem:[#allocation15] sm:$0x1]
          %v8540 = vlaneseq
          %v8541 = vshrl.u32 %v8540, 7
          %v8542 = vsub.s32 0, %v8541
          %v8543 = vrot.slane %v8538, %v8542
          %8545 = vmatprep.subr.mxu0 0.0
          %8546 = vmatpush1.msra.mxu0 %v8522
          %8547 = vmatprep.subr.mxu0 0.0
          %8548 = vmatpush1.msra.mxu0 %v8523
          %8549 = vmatprep.subr.mxu0 0.0
          %8550 = vmatpush1.msra.mxu0 %v8524
          %8551 = vmatprep.subr.mxu0 0.0
          %8552 = vmatpush1.msra.mxu0 %v8525
          %8553 = vmatprep.subr.mxu0 0.0
          %8554 = vmatpush1.msra.mxu0 %v8526
          %8555 = vmatprep.subr.mxu0 0.0
          %8556 = vmatpush1.msra.mxu0 %v8527
          %8557 = vmatprep.subr.mxu0 0.0
          %8558 = vmatpush1.msra.mxu0 %v8528
          %8559 = vmatprep.subr.mxu0 0.0
          %8560 = vmatpush1.msra.mxu0 %v8529
          %8561 = vmatprep.subr.mxu0 0.0
          %8562 = vmatpush1.msra.mxu0 %v8530
          %8563 = vmatprep.subr.mxu0 0.0
          %8564 = vmatpush1.msra.mxu0 %v8531
          %8565 = vmatprep.subr.mxu0 0.0
          %8566 = vmatpush1.msra.mxu0 %v8532
          %8567 = vmatprep.subr.mxu0 0.0
          %8568 = vmatpush1.msra.mxu0 %v8533
          %8569 = vmatprep.subr.mxu0 0.0
          %8570 = vmatpush1.msra.mxu0 %v8534
          %8571 = vmatprep.subr.mxu0 0.0
          %8572 = vmatpush1.msra.mxu0 %v8535
          %8573 = vmatprep.subr.mxu0 0.0
          %8574 = vmatpush1.msra.mxu0 %v8536
          %8575 = vmatprep.subr.mxu0 0.0
          %8576 = vmatpush1.msra.mxu0 %v8537
          %8577 = vmatprep.subr.mxu0 0.0
          %8578 = vmatpush1.msra.mxu0 0.0
          %8579 = vmatprep.subr.mxu0 0.0
          %8580 = vmatpush1.msra.mxu0 0.0
          %8581 = vmatprep.subr.mxu0 0.0
          %8582 = vmatpush1.msra.mxu0 0.0
          %8583 = vmatprep.subr.mxu0 0.0
          %8584 = vmatpush1.msra.mxu0 0.0
          %8585 = vmatprep.subr.mxu0 0.0
          %8586 = vmatpush1.msra.mxu0 0.0
          %8587 = vmatprep.subr.mxu0 0.0
          %8588 = vmatpush1.msra.mxu0 0.0
          %8589 = vmatprep.subr.mxu0 0.0
          %8590 = vmatpush1.msra.mxu0 0.0
          %8591 = vmatprep.subr.mxu0 0.0
          %8592 = vmatpush1.msra.mxu0 0.0
          %8593 = vmatprep.subr.mxu0 0.0
          %8594 = vmatpush1.msra.mxu0 0.0
          %8595 = vmatprep.subr.mxu0 0.0
          %8596 = vmatpush1.msra.mxu0 0.0
          %8597 = vmatprep.subr.mxu0 0.0
          %8598 = vmatpush1.msra.mxu0 0.0
          %8599 = vmatprep.subr.mxu0 0.0
          %8600 = vmatpush1.msra.mxu0 0.0
          %8601 = vmatprep.subr.mxu0 0.0
          %8602 = vmatpush1.msra.mxu0 0.0
          %8603 = vmatprep.subr.mxu0 0.0
          %8604 = vmatpush1.msra.mxu0 0.0
          %8605 = vmatprep.subr.mxu0 0.0
          %8606 = vmatpush1.msra.mxu0 0.0
          %8607 = vmatprep.subr.mxu0 0.0
          %8608 = vmatpush1.msra.mxu0 0.0
          %8609 = vmatprep.mubr.f32.mxu0 0.0
          %8610 = vmatmul.mubr.f32.gmra.mrb[0].mxu0 %v8521
          %v8611 = vpop.f32.mrb[0].mxu0
          %v8612 = vadd.f32 %v8543, %v8611
          %v8613 = vpop.f32.mrb[0].mxu0
          %8614 = vdwg.mxu0
          %v8615 = vld [vmem:[%s10] sm:$0xff]
          %v8616 = vld [vmem:[%s10 + $0x8] sm:$0xff]
          %v8617 = vld [vmem:[%s10 + $0x10] sm:$0xff]
          %v8618 = vld [vmem:[%s10 + $0x18] sm:$0xff]
          %v8619 = vld [vmem:[#allocation3] sm:$0x1]
          %v8621 = vlaneseq
          %v8622 = vshrl.u32 %v8621, 7
          %v8623 = vsub.s32 0, %v8622
          %v8624 = vrot.slane %v8619, %v8623
          %vm8626 = vcmask 261120
          %v8628 = vsel %vm8626, %v8612, 0
          %8630 = vmatprep.subr.mxu0 0.0
          %8631 = vmatpush1.msra.mxu0 %v8615
          %8632 = vmatprep.subr.mxu0 0.0
          %8633 = vmatpush1.msra.mxu0 %v8616
          %8634 = vmatprep.subr.mxu0 0.0
          %8635 = vmatpush1.msra.mxu0 %v8617
          %8636 = vmatprep.subr.mxu0 0.0
          %8637 = vmatpush1.msra.mxu0 %v8618
          %8638 = vmatprep.subr.mxu0 0.0
          %8639 = vmatpush1.msra.mxu0 0.0
          %8640 = vmatprep.subr.mxu0 0.0
          %8641 = vmatpush1.msra.mxu0 0.0
          %8642 = vmatprep.subr.mxu0 0.0
          %8643 = vmatpush1.msra.mxu0 0.0
          %8644 = vmatprep.subr.mxu0 0.0
          %8645 = vmatpush1.msra.mxu0 0.0
          %8646 = vmatprep.subr.mxu0 0.0
          %8647 = vmatpush1.msra.mxu0 0.0
          %8648 = vmatprep.subr.mxu0 0.0
          %8649 = vmatpush1.msra.mxu0 0.0
          %8650 = vmatprep.subr.mxu0 0.0
          %8651 = vmatpush1.msra.mxu0 0.0
          %8652 = vmatprep.subr.mxu0 0.0
          %8653 = vmatpush1.msra.mxu0 0.0
          %8654 = vmatprep.subr.mxu0 0.0
          %8655 = vmatpush1.msra.mxu0 0.0
          %8656 = vmatprep.subr.mxu0 0.0
          %8657 = vmatpush1.msra.mxu0 0.0
          %8658 = vmatprep.subr.mxu0 0.0
          %8659 = vmatpush1.msra.mxu0 0.0
          %8660 = vmatprep.subr.mxu0 0.0
          %8661 = vmatpush1.msra.mxu0 0.0
          %8662 = vmatprep.subr.mxu0 0.0
          %8663 = vmatpush1.msra.mxu0 0.0
          %8664 = vmatprep.subr.mxu0 0.0
          %8665 = vmatpush1.msra.mxu0 0.0
          %8666 = vmatprep.subr.mxu0 0.0
          %8667 = vmatpush1.msra.mxu0 0.0
          %8668 = vmatprep.subr.mxu0 0.0
          %8669 = vmatpush1.msra.mxu0 0.0
          %8670 = vmatprep.subr.mxu0 0.0
          %8671 = vmatpush1.msra.mxu0 0.0
          %8672 = vmatprep.subr.mxu0 0.0
          %8673 = vmatpush1.msra.mxu0 0.0
          %8674 = vmatprep.subr.mxu0 0.0
          %8675 = vmatpush1.msra.mxu0 0.0
          %8676 = vmatprep.subr.mxu0 0.0
          %8677 = vmatpush1.msra.mxu0 0.0
          %8678 = vmatprep.subr.mxu0 0.0
          %8679 = vmatpush1.msra.mxu0 0.0
          %8680 = vmatprep.subr.mxu0 0.0
          %8681 = vmatpush1.msra.mxu0 0.0
          %8682 = vmatprep.subr.mxu0 0.0
          %8683 = vmatpush1.msra.mxu0 0.0
          %8684 = vmatprep.subr.mxu0 0.0
          %8685 = vmatpush1.msra.mxu0 0.0
          %8686 = vmatprep.subr.mxu0 0.0
          %8687 = vmatpush1.msra.mxu0 0.0
          %8688 = vmatprep.subr.mxu0 0.0
          %8689 = vmatpush1.msra.mxu0 0.0
          %8690 = vmatprep.subr.mxu0 0.0
          %8691 = vmatpush1.msra.mxu0 0.0
          %8692 = vmatprep.subr.mxu0 0.0
          %8693 = vmatpush1.msra.mxu0 0.0
          %8694 = vmatprep.mubr.f32.mxu0 0.0
          %8695 = vmatmul.mubr.f32.gmra.mrb[0].mxu0 %v8628
          %v8696 = vpop.f32.mrb[0].mxu0
          %v8697 = vadd.f32 %v8624, %v8696
          %v8698 = vpop.f32.mrb[0].mxu0
          %8699 = vdwg.mxu0
          %v8700 = vand.u32 2147483647, %v8697
          %v8701 = vsub.f32 0.0, %v8700
          %v8702 = vmul.f32 %v8701, 1.442695
          %v8703 = vpow.pop %v8702
          %vm8704 = vcmp.ge.f32.partialorder %v8697, 0.0
          %v8705 = vadd.f32 %v8703, 1.0
          %v8706 = vrcp.pop %v8705
          %v8707 = vmul.f32 1.0, %v8706
          %v8708 = vmul.f32 %v8703, %v8706
          %v8709 = vsel %vm8704, %v8707, %v8708
          %vm8710 = vcmask 1024
          %8711 = vst.msk [vmem:[%s12] sm:$0x3] %vm8710, %v8709
        $region108: #{mlp_forward.1} parent=67 // pred_fallthru
          _
        // Predicated region
        $region109: #{mlp_forward.1} parent=67 // pred_check
          %p8712 = pneg %p307
        $region110: #{mlp_forward.1} parent=67 // pred_check_branch
          %8714 = sbr.rel (%p8712) target = $region112
        $region111: #{mlp_forward.1} parent=67 // pred_region
          _
        $region112: #{mlp_forward.1} parent=67 // pred_fallthru
          _
        // Predicated region
        $region113: #{mlp_forward.1} parent=67 // pred_check
          %p8715 = pneg %p307
        $region114: #{mlp_forward.1} parent=67 // pred_check_branch
          %8717 = sbr.rel (%p8715) target = $region116
        $region115: #{mlp_forward.1} parent=67 // pred_region
          _
        $region116: #{mlp_forward.1} parent=67 // pred_fallthru
          _
      $region68: #{mlp_forward.1} parent=5 // pred_fallthru
        _
      %p8718 = scmp.le.s32.totalorder 2, %s27
      // Predicated region
      $region117: #{mlp_forward.1} parent=5 // pred_check
        %p8719 = pneg %p8718
      $region118: #{mlp_forward.1} parent=5 // pred_check_branch
        %8721 = sbr.rel (%p8719) target = $region120
      $region119: #{mlp_forward.1} parent=5 // pred_region
        %s8722 = ssub.s32 %s27, 2
      $region120: #{mlp_forward.1} parent=5 // pred_fallthru
        _
    $region6: #{mlp_forward.1} parent=1 // loop_footer
      %s31 = sadd.s32 1, %s27
    $region7: #{mlp_forward.1} parent=1 // loop_footer_branch
      %26 = sbr.rel target = $region3
    $region8: #{mlp_forward.1} parent=1 // loop_exit
      _
    %8723 = vsyncpa [#allocation5], 1
    %s8724 = scalar_lea.sflag [#allocation5], 1
    %8725 = vsyncpa %s8724, 1
    %8726 = vsyncpa [#allocation7], 1
    %8727 = vsyncpa [#allocation10], 1
    %8728 = vsyncpa [#allocation13], 1
    %8729 = vsyncpa [#allocation16], 1

</llo_original>
